<compile_context>
chip_gen: v5e
topology: v5e:2x2
jax: 0.10.0
libtpu: 0.0.40
codegen_flags: <defaults>
</compile_context>

<pallas_src>
import functools
import math

import jax
import jax.numpy as jnp
from jax.experimental import pallas as pl
from jax.experimental.pallas import tpu as pltpu

# ---- model hyper-parameters (small, consistent with the module) -------------
D_MODEL = 32
N_HEADS = 4
D_HEAD = D_MODEL // N_HEADS
D_FF = 64
N_LAYERS = 2
BATCH = 2
SEQ = 8
EPS = 1e-5
NEG_INF = -1e9

PARAM_ORDER = (
    "w_sa_qkv", "b_sa_qkv", "w_sa_o", "b_sa_o", "ln1_g", "ln1_b",
    "w_ca_q", "b_ca_q", "w_ca_kv", "b_ca_kv", "w_ca_o", "b_ca_o", "ln2_g", "ln2_b",
    "w_ff1", "b_ff1", "w_ff2", "b_ff2", "ln3_g", "ln3_b",
)


# =========================== in-kernel helpers ================================

def _layernorm(x, g, b):
    """Post-LN: LayerNorm(x) * gamma + beta (x already holds residual + sublayer)."""
    mu = jnp.mean(x, axis=-1, keepdims=True)
    xc = x - mu
    var = jnp.mean(xc * xc, axis=-1, keepdims=True)
    return xc * jax.lax.rsqrt(var + EPS) * g + b


def _multi_head_attention(qf, kf, vf, wo, bo, mask, batch, seq_q, seq_kv):
    """qf: [B*Sq, D] (already scaled by 1/sqrt(Dh)), kf/vf: [B*Skv, D] -> [B*Sq, D].

    All heads handled at once via a merged (B*H) batch axis: two batched
    contractions + one softmax + one K=32 output-projection matmul.
    """
    h, dh = N_HEADS, D_HEAD
    # [B*S, D] -> [B*H, S, Dh]  (head moves to the batch axis; Dh stays on lanes)
    q = qf.reshape(batch, seq_q, h, dh).transpose(0, 2, 1, 3).reshape(batch * h, seq_q, dh)
    k = kf.reshape(batch, seq_kv, h, dh).transpose(0, 2, 1, 3).reshape(batch * h, seq_kv, dh)
    v = vf.reshape(batch, seq_kv, h, dh).transpose(0, 2, 1, 3).reshape(batch * h, seq_kv, dh)

    # scores: contract head dims directly (no k.T); single batched contraction.
    s = jnp.einsum("bqd,bkd->bqk", q, k, preferred_element_type=jnp.float32)
    if mask is not None:
        s = s + mask                          # [Sq, Skv] broadcasts over (B*H)
    s = s - jnp.max(s, axis=-1, keepdims=True)
    p = jnp.exp(s)
    p = p * pl.reciprocal(jnp.sum(p, axis=-1, keepdims=True), approx=True)

    o = jnp.einsum("bqk,bkd->bqd", p, v, preferred_element_type=jnp.float32)
    # [B*H, Sq, Dh] -> [B*Sq, H*Dh] (head-major columns == concat(heads) layout)
    o2 = o.reshape(batch, h, seq_q, dh).transpose(0, 2, 1, 3).reshape(batch * seq_q, h * dh)
    # one K=32 output-projection matmul instead of 4 folded K=8 matmuls
    return jnp.dot(o2, wo, preferred_element_type=jnp.float32) + bo


# =========================== fused decoder kernel =============================

def _decoder_kernel(mem_ref, x_ref, mask_ref,
                    w_sa_qkv, b_sa_qkv, w_sa_o, b_sa_o, ln1_g, ln1_b,
                    w_ca_q, b_ca_q, w_ca_kv, b_ca_kv, w_ca_o, b_ca_o, ln2_g, ln2_b,
                    w_ff1, b_ff1, w_ff2, b_ff2, ln3_g, ln3_b,
                    o_ref, *, bb, seq_q, seq_kv, n_layers):
    d = D_MODEL
    mem = mem_ref[...].reshape(bb * seq_kv, d)   # encoder memory for this batch block
    x = x_ref[...].reshape(bb * seq_q, d)        # decoder activation (VMEM-resident)
    mask = mask_ref[...]                         # [Sq, Sq] additive causal mask

    for l in range(n_layers):
        # 1) masked self-attention (fused QKV: one [D, 3D] matmul; Q pre-scaled)
        qkv = jnp.dot(x, w_sa_qkv[l], preferred_element_type=jnp.float32) + b_sa_qkv[l]
        sa = _multi_head_attention(qkv[:, 0:d], qkv[:, d:2 * d], qkv[:, 2 * d:3 * d],
                                   w_sa_o[l], b_sa_o[l], mask, bb, seq_q, seq_q)
        x = _layernorm(x + sa, ln1_g[l], ln1_b[l])

        # 2) cross-attention over encoder memory (mask add skipped at compile time)
        qc = jnp.dot(x, w_ca_q[l], preferred_element_type=jnp.float32) + b_ca_q[l]
        kv = jnp.dot(mem, w_ca_kv[l], preferred_element_type=jnp.float32) + b_ca_kv[l]
        ca = _multi_head_attention(qc, kv[:, 0:d], kv[:, d:2 * d],
                                   w_ca_o[l], b_ca_o[l], None, bb, seq_q, seq_kv)
        x = _layernorm(x + ca, ln2_g[l], ln2_b[l])

        # 3) position-wise FFN
        hdn = jnp.maximum(
            jnp.dot(x, w_ff1[l], preferred_element_type=jnp.float32) + b_ff1[l], 0.0)
        f = jnp.dot(hdn, w_ff2[l], preferred_element_type=jnp.float32) + b_ff2[l]
        x = _layernorm(x + f, ln3_g[l], ln3_b[l])

    o_ref[...] = x.reshape(bb, seq_q, d).astype(o_ref.dtype)


# ================================ wrapper =====================================

def _num_batch_blocks(batch):
    """Shard the batch across TensorCores only on v7x (2 TCs/chip)."""
    try:
        kind = jax.devices()[0].device_kind.lower()
    except Exception:
        kind = ""
    if ("v7" in kind or "tpu7" in kind) and batch % 2 == 0:
        return 2
    return 1


def decoder_forward(params, input_encode, output_embedded, mask):
    b, sq, d = output_embedded.shape
    skv = input_encode.shape[1]
    n_layers = params["w_sa_qkv"].shape[0]

    # Fold the 1/sqrt(D_HEAD) softmax scale into the Q projections once, outside
    # the kernel (parameter-construction fold, not input pre-scaling).
    scale = jnp.float32(1.0 / math.sqrt(D_HEAD))
    p = dict(params)
    p["w_sa_qkv"] = params["w_sa_qkv"].at[:, :, :d].multiply(scale)
    p["b_sa_qkv"] = params["b_sa_qkv"].at[:, :, :d].multiply(scale)
    p["w_ca_q"] = params["w_ca_q"] * scale
    p["b_ca_q"] = params["b_ca_q"] * scale

    n_blocks = _num_batch_blocks(b)
    bb = b // n_blocks

    args = (input_encode.astype(jnp.float32),
            output_embedded.astype(jnp.float32),
            mask.astype(jnp.float32),
            *[p[k] for k in PARAM_ORDER])

    def batch_spec(shape):                      # shard leading (batch) axis
        return pl.BlockSpec((bb,) + tuple(shape[1:]), lambda i: (i,) + (0,) * (len(shape) - 1))

    def full_spec(shape):                       # replicate across grid steps
        zeros = (0,) * len(shape)
        return pl.BlockSpec(tuple(shape), lambda i, z=zeros: z)

    in_specs = ([batch_spec(input_encode.shape), batch_spec(output_embedded.shape),
                 full_spec(mask.shape)]
                + [full_spec(p[k].shape) for k in PARAM_ORDER])

    out = pl.pallas_call(
        functools.partial(_decoder_kernel, bb=bb, seq_q=sq, seq_kv=skv,
                          n_layers=n_layers),
        out_shape=jax.ShapeDtypeStruct((b, sq, d), jnp.float32),
        grid=(n_blocks,),
        in_specs=in_specs,
        out_specs=pl.BlockSpec((bb, sq, d), lambda i: (i, 0, 0)),
        compiler_params=pltpu.CompilerParams(dimension_semantics=("parallel",)),
    )(*args)
    return out


# ============================ deterministic init ==============================

def init_decoder_params(key):
    k_sa, k_ca, k_f1, k_f2 = jax.random.split(key, 4)

    def lin(k, din, dout):
        return jax.random.normal(k, (din, dout), jnp.float32) / math.sqrt(din)

    ks = jax.random.split(k_sa, 4)
    kc = jax.random.split(k_ca, 4)
    layer = dict(
        # self-attention: fused QKV (columns: Q heads | K heads | V heads, head-major)
        w_sa_qkv=jnp.concatenate([lin(ks[0], D_MODEL, D_MODEL),
                                  lin(ks[1], D_MODEL, D_MODEL),
                                  lin(ks[2], D_MODEL, D_MODEL)], axis=1),
        b_sa_qkv=jnp.zeros((1, 3 * D_MODEL), jnp.float32),
        w_sa_o=lin(ks[3], D_MODEL, D_MODEL),
        b_sa_o=jnp.zeros((1, D_MODEL), jnp.float32),
        ln1_g=jnp.ones((1, D_MODEL), jnp.float32),
        ln1_b=jnp.zeros((1, D_MODEL), jnp.float32),
        # cross-attention: Q separate (decoder input), fused KV (encoder memory)
        w_ca_q=lin(kc[0], D_MODEL, D_MODEL),
        b_ca_q=jnp.zeros((1, D_MODEL), jnp.float32),
        w_ca_kv=jnp.concatenate([lin(kc[1], D_MODEL, D_MODEL),
                                 lin(kc[2], D_MODEL, D_MODEL)], axis=1),
        b_ca_kv=jnp.zeros((1, 2 * D_MODEL), jnp.float32),
        w_ca_o=lin(kc[3], D_MODEL, D_MODEL),
        b_ca_o=jnp.zeros((1, D_MODEL), jnp.float32),
        ln2_g=jnp.ones((1, D_MODEL), jnp.float32),
        ln2_b=jnp.zeros((1, D_MODEL), jnp.float32),
        # FFN
        w_ff1=lin(k_f1, D_MODEL, D_FF),
        b_ff1=jnp.zeros((1, D_FF), jnp.float32),
        w_ff2=lin(k_f2, D_FF, D_MODEL),
        b_ff2=jnp.zeros((1, D_MODEL), jnp.float32),
        ln3_g=jnp.ones((1, D_MODEL), jnp.float32),
        ln3_b=jnp.zeros((1, D_MODEL), jnp.float32),
    )
    # copy.deepcopy semantics: every layer starts from the *same* weights.
    return {k: jnp.stack([v] * N_LAYERS, axis=0) for k, v in layer.items()}


# ========================= pure-JAX reference (check) =========================

def decoder_reference(params, input_encode, output_embedded, mask):
    # NOTE: reference assumes seq_q == seq_kv (true in the test below).
    b, s, d = output_embedded.shape
    mem = input_encode.reshape(b * s, d)
    x = output_embedded.reshape(b * s, d)

    def ln(y, g, bb):
        mu = jnp.mean(y, -1, keepdims=True)
        yc = y - mu
        var = jnp.mean(yc * yc, -1, keepdims=True)
        return yc / jnp.sqrt(var + EPS) * g + bb

    def mha(q, k, v, wo, bo, m):
        outs = []
        for h in range(N_HEADS):
            sl = slice(h * D_HEAD, (h + 1) * D_HEAD)
            qh = q[:, sl].reshape(b, s, D_HEAD)
            kh = k[:, sl].reshape(b, s, D_HEAD)
            vh = v[:, sl].reshape(b, s, D_HEAD)
            sc = jnp.einsum("bqd,bkd->bqk", qh, kh) / math.sqrt(D_HEAD)
            if m is not None:
                sc = sc + m
            p = jax.nn.softmax(sc, axis=-1)
            outs.append(jnp.einsum("bqk,bkd->bqd", p, vh).reshape(b * s, D_HEAD))
        return jnp.concatenate(outs, -1) @ wo + bo

    for l in range(N_LAYERS):
        qkv = x @ params["w_sa_qkv"][l] + params["b_sa_qkv"][l]
        sa = mha(qkv[:, :d], qkv[:, d:2 * d], qkv[:, 2 * d:],
                 params["w_sa_o"][l], params["b_sa_o"][l], mask)
        x = ln(x + sa, params["ln1_g"][l], params["ln1_b"][l])
        qc = x @ params["w_ca_q"][l] + params["b_ca_q"][l]
        kvc = mem @ params["w_ca_kv"][l] + params["b_ca_kv"][l]
        ca = mha(qc, kvc[:, :d], kvc[:, d:],
                 params["w_ca_o"][l], params["b_ca_o"][l], None)
        x = ln(x + ca, params["ln2_g"][l], params["ln2_b"][l])
        hdn = jnp.maximum(x @ params["w_ff1"][l] + params["b_ff1"][l], 0.0)
        f = hdn @ params["w_ff2"][l] + params["b_ff2"][l]
        x = ln(x + f, params["ln3_g"][l], params["ln3_b"][l])
    return x.reshape(b, s, d)


# ==================================== main ====================================

if __name__ == "__main__":
    key = jax.random.PRNGKey(0)
    k_p, k_enc, k_emb = jax.random.split(key, 3)

    params = init_decoder_params(k_p)
    input_encode = jax.random.normal(k_enc, (BATCH, SEQ, D_MODEL), jnp.float32)
    output_embedded = jax.random.normal(k_emb, (BATCH, SEQ, D_MODEL), jnp.float32)
    # causal (look-ahead) mask, additive form: 0 where allowed, -1e9 where masked
    causal = jnp.tril(jnp.ones((SEQ, SEQ), jnp.float32))
    mask = jnp.where(causal > 0, 0.0, NEG_INF).astype(jnp.float32)

    out = decoder_forward(params, input_encode, output_embedded, mask)
    out = jax.block_until_ready(out)
    assert out.shape == (BATCH, SEQ, D_MODEL)
    assert bool(jnp.all(jnp.isfinite(out)))

    # silent correctness check against a pure-JAX reference (loose tolerance covers
    # approx reciprocal + MXU precision differences)
    ref = jax.block_until_ready(decoder_reference(params, input_encode,
                                                  output_embedded, mask))
    assert bool(jnp.allclose(out, ref, atol=5e-2, rtol=5e-2))

    print("KERNEL_OK")
</pallas_src>

<mosaic_0001>
module attributes {stable_mosaic.version = 11 : i64} {
  func.func @_decoder_kernel(%arg0: i32, %arg1: memref<2x8x32xf32, #tpu.memory_space<vmem>>, %arg2: memref<2x8x32xf32, #tpu.memory_space<vmem>>, %arg3: memref<8x8xf32, #tpu.memory_space<vmem>>, %arg4: memref<2x32x96xf32, #tpu.memory_space<vmem>>, %arg5: memref<2x1x96xf32, #tpu.memory_space<vmem>>, %arg6: memref<2x32x32xf32, #tpu.memory_space<vmem>>, %arg7: memref<2x1x32xf32, #tpu.memory_space<vmem>>, %arg8: memref<2x1x32xf32, #tpu.memory_space<vmem>>, %arg9: memref<2x1x32xf32, #tpu.memory_space<vmem>>, %arg10: memref<2x32x32xf32, #tpu.memory_space<vmem>>, %arg11: memref<2x1x32xf32, #tpu.memory_space<vmem>>, %arg12: memref<2x32x64xf32, #tpu.memory_space<vmem>>, %arg13: memref<2x1x64xf32, #tpu.memory_space<vmem>>, %arg14: memref<2x32x32xf32, #tpu.memory_space<vmem>>, %arg15: memref<2x1x32xf32, #tpu.memory_space<vmem>>, %arg16: memref<2x1x32xf32, #tpu.memory_space<vmem>>, %arg17: memref<2x1x32xf32, #tpu.memory_space<vmem>>, %arg18: memref<2x32x64xf32, #tpu.memory_space<vmem>>, %arg19: memref<2x1x64xf32, #tpu.memory_space<vmem>>, %arg20: memref<2x64x32xf32, #tpu.memory_space<vmem>>, %arg21: memref<2x1x32xf32, #tpu.memory_space<vmem>>, %arg22: memref<2x1x32xf32, #tpu.memory_space<vmem>>, %arg23: memref<2x1x32xf32, #tpu.memory_space<vmem>>, %arg24: memref<2x8x32xf32, #tpu.memory_space<vmem>>) attributes {dimension_semantics = [#tpu.dimension_semantics<parallel>], iteration_bounds = array<i64: 1>, scalar_prefetch = 0 : i64, scratch_operands = 0 : i64, tpu.core_type = #tpu.core_type<tc>, window_params = [{transform_indices = @transform_0, window_bounds = array<i64: 2, 8, 32>}, {transform_indices = @transform_1, window_bounds = array<i64: 2, 8, 32>}, {pipeline_mode = #tpu.pipeline_mode<synchronous>, transform_indices = @transform_2, window_bounds = array<i64: 8, 8>}, {pipeline_mode = #tpu.pipeline_mode<synchronous>, transform_indices = @transform_3, window_bounds = array<i64: 2, 32, 96>}, {pipeline_mode = #tpu.pipeline_mode<synchronous>, transform_indices = @transform_4, window_bounds = array<i64: 2, 1, 96>}, {pipeline_mode = #tpu.pipeline_mode<synchronous>, transform_indices = @transform_5, window_bounds = array<i64: 2, 32, 32>}, {pipeline_mode = #tpu.pipeline_mode<synchronous>, transform_indices = @transform_6, window_bounds = array<i64: 2, 1, 32>}, {pipeline_mode = #tpu.pipeline_mode<synchronous>, transform_indices = @transform_7, window_bounds = array<i64: 2, 1, 32>}, {pipeline_mode = #tpu.pipeline_mode<synchronous>, transform_indices = @transform_8, window_bounds = array<i64: 2, 1, 32>}, {pipeline_mode = #tpu.pipeline_mode<synchronous>, transform_indices = @transform_9, window_bounds = array<i64: 2, 32, 32>}, {pipeline_mode = #tpu.pipeline_mode<synchronous>, transform_indices = @transform_10, window_bounds = array<i64: 2, 1, 32>}, {pipeline_mode = #tpu.pipeline_mode<synchronous>, transform_indices = @transform_11, window_bounds = array<i64: 2, 32, 64>}, {pipeline_mode = #tpu.pipeline_mode<synchronous>, transform_indices = @transform_12, window_bounds = array<i64: 2, 1, 64>}, {pipeline_mode = #tpu.pipeline_mode<synchronous>, transform_indices = @transform_13, window_bounds = array<i64: 2, 32, 32>}, {pipeline_mode = #tpu.pipeline_mode<synchronous>, transform_indices = @transform_14, window_bounds = array<i64: 2, 1, 32>}, {pipeline_mode = #tpu.pipeline_mode<synchronous>, transform_indices = @transform_15, window_bounds = array<i64: 2, 1, 32>}, {pipeline_mode = #tpu.pipeline_mode<synchronous>, transform_indices = @transform_16, window_bounds = array<i64: 2, 1, 32>}, {pipeline_mode = #tpu.pipeline_mode<synchronous>, transform_indices = @transform_17, window_bounds = array<i64: 2, 32, 64>}, {pipeline_mode = #tpu.pipeline_mode<synchronous>, transform_indices = @transform_18, window_bounds = array<i64: 2, 1, 64>}, {pipeline_mode = #tpu.pipeline_mode<synchronous>, transform_indices = @transform_19, window_bounds = array<i64: 2, 64, 32>}, {pipeline_mode = #tpu.pipeline_mode<synchronous>, transform_indices = @transform_20, window_bounds = array<i64: 2, 1, 32>}, {pipeline_mode = #tpu.pipeline_mode<synchronous>, transform_indices = @transform_21, window_bounds = array<i64: 2, 1, 32>}, {pipeline_mode = #tpu.pipeline_mode<synchronous>, transform_indices = @transform_22, window_bounds = array<i64: 2, 1, 32>}, {transform_indices = @transform_23, window_bounds = array<i64: 2, 8, 32>}]} {
    %c0 = arith.constant 0 : index
    %c0_0 = arith.constant 0 : index
    %c0_1 = arith.constant 0 : index
    %0 = vector.load %arg1[%c0, %c0_0, %c0_1] : memref<2x8x32xf32, #tpu.memory_space<vmem>>, vector<2x8x32xf32>
    %1 = vector.shape_cast %0 : vector<2x8x32xf32> to vector<16x32xf32>
    %c0_2 = arith.constant 0 : index
    %c0_3 = arith.constant 0 : index
    %c0_4 = arith.constant 0 : index
    %2 = vector.load %arg2[%c0_2, %c0_3, %c0_4] : memref<2x8x32xf32, #tpu.memory_space<vmem>>, vector<2x8x32xf32>
    %3 = vector.shape_cast %2 : vector<2x8x32xf32> to vector<16x32xf32>
    %c0_5 = arith.constant 0 : index
    %c0_6 = arith.constant 0 : index
    %4 = vector.load %arg3[%c0_5, %c0_6] : memref<8x8xf32, #tpu.memory_space<vmem>>, vector<8x8xf32>
    %c0_7 = arith.constant 0 : index
    %c0_8 = arith.constant 0 : index
    %c0_9 = arith.constant 0 : index
    %5 = vector.load %arg4[%c0_7, %c0_8, %c0_9] : memref<2x32x96xf32, #tpu.memory_space<vmem>>, vector<1x32x96xf32>
    %6 = vector.shape_cast %5 : vector<1x32x96xf32> to vector<32x96xf32>
    %cst = arith.constant dense<0.000000e+00> : vector<16x96xf32>
    %7 = tpu.matmul %3, %6, %cst {dimension_numbers = #tpu.dot_dimension_numbers<[1], [0], [0], [1], [0, 0, 1, 1], [], []>} : vector<16x32xf32>, vector<32x96xf32>, vector<16x96xf32> -> vector<16x96xf32>
    %c0_10 = arith.constant 0 : index
    %c0_11 = arith.constant 0 : index
    %c0_12 = arith.constant 0 : index
    %8 = vector.load %arg5[%c0_10, %c0_11, %c0_12] : memref<2x1x96xf32, #tpu.memory_space<vmem>>, vector<1x1x96xf32>
    %9 = vector.shape_cast %8 : vector<1x1x96xf32> to vector<1x96xf32>
    %10 = vector.broadcast %9 : vector<1x96xf32> to vector<16x96xf32>
    %11 = arith.addf %7, %10 : vector<16x96xf32>
    %12 = vector.extract_strided_slice %11 {offsets = [0, 0], sizes = [16, 32], strides = [1, 1]} : vector<16x96xf32> to vector<16x32xf32>
    %13 = vector.extract_strided_slice %11 {offsets = [0, 32], sizes = [16, 32], strides = [1, 1]} : vector<16x96xf32> to vector<16x32xf32>
    %14 = vector.extract_strided_slice %11 {offsets = [0, 64], sizes = [16, 32], strides = [1, 1]} : vector<16x96xf32> to vector<16x32xf32>
    %c0_13 = arith.constant 0 : index
    %c0_14 = arith.constant 0 : index
    %c0_15 = arith.constant 0 : index
    %15 = vector.load %arg6[%c0_13, %c0_14, %c0_15] : memref<2x32x32xf32, #tpu.memory_space<vmem>>, vector<1x32x32xf32>
    %16 = vector.shape_cast %15 : vector<1x32x32xf32> to vector<32x32xf32>
    %c0_16 = arith.constant 0 : index
    %c0_17 = arith.constant 0 : index
    %c0_18 = arith.constant 0 : index
    %17 = vector.load %arg7[%c0_16, %c0_17, %c0_18] : memref<2x1x32xf32, #tpu.memory_space<vmem>>, vector<1x1x32xf32>
    %18 = vector.shape_cast %17 : vector<1x1x32xf32> to vector<1x32xf32>
    %19 = vector.shape_cast %12 : vector<16x32xf32> to vector<2x8x4x8xf32>
    %20 = tpu.transpose %19, [0, 2, 1, 3] : vector<2x8x4x8xf32> -> vector<2x4x8x8xf32>
    %21 = vector.shape_cast %20 : vector<2x4x8x8xf32> to vector<8x8x8xf32>
    %22 = vector.shape_cast %13 : vector<16x32xf32> to vector<2x8x4x8xf32>
    %23 = tpu.transpose %22, [0, 2, 1, 3] : vector<2x8x4x8xf32> -> vector<2x4x8x8xf32>
    %24 = vector.shape_cast %23 : vector<2x4x8x8xf32> to vector<8x8x8xf32>
    %25 = vector.shape_cast %14 : vector<16x32xf32> to vector<2x8x4x8xf32>
    %26 = tpu.transpose %25, [0, 2, 1, 3] : vector<2x8x4x8xf32> -> vector<2x4x8x8xf32>
    %27 = vector.shape_cast %26 : vector<2x4x8x8xf32> to vector<8x8x8xf32>
    "tpu.trace_start"() <{level = 10 : i32, message = "bqd,bkd->bqk"}> : () -> ()
    %cst_19 = arith.constant dense<0.000000e+00> : vector<8x8x8xf32>
    %28 = tpu.matmul %21, %24, %cst_19 {dimension_numbers = #tpu.dot_dimension_numbers<[2], [2], [1], [1], [0, 0, 0, 1, 1, 1], [0], [0]>} : vector<8x8x8xf32>, vector<8x8x8xf32>, vector<8x8x8xf32> -> vector<8x8x8xf32>
    "tpu.trace_stop"() : () -> ()
    %29 = vector.shape_cast %4 : vector<8x8xf32> to vector<1x8x8xf32>
    %30 = vector.broadcast %29 : vector<1x8x8xf32> to vector<8x8x8xf32>
    %31 = arith.addf %28, %30 : vector<8x8x8xf32>
    %cst_20 = arith.constant dense<0xFF800000> : vector<8x8xf32>
    %32 = vector.multi_reduction <maximumf>, %31, %cst_20 [2] : vector<8x8x8xf32> to vector<8x8xf32>
    %33 = vector.shape_cast %32 : vector<8x8xf32> to vector<8x8x1xf32>
    %34 = vector.broadcast %33 : vector<8x8x1xf32> to vector<8x8x8xf32>
    %35 = arith.subf %31, %34 : vector<8x8x8xf32>
    %36 = math.exp %35 : vector<8x8x8xf32>
    %cst_21 = arith.constant dense<0.000000e+00> : vector<8x8xf32>
    %37 = vector.multi_reduction <add>, %36, %cst_21 [2] : vector<8x8x8xf32> to vector<8x8xf32>
    %38 = vector.shape_cast %37 : vector<8x8xf32> to vector<8x8x1xf32>
    %39 = tpu.reciprocal %38 {approx = true} : vector<8x8x1xf32> -> vector<8x8x1xf32>
    %40 = vector.broadcast %39 : vector<8x8x1xf32> to vector<8x8x8xf32>
    %41 = arith.mulf %36, %40 : vector<8x8x8xf32>
    "tpu.trace_start"() <{level = 10 : i32, message = "bqk,bkd->bqd"}> : () -> ()
    %cst_22 = arith.constant dense<0.000000e+00> : vector<8x8x8xf32>
    %42 = tpu.matmul %41, %27, %cst_22 {dimension_numbers = #tpu.dot_dimension_numbers<[2], [1], [1], [2], [0, 0, 0, 1, 1, 2], [0], [0]>} : vector<8x8x8xf32>, vector<8x8x8xf32>, vector<8x8x8xf32> -> vector<8x8x8xf32>
    "tpu.trace_stop"() : () -> ()
    %43 = vector.shape_cast %42 : vector<8x8x8xf32> to vector<2x4x8x8xf32>
    %44 = tpu.transpose %43, [0, 2, 1, 3] : vector<2x4x8x8xf32> -> vector<2x8x4x8xf32>
    %45 = vector.shape_cast %44 : vector<2x8x4x8xf32> to vector<16x32xf32>
    %cst_23 = arith.constant dense<0.000000e+00> : vector<16x32xf32>
    %46 = tpu.matmul %45, %16, %cst_23 {dimension_numbers = #tpu.dot_dimension_numbers<[1], [0], [0], [1], [0, 0, 1, 1], [], []>} : vector<16x32xf32>, vector<32x32xf32>, vector<16x32xf32> -> vector<16x32xf32>
    %47 = vector.broadcast %18 : vector<1x32xf32> to vector<16x32xf32>
    %48 = arith.addf %46, %47 : vector<16x32xf32>
    %49 = arith.addf %3, %48 : vector<16x32xf32>
    %c0_24 = arith.constant 0 : index
    %c0_25 = arith.constant 0 : index
    %c0_26 = arith.constant 0 : index
    %50 = vector.load %arg8[%c0_24, %c0_25, %c0_26] : memref<2x1x32xf32, #tpu.memory_space<vmem>>, vector<1x1x32xf32>
    %51 = vector.shape_cast %50 : vector<1x1x32xf32> to vector<1x32xf32>
    %c0_27 = arith.constant 0 : index
    %c0_28 = arith.constant 0 : index
    %c0_29 = arith.constant 0 : index
    %52 = vector.load %arg9[%c0_27, %c0_28, %c0_29] : memref<2x1x32xf32, #tpu.memory_space<vmem>>, vector<1x1x32xf32>
    %53 = vector.shape_cast %52 : vector<1x1x32xf32> to vector<1x32xf32>
    %cst_30 = arith.constant dense<0.000000e+00> : vector<16xf32>
    %54 = vector.multi_reduction <add>, %49, %cst_30 [1] : vector<16x32xf32> to vector<16xf32>
    %55 = vector.shape_cast %54 : vector<16xf32> to vector<16x1xf32>
    %cst_31 = arith.constant 3.200000e+01 : f32
    %56 = vector.broadcast %cst_31 : f32 to vector<16x1xf32>
    %57 = arith.divf %55, %56 : vector<16x1xf32>
    %58 = vector.broadcast %57 : vector<16x1xf32> to vector<16x32xf32>
    %59 = arith.subf %49, %58 : vector<16x32xf32>
    %60 = arith.mulf %59, %59 : vector<16x32xf32>
    %cst_32 = arith.constant dense<0.000000e+00> : vector<16xf32>
    %61 = vector.multi_reduction <add>, %60, %cst_32 [1] : vector<16x32xf32> to vector<16xf32>
    %62 = vector.shape_cast %61 : vector<16xf32> to vector<16x1xf32>
    %cst_33 = arith.constant 3.200000e+01 : f32
    %63 = vector.broadcast %cst_33 : f32 to vector<16x1xf32>
    %64 = arith.divf %62, %63 : vector<16x1xf32>
    %cst_34 = arith.constant 9.99999974E-6 : f32
    %65 = vector.broadcast %cst_34 : f32 to vector<16x1xf32>
    %66 = arith.addf %64, %65 : vector<16x1xf32>
    %67 = math.rsqrt %66 : vector<16x1xf32>
    %68 = vector.broadcast %67 : vector<16x1xf32> to vector<16x32xf32>
    %69 = arith.mulf %59, %68 : vector<16x32xf32>
    %70 = vector.broadcast %51 : vector<1x32xf32> to vector<16x32xf32>
    %71 = arith.mulf %69, %70 : vector<16x32xf32>
    %72 = vector.broadcast %53 : vector<1x32xf32> to vector<16x32xf32>
    %73 = arith.addf %71, %72 : vector<16x32xf32>
    %c0_35 = arith.constant 0 : index
    %c0_36 = arith.constant 0 : index
    %c0_37 = arith.constant 0 : index
    %74 = vector.load %arg10[%c0_35, %c0_36, %c0_37] : memref<2x32x32xf32, #tpu.memory_space<vmem>>, vector<1x32x32xf32>
    %75 = vector.shape_cast %74 : vector<1x32x32xf32> to vector<32x32xf32>
    %cst_38 = arith.constant dense<0.000000e+00> : vector<16x32xf32>
    %76 = tpu.matmul %73, %75, %cst_38 {dimension_numbers = #tpu.dot_dimension_numbers<[1], [0], [0], [1], [0, 0, 1, 1], [], []>} : vector<16x32xf32>, vector<32x32xf32>, vector<16x32xf32> -> vector<16x32xf32>
    %c0_39 = arith.constant 0 : index
    %c0_40 = arith.constant 0 : index
    %c0_41 = arith.constant 0 : index
    %77 = vector.load %arg11[%c0_39, %c0_40, %c0_41] : memref<2x1x32xf32, #tpu.memory_space<vmem>>, vector<1x1x32xf32>
    %78 = vector.shape_cast %77 : vector<1x1x32xf32> to vector<1x32xf32>
    %79 = vector.broadcast %78 : vector<1x32xf32> to vector<16x32xf32>
    %80 = arith.addf %76, %79 : vector<16x32xf32>
    %c0_42 = arith.constant 0 : index
    %c0_43 = arith.constant 0 : index
    %c0_44 = arith.constant 0 : index
    %81 = vector.load %arg12[%c0_42, %c0_43, %c0_44] : memref<2x32x64xf32, #tpu.memory_space<vmem>>, vector<1x32x64xf32>
    %82 = vector.shape_cast %81 : vector<1x32x64xf32> to vector<32x64xf32>
    %cst_45 = arith.constant dense<0.000000e+00> : vector<16x64xf32>
    %83 = tpu.matmul %1, %82, %cst_45 {dimension_numbers = #tpu.dot_dimension_numbers<[1], [0], [0], [1], [0, 0, 1, 1], [], []>} : vector<16x32xf32>, vector<32x64xf32>, vector<16x64xf32> -> vector<16x64xf32>
    %c0_46 = arith.constant 0 : index
    %c0_47 = arith.constant 0 : index
    %c0_48 = arith.constant 0 : index
    %84 = vector.load %arg13[%c0_46, %c0_47, %c0_48] : memref<2x1x64xf32, #tpu.memory_space<vmem>>, vector<1x1x64xf32>
    %85 = vector.shape_cast %84 : vector<1x1x64xf32> to vector<1x64xf32>
    %86 = vector.broadcast %85 : vector<1x64xf32> to vector<16x64xf32>
    %87 = arith.addf %83, %86 : vector<16x64xf32>
    %88 = vector.extract_strided_slice %87 {offsets = [0, 0], sizes = [16, 32], strides = [1, 1]} : vector<16x64xf32> to vector<16x32xf32>
    %89 = vector.extract_strided_slice %87 {offsets = [0, 32], sizes = [16, 32], strides = [1, 1]} : vector<16x64xf32> to vector<16x32xf32>
    %c0_49 = arith.constant 0 : index
    %c0_50 = arith.constant 0 : index
    %c0_51 = arith.constant 0 : index
    %90 = vector.load %arg14[%c0_49, %c0_50, %c0_51] : memref<2x32x32xf32, #tpu.memory_space<vmem>>, vector<1x32x32xf32>
    %91 = vector.shape_cast %90 : vector<1x32x32xf32> to vector<32x32xf32>
    %c0_52 = arith.constant 0 : index
    %c0_53 = arith.constant 0 : index
    %c0_54 = arith.constant 0 : index
    %92 = vector.load %arg15[%c0_52, %c0_53, %c0_54] : memref<2x1x32xf32, #tpu.memory_space<vmem>>, vector<1x1x32xf32>
    %93 = vector.shape_cast %92 : vector<1x1x32xf32> to vector<1x32xf32>
    %94 = vector.shape_cast %80 : vector<16x32xf32> to vector<2x8x4x8xf32>
    %95 = tpu.transpose %94, [0, 2, 1, 3] : vector<2x8x4x8xf32> -> vector<2x4x8x8xf32>
    %96 = vector.shape_cast %95 : vector<2x4x8x8xf32> to vector<8x8x8xf32>
    %97 = vector.shape_cast %88 : vector<16x32xf32> to vector<2x8x4x8xf32>
    %98 = tpu.transpose %97, [0, 2, 1, 3] : vector<2x8x4x8xf32> -> vector<2x4x8x8xf32>
    %99 = vector.shape_cast %98 : vector<2x4x8x8xf32> to vector<8x8x8xf32>
    %100 = vector.shape_cast %89 : vector<16x32xf32> to vector<2x8x4x8xf32>
    %101 = tpu.transpose %100, [0, 2, 1, 3] : vector<2x8x4x8xf32> -> vector<2x4x8x8xf32>
    %102 = vector.shape_cast %101 : vector<2x4x8x8xf32> to vector<8x8x8xf32>
    "tpu.trace_start"() <{level = 10 : i32, message = "bqd,bkd->bqk"}> : () -> ()
    %cst_55 = arith.constant dense<0.000000e+00> : vector<8x8x8xf32>
    %103 = tpu.matmul %96, %99, %cst_55 {dimension_numbers = #tpu.dot_dimension_numbers<[2], [2], [1], [1], [0, 0, 0, 1, 1, 1], [0], [0]>} : vector<8x8x8xf32>, vector<8x8x8xf32>, vector<8x8x8xf32> -> vector<8x8x8xf32>
    "tpu.trace_stop"() : () -> ()
    %cst_56 = arith.constant dense<0xFF800000> : vector<8x8xf32>
    %104 = vector.multi_reduction <maximumf>, %103, %cst_56 [2] : vector<8x8x8xf32> to vector<8x8xf32>
    %105 = vector.shape_cast %104 : vector<8x8xf32> to vector<8x8x1xf32>
    %106 = vector.broadcast %105 : vector<8x8x1xf32> to vector<8x8x8xf32>
    %107 = arith.subf %103, %106 : vector<8x8x8xf32>
    %108 = math.exp %107 : vector<8x8x8xf32>
    %cst_57 = arith.constant dense<0.000000e+00> : vector<8x8xf32>
    %109 = vector.multi_reduction <add>, %108, %cst_57 [2] : vector<8x8x8xf32> to vector<8x8xf32>
    %110 = vector.shape_cast %109 : vector<8x8xf32> to vector<8x8x1xf32>
    %111 = tpu.reciprocal %110 {approx = true} : vector<8x8x1xf32> -> vector<8x8x1xf32>
    %112 = vector.broadcast %111 : vector<8x8x1xf32> to vector<8x8x8xf32>
    %113 = arith.mulf %108, %112 : vector<8x8x8xf32>
    "tpu.trace_start"() <{level = 10 : i32, message = "bqk,bkd->bqd"}> : () -> ()
    %cst_58 = arith.constant dense<0.000000e+00> : vector<8x8x8xf32>
    %114 = tpu.matmul %113, %102, %cst_58 {dimension_numbers = #tpu.dot_dimension_numbers<[2], [1], [1], [2], [0, 0, 0, 1, 1, 2], [0], [0]>} : vector<8x8x8xf32>, vector<8x8x8xf32>, vector<8x8x8xf32> -> vector<8x8x8xf32>
    "tpu.trace_stop"() : () -> ()
    %115 = vector.shape_cast %114 : vector<8x8x8xf32> to vector<2x4x8x8xf32>
    %116 = tpu.transpose %115, [0, 2, 1, 3] : vector<2x4x8x8xf32> -> vector<2x8x4x8xf32>
    %117 = vector.shape_cast %116 : vector<2x8x4x8xf32> to vector<16x32xf32>
    %cst_59 = arith.constant dense<0.000000e+00> : vector<16x32xf32>
    %118 = tpu.matmul %117, %91, %cst_59 {dimension_numbers = #tpu.dot_dimension_numbers<[1], [0], [0], [1], [0, 0, 1, 1], [], []>} : vector<16x32xf32>, vector<32x32xf32>, vector<16x32xf32> -> vector<16x32xf32>
    %119 = vector.broadcast %93 : vector<1x32xf32> to vector<16x32xf32>
    %120 = arith.addf %118, %119 : vector<16x32xf32>
    %121 = arith.addf %73, %120 : vector<16x32xf32>
    %c0_60 = arith.constant 0 : index
    %c0_61 = arith.constant 0 : index
    %c0_62 = arith.constant 0 : index
    %122 = vector.load %arg16[%c0_60, %c0_61, %c0_62] : memref<2x1x32xf32, #tpu.memory_space<vmem>>, vector<1x1x32xf32>
    %123 = vector.shape_cast %122 : vector<1x1x32xf32> to vector<1x32xf32>
    %c0_63 = arith.constant 0 : index
    %c0_64 = arith.constant 0 : index
    %c0_65 = arith.constant 0 : index
    %124 = vector.load %arg17[%c0_63, %c0_64, %c0_65] : memref<2x1x32xf32, #tpu.memory_space<vmem>>, vector<1x1x32xf32>
    %125 = vector.shape_cast %124 : vector<1x1x32xf32> to vector<1x32xf32>
    %cst_66 = arith.constant dense<0.000000e+00> : vector<16xf32>
    %126 = vector.multi_reduction <add>, %121, %cst_66 [1] : vector<16x32xf32> to vector<16xf32>
    %127 = vector.shape_cast %126 : vector<16xf32> to vector<16x1xf32>
    %cst_67 = arith.constant 3.200000e+01 : f32
    %128 = vector.broadcast %cst_67 : f32 to vector<16x1xf32>
    %129 = arith.divf %127, %128 : vector<16x1xf32>
    %130 = vector.broadcast %129 : vector<16x1xf32> to vector<16x32xf32>
    %131 = arith.subf %121, %130 : vector<16x32xf32>
    %132 = arith.mulf %131, %131 : vector<16x32xf32>
    %cst_68 = arith.constant dense<0.000000e+00> : vector<16xf32>
    %133 = vector.multi_reduction <add>, %132, %cst_68 [1] : vector<16x32xf32> to vector<16xf32>
    %134 = vector.shape_cast %133 : vector<16xf32> to vector<16x1xf32>
    %cst_69 = arith.constant 3.200000e+01 : f32
    %135 = vector.broadcast %cst_69 : f32 to vector<16x1xf32>
    %136 = arith.divf %134, %135 : vector<16x1xf32>
    %cst_70 = arith.constant 9.99999974E-6 : f32
    %137 = vector.broadcast %cst_70 : f32 to vector<16x1xf32>
    %138 = arith.addf %136, %137 : vector<16x1xf32>
    %139 = math.rsqrt %138 : vector<16x1xf32>
    %140 = vector.broadcast %139 : vector<16x1xf32> to vector<16x32xf32>
    %141 = arith.mulf %131, %140 : vector<16x32xf32>
    %142 = vector.broadcast %123 : vector<1x32xf32> to vector<16x32xf32>
    %143 = arith.mulf %141, %142 : vector<16x32xf32>
    %144 = vector.broadcast %125 : vector<1x32xf32> to vector<16x32xf32>
    %145 = arith.addf %143, %144 : vector<16x32xf32>
    %c0_71 = arith.constant 0 : index
    %c0_72 = arith.constant 0 : index
    %c0_73 = arith.constant 0 : index
    %146 = vector.load %arg18[%c0_71, %c0_72, %c0_73] : memref<2x32x64xf32, #tpu.memory_space<vmem>>, vector<1x32x64xf32>
    %147 = vector.shape_cast %146 : vector<1x32x64xf32> to vector<32x64xf32>
    %cst_74 = arith.constant dense<0.000000e+00> : vector<16x64xf32>
    %148 = tpu.matmul %145, %147, %cst_74 {dimension_numbers = #tpu.dot_dimension_numbers<[1], [0], [0], [1], [0, 0, 1, 1], [], []>} : vector<16x32xf32>, vector<32x64xf32>, vector<16x64xf32> -> vector<16x64xf32>
    %c0_75 = arith.constant 0 : index
    %c0_76 = arith.constant 0 : index
    %c0_77 = arith.constant 0 : index
    %149 = vector.load %arg19[%c0_75, %c0_76, %c0_77] : memref<2x1x64xf32, #tpu.memory_space<vmem>>, vector<1x1x64xf32>
    %150 = vector.shape_cast %149 : vector<1x1x64xf32> to vector<1x64xf32>
    %151 = vector.broadcast %150 : vector<1x64xf32> to vector<16x64xf32>
    %152 = arith.addf %148, %151 : vector<16x64xf32>
    %cst_78 = arith.constant 0.000000e+00 : f32
    %153 = vector.broadcast %cst_78 : f32 to vector<16x64xf32>
    %154 = arith.maximumf %152, %153 : vector<16x64xf32>
    %c0_79 = arith.constant 0 : index
    %c0_80 = arith.constant 0 : index
    %c0_81 = arith.constant 0 : index
    %155 = vector.load %arg20[%c0_79, %c0_80, %c0_81] : memref<2x64x32xf32, #tpu.memory_space<vmem>>, vector<1x64x32xf32>
    %156 = vector.shape_cast %155 : vector<1x64x32xf32> to vector<64x32xf32>
    %cst_82 = arith.constant dense<0.000000e+00> : vector<16x32xf32>
    %157 = tpu.matmul %154, %156, %cst_82 {dimension_numbers = #tpu.dot_dimension_numbers<[1], [0], [0], [1], [0, 0, 1, 1], [], []>} : vector<16x64xf32>, vector<64x32xf32>, vector<16x32xf32> -> vector<16x32xf32>
    %c0_83 = arith.constant 0 : index
    %c0_84 = arith.constant 0 : index
    %c0_85 = arith.constant 0 : index
    %158 = vector.load %arg21[%c0_83, %c0_84, %c0_85] : memref<2x1x32xf32, #tpu.memory_space<vmem>>, vector<1x1x32xf32>
    %159 = vector.shape_cast %158 : vector<1x1x32xf32> to vector<1x32xf32>
    %160 = vector.broadcast %159 : vector<1x32xf32> to vector<16x32xf32>
    %161 = arith.addf %157, %160 : vector<16x32xf32>
    %162 = arith.addf %145, %161 : vector<16x32xf32>
    %c0_86 = arith.constant 0 : index
    %c0_87 = arith.constant 0 : index
    %c0_88 = arith.constant 0 : index
    %163 = vector.load %arg22[%c0_86, %c0_87, %c0_88] : memref<2x1x32xf32, #tpu.memory_space<vmem>>, vector<1x1x32xf32>
    %164 = vector.shape_cast %163 : vector<1x1x32xf32> to vector<1x32xf32>
    %c0_89 = arith.constant 0 : index
    %c0_90 = arith.constant 0 : index
    %c0_91 = arith.constant 0 : index
    %165 = vector.load %arg23[%c0_89, %c0_90, %c0_91] : memref<2x1x32xf32, #tpu.memory_space<vmem>>, vector<1x1x32xf32>
    %166 = vector.shape_cast %165 : vector<1x1x32xf32> to vector<1x32xf32>
    %cst_92 = arith.constant dense<0.000000e+00> : vector<16xf32>
    %167 = vector.multi_reduction <add>, %162, %cst_92 [1] : vector<16x32xf32> to vector<16xf32>
    %168 = vector.shape_cast %167 : vector<16xf32> to vector<16x1xf32>
    %cst_93 = arith.constant 3.200000e+01 : f32
    %169 = vector.broadcast %cst_93 : f32 to vector<16x1xf32>
    %170 = arith.divf %168, %169 : vector<16x1xf32>
    %171 = vector.broadcast %170 : vector<16x1xf32> to vector<16x32xf32>
    %172 = arith.subf %162, %171 : vector<16x32xf32>
    %173 = arith.mulf %172, %172 : vector<16x32xf32>
    %cst_94 = arith.constant dense<0.000000e+00> : vector<16xf32>
    %174 = vector.multi_reduction <add>, %173, %cst_94 [1] : vector<16x32xf32> to vector<16xf32>
    %175 = vector.shape_cast %174 : vector<16xf32> to vector<16x1xf32>
    %cst_95 = arith.constant 3.200000e+01 : f32
    %176 = vector.broadcast %cst_95 : f32 to vector<16x1xf32>
    %177 = arith.divf %175, %176 : vector<16x1xf32>
    %cst_96 = arith.constant 9.99999974E-6 : f32
    %178 = vector.broadcast %cst_96 : f32 to vector<16x1xf32>
    %179 = arith.addf %177, %178 : vector<16x1xf32>
    %180 = math.rsqrt %179 : vector<16x1xf32>
    %181 = vector.broadcast %180 : vector<16x1xf32> to vector<16x32xf32>
    %182 = arith.mulf %172, %181 : vector<16x32xf32>
    %183 = vector.broadcast %164 : vector<1x32xf32> to vector<16x32xf32>
    %184 = arith.mulf %182, %183 : vector<16x32xf32>
    %185 = vector.broadcast %166 : vector<1x32xf32> to vector<16x32xf32>
    %186 = arith.addf %184, %185 : vector<16x32xf32>
    %c1 = arith.constant 1 : index
    %c0_97 = arith.constant 0 : index
    %c0_98 = arith.constant 0 : index
    %187 = vector.load %arg4[%c1, %c0_97, %c0_98] : memref<2x32x96xf32, #tpu.memory_space<vmem>>, vector<1x32x96xf32>
    %188 = vector.shape_cast %187 : vector<1x32x96xf32> to vector<32x96xf32>
    %cst_99 = arith.constant dense<0.000000e+00> : vector<16x96xf32>
    %189 = tpu.matmul %186, %188, %cst_99 {dimension_numbers = #tpu.dot_dimension_numbers<[1], [0], [0], [1], [0, 0, 1, 1], [], []>} : vector<16x32xf32>, vector<32x96xf32>, vector<16x96xf32> -> vector<16x96xf32>
    %c1_100 = arith.constant 1 : index
    %c0_101 = arith.constant 0 : index
    %c0_102 = arith.constant 0 : index
    %190 = vector.load %arg5[%c1_100, %c0_101, %c0_102] : memref<2x1x96xf32, #tpu.memory_space<vmem>>, vector<1x1x96xf32>
    %191 = vector.shape_cast %190 : vector<1x1x96xf32> to vector<1x96xf32>
    %192 = vector.broadcast %191 : vector<1x96xf32> to vector<16x96xf32>
    %193 = arith.addf %189, %192 : vector<16x96xf32>
    %194 = vector.extract_strided_slice %193 {offsets = [0, 0], sizes = [16, 32], strides = [1, 1]} : vector<16x96xf32> to vector<16x32xf32>
    %195 = vector.extract_strided_slice %193 {offsets = [0, 32], sizes = [16, 32], strides = [1, 1]} : vector<16x96xf32> to vector<16x32xf32>
    %196 = vector.extract_strided_slice %193 {offsets = [0, 64], sizes = [16, 32], strides = [1, 1]} : vector<16x96xf32> to vector<16x32xf32>
    %c1_103 = arith.constant 1 : index
    %c0_104 = arith.constant 0 : index
    %c0_105 = arith.constant 0 : index
    %197 = vector.load %arg6[%c1_103, %c0_104, %c0_105] : memref<2x32x32xf32, #tpu.memory_space<vmem>>, vector<1x32x32xf32>
    %198 = vector.shape_cast %197 : vector<1x32x32xf32> to vector<32x32xf32>
    %c1_106 = arith.constant 1 : index
    %c0_107 = arith.constant 0 : index
    %c0_108 = arith.constant 0 : index
    %199 = vector.load %arg7[%c1_106, %c0_107, %c0_108] : memref<2x1x32xf32, #tpu.memory_space<vmem>>, vector<1x1x32xf32>
    %200 = vector.shape_cast %199 : vector<1x1x32xf32> to vector<1x32xf32>
    %201 = vector.shape_cast %194 : vector<16x32xf32> to vector<2x8x4x8xf32>
    %202 = tpu.transpose %201, [0, 2, 1, 3] : vector<2x8x4x8xf32> -> vector<2x4x8x8xf32>
    %203 = vector.shape_cast %202 : vector<2x4x8x8xf32> to vector<8x8x8xf32>
    %204 = vector.shape_cast %195 : vector<16x32xf32> to vector<2x8x4x8xf32>
    %205 = tpu.transpose %204, [0, 2, 1, 3] : vector<2x8x4x8xf32> -> vector<2x4x8x8xf32>
    %206 = vector.shape_cast %205 : vector<2x4x8x8xf32> to vector<8x8x8xf32>
    %207 = vector.shape_cast %196 : vector<16x32xf32> to vector<2x8x4x8xf32>
    %208 = tpu.transpose %207, [0, 2, 1, 3] : vector<2x8x4x8xf32> -> vector<2x4x8x8xf32>
    %209 = vector.shape_cast %208 : vector<2x4x8x8xf32> to vector<8x8x8xf32>
    "tpu.trace_start"() <{level = 10 : i32, message = "bqd,bkd->bqk"}> : () -> ()
    %cst_109 = arith.constant dense<0.000000e+00> : vector<8x8x8xf32>
    %210 = tpu.matmul %203, %206, %cst_109 {dimension_numbers = #tpu.dot_dimension_numbers<[2], [2], [1], [1], [0, 0, 0, 1, 1, 1], [0], [0]>} : vector<8x8x8xf32>, vector<8x8x8xf32>, vector<8x8x8xf32> -> vector<8x8x8xf32>
    "tpu.trace_stop"() : () -> ()
    %211 = vector.shape_cast %4 : vector<8x8xf32> to vector<1x8x8xf32>
    %212 = vector.broadcast %211 : vector<1x8x8xf32> to vector<8x8x8xf32>
    %213 = arith.addf %210, %212 : vector<8x8x8xf32>
    %cst_110 = arith.constant dense<0xFF800000> : vector<8x8xf32>
    %214 = vector.multi_reduction <maximumf>, %213, %cst_110 [2] : vector<8x8x8xf32> to vector<8x8xf32>
    %215 = vector.shape_cast %214 : vector<8x8xf32> to vector<8x8x1xf32>
    %216 = vector.broadcast %215 : vector<8x8x1xf32> to vector<8x8x8xf32>
    %217 = arith.subf %213, %216 : vector<8x8x8xf32>
    %218 = math.exp %217 : vector<8x8x8xf32>
    %cst_111 = arith.constant dense<0.000000e+00> : vector<8x8xf32>
    %219 = vector.multi_reduction <add>, %218, %cst_111 [2] : vector<8x8x8xf32> to vector<8x8xf32>
    %220 = vector.shape_cast %219 : vector<8x8xf32> to vector<8x8x1xf32>
    %221 = tpu.reciprocal %220 {approx = true} : vector<8x8x1xf32> -> vector<8x8x1xf32>
    %222 = vector.broadcast %221 : vector<8x8x1xf32> to vector<8x8x8xf32>
    %223 = arith.mulf %218, %222 : vector<8x8x8xf32>
    "tpu.trace_start"() <{level = 10 : i32, message = "bqk,bkd->bqd"}> : () -> ()
    %cst_112 = arith.constant dense<0.000000e+00> : vector<8x8x8xf32>
    %224 = tpu.matmul %223, %209, %cst_112 {dimension_numbers = #tpu.dot_dimension_numbers<[2], [1], [1], [2], [0, 0, 0, 1, 1, 2], [0], [0]>} : vector<8x8x8xf32>, vector<8x8x8xf32>, vector<8x8x8xf32> -> vector<8x8x8xf32>
    "tpu.trace_stop"() : () -> ()
    %225 = vector.shape_cast %224 : vector<8x8x8xf32> to vector<2x4x8x8xf32>
    %226 = tpu.transpose %225, [0, 2, 1, 3] : vector<2x4x8x8xf32> -> vector<2x8x4x8xf32>
    %227 = vector.shape_cast %226 : vector<2x8x4x8xf32> to vector<16x32xf32>
    %cst_113 = arith.constant dense<0.000000e+00> : vector<16x32xf32>
    %228 = tpu.matmul %227, %198, %cst_113 {dimension_numbers = #tpu.dot_dimension_numbers<[1], [0], [0], [1], [0, 0, 1, 1], [], []>} : vector<16x32xf32>, vector<32x32xf32>, vector<16x32xf32> -> vector<16x32xf32>
    %229 = vector.broadcast %200 : vector<1x32xf32> to vector<16x32xf32>
    %230 = arith.addf %228, %229 : vector<16x32xf32>
    %231 = arith.addf %186, %230 : vector<16x32xf32>
    %c1_114 = arith.constant 1 : index
    %c0_115 = arith.constant 0 : index
    %c0_116 = arith.constant 0 : index
    %232 = vector.load %arg8[%c1_114, %c0_115, %c0_116] : memref<2x1x32xf32, #tpu.memory_space<vmem>>, vector<1x1x32xf32>
    %233 = vector.shape_cast %232 : vector<1x1x32xf32> to vector<1x32xf32>
    %c1_117 = arith.constant 1 : index
    %c0_118 = arith.constant 0 : index
    %c0_119 = arith.constant 0 : index
    %234 = vector.load %arg9[%c1_117, %c0_118, %c0_119] : memref<2x1x32xf32, #tpu.memory_space<vmem>>, vector<1x1x32xf32>
    %235 = vector.shape_cast %234 : vector<1x1x32xf32> to vector<1x32xf32>
    %cst_120 = arith.constant dense<0.000000e+00> : vector<16xf32>
    %236 = vector.multi_reduction <add>, %231, %cst_120 [1] : vector<16x32xf32> to vector<16xf32>
    %237 = vector.shape_cast %236 : vector<16xf32> to vector<16x1xf32>
    %cst_121 = arith.constant 3.200000e+01 : f32
    %238 = vector.broadcast %cst_121 : f32 to vector<16x1xf32>
    %239 = arith.divf %237, %238 : vector<16x1xf32>
    %240 = vector.broadcast %239 : vector<16x1xf32> to vector<16x32xf32>
    %241 = arith.subf %231, %240 : vector<16x32xf32>
    %242 = arith.mulf %241, %241 : vector<16x32xf32>
    %cst_122 = arith.constant dense<0.000000e+00> : vector<16xf32>
    %243 = vector.multi_reduction <add>, %242, %cst_122 [1] : vector<16x32xf32> to vector<16xf32>
    %244 = vector.shape_cast %243 : vector<16xf32> to vector<16x1xf32>
    %cst_123 = arith.constant 3.200000e+01 : f32
    %245 = vector.broadcast %cst_123 : f32 to vector<16x1xf32>
    %246 = arith.divf %244, %245 : vector<16x1xf32>
    %cst_124 = arith.constant 9.99999974E-6 : f32
    %247 = vector.broadcast %cst_124 : f32 to vector<16x1xf32>
    %248 = arith.addf %246, %247 : vector<16x1xf32>
    %249 = math.rsqrt %248 : vector<16x1xf32>
    %250 = vector.broadcast %249 : vector<16x1xf32> to vector<16x32xf32>
    %251 = arith.mulf %241, %250 : vector<16x32xf32>
    %252 = vector.broadcast %233 : vector<1x32xf32> to vector<16x32xf32>
    %253 = arith.mulf %251, %252 : vector<16x32xf32>
    %254 = vector.broadcast %235 : vector<1x32xf32> to vector<16x32xf32>
    %255 = arith.addf %253, %254 : vector<16x32xf32>
    %c1_125 = arith.constant 1 : index
    %c0_126 = arith.constant 0 : index
    %c0_127 = arith.constant 0 : index
    %256 = vector.load %arg10[%c1_125, %c0_126, %c0_127] : memref<2x32x32xf32, #tpu.memory_space<vmem>>, vector<1x32x32xf32>
    %257 = vector.shape_cast %256 : vector<1x32x32xf32> to vector<32x32xf32>
    %cst_128 = arith.constant dense<0.000000e+00> : vector<16x32xf32>
    %258 = tpu.matmul %255, %257, %cst_128 {dimension_numbers = #tpu.dot_dimension_numbers<[1], [0], [0], [1], [0, 0, 1, 1], [], []>} : vector<16x32xf32>, vector<32x32xf32>, vector<16x32xf32> -> vector<16x32xf32>
    %c1_129 = arith.constant 1 : index
    %c0_130 = arith.constant 0 : index
    %c0_131 = arith.constant 0 : index
    %259 = vector.load %arg11[%c1_129, %c0_130, %c0_131] : memref<2x1x32xf32, #tpu.memory_space<vmem>>, vector<1x1x32xf32>
    %260 = vector.shape_cast %259 : vector<1x1x32xf32> to vector<1x32xf32>
    %261 = vector.broadcast %260 : vector<1x32xf32> to vector<16x32xf32>
    %262 = arith.addf %258, %261 : vector<16x32xf32>
    %c1_132 = arith.constant 1 : index
    %c0_133 = arith.constant 0 : index
    %c0_134 = arith.constant 0 : index
    %263 = vector.load %arg12[%c1_132, %c0_133, %c0_134] : memref<2x32x64xf32, #tpu.memory_space<vmem>>, vector<1x32x64xf32>
    %264 = vector.shape_cast %263 : vector<1x32x64xf32> to vector<32x64xf32>
    %cst_135 = arith.constant dense<0.000000e+00> : vector<16x64xf32>
    %265 = tpu.matmul %1, %264, %cst_135 {dimension_numbers = #tpu.dot_dimension_numbers<[1], [0], [0], [1], [0, 0, 1, 1], [], []>} : vector<16x32xf32>, vector<32x64xf32>, vector<16x64xf32> -> vector<16x64xf32>
    %c1_136 = arith.constant 1 : index
    %c0_137 = arith.constant 0 : index
    %c0_138 = arith.constant 0 : index
    %266 = vector.load %arg13[%c1_136, %c0_137, %c0_138] : memref<2x1x64xf32, #tpu.memory_space<vmem>>, vector<1x1x64xf32>
    %267 = vector.shape_cast %266 : vector<1x1x64xf32> to vector<1x64xf32>
    %268 = vector.broadcast %267 : vector<1x64xf32> to vector<16x64xf32>
    %269 = arith.addf %265, %268 : vector<16x64xf32>
    %270 = vector.extract_strided_slice %269 {offsets = [0, 0], sizes = [16, 32], strides = [1, 1]} : vector<16x64xf32> to vector<16x32xf32>
    %271 = vector.extract_strided_slice %269 {offsets = [0, 32], sizes = [16, 32], strides = [1, 1]} : vector<16x64xf32> to vector<16x32xf32>
    %c1_139 = arith.constant 1 : index
    %c0_140 = arith.constant 0 : index
    %c0_141 = arith.constant 0 : index
    %272 = vector.load %arg14[%c1_139, %c0_140, %c0_141] : memref<2x32x32xf32, #tpu.memory_space<vmem>>, vector<1x32x32xf32>
    %273 = vector.shape_cast %272 : vector<1x32x32xf32> to vector<32x32xf32>
    %c1_142 = arith.constant 1 : index
    %c0_143 = arith.constant 0 : index
    %c0_144 = arith.constant 0 : index
    %274 = vector.load %arg15[%c1_142, %c0_143, %c0_144] : memref<2x1x32xf32, #tpu.memory_space<vmem>>, vector<1x1x32xf32>
    %275 = vector.shape_cast %274 : vector<1x1x32xf32> to vector<1x32xf32>
    %276 = vector.shape_cast %262 : vector<16x32xf32> to vector<2x8x4x8xf32>
    %277 = tpu.transpose %276, [0, 2, 1, 3] : vector<2x8x4x8xf32> -> vector<2x4x8x8xf32>
    %278 = vector.shape_cast %277 : vector<2x4x8x8xf32> to vector<8x8x8xf32>
    %279 = vector.shape_cast %270 : vector<16x32xf32> to vector<2x8x4x8xf32>
    %280 = tpu.transpose %279, [0, 2, 1, 3] : vector<2x8x4x8xf32> -> vector<2x4x8x8xf32>
    %281 = vector.shape_cast %280 : vector<2x4x8x8xf32> to vector<8x8x8xf32>
    %282 = vector.shape_cast %271 : vector<16x32xf32> to vector<2x8x4x8xf32>
    %283 = tpu.transpose %282, [0, 2, 1, 3] : vector<2x8x4x8xf32> -> vector<2x4x8x8xf32>
    %284 = vector.shape_cast %283 : vector<2x4x8x8xf32> to vector<8x8x8xf32>
    "tpu.trace_start"() <{level = 10 : i32, message = "bqd,bkd->bqk"}> : () -> ()
    %cst_145 = arith.constant dense<0.000000e+00> : vector<8x8x8xf32>
    %285 = tpu.matmul %278, %281, %cst_145 {dimension_numbers = #tpu.dot_dimension_numbers<[2], [2], [1], [1], [0, 0, 0, 1, 1, 1], [0], [0]>} : vector<8x8x8xf32>, vector<8x8x8xf32>, vector<8x8x8xf32> -> vector<8x8x8xf32>
    "tpu.trace_stop"() : () -> ()
    %cst_146 = arith.constant dense<0xFF800000> : vector<8x8xf32>
    %286 = vector.multi_reduction <maximumf>, %285, %cst_146 [2] : vector<8x8x8xf32> to vector<8x8xf32>
    %287 = vector.shape_cast %286 : vector<8x8xf32> to vector<8x8x1xf32>
    %288 = vector.broadcast %287 : vector<8x8x1xf32> to vector<8x8x8xf32>
    %289 = arith.subf %285, %288 : vector<8x8x8xf32>
    %290 = math.exp %289 : vector<8x8x8xf32>
    %cst_147 = arith.constant dense<0.000000e+00> : vector<8x8xf32>
    %291 = vector.multi_reduction <add>, %290, %cst_147 [2] : vector<8x8x8xf32> to vector<8x8xf32>
    %292 = vector.shape_cast %291 : vector<8x8xf32> to vector<8x8x1xf32>
    %293 = tpu.reciprocal %292 {approx = true} : vector<8x8x1xf32> -> vector<8x8x1xf32>
    %294 = vector.broadcast %293 : vector<8x8x1xf32> to vector<8x8x8xf32>
    %295 = arith.mulf %290, %294 : vector<8x8x8xf32>
    "tpu.trace_start"() <{level = 10 : i32, message = "bqk,bkd->bqd"}> : () -> ()
    %cst_148 = arith.constant dense<0.000000e+00> : vector<8x8x8xf32>
    %296 = tpu.matmul %295, %284, %cst_148 {dimension_numbers = #tpu.dot_dimension_numbers<[2], [1], [1], [2], [0, 0, 0, 1, 1, 2], [0], [0]>} : vector<8x8x8xf32>, vector<8x8x8xf32>, vector<8x8x8xf32> -> vector<8x8x8xf32>
    "tpu.trace_stop"() : () -> ()
    %297 = vector.shape_cast %296 : vector<8x8x8xf32> to vector<2x4x8x8xf32>
    %298 = tpu.transpose %297, [0, 2, 1, 3] : vector<2x4x8x8xf32> -> vector<2x8x4x8xf32>
    %299 = vector.shape_cast %298 : vector<2x8x4x8xf32> to vector<16x32xf32>
    %cst_149 = arith.constant dense<0.000000e+00> : vector<16x32xf32>
    %300 = tpu.matmul %299, %273, %cst_149 {dimension_numbers = #tpu.dot_dimension_numbers<[1], [0], [0], [1], [0, 0, 1, 1], [], []>} : vector<16x32xf32>, vector<32x32xf32>, vector<16x32xf32> -> vector<16x32xf32>
    %301 = vector.broadcast %275 : vector<1x32xf32> to vector<16x32xf32>
    %302 = arith.addf %300, %301 : vector<16x32xf32>
    %303 = arith.addf %255, %302 : vector<16x32xf32>
    %c1_150 = arith.constant 1 : index
    %c0_151 = arith.constant 0 : index
    %c0_152 = arith.constant 0 : index
    %304 = vector.load %arg16[%c1_150, %c0_151, %c0_152] : memref<2x1x32xf32, #tpu.memory_space<vmem>>, vector<1x1x32xf32>
    %305 = vector.shape_cast %304 : vector<1x1x32xf32> to vector<1x32xf32>
    %c1_153 = arith.constant 1 : index
    %c0_154 = arith.constant 0 : index
    %c0_155 = arith.constant 0 : index
    %306 = vector.load %arg17[%c1_153, %c0_154, %c0_155] : memref<2x1x32xf32, #tpu.memory_space<vmem>>, vector<1x1x32xf32>
    %307 = vector.shape_cast %306 : vector<1x1x32xf32> to vector<1x32xf32>
    %cst_156 = arith.constant dense<0.000000e+00> : vector<16xf32>
    %308 = vector.multi_reduction <add>, %303, %cst_156 [1] : vector<16x32xf32> to vector<16xf32>
    %309 = vector.shape_cast %308 : vector<16xf32> to vector<16x1xf32>
    %cst_157 = arith.constant 3.200000e+01 : f32
    %310 = vector.broadcast %cst_157 : f32 to vector<16x1xf32>
    %311 = arith.divf %309, %310 : vector<16x1xf32>
    %312 = vector.broadcast %311 : vector<16x1xf32> to vector<16x32xf32>
    %313 = arith.subf %303, %312 : vector<16x32xf32>
    %314 = arith.mulf %313, %313 : vector<16x32xf32>
    %cst_158 = arith.constant dense<0.000000e+00> : vector<16xf32>
    %315 = vector.multi_reduction <add>, %314, %cst_158 [1] : vector<16x32xf32> to vector<16xf32>
    %316 = vector.shape_cast %315 : vector<16xf32> to vector<16x1xf32>
    %cst_159 = arith.constant 3.200000e+01 : f32
    %317 = vector.broadcast %cst_159 : f32 to vector<16x1xf32>
    %318 = arith.divf %316, %317 : vector<16x1xf32>
    %cst_160 = arith.constant 9.99999974E-6 : f32
    %319 = vector.broadcast %cst_160 : f32 to vector<16x1xf32>
    %320 = arith.addf %318, %319 : vector<16x1xf32>
    %321 = math.rsqrt %320 : vector<16x1xf32>
    %322 = vector.broadcast %321 : vector<16x1xf32> to vector<16x32xf32>
    %323 = arith.mulf %313, %322 : vector<16x32xf32>
    %324 = vector.broadcast %305 : vector<1x32xf32> to vector<16x32xf32>
    %325 = arith.mulf %323, %324 : vector<16x32xf32>
    %326 = vector.broadcast %307 : vector<1x32xf32> to vector<16x32xf32>
    %327 = arith.addf %325, %326 : vector<16x32xf32>
    %c1_161 = arith.constant 1 : index
    %c0_162 = arith.constant 0 : index
    %c0_163 = arith.constant 0 : index
    %328 = vector.load %arg18[%c1_161, %c0_162, %c0_163] : memref<2x32x64xf32, #tpu.memory_space<vmem>>, vector<1x32x64xf32>
    %329 = vector.shape_cast %328 : vector<1x32x64xf32> to vector<32x64xf32>
    %cst_164 = arith.constant dense<0.000000e+00> : vector<16x64xf32>
    %330 = tpu.matmul %327, %329, %cst_164 {dimension_numbers = #tpu.dot_dimension_numbers<[1], [0], [0], [1], [0, 0, 1, 1], [], []>} : vector<16x32xf32>, vector<32x64xf32>, vector<16x64xf32> -> vector<16x64xf32>
    %c1_165 = arith.constant 1 : index
    %c0_166 = arith.constant 0 : index
    %c0_167 = arith.constant 0 : index
    %331 = vector.load %arg19[%c1_165, %c0_166, %c0_167] : memref<2x1x64xf32, #tpu.memory_space<vmem>>, vector<1x1x64xf32>
    %332 = vector.shape_cast %331 : vector<1x1x64xf32> to vector<1x64xf32>
    %333 = vector.broadcast %332 : vector<1x64xf32> to vector<16x64xf32>
    %334 = arith.addf %330, %333 : vector<16x64xf32>
    %cst_168 = arith.constant 0.000000e+00 : f32
    %335 = vector.broadcast %cst_168 : f32 to vector<16x64xf32>
    %336 = arith.maximumf %334, %335 : vector<16x64xf32>
    %c1_169 = arith.constant 1 : index
    %c0_170 = arith.constant 0 : index
    %c0_171 = arith.constant 0 : index
    %337 = vector.load %arg20[%c1_169, %c0_170, %c0_171] : memref<2x64x32xf32, #tpu.memory_space<vmem>>, vector<1x64x32xf32>
    %338 = vector.shape_cast %337 : vector<1x64x32xf32> to vector<64x32xf32>
    %cst_172 = arith.constant dense<0.000000e+00> : vector<16x32xf32>
    %339 = tpu.matmul %336, %338, %cst_172 {dimension_numbers = #tpu.dot_dimension_numbers<[1], [0], [0], [1], [0, 0, 1, 1], [], []>} : vector<16x64xf32>, vector<64x32xf32>, vector<16x32xf32> -> vector<16x32xf32>
    %c1_173 = arith.constant 1 : index
    %c0_174 = arith.constant 0 : index
    %c0_175 = arith.constant 0 : index
    %340 = vector.load %arg21[%c1_173, %c0_174, %c0_175] : memref<2x1x32xf32, #tpu.memory_space<vmem>>, vector<1x1x32xf32>
    %341 = vector.shape_cast %340 : vector<1x1x32xf32> to vector<1x32xf32>
    %342 = vector.broadcast %341 : vector<1x32xf32> to vector<16x32xf32>
    %343 = arith.addf %339, %342 : vector<16x32xf32>
    %344 = arith.addf %327, %343 : vector<16x32xf32>
    %c1_176 = arith.constant 1 : index
    %c0_177 = arith.constant 0 : index
    %c0_178 = arith.constant 0 : index
    %345 = vector.load %arg22[%c1_176, %c0_177, %c0_178] : memref<2x1x32xf32, #tpu.memory_space<vmem>>, vector<1x1x32xf32>
    %346 = vector.shape_cast %345 : vector<1x1x32xf32> to vector<1x32xf32>
    %c1_179 = arith.constant 1 : index
    %c0_180 = arith.constant 0 : index
    %c0_181 = arith.constant 0 : index
    %347 = vector.load %arg23[%c1_179, %c0_180, %c0_181] : memref<2x1x32xf32, #tpu.memory_space<vmem>>, vector<1x1x32xf32>
    %348 = vector.shape_cast %347 : vector<1x1x32xf32> to vector<1x32xf32>
    %cst_182 = arith.constant dense<0.000000e+00> : vector<16xf32>
    %349 = vector.multi_reduction <add>, %344, %cst_182 [1] : vector<16x32xf32> to vector<16xf32>
    %350 = vector.shape_cast %349 : vector<16xf32> to vector<16x1xf32>
    %cst_183 = arith.constant 3.200000e+01 : f32
    %351 = vector.broadcast %cst_183 : f32 to vector<16x1xf32>
    %352 = arith.divf %350, %351 : vector<16x1xf32>
    %353 = vector.broadcast %352 : vector<16x1xf32> to vector<16x32xf32>
    %354 = arith.subf %344, %353 : vector<16x32xf32>
    %355 = arith.mulf %354, %354 : vector<16x32xf32>
    %cst_184 = arith.constant dense<0.000000e+00> : vector<16xf32>
    %356 = vector.multi_reduction <add>, %355, %cst_184 [1] : vector<16x32xf32> to vector<16xf32>
    %357 = vector.shape_cast %356 : vector<16xf32> to vector<16x1xf32>
    %cst_185 = arith.constant 3.200000e+01 : f32
    %358 = vector.broadcast %cst_185 : f32 to vector<16x1xf32>
    %359 = arith.divf %357, %358 : vector<16x1xf32>
    %cst_186 = arith.constant 9.99999974E-6 : f32
    %360 = vector.broadcast %cst_186 : f32 to vector<16x1xf32>
    %361 = arith.addf %359, %360 : vector<16x1xf32>
    %362 = math.rsqrt %361 : vector<16x1xf32>
    %363 = vector.broadcast %362 : vector<16x1xf32> to vector<16x32xf32>
    %364 = arith.mulf %354, %363 : vector<16x32xf32>
    %365 = vector.broadcast %346 : vector<1x32xf32> to vector<16x32xf32>
    %366 = arith.mulf %364, %365 : vector<16x32xf32>
    %367 = vector.broadcast %348 : vector<1x32xf32> to vector<16x32xf32>
    %368 = arith.addf %366, %367 : vector<16x32xf32>
    %369 = vector.shape_cast %368 : vector<16x32xf32> to vector<2x8x32xf32>
    %c0_187 = arith.constant 0 : index
    %c0_188 = arith.constant 0 : index
    %c0_189 = arith.constant 0 : index
    %370 = vector.load %arg24[%c0_187, %c0_188, %c0_189] : memref<2x8x32xf32, #tpu.memory_space<vmem>>, vector<2x8x32xf32>
    tpu.vector_store %arg24[%c0_187, %c0_188, %c0_189], %369 {strides = array<i32>} : memref<2x8x32xf32, #tpu.memory_space<vmem>>, vector<2x8x32xf32>,
    return
  }
  func.func @transform_0(%arg0: i32) -> (i32, i32, i32) {
    %c0_i32 = arith.constant 0 : i32
    %c0_i32_0 = arith.constant 0 : i32
    %c0_i32_1 = arith.constant 0 : i32
    return %arg0, %c0_i32, %c0_i32_0 : i32, i32, i32
  }
  func.func @transform_1(%arg0: i32) -> (i32, i32, i32) {
    %c0_i32 = arith.constant 0 : i32
    %c0_i32_0 = arith.constant 0 : i32
    %c0_i32_1 = arith.constant 0 : i32
    return %arg0, %c0_i32, %c0_i32_0 : i32, i32, i32
  }
  func.func @transform_2(%arg0: i32) -> (i32, i32) {
    %c0_i32 = arith.constant 0 : i32
    %c0_i32_0 = arith.constant 0 : i32
    %c0_i32_1 = arith.constant 0 : i32
    return %c0_i32, %c0_i32_0 : i32, i32
  }
  func.func @transform_3(%arg0: i32) -> (i32, i32, i32) {
    %c0_i32 = arith.constant 0 : i32
    %c0_i32_0 = arith.constant 0 : i32
    %c0_i32_1 = arith.constant 0 : i32
    %c0_i32_2 = arith.constant 0 : i32
    return %c0_i32, %c0_i32_0, %c0_i32_1 : i32, i32, i32
  }
  func.func @transform_4(%arg0: i32) -> (i32, i32, i32) {
    %c0_i32 = arith.constant 0 : i32
    %c0_i32_0 = arith.constant 0 : i32
    %c0_i32_1 = arith.constant 0 : i32
    %c0_i32_2 = arith.constant 0 : i32
    return %c0_i32, %c0_i32_0, %c0_i32_1 : i32, i32, i32
  }
  func.func @transform_5(%arg0: i32) -> (i32, i32, i32) {
    %c0_i32 = arith.constant 0 : i32
    %c0_i32_0 = arith.constant 0 : i32
    %c0_i32_1 = arith.constant 0 : i32
    %c0_i32_2 = arith.constant 0 : i32
    return %c0_i32, %c0_i32_0, %c0_i32_1 : i32, i32, i32
  }
  func.func @transform_6(%arg0: i32) -> (i32, i32, i32) {
    %c0_i32 = arith.constant 0 : i32
    %c0_i32_0 = arith.constant 0 : i32
    %c0_i32_1 = arith.constant 0 : i32
    %c0_i32_2 = arith.constant 0 : i32
    return %c0_i32, %c0_i32_0, %c0_i32_1 : i32, i32, i32
  }
  func.func @transform_7(%arg0: i32) -> (i32, i32, i32) {
    %c0_i32 = arith.constant 0 : i32
    %c0_i32_0 = arith.constant 0 : i32
    %c0_i32_1 = arith.constant 0 : i32
    %c0_i32_2 = arith.constant 0 : i32
    return %c0_i32, %c0_i32_0, %c0_i32_1 : i32, i32, i32
  }
  func.func @transform_8(%arg0: i32) -> (i32, i32, i32) {
    %c0_i32 = arith.constant 0 : i32
    %c0_i32_0 = arith.constant 0 : i32
    %c0_i32_1 = arith.constant 0 : i32
    %c0_i32_2 = arith.constant 0 : i32
    return %c0_i32, %c0_i32_0, %c0_i32_1 : i32, i32, i32
  }
  func.func @transform_9(%arg0: i32) -> (i32, i32, i32) {
    %c0_i32 = arith.constant 0 : i32
    %c0_i32_0 = arith.constant 0 : i32
    %c0_i32_1 = arith.constant 0 : i32
    %c0_i32_2 = arith.constant 0 : i32
    return %c0_i32, %c0_i32_0, %c0_i32_1 : i32, i32, i32
  }
  func.func @transform_10(%arg0: i32) -> (i32, i32, i32) {
    %c0_i32 = arith.constant 0 : i32
    %c0_i32_0 = arith.constant 0 : i32
    %c0_i32_1 = arith.constant 0 : i32
    %c0_i32_2 = arith.constant 0 : i32
    return %c0_i32, %c0_i32_0, %c0_i32_1 : i32, i32, i32
  }
  func.func @transform_11(%arg0: i32) -> (i32, i32, i32) {
    %c0_i32 = arith.constant 0 : i32
    %c0_i32_0 = arith.constant 0 : i32
    %c0_i32_1 = arith.constant 0 : i32
    %c0_i32_2 = arith.constant 0 : i32
    return %c0_i32, %c0_i32_0, %c0_i32_1 : i32, i32, i32
  }
  func.func @transform_12(%arg0: i32) -> (i32, i32, i32) {
    %c0_i32 = arith.constant 0 : i32
    %c0_i32_0 = arith.constant 0 : i32
    %c0_i32_1 = arith.constant 0 : i32
    %c0_i32_2 = arith.constant 0 : i32
    return %c0_i32, %c0_i32_0, %c0_i32_1 : i32, i32, i32
  }
  func.func @transform_13(%arg0: i32) -> (i32, i32, i32) {
    %c0_i32 = arith.constant 0 : i32
    %c0_i32_0 = arith.constant 0 : i32
    %c0_i32_1 = arith.constant 0 : i32
    %c0_i32_2 = arith.constant 0 : i32
    return %c0_i32, %c0_i32_0, %c0_i32_1 : i32, i32, i32
  }
  func.func @transform_14(%arg0: i32) -> (i32, i32, i32) {
    %c0_i32 = arith.constant 0 : i32
    %c0_i32_0 = arith.constant 0 : i32
    %c0_i32_1 = arith.constant 0 : i32
    %c0_i32_2 = arith.constant 0 : i32
    return %c0_i32, %c0_i32_0, %c0_i32_1 : i32, i32, i32
  }
  func.func @transform_15(%arg0: i32) -> (i32, i32, i32) {
    %c0_i32 = arith.constant 0 : i32
    %c0_i32_0 = arith.constant 0 : i32
    %c0_i32_1 = arith.constant 0 : i32
    %c0_i32_2 = arith.constant 0 : i32
    return %c0_i32, %c0_i32_0, %c0_i32_1 : i32, i32, i32
  }
  func.func @transform_16(%arg0: i32) -> (i32, i32, i32) {
    %c0_i32 = arith.constant 0 : i32
    %c0_i32_0 = arith.constant 0 : i32
    %c0_i32_1 = arith.constant 0 : i32
    %c0_i32_2 = arith.constant 0 : i32
    return %c0_i32, %c0_i32_0, %c0_i32_1 : i32, i32, i32
  }
  func.func @transform_17(%arg0: i32) -> (i32, i32, i32) {
    %c0_i32 = arith.constant 0 : i32
    %c0_i32_0 = arith.constant 0 : i32
    %c0_i32_1 = arith.constant 0 : i32
    %c0_i32_2 = arith.constant 0 : i32
    return %c0_i32, %c0_i32_0, %c0_i32_1 : i32, i32, i32
  }
  func.func @transform_18(%arg0: i32) -> (i32, i32, i32) {
    %c0_i32 = arith.constant 0 : i32
    %c0_i32_0 = arith.constant 0 : i32
    %c0_i32_1 = arith.constant 0 : i32
    %c0_i32_2 = arith.constant 0 : i32
    return %c0_i32, %c0_i32_0, %c0_i32_1 : i32, i32, i32
  }
  func.func @transform_19(%arg0: i32) -> (i32, i32, i32) {
    %c0_i32 = arith.constant 0 : i32
    %c0_i32_0 = arith.constant 0 : i32
    %c0_i32_1 = arith.constant 0 : i32
    %c0_i32_2 = arith.constant 0 : i32
    return %c0_i32, %c0_i32_0, %c0_i32_1 : i32, i32, i32
  }
  func.func @transform_20(%arg0: i32) -> (i32, i32, i32) {
    %c0_i32 = arith.constant 0 : i32
    %c0_i32_0 = arith.constant 0 : i32
    %c0_i32_1 = arith.constant 0 : i32
    %c0_i32_2 = arith.constant 0 : i32
    return %c0_i32, %c0_i32_0, %c0_i32_1 : i32, i32, i32
  }
  func.func @transform_21(%arg0: i32) -> (i32, i32, i32) {
    %c0_i32 = arith.constant 0 : i32
    %c0_i32_0 = arith.constant 0 : i32
    %c0_i32_1 = arith.constant 0 : i32
    %c0_i32_2 = arith.constant 0 : i32
    return %c0_i32, %c0_i32_0, %c0_i32_1 : i32, i32, i32
  }
  func.func @transform_22(%arg0: i32) -> (i32, i32, i32) {
    %c0_i32 = arith.constant 0 : i32
    %c0_i32_0 = arith.constant 0 : i32
    %c0_i32_1 = arith.constant 0 : i32
    %c0_i32_2 = arith.constant 0 : i32
    return %c0_i32, %c0_i32_0, %c0_i32_1 : i32, i32, i32
  }
  func.func @transform_23(%arg0: i32) -> (i32, i32, i32) {
    %c0_i32 = arith.constant 0 : i32
    %c0_i32_0 = arith.constant 0 : i32
    %c0_i32_1 = arith.constant 0 : i32
    return %arg0, %c0_i32, %c0_i32_0 : i32, i32, i32
  }
}

</mosaic_0001>

<llo_original>
// kernel: tpu_custom_call.1
$region0: #{tpu_custom_call.1}
  #allocation0 [shape = 'u32[]', space=smem, size = 0x4, offset = 0x4, fixed_abs, tag = 'smem constant byte address 0x4 - core index']
  #allocation1 [shape = 'u32[72,128]{1,0:T(1,128)}', space=vmem, size = 0x9000, scoped, tag = 'internal scratch']
  %s0 = inlined_call_operand.hbm [shape: f32[2,8,32], index: 0, kind: input, shape index: {}]
  %s1 = inlined_call_operand.hbm [shape: f32[2,8,32], index: 1, kind: input, shape index: {}]
  %s2 = inlined_call_operand.hbm [shape: f32[8,8], index: 2, kind: input, shape index: {}]
  %s3 = inlined_call_operand.vmem [shape: f32[2,32,96], index: 3, kind: input, shape index: {}]
  %s4 = inlined_call_operand.vmem [shape: f32[2,1,96], index: 4, kind: input, shape index: {}]
  %s5 = inlined_call_operand.vmem [shape: f32[2,32,32], index: 5, kind: input, shape index: {}]
  %s6 = inlined_call_operand.vmem [shape: f32[2,1,32], index: 6, kind: input, shape index: {}]
  %s7 = inlined_call_operand.hbm [shape: f32[2,1,32], index: 7, kind: input, shape index: {}]
  %s8 = inlined_call_operand.hbm [shape: f32[2,1,32], index: 8, kind: input, shape index: {}]
  %s9 = inlined_call_operand.vmem [shape: f32[2,32,32], index: 9, kind: input, shape index: {}]
  %s10 = inlined_call_operand.vmem [shape: f32[2,1,32], index: 10, kind: input, shape index: {}]
  %s11 = inlined_call_operand.hbm [shape: f32[2,32,64], index: 11, kind: input, shape index: {}]
  %s12 = inlined_call_operand.vmem [shape: f32[2,1,64], index: 12, kind: input, shape index: {}]
  %s13 = inlined_call_operand.hbm [shape: f32[2,32,32], index: 13, kind: input, shape index: {}]
  %s14 = inlined_call_operand.vmem [shape: f32[2,1,32], index: 14, kind: input, shape index: {}]
  %s15 = inlined_call_operand.vmem [shape: f32[2,1,32], index: 15, kind: input, shape index: {}]
  %s16 = inlined_call_operand.vmem [shape: f32[2,1,32], index: 16, kind: input, shape index: {}]
  %s17 = inlined_call_operand.hbm [shape: f32[2,32,64], index: 17, kind: input, shape index: {}]
  %s18 = inlined_call_operand.vmem [shape: f32[2,1,64], index: 18, kind: input, shape index: {}]
  %s19 = inlined_call_operand.vmem [shape: f32[2,64,32], index: 19, kind: input, shape index: {}]
  %s20 = inlined_call_operand.hbm [shape: f32[2,1,32], index: 20, kind: input, shape index: {}]
  %s21 = inlined_call_operand.vmem [shape: f32[2,1,32], index: 21, kind: input, shape index: {}]
  %s22 = inlined_call_operand.vmem [shape: f32[2,1,32], index: 22, kind: input, shape index: {}]
  %s23 = inlined_call_operand.hbm [shape: f32[2,8,32], index: 23, kind: output, shape index: {}]
  %s24 = sld [smem:[#allocation0]]
  $region138: #{tpu_custom_call.1} parent=0
    _
  %s26 = ssub.s32 1, %s24
  %s27 = scalar_select 0, %s26, %s24
  $region1: #{tpu_custom_call.1} parent=0
    #allocation2 [shape = 'u8[8192]{0}', space=vmem, size = 0x2000, scoped, tag = 'input window, operand 0, single buffered']
    #allocation3 [shape = 's32[1]{0}', space=sflag, size = 0x4, scoped, tag = 'scoped memory for tpu_custom_call.1']
    #allocation4 [shape = 's32[1]{0}', space=sflag, size = 0x4, scoped, tag = 'scoped memory for tpu_custom_call.1']
    #allocation5 [shape = 'u8[8192]{0}', space=vmem, size = 0x2000, scoped, tag = 'input window, operand 1, single buffered']
    #allocation6 [shape = 's32[1]{0}', space=sflag, size = 0x4, scoped, tag = 'scoped memory for tpu_custom_call.1']
    #allocation7 [shape = 'u8[4096]{0}', space=vmem, size = 0x1000, scoped, tag = 'input window, operand 2, single buffered']
    #allocation8 [shape = 'u8[1024]{0}', space=vmem, size = 0x400, scoped, tag = 'input window, operand 7, single buffered']
    #allocation9 [shape = 's32[1]{0}', space=sflag, size = 0x4, scoped, tag = 'scoped memory for tpu_custom_call.1']
    #allocation10 [shape = 'u8[1024]{0}', space=vmem, size = 0x400, scoped, tag = 'input window, operand 8, single buffered']
    #allocation11 [shape = 'u8[32768]{0}', space=vmem, size = 0x8000, scoped, tag = 'input window, operand 11, single buffered']
    #allocation12 [shape = 's32[1]{0}', space=sflag, size = 0x4, scoped, tag = 'scoped memory for tpu_custom_call.1']
    #allocation13 [shape = 'u8[32768]{0}', space=vmem, size = 0x8000, scoped, tag = 'input window, operand 13, single buffered']
    #allocation14 [shape = 'u8[32768]{0}', space=vmem, size = 0x8000, scoped, tag = 'input window, operand 17, single buffered']
    #allocation15 [shape = 's32[1]{0}', space=sflag, size = 0x4, scoped, tag = 'scoped memory for tpu_custom_call.1']
    #allocation16 [shape = 'u8[1024]{0}', space=vmem, size = 0x400, scoped, tag = 'input window, operand 20, single buffered']
    #allocation17 [shape = 'u8[8192]{0}', space=vmem, size = 0x2000, scoped, tag = 'output window, operand 0, single buffered']
    %28 = vsyncpa [#allocation3], 0
    %29 = vsyncpa [#allocation6], 0
    %30 = vsyncpa [#allocation9], 0
    %31 = vsyncpa [#allocation12], 0
    %32 = vsyncpa [#allocation15], 0
    %33 = vsyncpa [#allocation4], 0
    // Predicated region
    $region2: #{tpu_custom_call.1} parent=1 // pred_check
      _
    $region3: #{tpu_custom_call.1} parent=1 // pred_check_branch
      %35 = sbr.rel (0) target = $region5
    $region4: #{tpu_custom_call.1} parent=1 // pred_region
      %37 = vsyncadd [#allocation3], 0
      %s38 = sshll.u32 %s0, 4
      %s39 = int_to_ptr.hbm [resolvable:$true] %s38
      %s40 = sshll.u32 [#allocation2], 4
      %s41 = int_to_ptr.vmem [resolvable:$true] %s40
      %46 = dma.hbm_to_vmem [thread:$0]  %s39, 256, %s41, [#allocation3], 128, 128, 8
    $region5: #{tpu_custom_call.1} parent=1 // pred_fallthru
      _
    // Predicated region
    $region6: #{tpu_custom_call.1} parent=1 // pred_check
      _
    $region7: #{tpu_custom_call.1} parent=1 // pred_check_branch
      %48 = sbr.rel (0) target = $region9
    $region8: #{tpu_custom_call.1} parent=1 // pred_region
      %50 = vsyncadd [#allocation6], 0
      %s51 = sshll.u32 %s1, 4
      %s52 = int_to_ptr.hbm [resolvable:$true] %s51
      %s53 = sshll.u32 [#allocation5], 4
      %s54 = int_to_ptr.vmem [resolvable:$true] %s53
      %59 = dma.hbm_to_vmem [thread:$0]  %s52, 256, %s54, [#allocation6], 128, 128, 8
    $region9: #{tpu_custom_call.1} parent=1 // pred_fallthru
      _
    // Predicated region
    $region10: #{tpu_custom_call.1} parent=1 // pred_check
      _
    $region11: #{tpu_custom_call.1} parent=1 // pred_check_branch
      %61 = sbr.rel (0) target = $region13
    $region12: #{tpu_custom_call.1} parent=1 // pred_region
      %63 = vsyncadd [#allocation6], 0
      %s65 = sshll.u32 %s2, 4
      %s66 = int_to_ptr.hbm [resolvable:$true] %s65
      %s67 = sshll.u32 [#allocation7], 4
      %s68 = int_to_ptr.vmem [resolvable:$true] %s67
      %70 = dma.hbm_to_vmem [thread:$0]  %s66, 128, %s68, [#allocation6]
    $region13: #{tpu_custom_call.1} parent=1 // pred_fallthru
      _
    // Predicated region
    $region14: #{tpu_custom_call.1} parent=1 // pred_check
      _
    $region15: #{tpu_custom_call.1} parent=1 // pred_check_branch
      %72 = sbr.rel (0) target = $region17
    $region16: #{tpu_custom_call.1} parent=1 // pred_region
      _
    $region17: #{tpu_custom_call.1} parent=1 // pred_fallthru
      _
    // Predicated region
    $region18: #{tpu_custom_call.1} parent=1 // pred_check
      _
    $region19: #{tpu_custom_call.1} parent=1 // pred_check_branch
      %74 = sbr.rel (0) target = $region21
    $region20: #{tpu_custom_call.1} parent=1 // pred_region
      _
    $region21: #{tpu_custom_call.1} parent=1 // pred_fallthru
      _
    // Predicated region
    $region22: #{tpu_custom_call.1} parent=1 // pred_check
      _
    $region23: #{tpu_custom_call.1} parent=1 // pred_check_branch
      %76 = sbr.rel (0) target = $region25
    $region24: #{tpu_custom_call.1} parent=1 // pred_region
      _
    $region25: #{tpu_custom_call.1} parent=1 // pred_fallthru
      _
    // Predicated region
    $region26: #{tpu_custom_call.1} parent=1 // pred_check
      _
    $region27: #{tpu_custom_call.1} parent=1 // pred_check_branch
      %78 = sbr.rel (0) target = $region29
    $region28: #{tpu_custom_call.1} parent=1 // pred_region
      _
    $region29: #{tpu_custom_call.1} parent=1 // pred_fallthru
      _
    // Predicated region
    $region30: #{tpu_custom_call.1} parent=1 // pred_check
      _
    $region31: #{tpu_custom_call.1} parent=1 // pred_check_branch
      %80 = sbr.rel (0) target = $region33
    $region32: #{tpu_custom_call.1} parent=1 // pred_region
      %82 = vsyncadd [#allocation9], 0
      %s83 = sshll.u32 %s7, 4
      %s84 = int_to_ptr.hbm [resolvable:$true] %s83
      %s85 = sshll.u32 [#allocation8], 4
      %s86 = int_to_ptr.vmem [resolvable:$true] %s85
      %91 = dma.hbm_to_vmem [thread:$0]  %s84, 32, %s86, [#allocation9], 16, 16, 1
    $region33: #{tpu_custom_call.1} parent=1 // pred_fallthru
      _
    // Predicated region
    $region34: #{tpu_custom_call.1} parent=1 // pred_check
      _
    $region35: #{tpu_custom_call.1} parent=1 // pred_check_branch
      %93 = sbr.rel (0) target = $region37
    $region36: #{tpu_custom_call.1} parent=1 // pred_region
      %95 = vsyncadd [#allocation9], 0
      %s96 = sshll.u32 %s8, 4
      %s97 = int_to_ptr.hbm [resolvable:$true] %s96
      %s98 = sshll.u32 [#allocation10], 4
      %s99 = int_to_ptr.vmem [resolvable:$true] %s98
      %104 = dma.hbm_to_vmem [thread:$0]  %s97, 32, %s99, [#allocation9], 16, 16, 1
    $region37: #{tpu_custom_call.1} parent=1 // pred_fallthru
      _
    // Predicated region
    $region38: #{tpu_custom_call.1} parent=1 // pred_check
      _
    $region39: #{tpu_custom_call.1} parent=1 // pred_check_branch
      %106 = sbr.rel (0) target = $region41
    $region40: #{tpu_custom_call.1} parent=1 // pred_region
      _
    $region41: #{tpu_custom_call.1} parent=1 // pred_fallthru
      _
    // Predicated region
    $region42: #{tpu_custom_call.1} parent=1 // pred_check
      _
    $region43: #{tpu_custom_call.1} parent=1 // pred_check_branch
      %108 = sbr.rel (0) target = $region45
    $region44: #{tpu_custom_call.1} parent=1 // pred_region
      _
    $region45: #{tpu_custom_call.1} parent=1 // pred_fallthru
      _
    // Predicated region
    $region46: #{tpu_custom_call.1} parent=1 // pred_check
      _
    $region47: #{tpu_custom_call.1} parent=1 // pred_check_branch
      %110 = sbr.rel (0) target = $region49
    $region48: #{tpu_custom_call.1} parent=1 // pred_region
      %112 = vsyncadd [#allocation12], 0
      %s113 = sshll.u32 %s11, 4
      %s114 = int_to_ptr.hbm [resolvable:$true] %s113
      %s115 = sshll.u32 [#allocation11], 4
      %s116 = int_to_ptr.vmem [resolvable:$true] %s115
      %121 = dma.hbm_to_vmem [thread:$0]  %s114, 1024, %s116, [#allocation12], 128, 128, 8
    $region49: #{tpu_custom_call.1} parent=1 // pred_fallthru
      _
    // Predicated region
    $region50: #{tpu_custom_call.1} parent=1 // pred_check
      _
    $region51: #{tpu_custom_call.1} parent=1 // pred_check_branch
      %123 = sbr.rel (0) target = $region53
    $region52: #{tpu_custom_call.1} parent=1 // pred_region
      _
    $region53: #{tpu_custom_call.1} parent=1 // pred_fallthru
      _
    // Predicated region
    $region54: #{tpu_custom_call.1} parent=1 // pred_check
      _
    $region55: #{tpu_custom_call.1} parent=1 // pred_check_branch
      %125 = sbr.rel (0) target = $region57
    $region56: #{tpu_custom_call.1} parent=1 // pred_region
      %127 = vsyncadd [#allocation12], 0
      %s128 = sshll.u32 %s13, 4
      %s129 = int_to_ptr.hbm [resolvable:$true] %s128
      %s130 = sshll.u32 [#allocation13], 4
      %s131 = int_to_ptr.vmem [resolvable:$true] %s130
      %136 = dma.hbm_to_vmem [thread:$0]  %s129, 1024, %s131, [#allocation12], 128, 128, 8
    $region57: #{tpu_custom_call.1} parent=1 // pred_fallthru
      _
    // Predicated region
    $region58: #{tpu_custom_call.1} parent=1 // pred_check
      _
    $region59: #{tpu_custom_call.1} parent=1 // pred_check_branch
      %138 = sbr.rel (0) target = $region61
    $region60: #{tpu_custom_call.1} parent=1 // pred_region
      _
    $region61: #{tpu_custom_call.1} parent=1 // pred_fallthru
      _
    // Predicated region
    $region62: #{tpu_custom_call.1} parent=1 // pred_check
      _
    $region63: #{tpu_custom_call.1} parent=1 // pred_check_branch
      %140 = sbr.rel (0) target = $region65
    $region64: #{tpu_custom_call.1} parent=1 // pred_region
      _
    $region65: #{tpu_custom_call.1} parent=1 // pred_fallthru
      _
    // Predicated region
    $region66: #{tpu_custom_call.1} parent=1 // pred_check
      _
    $region67: #{tpu_custom_call.1} parent=1 // pred_check_branch
      %142 = sbr.rel (0) target = $region69
    $region68: #{tpu_custom_call.1} parent=1 // pred_region
      _
    $region69: #{tpu_custom_call.1} parent=1 // pred_fallthru
      _
    // Predicated region
    $region70: #{tpu_custom_call.1} parent=1 // pred_check
      _
    $region71: #{tpu_custom_call.1} parent=1 // pred_check_branch
      %144 = sbr.rel (0) target = $region73
    $region72: #{tpu_custom_call.1} parent=1 // pred_region
      %146 = vsyncadd [#allocation15], 0
      %s147 = sshll.u32 %s17, 4
      %s148 = int_to_ptr.hbm [resolvable:$true] %s147
      %s149 = sshll.u32 [#allocation14], 4
      %s150 = int_to_ptr.vmem [resolvable:$true] %s149
      %155 = dma.hbm_to_vmem [thread:$0]  %s148, 1024, %s150, [#allocation15], 128, 128, 8
    $region73: #{tpu_custom_call.1} parent=1 // pred_fallthru
      _
    // Predicated region
    $region74: #{tpu_custom_call.1} parent=1 // pred_check
      _
    $region75: #{tpu_custom_call.1} parent=1 // pred_check_branch
      %157 = sbr.rel (0) target = $region77
    $region76: #{tpu_custom_call.1} parent=1 // pred_region
      _
    $region77: #{tpu_custom_call.1} parent=1 // pred_fallthru
      _
    // Predicated region
    $region78: #{tpu_custom_call.1} parent=1 // pred_check
      _
    $region79: #{tpu_custom_call.1} parent=1 // pred_check_branch
      %159 = sbr.rel (0) target = $region81
    $region80: #{tpu_custom_call.1} parent=1 // pred_region
      _
    $region81: #{tpu_custom_call.1} parent=1 // pred_fallthru
      _
    // Predicated region
    $region82: #{tpu_custom_call.1} parent=1 // pred_check
      _
    $region83: #{tpu_custom_call.1} parent=1 // pred_check_branch
      %161 = sbr.rel (0) target = $region85
    $region84: #{tpu_custom_call.1} parent=1 // pred_region
      %163 = vsyncadd [#allocation15], 0
      %s164 = sshll.u32 %s20, 4
      %s165 = int_to_ptr.hbm [resolvable:$true] %s164
      %s166 = sshll.u32 [#allocation16], 4
      %s167 = int_to_ptr.vmem [resolvable:$true] %s166
      %172 = dma.hbm_to_vmem [thread:$0]  %s165, 32, %s167, [#allocation15], 16, 16, 1
    $region85: #{tpu_custom_call.1} parent=1 // pred_fallthru
      _
    // Predicated region
    $region86: #{tpu_custom_call.1} parent=1 // pred_check
      _
    $region87: #{tpu_custom_call.1} parent=1 // pred_check_branch
      %174 = sbr.rel (0) target = $region89
    $region88: #{tpu_custom_call.1} parent=1 // pred_region
      _
    $region89: #{tpu_custom_call.1} parent=1 // pred_fallthru
      _
    // Predicated region
    $region90: #{tpu_custom_call.1} parent=1 // pred_check
      _
    $region91: #{tpu_custom_call.1} parent=1 // pred_check_branch
      %176 = sbr.rel (0) target = $region93
    $region92: #{tpu_custom_call.1} parent=1 // pred_region
      _
    $region93: #{tpu_custom_call.1} parent=1 // pred_fallthru
      _
    // Predicated region
    $region94: #{tpu_custom_call.1} parent=1 // pred_check
      _
    $region95: #{tpu_custom_call.1} parent=1 // pred_check_branch
      %178 = sbr.rel (0) target = $region97
    $region96: #{tpu_custom_call.1} parent=1 // pred_region
      %180 = dma.done [#allocation3], 256
    $region97: #{tpu_custom_call.1} parent=1 // pred_fallthru
      _
    // Predicated region
    $region98: #{tpu_custom_call.1} parent=1 // pred_check
      _
    $region99: #{tpu_custom_call.1} parent=1 // pred_check_branch
      %182 = sbr.rel (0) target = $region101
    $region100: #{tpu_custom_call.1} parent=1 // pred_region
      %184 = dma.done [#allocation6], 256
    $region101: #{tpu_custom_call.1} parent=1 // pred_fallthru
      _
    // Predicated region
    $region102: #{tpu_custom_call.1} parent=1 // pred_check
      _
    $region103: #{tpu_custom_call.1} parent=1 // pred_check_branch
      %186 = sbr.rel (0) target = $region105
    $region104: #{tpu_custom_call.1} parent=1 // pred_region
      %188 = dma.done [#allocation6], 128
    $region105: #{tpu_custom_call.1} parent=1 // pred_fallthru
      _
    // Predicated region
    $region106: #{tpu_custom_call.1} parent=1 // pred_check
      _
    $region107: #{tpu_custom_call.1} parent=1 // pred_check_branch
      %190 = sbr.rel (0) target = $region109
    $region108: #{tpu_custom_call.1} parent=1 // pred_region
      %192 = dma.done [#allocation9], 32
    $region109: #{tpu_custom_call.1} parent=1 // pred_fallthru
      _
    // Predicated region
    $region110: #{tpu_custom_call.1} parent=1 // pred_check
      _
    $region111: #{tpu_custom_call.1} parent=1 // pred_check_branch
      %194 = sbr.rel (0) target = $region113
    $region112: #{tpu_custom_call.1} parent=1 // pred_region
      %196 = dma.done [#allocation9], 32
    $region113: #{tpu_custom_call.1} parent=1 // pred_fallthru
      _
    // Predicated region
    $region114: #{tpu_custom_call.1} parent=1 // pred_check
      _
    $region115: #{tpu_custom_call.1} parent=1 // pred_check_branch
      %198 = sbr.rel (0) target = $region117
    $region116: #{tpu_custom_call.1} parent=1 // pred_region
      %200 = dma.done [#allocation12], 1024
    $region117: #{tpu_custom_call.1} parent=1 // pred_fallthru
      _
    // Predicated region
    $region118: #{tpu_custom_call.1} parent=1 // pred_check
      _
    $region119: #{tpu_custom_call.1} parent=1 // pred_check_branch
      %202 = sbr.rel (0) target = $region121
    $region120: #{tpu_custom_call.1} parent=1 // pred_region
      %204 = dma.done [#allocation12], 1024
    $region121: #{tpu_custom_call.1} parent=1 // pred_fallthru
      _
    // Predicated region
    $region122: #{tpu_custom_call.1} parent=1 // pred_check
      _
    $region123: #{tpu_custom_call.1} parent=1 // pred_check_branch
      %206 = sbr.rel (0) target = $region125
    $region124: #{tpu_custom_call.1} parent=1 // pred_region
      %208 = dma.done [#allocation15], 1024
    $region125: #{tpu_custom_call.1} parent=1 // pred_fallthru
      _
    // Predicated region
    $region126: #{tpu_custom_call.1} parent=1 // pred_check
      _
    $region127: #{tpu_custom_call.1} parent=1 // pred_check_branch
      %210 = sbr.rel (0) target = $region129
    $region128: #{tpu_custom_call.1} parent=1 // pred_region
      %212 = dma.done [#allocation15], 32
    $region129: #{tpu_custom_call.1} parent=1 // pred_fallthru
      _
    %v213 = vld [vmem:[#allocation2] sm:$0xff]
    %v214 = vld [vmem:[#allocation2 + $0x8] sm:$0xff]
    %v215 = vld [vmem:[#allocation5] sm:$0xff]
    %v216 = vld [vmem:[#allocation5 + $0x8] sm:$0xff]
    %v217 = vld [vmem:[#allocation7] sm:$0xff]
    %v218 = vld [vmem:[%s3] sm:$0xff]
    %v219 = vld [vmem:[%s3 + $0x8] sm:$0xff]
    %v220 = vld [vmem:[%s3 + $0x10] sm:$0xff]
    %v221 = vld [vmem:[%s3 + $0x18] sm:$0xff]
    %v222 = vld [vmem:[%s4] sm:$0x1]
    %v224 = vperm.slane %v222, 0
    %vm226 = vcmask 261120
    %v228 = vsel %vm226, %v215, 0
    %v231 = vsel %vm226, %v216, 0
    %233 = vmatpush.msra.mxu0 0.0
    %234 = vmatpush.msra.mxu0 0.0
    %235 = vmatpush.msra.mxu0 0.0
    %236 = vmatpush.msra.mxu0 0.0
    %237 = vmatpush.msra.mxu0 0.0
    %238 = vmatpush.msra.mxu0 0.0
    %239 = vmatpush.msra.mxu0 0.0
    %240 = vmatpush.msra.mxu0 0.0
    %241 = vmatpush.msra.mxu0 0.0
    %242 = vmatpush.msra.mxu0 0.0
    %243 = vmatpush.msra.mxu0 0.0
    %244 = vmatpush.msra.mxu0 0.0
    %245 = vmatpush.msra.mxu0 %v221
    %246 = vmatpush.msra.mxu0 %v220
    %247 = vmatpush.msra.mxu0 %v219
    %248 = vmatpush.msra.mxu0 %v218
    %249 = vmatmul.f32.gmra.mxu0 %v228
    %v250 = vpop.f32.mrf.mxu0
    %v251 = vadd.f32 %v224, %v250
    %252 = vmatmul.f32.gmra.mxu0 %v231
    %v253 = vpop.f32.mrf.mxu0
    %v254 = vadd.f32 %v224, %v253
    %255 = vdwg.mxu0
    %v256 = vld [vmem:[%s5] sm:$0xff]
    %v257 = vld [vmem:[%s5 + $0x8] sm:$0xff]
    %v258 = vld [vmem:[%s5 + $0x10] sm:$0xff]
    %v259 = vld [vmem:[%s5 + $0x18] sm:$0xff]
    %v260 = vld [vmem:[%s6] sm:$0x1]
    %263 = vrot.lane.b32.xlu0 %v251, 120
    %v264 = vpop.permute.xlu0 %263
    %265 = vrot.lane.b32.xlu0 %v254, 120
    %v266 = vpop.permute.xlu0 %265
    %269 = vrot.lane.b32.xlu0 %v251, 112
    %v270 = vpop.permute.xlu0 %269
    %271 = vrot.lane.b32.xlu0 %v254, 112
    %v272 = vpop.permute.xlu0 %271
    %275 = vrot.lane.b32.xlu0 %v251, 104
    %v276 = vpop.permute.xlu0 %275
    %277 = vrot.lane.b32.xlu0 %v254, 104
    %v278 = vpop.permute.xlu0 %277
    %v281 = vrot.slane %v270, 4
    %vm282 = vcmask 1047556
    %v283 = vsel %vm282, %v281, %v251
    %v284 = vrot.slane %v251, 4
    %v285 = vsel %vm282, %v270, %v284
    %v287 = vunpack.c.l.s4 1983009808
    %v288 = vunpack.c.0.s8 %v287
    %v289 = vperm.slane %v283, %v288
    %v291 = vunpack.c.l.s4 1983009808
    %v292 = vunpack.c.0.s8 %v291
    %v293 = vperm.slane %v285, %v292
    %v294 = vrot.slane %v276, 4
    %v295 = vsel %vm282, %v294, %v264
    %v296 = vrot.slane %v264, 4
    %v297 = vsel %vm282, %v276, %v296
    %v299 = vunpack.c.l.s4 1983009808
    %v300 = vunpack.c.0.s8 %v299
    %v301 = vperm.slane %v295, %v300
    %v303 = vunpack.c.l.s4 1983009808
    %v304 = vunpack.c.0.s8 %v303
    %v305 = vperm.slane %v297, %v304
    %v306 = vrot.slane %v301, 4
    %v307 = vsel %vm282, %v306, %v289
    %v308 = vrot.slane %v289, 4
    %v309 = vsel %vm282, %v301, %v308
    %v311 = vunpack.c.l.s4 1934713408
    %v312 = vunpack.c.0.s8 %v311
    %v313 = vperm.slane %v307, %v312
    %v315 = vunpack.c.l.s4 1934713408
    %v316 = vunpack.c.0.s8 %v315
    %v317 = vperm.slane %v309, %v316
    %v318 = vrot.slane %v305, 4
    %v319 = vsel %vm282, %v318, %v293
    %v320 = vrot.slane %v293, 4
    %v321 = vsel %vm282, %v305, %v320
    %v323 = vunpack.c.l.s4 1934713408
    %v324 = vunpack.c.0.s8 %v323
    %v325 = vperm.slane %v319, %v324
    %v327 = vunpack.c.l.s4 1934713408
    %v328 = vunpack.c.0.s8 %v327
    %v329 = vperm.slane %v321, %v328
    %v330 = vrot.slane %v313, 4
    %v331 = vsel %vm282, 0.0, %v330
    %v332 = vrot.slane %v317, 4
    %v333 = vsel %vm282, 0.0, %v332
    %v334 = vrot.slane %v325, 4
    %v335 = vsel %vm282, 0.0, %v334
    %v336 = vrot.slane %v329, 4
    %v337 = vsel %vm282, 0.0, %v336
    %v338 = vrot.slane %v272, 4
    %v339 = vsel %vm282, %v338, %v254
    %v340 = vrot.slane %v254, 4
    %v341 = vsel %vm282, %v272, %v340
    %v343 = vunpack.c.l.s4 1983009808
    %v344 = vunpack.c.0.s8 %v343
    %v345 = vperm.slane %v339, %v344
    %v347 = vunpack.c.l.s4 1983009808
    %v348 = vunpack.c.0.s8 %v347
    %v349 = vperm.slane %v341, %v348
    %v350 = vrot.slane %v278, 4
    %v351 = vsel %vm282, %v350, %v266
    %v352 = vrot.slane %v266, 4
    %v353 = vsel %vm282, %v278, %v352
    %v355 = vunpack.c.l.s4 1983009808
    %v356 = vunpack.c.0.s8 %v355
    %v357 = vperm.slane %v351, %v356
    %v359 = vunpack.c.l.s4 1983009808
    %v360 = vunpack.c.0.s8 %v359
    %v361 = vperm.slane %v353, %v360
    %v362 = vrot.slane %v357, 4
    %v363 = vsel %vm282, %v362, %v345
    %v364 = vrot.slane %v345, 4
    %v365 = vsel %vm282, %v357, %v364
    %v367 = vunpack.c.l.s4 1934713408
    %v368 = vunpack.c.0.s8 %v367
    %v369 = vperm.slane %v363, %v368
    %v371 = vunpack.c.l.s4 1934713408
    %v372 = vunpack.c.0.s8 %v371
    %v373 = vperm.slane %v365, %v372
    %v374 = vrot.slane %v361, 4
    %v375 = vsel %vm282, %v374, %v349
    %v376 = vrot.slane %v349, 4
    %v377 = vsel %vm282, %v361, %v376
    %v379 = vunpack.c.l.s4 1934713408
    %v380 = vunpack.c.0.s8 %v379
    %v381 = vperm.slane %v375, %v380
    %v383 = vunpack.c.l.s4 1934713408
    %v384 = vunpack.c.0.s8 %v383
    %v385 = vperm.slane %v377, %v384
    %v386 = vrot.slane %v369, 4
    %v387 = vsel %vm282, 0.0, %v386
    %v388 = vrot.slane %v373, 4
    %v389 = vsel %vm282, 0.0, %v388
    %v390 = vrot.slane %v381, 4
    %v391 = vsel %vm282, 0.0, %v390
    %v392 = vrot.slane %v385, 4
    %v393 = vsel %vm282, 0.0, %v392
    %v394 = vsel %vm282, %v332, %v313
    %v396 = vunpack.c.l.s4 1983009808
    %v397 = vunpack.c.0.s8 %v396
    %v398 = vperm.slane %v394, %v397
    %v399 = vrot.slane %v333, 4
    %v400 = vsel %vm282, %v399, %v331
    %v402 = vunpack.c.l.s4 1983009808
    %v403 = vunpack.c.0.s8 %v402
    %v404 = vperm.slane %v400, %v403
    %v405 = vsel %vm282, %v336, %v325
    %v407 = vunpack.c.l.s4 1983009808
    %v408 = vunpack.c.0.s8 %v407
    %v409 = vperm.slane %v405, %v408
    %v410 = vrot.slane %v337, 4
    %v411 = vsel %vm282, %v410, %v335
    %v413 = vunpack.c.l.s4 1983009808
    %v414 = vunpack.c.0.s8 %v413
    %v415 = vperm.slane %v411, %v414
    %v416 = vrot.slane %v404, 4
    %v417 = vsel %vm282, %v416, %v398
    %v418 = vrot.slane %v398, 4
    %v419 = vsel %vm282, %v404, %v418
    %v421 = vunpack.c.l.s4 1934713408
    %v422 = vunpack.c.0.s8 %v421
    %v423 = vperm.slane %v417, %v422
    %v425 = vunpack.c.l.s4 1934713408
    %v426 = vunpack.c.0.s8 %v425
    %v427 = vperm.slane %v419, %v426
    %v428 = vrot.slane %v415, 4
    %v429 = vsel %vm282, %v428, %v409
    %v430 = vrot.slane %v409, 4
    %v431 = vsel %vm282, %v415, %v430
    %v433 = vunpack.c.l.s4 1934713408
    %v434 = vunpack.c.0.s8 %v433
    %v435 = vperm.slane %v429, %v434
    %v437 = vunpack.c.l.s4 1934713408
    %v438 = vunpack.c.0.s8 %v437
    %v439 = vperm.slane %v431, %v438
    %v440 = vrot.slane %v435, 4
    %v441 = vsel %vm282, %v440, %v423
    %v442 = vrot.slane %v423, 4
    %v443 = vsel %vm282, %v435, %v442
    %v444 = vrot.slane %v439, 4
    %v445 = vsel %vm282, %v444, %v427
    %v446 = vrot.slane %v427, 4
    %v447 = vsel %vm282, %v439, %v446
    %v448 = vsel %vm282, %v388, %v369
    %v450 = vunpack.c.l.s4 1983009808
    %v451 = vunpack.c.0.s8 %v450
    %v452 = vperm.slane %v448, %v451
    %v453 = vrot.slane %v389, 4
    %v454 = vsel %vm282, %v453, %v387
    %v456 = vunpack.c.l.s4 1983009808
    %v457 = vunpack.c.0.s8 %v456
    %v458 = vperm.slane %v454, %v457
    %v459 = vsel %vm282, %v392, %v381
    %v461 = vunpack.c.l.s4 1983009808
    %v462 = vunpack.c.0.s8 %v461
    %v463 = vperm.slane %v459, %v462
    %v464 = vrot.slane %v393, 4
    %v465 = vsel %vm282, %v464, %v391
    %v467 = vunpack.c.l.s4 1983009808
    %v468 = vunpack.c.0.s8 %v467
    %v469 = vperm.slane %v465, %v468
    %v470 = vrot.slane %v458, 4
    %v471 = vsel %vm282, %v470, %v452
    %v472 = vrot.slane %v452, 4
    %v473 = vsel %vm282, %v458, %v472
    %v475 = vunpack.c.l.s4 1934713408
    %v476 = vunpack.c.0.s8 %v475
    %v477 = vperm.slane %v471, %v476
    %v479 = vunpack.c.l.s4 1934713408
    %v480 = vunpack.c.0.s8 %v479
    %v481 = vperm.slane %v473, %v480
    %v482 = vrot.slane %v469, 4
    %v483 = vsel %vm282, %v482, %v463
    %v484 = vrot.slane %v463, 4
    %v485 = vsel %vm282, %v469, %v484
    %v487 = vunpack.c.l.s4 1934713408
    %v488 = vunpack.c.0.s8 %v487
    %v489 = vperm.slane %v483, %v488
    %v491 = vunpack.c.l.s4 1934713408
    %v492 = vunpack.c.0.s8 %v491
    %v493 = vperm.slane %v485, %v492
    %v494 = vrot.slane %v489, 4
    %v495 = vsel %vm282, %v494, %v477
    %v496 = vrot.slane %v477, 4
    %v497 = vsel %vm282, %v489, %v496
    %v498 = vrot.slane %v493, 4
    %v499 = vsel %vm282, %v498, %v481
    %v500 = vrot.slane %v481, 4
    %v501 = vsel %vm282, %v493, %v500
    %502 = vrot.lane.b32.xlu0 %v251, 96
    %v503 = vpop.permute.xlu0 %502
    %504 = vrot.lane.b32.xlu0 %v254, 96
    %v505 = vpop.permute.xlu0 %504
    %506 = vrot.lane.b32.xlu0 %v264, 96
    %v507 = vpop.permute.xlu0 %506
    %508 = vrot.lane.b32.xlu0 %v266, 96
    %v509 = vpop.permute.xlu0 %508
    %510 = vrot.lane.b32.xlu0 %v270, 96
    %v511 = vpop.permute.xlu0 %510
    %512 = vrot.lane.b32.xlu0 %v272, 96
    %v513 = vpop.permute.xlu0 %512
    %514 = vrot.lane.b32.xlu0 %v276, 96
    %v515 = vpop.permute.xlu0 %514
    %516 = vrot.lane.b32.xlu0 %v278, 96
    %v517 = vpop.permute.xlu0 %516
    %v526 = vrot.slane %v511, 4
    %v527 = vsel %vm282, %v526, %v503
    %v528 = vrot.slane %v503, 4
    %v529 = vsel %vm282, %v511, %v528
    %v531 = vunpack.c.l.s4 1983009808
    %v532 = vunpack.c.0.s8 %v531
    %v533 = vperm.slane %v527, %v532
    %v535 = vunpack.c.l.s4 1983009808
    %v536 = vunpack.c.0.s8 %v535
    %v537 = vperm.slane %v529, %v536
    %v538 = vrot.slane %v515, 4
    %v539 = vsel %vm282, %v538, %v507
    %v540 = vrot.slane %v507, 4
    %v541 = vsel %vm282, %v515, %v540
    %v543 = vunpack.c.l.s4 1983009808
    %v544 = vunpack.c.0.s8 %v543
    %v545 = vperm.slane %v539, %v544
    %v547 = vunpack.c.l.s4 1983009808
    %v548 = vunpack.c.0.s8 %v547
    %v549 = vperm.slane %v541, %v548
    %v550 = vrot.slane %v545, 4
    %v551 = vsel %vm282, %v550, %v533
    %v552 = vrot.slane %v533, 4
    %v553 = vsel %vm282, %v545, %v552
    %v555 = vunpack.c.l.s4 1934713408
    %v556 = vunpack.c.0.s8 %v555
    %v557 = vperm.slane %v551, %v556
    %v559 = vunpack.c.l.s4 1934713408
    %v560 = vunpack.c.0.s8 %v559
    %v561 = vperm.slane %v553, %v560
    %v562 = vrot.slane %v549, 4
    %v563 = vsel %vm282, %v562, %v537
    %v564 = vrot.slane %v537, 4
    %v565 = vsel %vm282, %v549, %v564
    %v567 = vunpack.c.l.s4 1934713408
    %v568 = vunpack.c.0.s8 %v567
    %v569 = vperm.slane %v563, %v568
    %v571 = vunpack.c.l.s4 1934713408
    %v572 = vunpack.c.0.s8 %v571
    %v573 = vperm.slane %v565, %v572
    %v574 = vrot.slane %v557, 4
    %v575 = vsel %vm282, 0.0, %v574
    %v576 = vrot.slane %v561, 4
    %v577 = vsel %vm282, 0.0, %v576
    %v578 = vrot.slane %v569, 4
    %v579 = vsel %vm282, 0.0, %v578
    %v580 = vrot.slane %v573, 4
    %v581 = vsel %vm282, 0.0, %v580
    %v582 = vrot.slane %v513, 4
    %v583 = vsel %vm282, %v582, %v505
    %v584 = vrot.slane %v505, 4
    %v585 = vsel %vm282, %v513, %v584
    %v587 = vunpack.c.l.s4 1983009808
    %v588 = vunpack.c.0.s8 %v587
    %v589 = vperm.slane %v583, %v588
    %v591 = vunpack.c.l.s4 1983009808
    %v592 = vunpack.c.0.s8 %v591
    %v593 = vperm.slane %v585, %v592
    %v594 = vrot.slane %v517, 4
    %v595 = vsel %vm282, %v594, %v509
    %v596 = vrot.slane %v509, 4
    %v597 = vsel %vm282, %v517, %v596
    %v599 = vunpack.c.l.s4 1983009808
    %v600 = vunpack.c.0.s8 %v599
    %v601 = vperm.slane %v595, %v600
    %v603 = vunpack.c.l.s4 1983009808
    %v604 = vunpack.c.0.s8 %v603
    %v605 = vperm.slane %v597, %v604
    %v606 = vrot.slane %v601, 4
    %v607 = vsel %vm282, %v606, %v589
    %v608 = vrot.slane %v589, 4
    %v609 = vsel %vm282, %v601, %v608
    %v611 = vunpack.c.l.s4 1934713408
    %v612 = vunpack.c.0.s8 %v611
    %v613 = vperm.slane %v607, %v612
    %v615 = vunpack.c.l.s4 1934713408
    %v616 = vunpack.c.0.s8 %v615
    %v617 = vperm.slane %v609, %v616
    %v618 = vrot.slane %v605, 4
    %v619 = vsel %vm282, %v618, %v593
    %v620 = vrot.slane %v593, 4
    %v621 = vsel %vm282, %v605, %v620
    %v623 = vunpack.c.l.s4 1934713408
    %v624 = vunpack.c.0.s8 %v623
    %v625 = vperm.slane %v619, %v624
    %v627 = vunpack.c.l.s4 1934713408
    %v628 = vunpack.c.0.s8 %v627
    %v629 = vperm.slane %v621, %v628
    %v630 = vrot.slane %v613, 4
    %v631 = vsel %vm282, 0.0, %v630
    %v632 = vrot.slane %v617, 4
    %v633 = vsel %vm282, 0.0, %v632
    %v634 = vrot.slane %v625, 4
    %v635 = vsel %vm282, 0.0, %v634
    %v636 = vrot.slane %v629, 4
    %v637 = vsel %vm282, 0.0, %v636
    %v638 = vsel %vm282, %v576, %v557
    %v640 = vunpack.c.l.s4 1983009808
    %v641 = vunpack.c.0.s8 %v640
    %v642 = vperm.slane %v638, %v641
    %v643 = vrot.slane %v577, 4
    %v644 = vsel %vm282, %v643, %v575
    %v646 = vunpack.c.l.s4 1983009808
    %v647 = vunpack.c.0.s8 %v646
    %v648 = vperm.slane %v644, %v647
    %v649 = vsel %vm282, %v580, %v569
    %v651 = vunpack.c.l.s4 1983009808
    %v652 = vunpack.c.0.s8 %v651
    %v653 = vperm.slane %v649, %v652
    %v654 = vrot.slane %v581, 4
    %v655 = vsel %vm282, %v654, %v579
    %v657 = vunpack.c.l.s4 1983009808
    %v658 = vunpack.c.0.s8 %v657
    %v659 = vperm.slane %v655, %v658
    %v660 = vrot.slane %v648, 4
    %v661 = vsel %vm282, %v660, %v642
    %v662 = vrot.slane %v642, 4
    %v663 = vsel %vm282, %v648, %v662
    %v665 = vunpack.c.l.s4 1934713408
    %v666 = vunpack.c.0.s8 %v665
    %v667 = vperm.slane %v661, %v666
    %v669 = vunpack.c.l.s4 1934713408
    %v670 = vunpack.c.0.s8 %v669
    %v671 = vperm.slane %v663, %v670
    %v672 = vrot.slane %v659, 4
    %v673 = vsel %vm282, %v672, %v653
    %v674 = vrot.slane %v653, 4
    %v675 = vsel %vm282, %v659, %v674
    %v677 = vunpack.c.l.s4 1934713408
    %v678 = vunpack.c.0.s8 %v677
    %v679 = vperm.slane %v673, %v678
    %v681 = vunpack.c.l.s4 1934713408
    %v682 = vunpack.c.0.s8 %v681
    %v683 = vperm.slane %v675, %v682
    %v684 = vrot.slane %v679, 4
    %v685 = vsel %vm282, %v684, %v667
    %v686 = vrot.slane %v667, 4
    %v687 = vsel %vm282, %v679, %v686
    %v688 = vrot.slane %v683, 4
    %v689 = vsel %vm282, %v688, %v671
    %v690 = vrot.slane %v671, 4
    %v691 = vsel %vm282, %v683, %v690
    %v692 = vsel %vm282, %v632, %v613
    %v694 = vunpack.c.l.s4 1983009808
    %v695 = vunpack.c.0.s8 %v694
    %v696 = vperm.slane %v692, %v695
    %v697 = vrot.slane %v633, 4
    %v698 = vsel %vm282, %v697, %v631
    %v700 = vunpack.c.l.s4 1983009808
    %v701 = vunpack.c.0.s8 %v700
    %v702 = vperm.slane %v698, %v701
    %v703 = vsel %vm282, %v636, %v625
    %v705 = vunpack.c.l.s4 1983009808
    %v706 = vunpack.c.0.s8 %v705
    %v707 = vperm.slane %v703, %v706
    %v708 = vrot.slane %v637, 4
    %v709 = vsel %vm282, %v708, %v635
    %v711 = vunpack.c.l.s4 1983009808
    %v712 = vunpack.c.0.s8 %v711
    %v713 = vperm.slane %v709, %v712
    %v714 = vrot.slane %v702, 4
    %v715 = vsel %vm282, %v714, %v696
    %v716 = vrot.slane %v696, 4
    %v717 = vsel %vm282, %v702, %v716
    %v719 = vunpack.c.l.s4 1934713408
    %v720 = vunpack.c.0.s8 %v719
    %v721 = vperm.slane %v715, %v720
    %v723 = vunpack.c.l.s4 1934713408
    %v724 = vunpack.c.0.s8 %v723
    %v725 = vperm.slane %v717, %v724
    %v726 = vrot.slane %v713, 4
    %v727 = vsel %vm282, %v726, %v707
    %v728 = vrot.slane %v707, 4
    %v729 = vsel %vm282, %v713, %v728
    %v731 = vunpack.c.l.s4 1934713408
    %v732 = vunpack.c.0.s8 %v731
    %v733 = vperm.slane %v727, %v732
    %v735 = vunpack.c.l.s4 1934713408
    %v736 = vunpack.c.0.s8 %v735
    %v737 = vperm.slane %v729, %v736
    %v738 = vrot.slane %v733, 4
    %v739 = vsel %vm282, %v738, %v721
    %v740 = vrot.slane %v721, 4
    %v741 = vsel %vm282, %v733, %v740
    %v742 = vrot.slane %v737, 4
    %v743 = vsel %vm282, %v742, %v725
    %v744 = vrot.slane %v725, 4
    %v745 = vsel %vm282, %v737, %v744
    %746 = vrot.lane.b32.xlu0 %v251, 64
    %v747 = vpop.permute.xlu0 %746
    %748 = vrot.lane.b32.xlu0 %v254, 64
    %v749 = vpop.permute.xlu0 %748
    %750 = vrot.lane.b32.xlu0 %v264, 64
    %v751 = vpop.permute.xlu0 %750
    %752 = vrot.lane.b32.xlu0 %v266, 64
    %v753 = vpop.permute.xlu0 %752
    %754 = vrot.lane.b32.xlu0 %v270, 64
    %v755 = vpop.permute.xlu0 %754
    %756 = vrot.lane.b32.xlu0 %v272, 64
    %v757 = vpop.permute.xlu0 %756
    %758 = vrot.lane.b32.xlu0 %v276, 64
    %v759 = vpop.permute.xlu0 %758
    %760 = vrot.lane.b32.xlu0 %v278, 64
    %v761 = vpop.permute.xlu0 %760
    %v770 = vrot.slane %v755, 4
    %v771 = vsel %vm282, %v770, %v747
    %v772 = vrot.slane %v747, 4
    %v773 = vsel %vm282, %v755, %v772
    %v775 = vunpack.c.l.s4 1983009808
    %v776 = vunpack.c.0.s8 %v775
    %v777 = vperm.slane %v771, %v776
    %v779 = vunpack.c.l.s4 1983009808
    %v780 = vunpack.c.0.s8 %v779
    %v781 = vperm.slane %v773, %v780
    %v782 = vrot.slane %v759, 4
    %v783 = vsel %vm282, %v782, %v751
    %v784 = vrot.slane %v751, 4
    %v785 = vsel %vm282, %v759, %v784
    %v787 = vunpack.c.l.s4 1983009808
    %v788 = vunpack.c.0.s8 %v787
    %v789 = vperm.slane %v783, %v788
    %v791 = vunpack.c.l.s4 1983009808
    %v792 = vunpack.c.0.s8 %v791
    %v793 = vperm.slane %v785, %v792
    %v794 = vrot.slane %v789, 4
    %v795 = vsel %vm282, %v794, %v777
    %v796 = vrot.slane %v777, 4
    %v797 = vsel %vm282, %v789, %v796
    %v799 = vunpack.c.l.s4 1934713408
    %v800 = vunpack.c.0.s8 %v799
    %v801 = vperm.slane %v795, %v800
    %v803 = vunpack.c.l.s4 1934713408
    %v804 = vunpack.c.0.s8 %v803
    %v805 = vperm.slane %v797, %v804
    %v806 = vrot.slane %v793, 4
    %v807 = vsel %vm282, %v806, %v781
    %v808 = vrot.slane %v781, 4
    %v809 = vsel %vm282, %v793, %v808
    %v811 = vunpack.c.l.s4 1934713408
    %v812 = vunpack.c.0.s8 %v811
    %v813 = vperm.slane %v807, %v812
    %v815 = vunpack.c.l.s4 1934713408
    %v816 = vunpack.c.0.s8 %v815
    %v817 = vperm.slane %v809, %v816
    %v818 = vrot.slane %v801, 4
    %v819 = vsel %vm282, 0.0, %v818
    %v820 = vrot.slane %v805, 4
    %v821 = vsel %vm282, 0.0, %v820
    %v822 = vrot.slane %v813, 4
    %v823 = vsel %vm282, 0.0, %v822
    %v824 = vrot.slane %v817, 4
    %v825 = vsel %vm282, 0.0, %v824
    %v826 = vrot.slane %v757, 4
    %v827 = vsel %vm282, %v826, %v749
    %v828 = vrot.slane %v749, 4
    %v829 = vsel %vm282, %v757, %v828
    %v831 = vunpack.c.l.s4 1983009808
    %v832 = vunpack.c.0.s8 %v831
    %v833 = vperm.slane %v827, %v832
    %v835 = vunpack.c.l.s4 1983009808
    %v836 = vunpack.c.0.s8 %v835
    %v837 = vperm.slane %v829, %v836
    %v838 = vrot.slane %v761, 4
    %v839 = vsel %vm282, %v838, %v753
    %v840 = vrot.slane %v753, 4
    %v841 = vsel %vm282, %v761, %v840
    %v843 = vunpack.c.l.s4 1983009808
    %v844 = vunpack.c.0.s8 %v843
    %v845 = vperm.slane %v839, %v844
    %v847 = vunpack.c.l.s4 1983009808
    %v848 = vunpack.c.0.s8 %v847
    %v849 = vperm.slane %v841, %v848
    %v850 = vrot.slane %v845, 4
    %v851 = vsel %vm282, %v850, %v833
    %v852 = vrot.slane %v833, 4
    %v853 = vsel %vm282, %v845, %v852
    %v855 = vunpack.c.l.s4 1934713408
    %v856 = vunpack.c.0.s8 %v855
    %v857 = vperm.slane %v851, %v856
    %v859 = vunpack.c.l.s4 1934713408
    %v860 = vunpack.c.0.s8 %v859
    %v861 = vperm.slane %v853, %v860
    %v862 = vrot.slane %v849, 4
    %v863 = vsel %vm282, %v862, %v837
    %v864 = vrot.slane %v837, 4
    %v865 = vsel %vm282, %v849, %v864
    %v867 = vunpack.c.l.s4 1934713408
    %v868 = vunpack.c.0.s8 %v867
    %v869 = vperm.slane %v863, %v868
    %v871 = vunpack.c.l.s4 1934713408
    %v872 = vunpack.c.0.s8 %v871
    %v873 = vperm.slane %v865, %v872
    %v874 = vrot.slane %v857, 4
    %v875 = vsel %vm282, 0.0, %v874
    %v876 = vrot.slane %v861, 4
    %v877 = vsel %vm282, 0.0, %v876
    %v878 = vrot.slane %v869, 4
    %v879 = vsel %vm282, 0.0, %v878
    %v880 = vrot.slane %v873, 4
    %v881 = vsel %vm282, 0.0, %v880
    %v882 = vsel %vm282, %v820, %v801
    %v884 = vunpack.c.l.s4 1983009808
    %v885 = vunpack.c.0.s8 %v884
    %v886 = vperm.slane %v882, %v885
    %v887 = vrot.slane %v821, 4
    %v888 = vsel %vm282, %v887, %v819
    %v890 = vunpack.c.l.s4 1983009808
    %v891 = vunpack.c.0.s8 %v890
    %v892 = vperm.slane %v888, %v891
    %v893 = vsel %vm282, %v824, %v813
    %v895 = vunpack.c.l.s4 1983009808
    %v896 = vunpack.c.0.s8 %v895
    %v897 = vperm.slane %v893, %v896
    %v898 = vrot.slane %v825, 4
    %v899 = vsel %vm282, %v898, %v823
    %v901 = vunpack.c.l.s4 1983009808
    %v902 = vunpack.c.0.s8 %v901
    %v903 = vperm.slane %v899, %v902
    %v904 = vrot.slane %v892, 4
    %v905 = vsel %vm282, %v904, %v886
    %v906 = vrot.slane %v886, 4
    %v907 = vsel %vm282, %v892, %v906
    %v909 = vunpack.c.l.s4 1934713408
    %v910 = vunpack.c.0.s8 %v909
    %v911 = vperm.slane %v905, %v910
    %v913 = vunpack.c.l.s4 1934713408
    %v914 = vunpack.c.0.s8 %v913
    %v915 = vperm.slane %v907, %v914
    %v916 = vrot.slane %v903, 4
    %v917 = vsel %vm282, %v916, %v897
    %v918 = vrot.slane %v897, 4
    %v919 = vsel %vm282, %v903, %v918
    %v921 = vunpack.c.l.s4 1934713408
    %v922 = vunpack.c.0.s8 %v921
    %v923 = vperm.slane %v917, %v922
    %v925 = vunpack.c.l.s4 1934713408
    %v926 = vunpack.c.0.s8 %v925
    %v927 = vperm.slane %v919, %v926
    %v928 = vrot.slane %v923, 4
    %v929 = vsel %vm282, %v928, %v911
    %v930 = vrot.slane %v911, 4
    %v931 = vsel %vm282, %v923, %v930
    %v932 = vrot.slane %v927, 4
    %v933 = vsel %vm282, %v932, %v915
    %v934 = vrot.slane %v915, 4
    %v935 = vsel %vm282, %v927, %v934
    %v936 = vsel %vm282, %v876, %v857
    %v938 = vunpack.c.l.s4 1983009808
    %v939 = vunpack.c.0.s8 %v938
    %v940 = vperm.slane %v936, %v939
    %v941 = vrot.slane %v877, 4
    %v942 = vsel %vm282, %v941, %v875
    %v944 = vunpack.c.l.s4 1983009808
    %v945 = vunpack.c.0.s8 %v944
    %v946 = vperm.slane %v942, %v945
    %v947 = vsel %vm282, %v880, %v869
    %v949 = vunpack.c.l.s4 1983009808
    %v950 = vunpack.c.0.s8 %v949
    %v951 = vperm.slane %v947, %v950
    %v952 = vrot.slane %v881, 4
    %v953 = vsel %vm282, %v952, %v879
    %v955 = vunpack.c.l.s4 1983009808
    %v956 = vunpack.c.0.s8 %v955
    %v957 = vperm.slane %v953, %v956
    %v958 = vrot.slane %v946, 4
    %v959 = vsel %vm282, %v958, %v940
    %v960 = vrot.slane %v940, 4
    %v961 = vsel %vm282, %v946, %v960
    %v963 = vunpack.c.l.s4 1934713408
    %v964 = vunpack.c.0.s8 %v963
    %v965 = vperm.slane %v959, %v964
    %v967 = vunpack.c.l.s4 1934713408
    %v968 = vunpack.c.0.s8 %v967
    %v969 = vperm.slane %v961, %v968
    %v970 = vrot.slane %v957, 4
    %v971 = vsel %vm282, %v970, %v951
    %v972 = vrot.slane %v951, 4
    %v973 = vsel %vm282, %v957, %v972
    %v975 = vunpack.c.l.s4 1934713408
    %v976 = vunpack.c.0.s8 %v975
    %v977 = vperm.slane %v971, %v976
    %v979 = vunpack.c.l.s4 1934713408
    %v980 = vunpack.c.0.s8 %v979
    %v981 = vperm.slane %v973, %v980
    %v982 = vrot.slane %v977, 4
    %v983 = vsel %vm282, %v982, %v965
    %v984 = vrot.slane %v965, 4
    %v985 = vsel %vm282, %v977, %v984
    %v986 = vrot.slane %v981, 4
    %v987 = vsel %vm282, %v986, %v969
    %v988 = vrot.slane %v969, 4
    %v989 = vsel %vm282, %v981, %v988
    %vm990 = vcmask 64512
    %v992 = vsel %vm990, %v441, 0
    %v995 = vsel %vm990, %v685, 0
    %997 = vmatpush.xpose.msra.mxu0 0.0
    %998 = vmatpush.xpose.msra.mxu0 0.0
    %999 = vmatpush.xpose.msra.mxu0 0.0
    %1000 = vmatpush.xpose.msra.mxu0 0.0
    %1001 = vmatpush.xpose.msra.mxu0 0.0
    %1002 = vmatpush.xpose.msra.mxu0 0.0
    %1003 = vmatpush.xpose.msra.mxu0 0.0
    %1004 = vmatpush.xpose.msra.mxu0 0.0
    %1005 = vmatpush.xpose.msra.mxu0 0.0
    %1006 = vmatpush.xpose.msra.mxu0 0.0
    %1007 = vmatpush.xpose.msra.mxu0 0.0
    %1008 = vmatpush.xpose.msra.mxu0 0.0
    %1009 = vmatpush.xpose.msra.mxu0 0.0
    %1010 = vmatpush.xpose.msra.mxu0 0.0
    %1011 = vmatpush.xpose.msra.mxu0 0.0
    %1012 = vmatpush.xpose.msra.mxu0 %v995
    %1013 = vmatmul.f32.gmra.mxu0 %v992
    %v1014 = vpop.f32.mrf.mxu0
    %v1015 = vadd.f32 %v217, %v1014
    %1016 = vdwg.mxu0
    %v1018 = vsel %vm990, %v443, 0
    %v1021 = vsel %vm990, %v687, 0
    %1023 = vmatpush.xpose.msra.mxu0 0.0
    %1024 = vmatpush.xpose.msra.mxu0 0.0
    %1025 = vmatpush.xpose.msra.mxu0 0.0
    %1026 = vmatpush.xpose.msra.mxu0 0.0
    %1027 = vmatpush.xpose.msra.mxu0 0.0
    %1028 = vmatpush.xpose.msra.mxu0 0.0
    %1029 = vmatpush.xpose.msra.mxu0 0.0
    %1030 = vmatpush.xpose.msra.mxu0 0.0
    %1031 = vmatpush.xpose.msra.mxu0 0.0
    %1032 = vmatpush.xpose.msra.mxu0 0.0
    %1033 = vmatpush.xpose.msra.mxu0 0.0
    %1034 = vmatpush.xpose.msra.mxu0 0.0
    %1035 = vmatpush.xpose.msra.mxu0 0.0
    %1036 = vmatpush.xpose.msra.mxu0 0.0
    %1037 = vmatpush.xpose.msra.mxu0 0.0
    %1038 = vmatpush.xpose.msra.mxu0 %v1021
    %1039 = vmatmul.f32.gmra.mxu0 %v1018
    %v1040 = vpop.f32.mrf.mxu0
    %v1041 = vadd.f32 %v217, %v1040
    %1042 = vdwg.mxu0
    %v1044 = vsel %vm990, %v445, 0
    %v1047 = vsel %vm990, %v689, 0
    %1049 = vmatpush.xpose.msra.mxu0 0.0
    %1050 = vmatpush.xpose.msra.mxu0 0.0
    %1051 = vmatpush.xpose.msra.mxu0 0.0
    %1052 = vmatpush.xpose.msra.mxu0 0.0
    %1053 = vmatpush.xpose.msra.mxu0 0.0
    %1054 = vmatpush.xpose.msra.mxu0 0.0
    %1055 = vmatpush.xpose.msra.mxu0 0.0
    %1056 = vmatpush.xpose.msra.mxu0 0.0
    %1057 = vmatpush.xpose.msra.mxu0 0.0
    %1058 = vmatpush.xpose.msra.mxu0 0.0
    %1059 = vmatpush.xpose.msra.mxu0 0.0
    %1060 = vmatpush.xpose.msra.mxu0 0.0
    %1061 = vmatpush.xpose.msra.mxu0 0.0
    %1062 = vmatpush.xpose.msra.mxu0 0.0
    %1063 = vmatpush.xpose.msra.mxu0 0.0
    %1064 = vmatpush.xpose.msra.mxu0 %v1047
    %1065 = vmatmul.f32.gmra.mxu0 %v1044
    %v1066 = vpop.f32.mrf.mxu0
    %v1067 = vadd.f32 %v217, %v1066
    %1068 = vdwg.mxu0
    %v1070 = vsel %vm990, %v447, 0
    %v1073 = vsel %vm990, %v691, 0
    %1075 = vmatpush.xpose.msra.mxu0 0.0
    %1076 = vmatpush.xpose.msra.mxu0 0.0
    %1077 = vmatpush.xpose.msra.mxu0 0.0
    %1078 = vmatpush.xpose.msra.mxu0 0.0
    %1079 = vmatpush.xpose.msra.mxu0 0.0
    %1080 = vmatpush.xpose.msra.mxu0 0.0
    %1081 = vmatpush.xpose.msra.mxu0 0.0
    %1082 = vmatpush.xpose.msra.mxu0 0.0
    %1083 = vmatpush.xpose.msra.mxu0 0.0
    %1084 = vmatpush.xpose.msra.mxu0 0.0
    %1085 = vmatpush.xpose.msra.mxu0 0.0
    %1086 = vmatpush.xpose.msra.mxu0 0.0
    %1087 = vmatpush.xpose.msra.mxu0 0.0
    %1088 = vmatpush.xpose.msra.mxu0 0.0
    %1089 = vmatpush.xpose.msra.mxu0 0.0
    %1090 = vmatpush.xpose.msra.mxu0 %v1073
    %1091 = vmatmul.f32.gmra.mxu0 %v1070
    %v1092 = vpop.f32.mrf.mxu0
    %v1093 = vadd.f32 %v217, %v1092
    %1094 = vdwg.mxu0
    %v1096 = vsel %vm990, %v495, 0
    %v1099 = vsel %vm990, %v739, 0
    %1101 = vmatpush.xpose.msra.mxu0 0.0
    %1102 = vmatpush.xpose.msra.mxu0 0.0
    %1103 = vmatpush.xpose.msra.mxu0 0.0
    %1104 = vmatpush.xpose.msra.mxu0 0.0
    %1105 = vmatpush.xpose.msra.mxu0 0.0
    %1106 = vmatpush.xpose.msra.mxu0 0.0
    %1107 = vmatpush.xpose.msra.mxu0 0.0
    %1108 = vmatpush.xpose.msra.mxu0 0.0
    %1109 = vmatpush.xpose.msra.mxu0 0.0
    %1110 = vmatpush.xpose.msra.mxu0 0.0
    %1111 = vmatpush.xpose.msra.mxu0 0.0
    %1112 = vmatpush.xpose.msra.mxu0 0.0
    %1113 = vmatpush.xpose.msra.mxu0 0.0
    %1114 = vmatpush.xpose.msra.mxu0 0.0
    %1115 = vmatpush.xpose.msra.mxu0 0.0
    %1116 = vmatpush.xpose.msra.mxu0 %v1099
    %1117 = vmatmul.f32.gmra.mxu0 %v1096
    %v1118 = vpop.f32.mrf.mxu0
    %v1119 = vadd.f32 %v217, %v1118
    %1120 = vdwg.mxu0
    %v1122 = vsel %vm990, %v497, 0
    %v1125 = vsel %vm990, %v741, 0
    %1127 = vmatpush.xpose.msra.mxu0 0.0
    %1128 = vmatpush.xpose.msra.mxu0 0.0
    %1129 = vmatpush.xpose.msra.mxu0 0.0
    %1130 = vmatpush.xpose.msra.mxu0 0.0
    %1131 = vmatpush.xpose.msra.mxu0 0.0
    %1132 = vmatpush.xpose.msra.mxu0 0.0
    %1133 = vmatpush.xpose.msra.mxu0 0.0
    %1134 = vmatpush.xpose.msra.mxu0 0.0
    %1135 = vmatpush.xpose.msra.mxu0 0.0
    %1136 = vmatpush.xpose.msra.mxu0 0.0
    %1137 = vmatpush.xpose.msra.mxu0 0.0
    %1138 = vmatpush.xpose.msra.mxu0 0.0
    %1139 = vmatpush.xpose.msra.mxu0 0.0
    %1140 = vmatpush.xpose.msra.mxu0 0.0
    %1141 = vmatpush.xpose.msra.mxu0 0.0
    %1142 = vmatpush.xpose.msra.mxu0 %v1125
    %1143 = vmatmul.f32.gmra.mxu0 %v1122
    %v1144 = vpop.f32.mrf.mxu0
    %v1145 = vadd.f32 %v217, %v1144
    %1146 = vdwg.mxu0
    %v1148 = vsel %vm990, %v499, 0
    %v1151 = vsel %vm990, %v743, 0
    %1153 = vmatpush.xpose.msra.mxu0 0.0
    %1154 = vmatpush.xpose.msra.mxu0 0.0
    %1155 = vmatpush.xpose.msra.mxu0 0.0
    %1156 = vmatpush.xpose.msra.mxu0 0.0
    %1157 = vmatpush.xpose.msra.mxu0 0.0
    %1158 = vmatpush.xpose.msra.mxu0 0.0
    %1159 = vmatpush.xpose.msra.mxu0 0.0
    %1160 = vmatpush.xpose.msra.mxu0 0.0
    %1161 = vmatpush.xpose.msra.mxu0 0.0
    %1162 = vmatpush.xpose.msra.mxu0 0.0
    %1163 = vmatpush.xpose.msra.mxu0 0.0
    %1164 = vmatpush.xpose.msra.mxu0 0.0
    %1165 = vmatpush.xpose.msra.mxu0 0.0
    %1166 = vmatpush.xpose.msra.mxu0 0.0
    %1167 = vmatpush.xpose.msra.mxu0 0.0
    %1168 = vmatpush.xpose.msra.mxu0 %v1151
    %1169 = vmatmul.f32.gmra.mxu0 %v1148
    %v1170 = vpop.f32.mrf.mxu0
    %v1171 = vadd.f32 %v217, %v1170
    %1172 = vdwg.mxu0
    %v1174 = vsel %vm990, %v501, 0
    %v1177 = vsel %vm990, %v745, 0
    %1179 = vmatpush.xpose.msra.mxu0 0.0
    %1180 = vmatpush.xpose.msra.mxu0 0.0
    %1181 = vmatpush.xpose.msra.mxu0 0.0
    %1182 = vmatpush.xpose.msra.mxu0 0.0
    %1183 = vmatpush.xpose.msra.mxu0 0.0
    %1184 = vmatpush.xpose.msra.mxu0 0.0
    %1185 = vmatpush.xpose.msra.mxu0 0.0
    %1186 = vmatpush.xpose.msra.mxu0 0.0
    %1187 = vmatpush.xpose.msra.mxu0 0.0
    %1188 = vmatpush.xpose.msra.mxu0 0.0
    %1189 = vmatpush.xpose.msra.mxu0 0.0
    %1190 = vmatpush.xpose.msra.mxu0 0.0
    %1191 = vmatpush.xpose.msra.mxu0 0.0
    %1192 = vmatpush.xpose.msra.mxu0 0.0
    %1193 = vmatpush.xpose.msra.mxu0 0.0
    %1194 = vmatpush.xpose.msra.mxu0 %v1177
    %1195 = vmatmul.f32.gmra.mxu0 %v1174
    %v1196 = vpop.f32.mrf.mxu0
    %v1197 = vadd.f32 %v217, %v1196
    %1198 = vdwg.mxu0
    %v1199 = vsel %vm990, %v1015, -inf
    %1200 = vmax.xlane.f32.xlu0 %v1199
    %v1201 = vpop.xlane.xlu0 %1200
    %v1202 = vsel %vm990, %v1041, -inf
    %1203 = vmax.xlane.f32.xlu0 %v1202
    %v1204 = vpop.xlane.xlu0 %1203
    %v1205 = vsel %vm990, %v1067, -inf
    %1206 = vmax.xlane.f32.xlu0 %v1205
    %v1207 = vpop.xlane.xlu0 %1206
    %v1208 = vsel %vm990, %v1093, -inf
    %1209 = vmax.xlane.f32.xlu0 %v1208
    %v1210 = vpop.xlane.xlu0 %1209
    %v1211 = vsel %vm990, %v1119, -inf
    %1212 = vmax.xlane.f32.xlu0 %v1211
    %v1213 = vpop.xlane.xlu0 %1212
    %v1214 = vsel %vm990, %v1145, -inf
    %1215 = vmax.xlane.f32.xlu0 %v1214
    %v1216 = vpop.xlane.xlu0 %1215
    %v1217 = vsel %vm990, %v1171, -inf
    %1218 = vmax.xlane.f32.xlu0 %v1217
    %v1219 = vpop.xlane.xlu0 %1218
    %v1220 = vsel %vm990, %v1197, -inf
    %1221 = vmax.xlane.f32.xlu0 %v1220
    %v1222 = vpop.xlane.xlu0 %1221
    %v1223 = vsub.f32 %v1015, %v1201
    %v1224 = vsub.f32 %v1041, %v1204
    %v1225 = vsub.f32 %v1067, %v1207
    %v1226 = vsub.f32 %v1093, %v1210
    %v1227 = vsub.f32 %v1119, %v1213
    %v1228 = vsub.f32 %v1145, %v1216
    %v1229 = vsub.f32 %v1171, %v1219
    %v1230 = vsub.f32 %v1197, %v1222
    %v1231 = vmul.f32 %v1223, 1.442695
    %v1232 = vpow.pop %v1231
    %v1233 = vmul.f32 %v1224, 1.442695
    %v1234 = vpow.pop %v1233
    %v1235 = vmul.f32 %v1225, 1.442695
    %v1236 = vpow.pop %v1235
    %v1237 = vmul.f32 %v1226, 1.442695
    %v1238 = vpow.pop %v1237
    %v1239 = vmul.f32 %v1227, 1.442695
    %v1240 = vpow.pop %v1239
    %v1241 = vmul.f32 %v1228, 1.442695
    %v1242 = vpow.pop %v1241
    %v1243 = vmul.f32 %v1229, 1.442695
    %v1244 = vpow.pop %v1243
    %v1245 = vmul.f32 %v1230, 1.442695
    %v1246 = vpow.pop %v1245
    %v1247 = vsel %vm990, %v1232, 0.0
    %1248 = vadd.xlane.f32.xlu0 %v1247
    %v1249 = vpop.xlane.xlu0 %1248
    %v1250 = vsel %vm990, %v1234, 0.0
    %1251 = vadd.xlane.f32.xlu0 %v1250
    %v1252 = vpop.xlane.xlu0 %1251
    %v1253 = vsel %vm990, %v1236, 0.0
    %1254 = vadd.xlane.f32.xlu0 %v1253
    %v1255 = vpop.xlane.xlu0 %1254
    %v1256 = vsel %vm990, %v1238, 0.0
    %1257 = vadd.xlane.f32.xlu0 %v1256
    %v1258 = vpop.xlane.xlu0 %1257
    %v1259 = vsel %vm990, %v1240, 0.0
    %1260 = vadd.xlane.f32.xlu0 %v1259
    %v1261 = vpop.xlane.xlu0 %1260
    %v1262 = vsel %vm990, %v1242, 0.0
    %1263 = vadd.xlane.f32.xlu0 %v1262
    %v1264 = vpop.xlane.xlu0 %1263
    %v1265 = vsel %vm990, %v1244, 0.0
    %1266 = vadd.xlane.f32.xlu0 %v1265
    %v1267 = vpop.xlane.xlu0 %1266
    %v1268 = vsel %vm990, %v1246, 0.0
    %1269 = vadd.xlane.f32.xlu0 %v1268
    %v1270 = vpop.xlane.xlu0 %1269
    %v1271 = vrcp.pop %v1249
    %v1272 = vrcp.pop %v1252
    %v1273 = vrcp.pop %v1255
    %v1274 = vrcp.pop %v1258
    %v1275 = vrcp.pop %v1261
    %v1276 = vrcp.pop %v1264
    %v1277 = vrcp.pop %v1267
    %v1278 = vrcp.pop %v1270
    %v1279 = vmul.f32 %v1232, %v1271
    %v1280 = vmul.f32 %v1234, %v1272
    %v1281 = vmul.f32 %v1236, %v1273
    %v1282 = vmul.f32 %v1238, %v1274
    %v1283 = vmul.f32 %v1240, %v1275
    %v1284 = vmul.f32 %v1242, %v1276
    %v1285 = vmul.f32 %v1244, %v1277
    %v1286 = vmul.f32 %v1246, %v1278
    %v1288 = vsel %vm990, %v1279, 0
    %1290 = vmatpush.msra.mxu0 0.0
    %1291 = vmatpush.msra.mxu0 0.0
    %1292 = vmatpush.msra.mxu0 0.0
    %1293 = vmatpush.msra.mxu0 0.0
    %1294 = vmatpush.msra.mxu0 0.0
    %1295 = vmatpush.msra.mxu0 0.0
    %1296 = vmatpush.msra.mxu0 0.0
    %1297 = vmatpush.msra.mxu0 0.0
    %1298 = vmatpush.msra.mxu0 0.0
    %1299 = vmatpush.msra.mxu0 0.0
    %1300 = vmatpush.msra.mxu0 0.0
    %1301 = vmatpush.msra.mxu0 0.0
    %1302 = vmatpush.msra.mxu0 0.0
    %1303 = vmatpush.msra.mxu0 0.0
    %1304 = vmatpush.msra.mxu0 0.0
    %1305 = vmatpush.msra.mxu0 %v929
    %1306 = vmatmul.f32.gmra.mxu0 %v1288
    %v1307 = vpop.f32.mrf.mxu0
    %v1308 = vadd.f32 0.0, %v1307
    %1309 = vdwg.mxu0
    %v1311 = vsel %vm990, %v1280, 0
    %1313 = vmatpush.msra.mxu0 0.0
    %1314 = vmatpush.msra.mxu0 0.0
    %1315 = vmatpush.msra.mxu0 0.0
    %1316 = vmatpush.msra.mxu0 0.0
    %1317 = vmatpush.msra.mxu0 0.0
    %1318 = vmatpush.msra.mxu0 0.0
    %1319 = vmatpush.msra.mxu0 0.0
    %1320 = vmatpush.msra.mxu0 0.0
    %1321 = vmatpush.msra.mxu0 0.0
    %1322 = vmatpush.msra.mxu0 0.0
    %1323 = vmatpush.msra.mxu0 0.0
    %1324 = vmatpush.msra.mxu0 0.0
    %1325 = vmatpush.msra.mxu0 0.0
    %1326 = vmatpush.msra.mxu0 0.0
    %1327 = vmatpush.msra.mxu0 0.0
    %1328 = vmatpush.msra.mxu0 %v931
    %1329 = vmatmul.f32.gmra.mxu0 %v1311
    %v1330 = vpop.f32.mrf.mxu0
    %v1331 = vadd.f32 0.0, %v1330
    %1332 = vdwg.mxu0
    %v1334 = vsel %vm990, %v1281, 0
    %1336 = vmatpush.msra.mxu0 0.0
    %1337 = vmatpush.msra.mxu0 0.0
    %1338 = vmatpush.msra.mxu0 0.0
    %1339 = vmatpush.msra.mxu0 0.0
    %1340 = vmatpush.msra.mxu0 0.0
    %1341 = vmatpush.msra.mxu0 0.0
    %1342 = vmatpush.msra.mxu0 0.0
    %1343 = vmatpush.msra.mxu0 0.0
    %1344 = vmatpush.msra.mxu0 0.0
    %1345 = vmatpush.msra.mxu0 0.0
    %1346 = vmatpush.msra.mxu0 0.0
    %1347 = vmatpush.msra.mxu0 0.0
    %1348 = vmatpush.msra.mxu0 0.0
    %1349 = vmatpush.msra.mxu0 0.0
    %1350 = vmatpush.msra.mxu0 0.0
    %1351 = vmatpush.msra.mxu0 %v933
    %1352 = vmatmul.f32.gmra.mxu0 %v1334
    %v1353 = vpop.f32.mrf.mxu0
    %v1354 = vadd.f32 0.0, %v1353
    %1355 = vdwg.mxu0
    %v1357 = vsel %vm990, %v1282, 0
    %1359 = vmatpush.msra.mxu0 0.0
    %1360 = vmatpush.msra.mxu0 0.0
    %1361 = vmatpush.msra.mxu0 0.0
    %1362 = vmatpush.msra.mxu0 0.0
    %1363 = vmatpush.msra.mxu0 0.0
    %1364 = vmatpush.msra.mxu0 0.0
    %1365 = vmatpush.msra.mxu0 0.0
    %1366 = vmatpush.msra.mxu0 0.0
    %1367 = vmatpush.msra.mxu0 0.0
    %1368 = vmatpush.msra.mxu0 0.0
    %1369 = vmatpush.msra.mxu0 0.0
    %1370 = vmatpush.msra.mxu0 0.0
    %1371 = vmatpush.msra.mxu0 0.0
    %1372 = vmatpush.msra.mxu0 0.0
    %1373 = vmatpush.msra.mxu0 0.0
    %1374 = vmatpush.msra.mxu0 %v935
    %1375 = vmatmul.f32.gmra.mxu0 %v1357
    %v1376 = vpop.f32.mrf.mxu0
    %v1377 = vadd.f32 0.0, %v1376
    %1378 = vdwg.mxu0
    %v1380 = vsel %vm990, %v1283, 0
    %1382 = vmatpush.msra.mxu0 0.0
    %1383 = vmatpush.msra.mxu0 0.0
    %1384 = vmatpush.msra.mxu0 0.0
    %1385 = vmatpush.msra.mxu0 0.0
    %1386 = vmatpush.msra.mxu0 0.0
    %1387 = vmatpush.msra.mxu0 0.0
    %1388 = vmatpush.msra.mxu0 0.0
    %1389 = vmatpush.msra.mxu0 0.0
    %1390 = vmatpush.msra.mxu0 0.0
    %1391 = vmatpush.msra.mxu0 0.0
    %1392 = vmatpush.msra.mxu0 0.0
    %1393 = vmatpush.msra.mxu0 0.0
    %1394 = vmatpush.msra.mxu0 0.0
    %1395 = vmatpush.msra.mxu0 0.0
    %1396 = vmatpush.msra.mxu0 0.0
    %1397 = vmatpush.msra.mxu0 %v983
    %1398 = vmatmul.f32.gmra.mxu0 %v1380
    %v1399 = vpop.f32.mrf.mxu0
    %v1400 = vadd.f32 0.0, %v1399
    %1401 = vdwg.mxu0
    %v1403 = vsel %vm990, %v1284, 0
    %1405 = vmatpush.msra.mxu0 0.0
    %1406 = vmatpush.msra.mxu0 0.0
    %1407 = vmatpush.msra.mxu0 0.0
    %1408 = vmatpush.msra.mxu0 0.0
    %1409 = vmatpush.msra.mxu0 0.0
    %1410 = vmatpush.msra.mxu0 0.0
    %1411 = vmatpush.msra.mxu0 0.0
    %1412 = vmatpush.msra.mxu0 0.0
    %1413 = vmatpush.msra.mxu0 0.0
    %1414 = vmatpush.msra.mxu0 0.0
    %1415 = vmatpush.msra.mxu0 0.0
    %1416 = vmatpush.msra.mxu0 0.0
    %1417 = vmatpush.msra.mxu0 0.0
    %1418 = vmatpush.msra.mxu0 0.0
    %1419 = vmatpush.msra.mxu0 0.0
    %1420 = vmatpush.msra.mxu0 %v985
    %1421 = vmatmul.f32.gmra.mxu0 %v1403
    %v1422 = vpop.f32.mrf.mxu0
    %v1423 = vadd.f32 0.0, %v1422
    %1424 = vdwg.mxu0
    %v1426 = vsel %vm990, %v1285, 0
    %1428 = vmatpush.msra.mxu0 0.0
    %1429 = vmatpush.msra.mxu0 0.0
    %1430 = vmatpush.msra.mxu0 0.0
    %1431 = vmatpush.msra.mxu0 0.0
    %1432 = vmatpush.msra.mxu0 0.0
    %1433 = vmatpush.msra.mxu0 0.0
    %1434 = vmatpush.msra.mxu0 0.0
    %1435 = vmatpush.msra.mxu0 0.0
    %1436 = vmatpush.msra.mxu0 0.0
    %1437 = vmatpush.msra.mxu0 0.0
    %1438 = vmatpush.msra.mxu0 0.0
    %1439 = vmatpush.msra.mxu0 0.0
    %1440 = vmatpush.msra.mxu0 0.0
    %1441 = vmatpush.msra.mxu0 0.0
    %1442 = vmatpush.msra.mxu0 0.0
    %1443 = vmatpush.msra.mxu0 %v987
    %1444 = vmatmul.f32.gmra.mxu0 %v1426
    %v1445 = vpop.f32.mrf.mxu0
    %v1446 = vadd.f32 0.0, %v1445
    %1447 = vdwg.mxu0
    %v1449 = vsel %vm990, %v1286, 0
    %1451 = vmatpush.msra.mxu0 0.0
    %1452 = vmatpush.msra.mxu0 0.0
    %1453 = vmatpush.msra.mxu0 0.0
    %1454 = vmatpush.msra.mxu0 0.0
    %1455 = vmatpush.msra.mxu0 0.0
    %1456 = vmatpush.msra.mxu0 0.0
    %1457 = vmatpush.msra.mxu0 0.0
    %1458 = vmatpush.msra.mxu0 0.0
    %1459 = vmatpush.msra.mxu0 0.0
    %1460 = vmatpush.msra.mxu0 0.0
    %1461 = vmatpush.msra.mxu0 0.0
    %1462 = vmatpush.msra.mxu0 0.0
    %1463 = vmatpush.msra.mxu0 0.0
    %1464 = vmatpush.msra.mxu0 0.0
    %1465 = vmatpush.msra.mxu0 0.0
    %1466 = vmatpush.msra.mxu0 %v989
    %1467 = vmatmul.f32.gmra.mxu0 %v1449
    %v1468 = vpop.f32.mrf.mxu0
    %v1469 = vadd.f32 0.0, %v1468
    %1470 = vdwg.mxu0
    %v1471 = vrot.slane %v1354, 4
    %v1472 = vsel %vm282, %v1471, %v1308
    %v1473 = vrot.slane %v1308, 4
    %v1474 = vsel %vm282, %v1354, %v1473
    %v1476 = vunpack.c.l.s4 1983009808
    %v1477 = vunpack.c.0.s8 %v1476
    %v1478 = vperm.slane %v1472, %v1477
    %v1480 = vunpack.c.l.s4 1983009808
    %v1481 = vunpack.c.0.s8 %v1480
    %v1482 = vperm.slane %v1474, %v1481
    %v1483 = vrot.slane %v1377, 4
    %v1484 = vsel %vm282, %v1483, %v1331
    %v1485 = vrot.slane %v1331, 4
    %v1486 = vsel %vm282, %v1377, %v1485
    %v1488 = vunpack.c.l.s4 1983009808
    %v1489 = vunpack.c.0.s8 %v1488
    %v1490 = vperm.slane %v1484, %v1489
    %v1492 = vunpack.c.l.s4 1983009808
    %v1493 = vunpack.c.0.s8 %v1492
    %v1494 = vperm.slane %v1486, %v1493
    %v1495 = vrot.slane %v1490, 4
    %v1496 = vsel %vm282, %v1495, %v1478
    %v1497 = vrot.slane %v1478, 4
    %v1498 = vsel %vm282, %v1490, %v1497
    %v1500 = vunpack.c.l.s4 1934713408
    %v1501 = vunpack.c.0.s8 %v1500
    %v1502 = vperm.slane %v1496, %v1501
    %v1504 = vunpack.c.l.s4 1934713408
    %v1505 = vunpack.c.0.s8 %v1504
    %v1506 = vperm.slane %v1498, %v1505
    %v1507 = vrot.slane %v1494, 4
    %v1508 = vsel %vm282, %v1507, %v1482
    %v1509 = vrot.slane %v1482, 4
    %v1510 = vsel %vm282, %v1494, %v1509
    %v1512 = vunpack.c.l.s4 1934713408
    %v1513 = vunpack.c.0.s8 %v1512
    %v1514 = vperm.slane %v1508, %v1513
    %v1516 = vunpack.c.l.s4 1934713408
    %v1517 = vunpack.c.0.s8 %v1516
    %v1518 = vperm.slane %v1510, %v1517
    %v1519 = vrot.slane %v1502, 4
    %v1520 = vsel %vm282, 0.0, %v1519
    %v1521 = vrot.slane %v1506, 4
    %v1522 = vsel %vm282, 0.0, %v1521
    %v1523 = vrot.slane %v1514, 4
    %v1524 = vsel %vm282, 0.0, %v1523
    %v1525 = vrot.slane %v1518, 4
    %v1526 = vsel %vm282, 0.0, %v1525
    %v1527 = vrot.slane %v1446, 4
    %v1528 = vsel %vm282, %v1527, %v1400
    %v1529 = vrot.slane %v1400, 4
    %v1530 = vsel %vm282, %v1446, %v1529
    %v1532 = vunpack.c.l.s4 1983009808
    %v1533 = vunpack.c.0.s8 %v1532
    %v1534 = vperm.slane %v1528, %v1533
    %v1536 = vunpack.c.l.s4 1983009808
    %v1537 = vunpack.c.0.s8 %v1536
    %v1538 = vperm.slane %v1530, %v1537
    %v1539 = vrot.slane %v1469, 4
    %v1540 = vsel %vm282, %v1539, %v1423
    %v1541 = vrot.slane %v1423, 4
    %v1542 = vsel %vm282, %v1469, %v1541
    %v1544 = vunpack.c.l.s4 1983009808
    %v1545 = vunpack.c.0.s8 %v1544
    %v1546 = vperm.slane %v1540, %v1545
    %v1548 = vunpack.c.l.s4 1983009808
    %v1549 = vunpack.c.0.s8 %v1548
    %v1550 = vperm.slane %v1542, %v1549
    %v1551 = vrot.slane %v1546, 4
    %v1552 = vsel %vm282, %v1551, %v1534
    %v1553 = vrot.slane %v1534, 4
    %v1554 = vsel %vm282, %v1546, %v1553
    %v1556 = vunpack.c.l.s4 1934713408
    %v1557 = vunpack.c.0.s8 %v1556
    %v1558 = vperm.slane %v1552, %v1557
    %v1560 = vunpack.c.l.s4 1934713408
    %v1561 = vunpack.c.0.s8 %v1560
    %v1562 = vperm.slane %v1554, %v1561
    %v1563 = vrot.slane %v1550, 4
    %v1564 = vsel %vm282, %v1563, %v1538
    %v1565 = vrot.slane %v1538, 4
    %v1566 = vsel %vm282, %v1550, %v1565
    %v1568 = vunpack.c.l.s4 1934713408
    %v1569 = vunpack.c.0.s8 %v1568
    %v1570 = vperm.slane %v1564, %v1569
    %v1572 = vunpack.c.l.s4 1934713408
    %v1573 = vunpack.c.0.s8 %v1572
    %v1574 = vperm.slane %v1566, %v1573
    %v1575 = vrot.slane %v1558, 4
    %v1576 = vsel %vm282, 0.0, %v1575
    %v1577 = vrot.slane %v1562, 4
    %v1578 = vsel %vm282, 0.0, %v1577
    %v1579 = vrot.slane %v1570, 4
    %v1580 = vsel %vm282, 0.0, %v1579
    %v1581 = vrot.slane %v1574, 4
    %v1582 = vsel %vm282, 0.0, %v1581
    %v1583 = vsel %vm282, %v1521, %v1502
    %v1585 = vunpack.c.l.s4 1983009808
    %v1586 = vunpack.c.0.s8 %v1585
    %v1587 = vperm.slane %v1583, %v1586
    %v1588 = vrot.slane %v1522, 4
    %v1589 = vsel %vm282, %v1588, %v1520
    %v1591 = vunpack.c.l.s4 1983009808
    %v1592 = vunpack.c.0.s8 %v1591
    %v1593 = vperm.slane %v1589, %v1592
    %v1594 = vsel %vm282, %v1525, %v1514
    %v1596 = vunpack.c.l.s4 1983009808
    %v1597 = vunpack.c.0.s8 %v1596
    %v1598 = vperm.slane %v1594, %v1597
    %v1599 = vrot.slane %v1526, 4
    %v1600 = vsel %vm282, %v1599, %v1524
    %v1602 = vunpack.c.l.s4 1983009808
    %v1603 = vunpack.c.0.s8 %v1602
    %v1604 = vperm.slane %v1600, %v1603
    %v1605 = vrot.slane %v1593, 4
    %v1606 = vsel %vm282, %v1605, %v1587
    %v1607 = vrot.slane %v1587, 4
    %v1608 = vsel %vm282, %v1593, %v1607
    %v1610 = vunpack.c.l.s4 1934713408
    %v1611 = vunpack.c.0.s8 %v1610
    %v1612 = vperm.slane %v1606, %v1611
    %v1614 = vunpack.c.l.s4 1934713408
    %v1615 = vunpack.c.0.s8 %v1614
    %v1616 = vperm.slane %v1608, %v1615
    %v1617 = vrot.slane %v1604, 4
    %v1618 = vsel %vm282, %v1617, %v1598
    %v1619 = vrot.slane %v1598, 4
    %v1620 = vsel %vm282, %v1604, %v1619
    %v1622 = vunpack.c.l.s4 1934713408
    %v1623 = vunpack.c.0.s8 %v1622
    %v1624 = vperm.slane %v1618, %v1623
    %v1626 = vunpack.c.l.s4 1934713408
    %v1627 = vunpack.c.0.s8 %v1626
    %v1628 = vperm.slane %v1620, %v1627
    %v1629 = vrot.slane %v1624, 4
    %v1630 = vsel %vm282, %v1629, %v1612
    %v1631 = vrot.slane %v1612, 4
    %v1632 = vsel %vm282, %v1624, %v1631
    %v1633 = vrot.slane %v1628, 4
    %v1634 = vsel %vm282, %v1633, %v1616
    %v1635 = vrot.slane %v1616, 4
    %v1636 = vsel %vm282, %v1628, %v1635
    %v1637 = vsel %vm282, %v1577, %v1558
    %v1639 = vunpack.c.l.s4 1983009808
    %v1640 = vunpack.c.0.s8 %v1639
    %v1641 = vperm.slane %v1637, %v1640
    %v1642 = vrot.slane %v1578, 4
    %v1643 = vsel %vm282, %v1642, %v1576
    %v1645 = vunpack.c.l.s4 1983009808
    %v1646 = vunpack.c.0.s8 %v1645
    %v1647 = vperm.slane %v1643, %v1646
    %v1648 = vsel %vm282, %v1581, %v1570
    %v1650 = vunpack.c.l.s4 1983009808
    %v1651 = vunpack.c.0.s8 %v1650
    %v1652 = vperm.slane %v1648, %v1651
    %v1653 = vrot.slane %v1582, 4
    %v1654 = vsel %vm282, %v1653, %v1580
    %v1656 = vunpack.c.l.s4 1983009808
    %v1657 = vunpack.c.0.s8 %v1656
    %v1658 = vperm.slane %v1654, %v1657
    %v1659 = vrot.slane %v1647, 4
    %v1660 = vsel %vm282, %v1659, %v1641
    %v1661 = vrot.slane %v1641, 4
    %v1662 = vsel %vm282, %v1647, %v1661
    %v1664 = vunpack.c.l.s4 1934713408
    %v1665 = vunpack.c.0.s8 %v1664
    %v1666 = vperm.slane %v1660, %v1665
    %v1668 = vunpack.c.l.s4 1934713408
    %v1669 = vunpack.c.0.s8 %v1668
    %v1670 = vperm.slane %v1662, %v1669
    %v1671 = vrot.slane %v1658, 4
    %v1672 = vsel %vm282, %v1671, %v1652
    %v1673 = vrot.slane %v1652, 4
    %v1674 = vsel %vm282, %v1658, %v1673
    %v1676 = vunpack.c.l.s4 1934713408
    %v1677 = vunpack.c.0.s8 %v1676
    %v1678 = vperm.slane %v1672, %v1677
    %v1680 = vunpack.c.l.s4 1934713408
    %v1681 = vunpack.c.0.s8 %v1680
    %v1682 = vperm.slane %v1674, %v1681
    %v1683 = vrot.slane %v1678, 4
    %v1684 = vsel %vm282, %v1683, %v1666
    %v1685 = vrot.slane %v1666, 4
    %v1686 = vsel %vm282, %v1678, %v1685
    %v1687 = vrot.slane %v1682, 4
    %v1688 = vsel %vm282, %v1687, %v1670
    %v1689 = vrot.slane %v1670, 4
    %v1690 = vsel %vm282, %v1682, %v1689
    %1693 = vrot.lane.b32.xlu0 %v1632, 8
    %v1694 = vpop.permute.xlu0 %1693
    %1695 = vrot.lane.b32.xlu0 %v1686, 8
    %v1696 = vpop.permute.xlu0 %1695
    %1701 = vrot.lane.b32.xlu0 %v1634, 16
    %v1702 = vpop.permute.xlu0 %1701
    %1703 = vrot.lane.b32.xlu0 %v1688, 16
    %v1704 = vpop.permute.xlu0 %1703
    %1709 = vrot.lane.b32.xlu0 %v1636, 24
    %v1710 = vpop.permute.xlu0 %1709
    %1711 = vrot.lane.b32.xlu0 %v1690, 24
    %v1712 = vpop.permute.xlu0 %1711
    %v1715 = vsel %vm990, %v1630, %v1694
    %v1716 = vsel %vm990, %v1684, %v1696
    %vm1717 = vcmask 130048
    %v1718 = vsel %vm1717, %v1715, %v1702
    %v1719 = vsel %vm1717, %v1716, %v1704
    %vm1720 = vcmask 195584
    %v1721 = vsel %vm1720, %v1718, %v1710
    %v1722 = vsel %vm1720, %v1719, %v1712
    %v1724 = vperm.slane %v260, 0
    %v1727 = vsel %vm226, %v1721, 0
    %v1730 = vsel %vm226, %v1722, 0
    %1732 = vmatpush.msra.mxu0 0.0
    %1733 = vmatpush.msra.mxu0 0.0
    %1734 = vmatpush.msra.mxu0 0.0
    %1735 = vmatpush.msra.mxu0 0.0
    %1736 = vmatpush.msra.mxu0 0.0
    %1737 = vmatpush.msra.mxu0 0.0
    %1738 = vmatpush.msra.mxu0 0.0
    %1739 = vmatpush.msra.mxu0 0.0
    %1740 = vmatpush.msra.mxu0 0.0
    %1741 = vmatpush.msra.mxu0 0.0
    %1742 = vmatpush.msra.mxu0 0.0
    %1743 = vmatpush.msra.mxu0 0.0
    %1744 = vmatpush.msra.mxu0 %v259
    %1745 = vmatpush.msra.mxu0 %v258
    %1746 = vmatpush.msra.mxu0 %v257
    %1747 = vmatpush.msra.mxu0 %v256
    %1748 = vmatmul.f32.gmra.mxu0 %v1727
    %v1749 = vpop.f32.mrf.mxu0
    %v1750 = vadd.f32 %v1724, %v1749
    %1751 = vmatmul.f32.gmra.mxu0 %v1730
    %v1752 = vpop.f32.mrf.mxu0
    %v1753 = vadd.f32 %v1724, %v1752
    %1754 = vdwg.mxu0
    %v1755 = vadd.f32 %v215, %v1750
    %v1756 = vadd.f32 %v216, %v1753
    %v1757 = vld [vmem:[#allocation8] sm:$0x1]
    %v1758 = vld [vmem:[#allocation10] sm:$0x1]
    %v1759 = vsel %vm226, %v1755, 0.0
    %1760 = vadd.xlane.f32.xlu0 %v1759
    %v1761 = vpop.xlane.xlu0 %1760
    %v1762 = vsel %vm226, %v1756, 0.0
    %1763 = vadd.xlane.f32.xlu0 %v1762
    %v1764 = vpop.xlane.xlu0 %1763
    %v1765 = vrcp.pop 32.0
    %v1766 = vmul.f32 32.0, %v1765
    %v1767 = vsub.f32 1.0, %v1766
    %v1768 = vmul.f32 %v1765, %v1767
    %v1769 = vadd.f32 %v1765, %v1768
    %vm1770 = vweird.f32 %v1765
    %v1771 = vsel %vm1770, %v1765, %v1769
    %v1772 = vmul.f32 %v1761, %v1771
    %v1773 = vmul.f32 %v1764, %v1771
    %v1774 = vsub.f32 %v1755, %v1772
    %v1775 = vsub.f32 %v1756, %v1773
    %v1776 = vmul.f32 %v1774, %v1774
    %v1777 = vmul.f32 %v1775, %v1775
    %v1778 = vsel %vm226, %v1776, 0.0
    %1779 = vadd.xlane.f32.xlu0 %v1778
    %v1780 = vpop.xlane.xlu0 %1779
    %v1781 = vsel %vm226, %v1777, 0.0
    %1782 = vadd.xlane.f32.xlu0 %v1781
    %v1783 = vpop.xlane.xlu0 %1782
    %v1784 = vmul.f32 %v1780, %v1771
    %v1785 = vmul.f32 %v1783, %v1771
    %v1786 = vadd.f32 %v1784, 1e-05
    %v1787 = vadd.f32 %v1785, 1e-05
    %v1788 = vrsqrt.pop %v1786
    %v1789 = vmul.f32 %v1788, %v1786
    %v1790 = vmul.f32 %v1789, %v1788
    %v1791 = vmul.f32 0.5, %v1790
    %v1792 = vsub.f32 1.5, %v1791
    %v1793 = vmul.f32 %v1788, %v1792
    %vm1794 = vweird.f32 %v1786
    %vm1795 = vweird.f32 %v1788
    %vm1796 = vmor %vm1794, %vm1795
    %v1797 = vsel %vm1796, %v1788, %v1793
    %v1798 = vrsqrt.pop %v1787
    %v1799 = vmul.f32 %v1798, %v1787
    %v1800 = vmul.f32 %v1799, %v1798
    %v1801 = vmul.f32 0.5, %v1800
    %v1802 = vsub.f32 1.5, %v1801
    %v1803 = vmul.f32 %v1798, %v1802
    %vm1804 = vweird.f32 %v1787
    %vm1805 = vweird.f32 %v1798
    %vm1806 = vmor %vm1804, %vm1805
    %v1807 = vsel %vm1806, %v1798, %v1803
    %v1808 = vmul.f32 %v1774, %v1797
    %v1809 = vmul.f32 %v1775, %v1807
    %v1811 = vperm.slane %v1757, 0
    %v1813 = vmul.f32 %v1808, %v1811
    %v1814 = vmul.f32 %v1809, %v1811
    %v1816 = vperm.slane %v1758, 0
    %v1818 = vadd.f32 %v1813, %v1816
    %v1819 = vadd.f32 %v1814, %v1816
    %v1820 = vld [vmem:[%s9] sm:$0xff]
    %v1821 = vld [vmem:[%s9 + $0x8] sm:$0xff]
    %v1822 = vld [vmem:[%s9 + $0x10] sm:$0xff]
    %v1823 = vld [vmem:[%s9 + $0x18] sm:$0xff]
    %v1824 = vld [vmem:[%s10] sm:$0x1]
    %v1826 = vperm.slane %v1824, 0
    %v1829 = vsel %vm226, %v1818, 0
    %v1832 = vsel %vm226, %v1819, 0
    %1834 = vmatpush.msra.mxu0 0.0
    %1835 = vmatpush.msra.mxu0 0.0
    %1836 = vmatpush.msra.mxu0 0.0
    %1837 = vmatpush.msra.mxu0 0.0
    %1838 = vmatpush.msra.mxu0 0.0
    %1839 = vmatpush.msra.mxu0 0.0
    %1840 = vmatpush.msra.mxu0 0.0
    %1841 = vmatpush.msra.mxu0 0.0
    %1842 = vmatpush.msra.mxu0 0.0
    %1843 = vmatpush.msra.mxu0 0.0
    %1844 = vmatpush.msra.mxu0 0.0
    %1845 = vmatpush.msra.mxu0 0.0
    %1846 = vmatpush.msra.mxu0 %v1823
    %1847 = vmatpush.msra.mxu0 %v1822
    %1848 = vmatpush.msra.mxu0 %v1821
    %1849 = vmatpush.msra.mxu0 %v1820
    %1850 = vmatmul.f32.gmra.mxu0 %v1829
    %v1851 = vpop.f32.mrf.mxu0
    %v1852 = vadd.f32 %v1826, %v1851
    %1853 = vmatmul.f32.gmra.mxu0 %v1832
    %v1854 = vpop.f32.mrf.mxu0
    %v1855 = vadd.f32 %v1826, %v1854
    %1856 = vdwg.mxu0
    %v1857 = vld [vmem:[#allocation11] sm:$0xff]
    %v1858 = vld [vmem:[#allocation11 + $0x8] sm:$0xff]
    %v1859 = vld [vmem:[#allocation11 + $0x10] sm:$0xff]
    %v1860 = vld [vmem:[#allocation11 + $0x18] sm:$0xff]
    %v1861 = vld [vmem:[%s12] sm:$0x1]
    %v1863 = vperm.slane %v1861, 0
    %v1866 = vsel %vm226, %v213, 0
    %v1869 = vsel %vm226, %v214, 0
    %1871 = vmatpush.msra.mxu0 0.0
    %1872 = vmatpush.msra.mxu0 0.0
    %1873 = vmatpush.msra.mxu0 0.0
    %1874 = vmatpush.msra.mxu0 0.0
    %1875 = vmatpush.msra.mxu0 0.0
    %1876 = vmatpush.msra.mxu0 0.0
    %1877 = vmatpush.msra.mxu0 0.0
    %1878 = vmatpush.msra.mxu0 0.0
    %1879 = vmatpush.msra.mxu0 0.0
    %1880 = vmatpush.msra.mxu0 0.0
    %1881 = vmatpush.msra.mxu0 0.0
    %1882 = vmatpush.msra.mxu0 0.0
    %1883 = vmatpush.msra.mxu0 %v1860
    %1884 = vmatpush.msra.mxu0 %v1859
    %1885 = vmatpush.msra.mxu0 %v1858
    %1886 = vmatpush.msra.mxu0 %v1857
    %1887 = vmatmul.f32.gmra.mxu0 %v1866
    %v1888 = vpop.f32.mrf.mxu0
    %v1889 = vadd.f32 %v1863, %v1888
    %1890 = vmatmul.f32.gmra.mxu0 %v1869
    %v1891 = vpop.f32.mrf.mxu0
    %v1892 = vadd.f32 %v1863, %v1891
    %1893 = vdwg.mxu0
    %v1894 = vld [vmem:[#allocation13] sm:$0xff]
    %v1895 = vld [vmem:[#allocation13 + $0x8] sm:$0xff]
    %v1896 = vld [vmem:[#allocation13 + $0x10] sm:$0xff]
    %v1897 = vld [vmem:[#allocation13 + $0x18] sm:$0xff]
    %v1898 = vld [vmem:[%s14] sm:$0x1]
    %1901 = vrot.lane.b32.xlu0 %v1852, 120
    %v1902 = vpop.permute.xlu0 %1901
    %1903 = vrot.lane.b32.xlu0 %v1855, 120
    %v1904 = vpop.permute.xlu0 %1903
    %1907 = vrot.lane.b32.xlu0 %v1852, 112
    %v1908 = vpop.permute.xlu0 %1907
    %1909 = vrot.lane.b32.xlu0 %v1855, 112
    %v1910 = vpop.permute.xlu0 %1909
    %1913 = vrot.lane.b32.xlu0 %v1852, 104
    %v1914 = vpop.permute.xlu0 %1913
    %1915 = vrot.lane.b32.xlu0 %v1855, 104
    %v1916 = vpop.permute.xlu0 %1915
    %v1919 = vrot.slane %v1908, 4
    %v1920 = vsel %vm282, %v1919, %v1852
    %v1921 = vrot.slane %v1852, 4
    %v1922 = vsel %vm282, %v1908, %v1921
    %v1924 = vunpack.c.l.s4 1983009808
    %v1925 = vunpack.c.0.s8 %v1924
    %v1926 = vperm.slane %v1920, %v1925
    %v1928 = vunpack.c.l.s4 1983009808
    %v1929 = vunpack.c.0.s8 %v1928
    %v1930 = vperm.slane %v1922, %v1929
    %v1931 = vrot.slane %v1914, 4
    %v1932 = vsel %vm282, %v1931, %v1902
    %v1933 = vrot.slane %v1902, 4
    %v1934 = vsel %vm282, %v1914, %v1933
    %v1936 = vunpack.c.l.s4 1983009808
    %v1937 = vunpack.c.0.s8 %v1936
    %v1938 = vperm.slane %v1932, %v1937
    %v1940 = vunpack.c.l.s4 1983009808
    %v1941 = vunpack.c.0.s8 %v1940
    %v1942 = vperm.slane %v1934, %v1941
    %v1943 = vrot.slane %v1938, 4
    %v1944 = vsel %vm282, %v1943, %v1926
    %v1945 = vrot.slane %v1926, 4
    %v1946 = vsel %vm282, %v1938, %v1945
    %v1948 = vunpack.c.l.s4 1934713408
    %v1949 = vunpack.c.0.s8 %v1948
    %v1950 = vperm.slane %v1944, %v1949
    %v1952 = vunpack.c.l.s4 1934713408
    %v1953 = vunpack.c.0.s8 %v1952
    %v1954 = vperm.slane %v1946, %v1953
    %v1955 = vrot.slane %v1942, 4
    %v1956 = vsel %vm282, %v1955, %v1930
    %v1957 = vrot.slane %v1930, 4
    %v1958 = vsel %vm282, %v1942, %v1957
    %v1960 = vunpack.c.l.s4 1934713408
    %v1961 = vunpack.c.0.s8 %v1960
    %v1962 = vperm.slane %v1956, %v1961
    %v1964 = vunpack.c.l.s4 1934713408
    %v1965 = vunpack.c.0.s8 %v1964
    %v1966 = vperm.slane %v1958, %v1965
    %v1967 = vrot.slane %v1950, 4
    %v1968 = vsel %vm282, 0.0, %v1967
    %v1969 = vrot.slane %v1954, 4
    %v1970 = vsel %vm282, 0.0, %v1969
    %v1971 = vrot.slane %v1962, 4
    %v1972 = vsel %vm282, 0.0, %v1971
    %v1973 = vrot.slane %v1966, 4
    %v1974 = vsel %vm282, 0.0, %v1973
    %v1975 = vrot.slane %v1910, 4
    %v1976 = vsel %vm282, %v1975, %v1855
    %v1977 = vrot.slane %v1855, 4
    %v1978 = vsel %vm282, %v1910, %v1977
    %v1980 = vunpack.c.l.s4 1983009808
    %v1981 = vunpack.c.0.s8 %v1980
    %v1982 = vperm.slane %v1976, %v1981
    %v1984 = vunpack.c.l.s4 1983009808
    %v1985 = vunpack.c.0.s8 %v1984
    %v1986 = vperm.slane %v1978, %v1985
    %v1987 = vrot.slane %v1916, 4
    %v1988 = vsel %vm282, %v1987, %v1904
    %v1989 = vrot.slane %v1904, 4
    %v1990 = vsel %vm282, %v1916, %v1989
    %v1992 = vunpack.c.l.s4 1983009808
    %v1993 = vunpack.c.0.s8 %v1992
    %v1994 = vperm.slane %v1988, %v1993
    %v1996 = vunpack.c.l.s4 1983009808
    %v1997 = vunpack.c.0.s8 %v1996
    %v1998 = vperm.slane %v1990, %v1997
    %v1999 = vrot.slane %v1994, 4
    %v2000 = vsel %vm282, %v1999, %v1982
    %v2001 = vrot.slane %v1982, 4
    %v2002 = vsel %vm282, %v1994, %v2001
    %v2004 = vunpack.c.l.s4 1934713408
    %v2005 = vunpack.c.0.s8 %v2004
    %v2006 = vperm.slane %v2000, %v2005
    %v2008 = vunpack.c.l.s4 1934713408
    %v2009 = vunpack.c.0.s8 %v2008
    %v2010 = vperm.slane %v2002, %v2009
    %v2011 = vrot.slane %v1998, 4
    %v2012 = vsel %vm282, %v2011, %v1986
    %v2013 = vrot.slane %v1986, 4
    %v2014 = vsel %vm282, %v1998, %v2013
    %v2016 = vunpack.c.l.s4 1934713408
    %v2017 = vunpack.c.0.s8 %v2016
    %v2018 = vperm.slane %v2012, %v2017
    %v2020 = vunpack.c.l.s4 1934713408
    %v2021 = vunpack.c.0.s8 %v2020
    %v2022 = vperm.slane %v2014, %v2021
    %v2023 = vrot.slane %v2006, 4
    %v2024 = vsel %vm282, 0.0, %v2023
    %v2025 = vrot.slane %v2010, 4
    %v2026 = vsel %vm282, 0.0, %v2025
    %v2027 = vrot.slane %v2018, 4
    %v2028 = vsel %vm282, 0.0, %v2027
    %v2029 = vrot.slane %v2022, 4
    %v2030 = vsel %vm282, 0.0, %v2029
    %v2031 = vsel %vm282, %v1969, %v1950
    %v2033 = vunpack.c.l.s4 1983009808
    %v2034 = vunpack.c.0.s8 %v2033
    %v2035 = vperm.slane %v2031, %v2034
    %v2036 = vrot.slane %v1970, 4
    %v2037 = vsel %vm282, %v2036, %v1968
    %v2039 = vunpack.c.l.s4 1983009808
    %v2040 = vunpack.c.0.s8 %v2039
    %v2041 = vperm.slane %v2037, %v2040
    %v2042 = vsel %vm282, %v1973, %v1962
    %v2044 = vunpack.c.l.s4 1983009808
    %v2045 = vunpack.c.0.s8 %v2044
    %v2046 = vperm.slane %v2042, %v2045
    %v2047 = vrot.slane %v1974, 4
    %v2048 = vsel %vm282, %v2047, %v1972
    %v2050 = vunpack.c.l.s4 1983009808
    %v2051 = vunpack.c.0.s8 %v2050
    %v2052 = vperm.slane %v2048, %v2051
    %v2053 = vrot.slane %v2041, 4
    %v2054 = vsel %vm282, %v2053, %v2035
    %v2055 = vrot.slane %v2035, 4
    %v2056 = vsel %vm282, %v2041, %v2055
    %v2058 = vunpack.c.l.s4 1934713408
    %v2059 = vunpack.c.0.s8 %v2058
    %v2060 = vperm.slane %v2054, %v2059
    %v2062 = vunpack.c.l.s4 1934713408
    %v2063 = vunpack.c.0.s8 %v2062
    %v2064 = vperm.slane %v2056, %v2063
    %v2065 = vrot.slane %v2052, 4
    %v2066 = vsel %vm282, %v2065, %v2046
    %v2067 = vrot.slane %v2046, 4
    %v2068 = vsel %vm282, %v2052, %v2067
    %v2070 = vunpack.c.l.s4 1934713408
    %v2071 = vunpack.c.0.s8 %v2070
    %v2072 = vperm.slane %v2066, %v2071
    %v2074 = vunpack.c.l.s4 1934713408
    %v2075 = vunpack.c.0.s8 %v2074
    %v2076 = vperm.slane %v2068, %v2075
    %v2077 = vrot.slane %v2072, 4
    %v2078 = vsel %vm282, %v2077, %v2060
    %v2079 = vrot.slane %v2060, 4
    %v2080 = vsel %vm282, %v2072, %v2079
    %v2081 = vrot.slane %v2076, 4
    %v2082 = vsel %vm282, %v2081, %v2064
    %v2083 = vrot.slane %v2064, 4
    %v2084 = vsel %vm282, %v2076, %v2083
    %v2085 = vsel %vm282, %v2025, %v2006
    %v2087 = vunpack.c.l.s4 1983009808
    %v2088 = vunpack.c.0.s8 %v2087
    %v2089 = vperm.slane %v2085, %v2088
    %v2090 = vrot.slane %v2026, 4
    %v2091 = vsel %vm282, %v2090, %v2024
    %v2093 = vunpack.c.l.s4 1983009808
    %v2094 = vunpack.c.0.s8 %v2093
    %v2095 = vperm.slane %v2091, %v2094
    %v2096 = vsel %vm282, %v2029, %v2018
    %v2098 = vunpack.c.l.s4 1983009808
    %v2099 = vunpack.c.0.s8 %v2098
    %v2100 = vperm.slane %v2096, %v2099
    %v2101 = vrot.slane %v2030, 4
    %v2102 = vsel %vm282, %v2101, %v2028
    %v2104 = vunpack.c.l.s4 1983009808
    %v2105 = vunpack.c.0.s8 %v2104
    %v2106 = vperm.slane %v2102, %v2105
    %v2107 = vrot.slane %v2095, 4
    %v2108 = vsel %vm282, %v2107, %v2089
    %v2109 = vrot.slane %v2089, 4
    %v2110 = vsel %vm282, %v2095, %v2109
    %v2112 = vunpack.c.l.s4 1934713408
    %v2113 = vunpack.c.0.s8 %v2112
    %v2114 = vperm.slane %v2108, %v2113
    %v2116 = vunpack.c.l.s4 1934713408
    %v2117 = vunpack.c.0.s8 %v2116
    %v2118 = vperm.slane %v2110, %v2117
    %v2119 = vrot.slane %v2106, 4
    %v2120 = vsel %vm282, %v2119, %v2100
    %v2121 = vrot.slane %v2100, 4
    %v2122 = vsel %vm282, %v2106, %v2121
    %v2124 = vunpack.c.l.s4 1934713408
    %v2125 = vunpack.c.0.s8 %v2124
    %v2126 = vperm.slane %v2120, %v2125
    %v2128 = vunpack.c.l.s4 1934713408
    %v2129 = vunpack.c.0.s8 %v2128
    %v2130 = vperm.slane %v2122, %v2129
    %v2131 = vrot.slane %v2126, 4
    %v2132 = vsel %vm282, %v2131, %v2114
    %v2133 = vrot.slane %v2114, 4
    %v2134 = vsel %vm282, %v2126, %v2133
    %v2135 = vrot.slane %v2130, 4
    %v2136 = vsel %vm282, %v2135, %v2118
    %v2137 = vrot.slane %v2118, 4
    %v2138 = vsel %vm282, %v2130, %v2137
    %2141 = vrot.lane.b32.xlu0 %v1889, 120
    %v2142 = vpop.permute.xlu0 %2141
    %2143 = vrot.lane.b32.xlu0 %v1892, 120
    %v2144 = vpop.permute.xlu0 %2143
    %2147 = vrot.lane.b32.xlu0 %v1889, 112
    %v2148 = vpop.permute.xlu0 %2147
    %2149 = vrot.lane.b32.xlu0 %v1892, 112
    %v2150 = vpop.permute.xlu0 %2149
    %2153 = vrot.lane.b32.xlu0 %v1889, 104
    %v2154 = vpop.permute.xlu0 %2153
    %2155 = vrot.lane.b32.xlu0 %v1892, 104
    %v2156 = vpop.permute.xlu0 %2155
    %v2159 = vrot.slane %v2148, 4
    %v2160 = vsel %vm282, %v2159, %v1889
    %v2161 = vrot.slane %v1889, 4
    %v2162 = vsel %vm282, %v2148, %v2161
    %v2164 = vunpack.c.l.s4 1983009808
    %v2165 = vunpack.c.0.s8 %v2164
    %v2166 = vperm.slane %v2160, %v2165
    %v2168 = vunpack.c.l.s4 1983009808
    %v2169 = vunpack.c.0.s8 %v2168
    %v2170 = vperm.slane %v2162, %v2169
    %v2171 = vrot.slane %v2154, 4
    %v2172 = vsel %vm282, %v2171, %v2142
    %v2173 = vrot.slane %v2142, 4
    %v2174 = vsel %vm282, %v2154, %v2173
    %v2176 = vunpack.c.l.s4 1983009808
    %v2177 = vunpack.c.0.s8 %v2176
    %v2178 = vperm.slane %v2172, %v2177
    %v2180 = vunpack.c.l.s4 1983009808
    %v2181 = vunpack.c.0.s8 %v2180
    %v2182 = vperm.slane %v2174, %v2181
    %v2183 = vrot.slane %v2178, 4
    %v2184 = vsel %vm282, %v2183, %v2166
    %v2185 = vrot.slane %v2166, 4
    %v2186 = vsel %vm282, %v2178, %v2185
    %v2188 = vunpack.c.l.s4 1934713408
    %v2189 = vunpack.c.0.s8 %v2188
    %v2190 = vperm.slane %v2184, %v2189
    %v2192 = vunpack.c.l.s4 1934713408
    %v2193 = vunpack.c.0.s8 %v2192
    %v2194 = vperm.slane %v2186, %v2193
    %v2195 = vrot.slane %v2182, 4
    %v2196 = vsel %vm282, %v2195, %v2170
    %v2197 = vrot.slane %v2170, 4
    %v2198 = vsel %vm282, %v2182, %v2197
    %v2200 = vunpack.c.l.s4 1934713408
    %v2201 = vunpack.c.0.s8 %v2200
    %v2202 = vperm.slane %v2196, %v2201
    %v2204 = vunpack.c.l.s4 1934713408
    %v2205 = vunpack.c.0.s8 %v2204
    %v2206 = vperm.slane %v2198, %v2205
    %v2207 = vrot.slane %v2190, 4
    %v2208 = vsel %vm282, 0.0, %v2207
    %v2209 = vrot.slane %v2194, 4
    %v2210 = vsel %vm282, 0.0, %v2209
    %v2211 = vrot.slane %v2202, 4
    %v2212 = vsel %vm282, 0.0, %v2211
    %v2213 = vrot.slane %v2206, 4
    %v2214 = vsel %vm282, 0.0, %v2213
    %v2215 = vrot.slane %v2150, 4
    %v2216 = vsel %vm282, %v2215, %v1892
    %v2217 = vrot.slane %v1892, 4
    %v2218 = vsel %vm282, %v2150, %v2217
    %v2220 = vunpack.c.l.s4 1983009808
    %v2221 = vunpack.c.0.s8 %v2220
    %v2222 = vperm.slane %v2216, %v2221
    %v2224 = vunpack.c.l.s4 1983009808
    %v2225 = vunpack.c.0.s8 %v2224
    %v2226 = vperm.slane %v2218, %v2225
    %v2227 = vrot.slane %v2156, 4
    %v2228 = vsel %vm282, %v2227, %v2144
    %v2229 = vrot.slane %v2144, 4
    %v2230 = vsel %vm282, %v2156, %v2229
    %v2232 = vunpack.c.l.s4 1983009808
    %v2233 = vunpack.c.0.s8 %v2232
    %v2234 = vperm.slane %v2228, %v2233
    %v2236 = vunpack.c.l.s4 1983009808
    %v2237 = vunpack.c.0.s8 %v2236
    %v2238 = vperm.slane %v2230, %v2237
    %v2239 = vrot.slane %v2234, 4
    %v2240 = vsel %vm282, %v2239, %v2222
    %v2241 = vrot.slane %v2222, 4
    %v2242 = vsel %vm282, %v2234, %v2241
    %v2244 = vunpack.c.l.s4 1934713408
    %v2245 = vunpack.c.0.s8 %v2244
    %v2246 = vperm.slane %v2240, %v2245
    %v2248 = vunpack.c.l.s4 1934713408
    %v2249 = vunpack.c.0.s8 %v2248
    %v2250 = vperm.slane %v2242, %v2249
    %v2251 = vrot.slane %v2238, 4
    %v2252 = vsel %vm282, %v2251, %v2226
    %v2253 = vrot.slane %v2226, 4
    %v2254 = vsel %vm282, %v2238, %v2253
    %v2256 = vunpack.c.l.s4 1934713408
    %v2257 = vunpack.c.0.s8 %v2256
    %v2258 = vperm.slane %v2252, %v2257
    %v2260 = vunpack.c.l.s4 1934713408
    %v2261 = vunpack.c.0.s8 %v2260
    %v2262 = vperm.slane %v2254, %v2261
    %v2263 = vrot.slane %v2246, 4
    %v2264 = vsel %vm282, 0.0, %v2263
    %v2265 = vrot.slane %v2250, 4
    %v2266 = vsel %vm282, 0.0, %v2265
    %v2267 = vrot.slane %v2258, 4
    %v2268 = vsel %vm282, 0.0, %v2267
    %v2269 = vrot.slane %v2262, 4
    %v2270 = vsel %vm282, 0.0, %v2269
    %v2271 = vsel %vm282, %v2209, %v2190
    %v2273 = vunpack.c.l.s4 1983009808
    %v2274 = vunpack.c.0.s8 %v2273
    %v2275 = vperm.slane %v2271, %v2274
    %v2276 = vrot.slane %v2210, 4
    %v2277 = vsel %vm282, %v2276, %v2208
    %v2279 = vunpack.c.l.s4 1983009808
    %v2280 = vunpack.c.0.s8 %v2279
    %v2281 = vperm.slane %v2277, %v2280
    %v2282 = vsel %vm282, %v2213, %v2202
    %v2284 = vunpack.c.l.s4 1983009808
    %v2285 = vunpack.c.0.s8 %v2284
    %v2286 = vperm.slane %v2282, %v2285
    %v2287 = vrot.slane %v2214, 4
    %v2288 = vsel %vm282, %v2287, %v2212
    %v2290 = vunpack.c.l.s4 1983009808
    %v2291 = vunpack.c.0.s8 %v2290
    %v2292 = vperm.slane %v2288, %v2291
    %v2293 = vrot.slane %v2281, 4
    %v2294 = vsel %vm282, %v2293, %v2275
    %v2295 = vrot.slane %v2275, 4
    %v2296 = vsel %vm282, %v2281, %v2295
    %v2298 = vunpack.c.l.s4 1934713408
    %v2299 = vunpack.c.0.s8 %v2298
    %v2300 = vperm.slane %v2294, %v2299
    %v2302 = vunpack.c.l.s4 1934713408
    %v2303 = vunpack.c.0.s8 %v2302
    %v2304 = vperm.slane %v2296, %v2303
    %v2305 = vrot.slane %v2292, 4
    %v2306 = vsel %vm282, %v2305, %v2286
    %v2307 = vrot.slane %v2286, 4
    %v2308 = vsel %vm282, %v2292, %v2307
    %v2310 = vunpack.c.l.s4 1934713408
    %v2311 = vunpack.c.0.s8 %v2310
    %v2312 = vperm.slane %v2306, %v2311
    %v2314 = vunpack.c.l.s4 1934713408
    %v2315 = vunpack.c.0.s8 %v2314
    %v2316 = vperm.slane %v2308, %v2315
    %v2317 = vrot.slane %v2312, 4
    %v2318 = vsel %vm282, %v2317, %v2300
    %v2319 = vrot.slane %v2300, 4
    %v2320 = vsel %vm282, %v2312, %v2319
    %v2321 = vrot.slane %v2316, 4
    %v2322 = vsel %vm282, %v2321, %v2304
    %v2323 = vrot.slane %v2304, 4
    %v2324 = vsel %vm282, %v2316, %v2323
    %v2325 = vsel %vm282, %v2265, %v2246
    %v2327 = vunpack.c.l.s4 1983009808
    %v2328 = vunpack.c.0.s8 %v2327
    %v2329 = vperm.slane %v2325, %v2328
    %v2330 = vrot.slane %v2266, 4
    %v2331 = vsel %vm282, %v2330, %v2264
    %v2333 = vunpack.c.l.s4 1983009808
    %v2334 = vunpack.c.0.s8 %v2333
    %v2335 = vperm.slane %v2331, %v2334
    %v2336 = vsel %vm282, %v2269, %v2258
    %v2338 = vunpack.c.l.s4 1983009808
    %v2339 = vunpack.c.0.s8 %v2338
    %v2340 = vperm.slane %v2336, %v2339
    %v2341 = vrot.slane %v2270, 4
    %v2342 = vsel %vm282, %v2341, %v2268
    %v2344 = vunpack.c.l.s4 1983009808
    %v2345 = vunpack.c.0.s8 %v2344
    %v2346 = vperm.slane %v2342, %v2345
    %v2347 = vrot.slane %v2335, 4
    %v2348 = vsel %vm282, %v2347, %v2329
    %v2349 = vrot.slane %v2329, 4
    %v2350 = vsel %vm282, %v2335, %v2349
    %v2352 = vunpack.c.l.s4 1934713408
    %v2353 = vunpack.c.0.s8 %v2352
    %v2354 = vperm.slane %v2348, %v2353
    %v2356 = vunpack.c.l.s4 1934713408
    %v2357 = vunpack.c.0.s8 %v2356
    %v2358 = vperm.slane %v2350, %v2357
    %v2359 = vrot.slane %v2346, 4
    %v2360 = vsel %vm282, %v2359, %v2340
    %v2361 = vrot.slane %v2340, 4
    %v2362 = vsel %vm282, %v2346, %v2361
    %v2364 = vunpack.c.l.s4 1934713408
    %v2365 = vunpack.c.0.s8 %v2364
    %v2366 = vperm.slane %v2360, %v2365
    %v2368 = vunpack.c.l.s4 1934713408
    %v2369 = vunpack.c.0.s8 %v2368
    %v2370 = vperm.slane %v2362, %v2369
    %v2371 = vrot.slane %v2366, 4
    %v2372 = vsel %vm282, %v2371, %v2354
    %v2373 = vrot.slane %v2354, 4
    %v2374 = vsel %vm282, %v2366, %v2373
    %v2375 = vrot.slane %v2370, 4
    %v2376 = vsel %vm282, %v2375, %v2358
    %v2377 = vrot.slane %v2358, 4
    %v2378 = vsel %vm282, %v2370, %v2377
    %2379 = vrot.lane.b32.xlu0 %v1889, 96
    %v2380 = vpop.permute.xlu0 %2379
    %2381 = vrot.lane.b32.xlu0 %v1892, 96
    %v2382 = vpop.permute.xlu0 %2381
    %2383 = vrot.lane.b32.xlu0 %v2142, 96
    %v2384 = vpop.permute.xlu0 %2383
    %2385 = vrot.lane.b32.xlu0 %v2144, 96
    %v2386 = vpop.permute.xlu0 %2385
    %2387 = vrot.lane.b32.xlu0 %v2148, 96
    %v2388 = vpop.permute.xlu0 %2387
    %2389 = vrot.lane.b32.xlu0 %v2150, 96
    %v2390 = vpop.permute.xlu0 %2389
    %2391 = vrot.lane.b32.xlu0 %v2154, 96
    %v2392 = vpop.permute.xlu0 %2391
    %2393 = vrot.lane.b32.xlu0 %v2156, 96
    %v2394 = vpop.permute.xlu0 %2393
    %v2403 = vrot.slane %v2388, 4
    %v2404 = vsel %vm282, %v2403, %v2380
    %v2405 = vrot.slane %v2380, 4
    %v2406 = vsel %vm282, %v2388, %v2405
    %v2408 = vunpack.c.l.s4 1983009808
    %v2409 = vunpack.c.0.s8 %v2408
    %v2410 = vperm.slane %v2404, %v2409
    %v2412 = vunpack.c.l.s4 1983009808
    %v2413 = vunpack.c.0.s8 %v2412
    %v2414 = vperm.slane %v2406, %v2413
    %v2415 = vrot.slane %v2392, 4
    %v2416 = vsel %vm282, %v2415, %v2384
    %v2417 = vrot.slane %v2384, 4
    %v2418 = vsel %vm282, %v2392, %v2417
    %v2420 = vunpack.c.l.s4 1983009808
    %v2421 = vunpack.c.0.s8 %v2420
    %v2422 = vperm.slane %v2416, %v2421
    %v2424 = vunpack.c.l.s4 1983009808
    %v2425 = vunpack.c.0.s8 %v2424
    %v2426 = vperm.slane %v2418, %v2425
    %v2427 = vrot.slane %v2422, 4
    %v2428 = vsel %vm282, %v2427, %v2410
    %v2429 = vrot.slane %v2410, 4
    %v2430 = vsel %vm282, %v2422, %v2429
    %v2432 = vunpack.c.l.s4 1934713408
    %v2433 = vunpack.c.0.s8 %v2432
    %v2434 = vperm.slane %v2428, %v2433
    %v2436 = vunpack.c.l.s4 1934713408
    %v2437 = vunpack.c.0.s8 %v2436
    %v2438 = vperm.slane %v2430, %v2437
    %v2439 = vrot.slane %v2426, 4
    %v2440 = vsel %vm282, %v2439, %v2414
    %v2441 = vrot.slane %v2414, 4
    %v2442 = vsel %vm282, %v2426, %v2441
    %v2444 = vunpack.c.l.s4 1934713408
    %v2445 = vunpack.c.0.s8 %v2444
    %v2446 = vperm.slane %v2440, %v2445
    %v2448 = vunpack.c.l.s4 1934713408
    %v2449 = vunpack.c.0.s8 %v2448
    %v2450 = vperm.slane %v2442, %v2449
    %v2451 = vrot.slane %v2434, 4
    %v2452 = vsel %vm282, 0.0, %v2451
    %v2453 = vrot.slane %v2438, 4
    %v2454 = vsel %vm282, 0.0, %v2453
    %v2455 = vrot.slane %v2446, 4
    %v2456 = vsel %vm282, 0.0, %v2455
    %v2457 = vrot.slane %v2450, 4
    %v2458 = vsel %vm282, 0.0, %v2457
    %v2459 = vrot.slane %v2390, 4
    %v2460 = vsel %vm282, %v2459, %v2382
    %v2461 = vrot.slane %v2382, 4
    %v2462 = vsel %vm282, %v2390, %v2461
    %v2464 = vunpack.c.l.s4 1983009808
    %v2465 = vunpack.c.0.s8 %v2464
    %v2466 = vperm.slane %v2460, %v2465
    %v2468 = vunpack.c.l.s4 1983009808
    %v2469 = vunpack.c.0.s8 %v2468
    %v2470 = vperm.slane %v2462, %v2469
    %v2471 = vrot.slane %v2394, 4
    %v2472 = vsel %vm282, %v2471, %v2386
    %v2473 = vrot.slane %v2386, 4
    %v2474 = vsel %vm282, %v2394, %v2473
    %v2476 = vunpack.c.l.s4 1983009808
    %v2477 = vunpack.c.0.s8 %v2476
    %v2478 = vperm.slane %v2472, %v2477
    %v2480 = vunpack.c.l.s4 1983009808
    %v2481 = vunpack.c.0.s8 %v2480
    %v2482 = vperm.slane %v2474, %v2481
    %v2483 = vrot.slane %v2478, 4
    %v2484 = vsel %vm282, %v2483, %v2466
    %v2485 = vrot.slane %v2466, 4
    %v2486 = vsel %vm282, %v2478, %v2485
    %v2488 = vunpack.c.l.s4 1934713408
    %v2489 = vunpack.c.0.s8 %v2488
    %v2490 = vperm.slane %v2484, %v2489
    %v2492 = vunpack.c.l.s4 1934713408
    %v2493 = vunpack.c.0.s8 %v2492
    %v2494 = vperm.slane %v2486, %v2493
    %v2495 = vrot.slane %v2482, 4
    %v2496 = vsel %vm282, %v2495, %v2470
    %v2497 = vrot.slane %v2470, 4
    %v2498 = vsel %vm282, %v2482, %v2497
    %v2500 = vunpack.c.l.s4 1934713408
    %v2501 = vunpack.c.0.s8 %v2500
    %v2502 = vperm.slane %v2496, %v2501
    %v2504 = vunpack.c.l.s4 1934713408
    %v2505 = vunpack.c.0.s8 %v2504
    %v2506 = vperm.slane %v2498, %v2505
    %v2507 = vrot.slane %v2490, 4
    %v2508 = vsel %vm282, 0.0, %v2507
    %v2509 = vrot.slane %v2494, 4
    %v2510 = vsel %vm282, 0.0, %v2509
    %v2511 = vrot.slane %v2502, 4
    %v2512 = vsel %vm282, 0.0, %v2511
    %v2513 = vrot.slane %v2506, 4
    %v2514 = vsel %vm282, 0.0, %v2513
    %v2515 = vsel %vm282, %v2453, %v2434
    %v2517 = vunpack.c.l.s4 1983009808
    %v2518 = vunpack.c.0.s8 %v2517
    %v2519 = vperm.slane %v2515, %v2518
    %v2520 = vrot.slane %v2454, 4
    %v2521 = vsel %vm282, %v2520, %v2452
    %v2523 = vunpack.c.l.s4 1983009808
    %v2524 = vunpack.c.0.s8 %v2523
    %v2525 = vperm.slane %v2521, %v2524
    %v2526 = vsel %vm282, %v2457, %v2446
    %v2528 = vunpack.c.l.s4 1983009808
    %v2529 = vunpack.c.0.s8 %v2528
    %v2530 = vperm.slane %v2526, %v2529
    %v2531 = vrot.slane %v2458, 4
    %v2532 = vsel %vm282, %v2531, %v2456
    %v2534 = vunpack.c.l.s4 1983009808
    %v2535 = vunpack.c.0.s8 %v2534
    %v2536 = vperm.slane %v2532, %v2535
    %v2537 = vrot.slane %v2525, 4
    %v2538 = vsel %vm282, %v2537, %v2519
    %v2539 = vrot.slane %v2519, 4
    %v2540 = vsel %vm282, %v2525, %v2539
    %v2542 = vunpack.c.l.s4 1934713408
    %v2543 = vunpack.c.0.s8 %v2542
    %v2544 = vperm.slane %v2538, %v2543
    %v2546 = vunpack.c.l.s4 1934713408
    %v2547 = vunpack.c.0.s8 %v2546
    %v2548 = vperm.slane %v2540, %v2547
    %v2549 = vrot.slane %v2536, 4
    %v2550 = vsel %vm282, %v2549, %v2530
    %v2551 = vrot.slane %v2530, 4
    %v2552 = vsel %vm282, %v2536, %v2551
    %v2554 = vunpack.c.l.s4 1934713408
    %v2555 = vunpack.c.0.s8 %v2554
    %v2556 = vperm.slane %v2550, %v2555
    %v2558 = vunpack.c.l.s4 1934713408
    %v2559 = vunpack.c.0.s8 %v2558
    %v2560 = vperm.slane %v2552, %v2559
    %v2561 = vrot.slane %v2556, 4
    %v2562 = vsel %vm282, %v2561, %v2544
    %v2563 = vrot.slane %v2544, 4
    %v2564 = vsel %vm282, %v2556, %v2563
    %v2565 = vrot.slane %v2560, 4
    %v2566 = vsel %vm282, %v2565, %v2548
    %v2567 = vrot.slane %v2548, 4
    %v2568 = vsel %vm282, %v2560, %v2567
    %v2569 = vsel %vm282, %v2509, %v2490
    %v2571 = vunpack.c.l.s4 1983009808
    %v2572 = vunpack.c.0.s8 %v2571
    %v2573 = vperm.slane %v2569, %v2572
    %v2574 = vrot.slane %v2510, 4
    %v2575 = vsel %vm282, %v2574, %v2508
    %v2577 = vunpack.c.l.s4 1983009808
    %v2578 = vunpack.c.0.s8 %v2577
    %v2579 = vperm.slane %v2575, %v2578
    %v2580 = vsel %vm282, %v2513, %v2502
    %v2582 = vunpack.c.l.s4 1983009808
    %v2583 = vunpack.c.0.s8 %v2582
    %v2584 = vperm.slane %v2580, %v2583
    %v2585 = vrot.slane %v2514, 4
    %v2586 = vsel %vm282, %v2585, %v2512
    %v2588 = vunpack.c.l.s4 1983009808
    %v2589 = vunpack.c.0.s8 %v2588
    %v2590 = vperm.slane %v2586, %v2589
    %v2591 = vrot.slane %v2579, 4
    %v2592 = vsel %vm282, %v2591, %v2573
    %v2593 = vrot.slane %v2573, 4
    %v2594 = vsel %vm282, %v2579, %v2593
    %v2596 = vunpack.c.l.s4 1934713408
    %v2597 = vunpack.c.0.s8 %v2596
    %v2598 = vperm.slane %v2592, %v2597
    %v2600 = vunpack.c.l.s4 1934713408
    %v2601 = vunpack.c.0.s8 %v2600
    %v2602 = vperm.slane %v2594, %v2601
    %v2603 = vrot.slane %v2590, 4
    %v2604 = vsel %vm282, %v2603, %v2584
    %v2605 = vrot.slane %v2584, 4
    %v2606 = vsel %vm282, %v2590, %v2605
    %v2608 = vunpack.c.l.s4 1934713408
    %v2609 = vunpack.c.0.s8 %v2608
    %v2610 = vperm.slane %v2604, %v2609
    %v2612 = vunpack.c.l.s4 1934713408
    %v2613 = vunpack.c.0.s8 %v2612
    %v2614 = vperm.slane %v2606, %v2613
    %v2615 = vrot.slane %v2610, 4
    %v2616 = vsel %vm282, %v2615, %v2598
    %v2617 = vrot.slane %v2598, 4
    %v2618 = vsel %vm282, %v2610, %v2617
    %v2619 = vrot.slane %v2614, 4
    %v2620 = vsel %vm282, %v2619, %v2602
    %v2621 = vrot.slane %v2602, 4
    %v2622 = vsel %vm282, %v2614, %v2621
    %v2624 = vsel %vm990, %v2078, 0
    %v2627 = vsel %vm990, %v2318, 0
    %2629 = vmatpush.xpose.msra.mxu0 0.0
    %2630 = vmatpush.xpose.msra.mxu0 0.0
    %2631 = vmatpush.xpose.msra.mxu0 0.0
    %2632 = vmatpush.xpose.msra.mxu0 0.0
    %2633 = vmatpush.xpose.msra.mxu0 0.0
    %2634 = vmatpush.xpose.msra.mxu0 0.0
    %2635 = vmatpush.xpose.msra.mxu0 0.0
    %2636 = vmatpush.xpose.msra.mxu0 0.0
    %2637 = vmatpush.xpose.msra.mxu0 0.0
    %2638 = vmatpush.xpose.msra.mxu0 0.0
    %2639 = vmatpush.xpose.msra.mxu0 0.0
    %2640 = vmatpush.xpose.msra.mxu0 0.0
    %2641 = vmatpush.xpose.msra.mxu0 0.0
    %2642 = vmatpush.xpose.msra.mxu0 0.0
    %2643 = vmatpush.xpose.msra.mxu0 0.0
    %2644 = vmatpush.xpose.msra.mxu0 %v2627
    %2645 = vmatmul.f32.gmra.mxu0 %v2624
    %v2646 = vpop.f32.mrf.mxu0
    %v2647 = vadd.f32 0.0, %v2646
    %2648 = vdwg.mxu0
    %v2650 = vsel %vm990, %v2080, 0
    %v2653 = vsel %vm990, %v2320, 0
    %2655 = vmatpush.xpose.msra.mxu0 0.0
    %2656 = vmatpush.xpose.msra.mxu0 0.0
    %2657 = vmatpush.xpose.msra.mxu0 0.0
    %2658 = vmatpush.xpose.msra.mxu0 0.0
    %2659 = vmatpush.xpose.msra.mxu0 0.0
    %2660 = vmatpush.xpose.msra.mxu0 0.0
    %2661 = vmatpush.xpose.msra.mxu0 0.0
    %2662 = vmatpush.xpose.msra.mxu0 0.0
    %2663 = vmatpush.xpose.msra.mxu0 0.0
    %2664 = vmatpush.xpose.msra.mxu0 0.0
    %2665 = vmatpush.xpose.msra.mxu0 0.0
    %2666 = vmatpush.xpose.msra.mxu0 0.0
    %2667 = vmatpush.xpose.msra.mxu0 0.0
    %2668 = vmatpush.xpose.msra.mxu0 0.0
    %2669 = vmatpush.xpose.msra.mxu0 0.0
    %2670 = vmatpush.xpose.msra.mxu0 %v2653
    %2671 = vmatmul.f32.gmra.mxu0 %v2650
    %v2672 = vpop.f32.mrf.mxu0
    %v2673 = vadd.f32 0.0, %v2672
    %2674 = vdwg.mxu0
    %v2676 = vsel %vm990, %v2082, 0
    %v2679 = vsel %vm990, %v2322, 0
    %2681 = vmatpush.xpose.msra.mxu0 0.0
    %2682 = vmatpush.xpose.msra.mxu0 0.0
    %2683 = vmatpush.xpose.msra.mxu0 0.0
    %2684 = vmatpush.xpose.msra.mxu0 0.0
    %2685 = vmatpush.xpose.msra.mxu0 0.0
    %2686 = vmatpush.xpose.msra.mxu0 0.0
    %2687 = vmatpush.xpose.msra.mxu0 0.0
    %2688 = vmatpush.xpose.msra.mxu0 0.0
    %2689 = vmatpush.xpose.msra.mxu0 0.0
    %2690 = vmatpush.xpose.msra.mxu0 0.0
    %2691 = vmatpush.xpose.msra.mxu0 0.0
    %2692 = vmatpush.xpose.msra.mxu0 0.0
    %2693 = vmatpush.xpose.msra.mxu0 0.0
    %2694 = vmatpush.xpose.msra.mxu0 0.0
    %2695 = vmatpush.xpose.msra.mxu0 0.0
    %2696 = vmatpush.xpose.msra.mxu0 %v2679
    %2697 = vmatmul.f32.gmra.mxu0 %v2676
    %v2698 = vpop.f32.mrf.mxu0
    %v2699 = vadd.f32 0.0, %v2698
    %2700 = vdwg.mxu0
    %v2702 = vsel %vm990, %v2084, 0
    %v2705 = vsel %vm990, %v2324, 0
    %2707 = vmatpush.xpose.msra.mxu0 0.0
    %2708 = vmatpush.xpose.msra.mxu0 0.0
    %2709 = vmatpush.xpose.msra.mxu0 0.0
    %2710 = vmatpush.xpose.msra.mxu0 0.0
    %2711 = vmatpush.xpose.msra.mxu0 0.0
    %2712 = vmatpush.xpose.msra.mxu0 0.0
    %2713 = vmatpush.xpose.msra.mxu0 0.0
    %2714 = vmatpush.xpose.msra.mxu0 0.0
    %2715 = vmatpush.xpose.msra.mxu0 0.0
    %2716 = vmatpush.xpose.msra.mxu0 0.0
    %2717 = vmatpush.xpose.msra.mxu0 0.0
    %2718 = vmatpush.xpose.msra.mxu0 0.0
    %2719 = vmatpush.xpose.msra.mxu0 0.0
    %2720 = vmatpush.xpose.msra.mxu0 0.0
    %2721 = vmatpush.xpose.msra.mxu0 0.0
    %2722 = vmatpush.xpose.msra.mxu0 %v2705
    %2723 = vmatmul.f32.gmra.mxu0 %v2702
    %v2724 = vpop.f32.mrf.mxu0
    %v2725 = vadd.f32 0.0, %v2724
    %2726 = vdwg.mxu0
    %v2728 = vsel %vm990, %v2132, 0
    %v2731 = vsel %vm990, %v2372, 0
    %2733 = vmatpush.xpose.msra.mxu0 0.0
    %2734 = vmatpush.xpose.msra.mxu0 0.0
    %2735 = vmatpush.xpose.msra.mxu0 0.0
    %2736 = vmatpush.xpose.msra.mxu0 0.0
    %2737 = vmatpush.xpose.msra.mxu0 0.0
    %2738 = vmatpush.xpose.msra.mxu0 0.0
    %2739 = vmatpush.xpose.msra.mxu0 0.0
    %2740 = vmatpush.xpose.msra.mxu0 0.0
    %2741 = vmatpush.xpose.msra.mxu0 0.0
    %2742 = vmatpush.xpose.msra.mxu0 0.0
    %2743 = vmatpush.xpose.msra.mxu0 0.0
    %2744 = vmatpush.xpose.msra.mxu0 0.0
    %2745 = vmatpush.xpose.msra.mxu0 0.0
    %2746 = vmatpush.xpose.msra.mxu0 0.0
    %2747 = vmatpush.xpose.msra.mxu0 0.0
    %2748 = vmatpush.xpose.msra.mxu0 %v2731
    %2749 = vmatmul.f32.gmra.mxu0 %v2728
    %v2750 = vpop.f32.mrf.mxu0
    %v2751 = vadd.f32 0.0, %v2750
    %2752 = vdwg.mxu0
    %v2754 = vsel %vm990, %v2134, 0
    %v2757 = vsel %vm990, %v2374, 0
    %2759 = vmatpush.xpose.msra.mxu0 0.0
    %2760 = vmatpush.xpose.msra.mxu0 0.0
    %2761 = vmatpush.xpose.msra.mxu0 0.0
    %2762 = vmatpush.xpose.msra.mxu0 0.0
    %2763 = vmatpush.xpose.msra.mxu0 0.0
    %2764 = vmatpush.xpose.msra.mxu0 0.0
    %2765 = vmatpush.xpose.msra.mxu0 0.0
    %2766 = vmatpush.xpose.msra.mxu0 0.0
    %2767 = vmatpush.xpose.msra.mxu0 0.0
    %2768 = vmatpush.xpose.msra.mxu0 0.0
    %2769 = vmatpush.xpose.msra.mxu0 0.0
    %2770 = vmatpush.xpose.msra.mxu0 0.0
    %2771 = vmatpush.xpose.msra.mxu0 0.0
    %2772 = vmatpush.xpose.msra.mxu0 0.0
    %2773 = vmatpush.xpose.msra.mxu0 0.0
    %2774 = vmatpush.xpose.msra.mxu0 %v2757
    %2775 = vmatmul.f32.gmra.mxu0 %v2754
    %v2776 = vpop.f32.mrf.mxu0
    %v2777 = vadd.f32 0.0, %v2776
    %2778 = vdwg.mxu0
    %v2780 = vsel %vm990, %v2136, 0
    %v2783 = vsel %vm990, %v2376, 0
    %2785 = vmatpush.xpose.msra.mxu0 0.0
    %2786 = vmatpush.xpose.msra.mxu0 0.0
    %2787 = vmatpush.xpose.msra.mxu0 0.0
    %2788 = vmatpush.xpose.msra.mxu0 0.0
    %2789 = vmatpush.xpose.msra.mxu0 0.0
    %2790 = vmatpush.xpose.msra.mxu0 0.0
    %2791 = vmatpush.xpose.msra.mxu0 0.0
    %2792 = vmatpush.xpose.msra.mxu0 0.0
    %2793 = vmatpush.xpose.msra.mxu0 0.0
    %2794 = vmatpush.xpose.msra.mxu0 0.0
    %2795 = vmatpush.xpose.msra.mxu0 0.0
    %2796 = vmatpush.xpose.msra.mxu0 0.0
    %2797 = vmatpush.xpose.msra.mxu0 0.0
    %2798 = vmatpush.xpose.msra.mxu0 0.0
    %2799 = vmatpush.xpose.msra.mxu0 0.0
    %2800 = vmatpush.xpose.msra.mxu0 %v2783
    %2801 = vmatmul.f32.gmra.mxu0 %v2780
    %v2802 = vpop.f32.mrf.mxu0
    %v2803 = vadd.f32 0.0, %v2802
    %2804 = vdwg.mxu0
    %v2806 = vsel %vm990, %v2138, 0
    %v2809 = vsel %vm990, %v2378, 0
    %2811 = vmatpush.xpose.msra.mxu0 0.0
    %2812 = vmatpush.xpose.msra.mxu0 0.0
    %2813 = vmatpush.xpose.msra.mxu0 0.0
    %2814 = vmatpush.xpose.msra.mxu0 0.0
    %2815 = vmatpush.xpose.msra.mxu0 0.0
    %2816 = vmatpush.xpose.msra.mxu0 0.0
    %2817 = vmatpush.xpose.msra.mxu0 0.0
    %2818 = vmatpush.xpose.msra.mxu0 0.0
    %2819 = vmatpush.xpose.msra.mxu0 0.0
    %2820 = vmatpush.xpose.msra.mxu0 0.0
    %2821 = vmatpush.xpose.msra.mxu0 0.0
    %2822 = vmatpush.xpose.msra.mxu0 0.0
    %2823 = vmatpush.xpose.msra.mxu0 0.0
    %2824 = vmatpush.xpose.msra.mxu0 0.0
    %2825 = vmatpush.xpose.msra.mxu0 0.0
    %2826 = vmatpush.xpose.msra.mxu0 %v2809
    %2827 = vmatmul.f32.gmra.mxu0 %v2806
    %v2828 = vpop.f32.mrf.mxu0
    %v2829 = vadd.f32 0.0, %v2828
    %2830 = vdwg.mxu0
    %v2831 = vsel %vm990, %v2647, -inf
    %2832 = vmax.xlane.f32.xlu0 %v2831
    %v2833 = vpop.xlane.xlu0 %2832
    %v2834 = vsel %vm990, %v2673, -inf
    %2835 = vmax.xlane.f32.xlu0 %v2834
    %v2836 = vpop.xlane.xlu0 %2835
    %v2837 = vsel %vm990, %v2699, -inf
    %2838 = vmax.xlane.f32.xlu0 %v2837
    %v2839 = vpop.xlane.xlu0 %2838
    %v2840 = vsel %vm990, %v2725, -inf
    %2841 = vmax.xlane.f32.xlu0 %v2840
    %v2842 = vpop.xlane.xlu0 %2841
    %v2843 = vsel %vm990, %v2751, -inf
    %2844 = vmax.xlane.f32.xlu0 %v2843
    %v2845 = vpop.xlane.xlu0 %2844
    %v2846 = vsel %vm990, %v2777, -inf
    %2847 = vmax.xlane.f32.xlu0 %v2846
    %v2848 = vpop.xlane.xlu0 %2847
    %v2849 = vsel %vm990, %v2803, -inf
    %2850 = vmax.xlane.f32.xlu0 %v2849
    %v2851 = vpop.xlane.xlu0 %2850
    %v2852 = vsel %vm990, %v2829, -inf
    %2853 = vmax.xlane.f32.xlu0 %v2852
    %v2854 = vpop.xlane.xlu0 %2853
    %v2855 = vsub.f32 %v2647, %v2833
    %v2856 = vsub.f32 %v2673, %v2836
    %v2857 = vsub.f32 %v2699, %v2839
    %v2858 = vsub.f32 %v2725, %v2842
    %v2859 = vsub.f32 %v2751, %v2845
    %v2860 = vsub.f32 %v2777, %v2848
    %v2861 = vsub.f32 %v2803, %v2851
    %v2862 = vsub.f32 %v2829, %v2854
    %v2863 = vmul.f32 %v2855, 1.442695
    %v2864 = vpow.pop %v2863
    %v2865 = vmul.f32 %v2856, 1.442695
    %v2866 = vpow.pop %v2865
    %v2867 = vmul.f32 %v2857, 1.442695
    %v2868 = vpow.pop %v2867
    %v2869 = vmul.f32 %v2858, 1.442695
    %v2870 = vpow.pop %v2869
    %v2871 = vmul.f32 %v2859, 1.442695
    %v2872 = vpow.pop %v2871
    %v2873 = vmul.f32 %v2860, 1.442695
    %v2874 = vpow.pop %v2873
    %v2875 = vmul.f32 %v2861, 1.442695
    %v2876 = vpow.pop %v2875
    %v2877 = vmul.f32 %v2862, 1.442695
    %v2878 = vpow.pop %v2877
    %v2879 = vsel %vm990, %v2864, 0.0
    %2880 = vadd.xlane.f32.xlu0 %v2879
    %v2881 = vpop.xlane.xlu0 %2880
    %v2882 = vsel %vm990, %v2866, 0.0
    %2883 = vadd.xlane.f32.xlu0 %v2882
    %v2884 = vpop.xlane.xlu0 %2883
    %v2885 = vsel %vm990, %v2868, 0.0
    %2886 = vadd.xlane.f32.xlu0 %v2885
    %v2887 = vpop.xlane.xlu0 %2886
    %v2888 = vsel %vm990, %v2870, 0.0
    %2889 = vadd.xlane.f32.xlu0 %v2888
    %v2890 = vpop.xlane.xlu0 %2889
    %v2891 = vsel %vm990, %v2872, 0.0
    %2892 = vadd.xlane.f32.xlu0 %v2891
    %v2893 = vpop.xlane.xlu0 %2892
    %v2894 = vsel %vm990, %v2874, 0.0
    %2895 = vadd.xlane.f32.xlu0 %v2894
    %v2896 = vpop.xlane.xlu0 %2895
    %v2897 = vsel %vm990, %v2876, 0.0
    %2898 = vadd.xlane.f32.xlu0 %v2897
    %v2899 = vpop.xlane.xlu0 %2898
    %v2900 = vsel %vm990, %v2878, 0.0
    %2901 = vadd.xlane.f32.xlu0 %v2900
    %v2902 = vpop.xlane.xlu0 %2901
    %v2903 = vrcp.pop %v2881
    %v2904 = vrcp.pop %v2884
    %v2905 = vrcp.pop %v2887
    %v2906 = vrcp.pop %v2890
    %v2907 = vrcp.pop %v2893
    %v2908 = vrcp.pop %v2896
    %v2909 = vrcp.pop %v2899
    %v2910 = vrcp.pop %v2902
    %v2911 = vmul.f32 %v2864, %v2903
    %v2912 = vmul.f32 %v2866, %v2904
    %v2913 = vmul.f32 %v2868, %v2905
    %v2914 = vmul.f32 %v2870, %v2906
    %v2915 = vmul.f32 %v2872, %v2907
    %v2916 = vmul.f32 %v2874, %v2908
    %v2917 = vmul.f32 %v2876, %v2909
    %v2918 = vmul.f32 %v2878, %v2910
    %v2920 = vsel %vm990, %v2911, 0
    %2922 = vmatpush.msra.mxu0 0.0
    %2923 = vmatpush.msra.mxu0 0.0
    %2924 = vmatpush.msra.mxu0 0.0
    %2925 = vmatpush.msra.mxu0 0.0
    %2926 = vmatpush.msra.mxu0 0.0
    %2927 = vmatpush.msra.mxu0 0.0
    %2928 = vmatpush.msra.mxu0 0.0
    %2929 = vmatpush.msra.mxu0 0.0
    %2930 = vmatpush.msra.mxu0 0.0
    %2931 = vmatpush.msra.mxu0 0.0
    %2932 = vmatpush.msra.mxu0 0.0
    %2933 = vmatpush.msra.mxu0 0.0
    %2934 = vmatpush.msra.mxu0 0.0
    %2935 = vmatpush.msra.mxu0 0.0
    %2936 = vmatpush.msra.mxu0 0.0
    %2937 = vmatpush.msra.mxu0 %v2562
    %2938 = vmatmul.f32.gmra.mxu0 %v2920
    %v2939 = vpop.f32.mrf.mxu0
    %v2940 = vadd.f32 0.0, %v2939
    %2941 = vdwg.mxu0
    %v2943 = vsel %vm990, %v2912, 0
    %2945 = vmatpush.msra.mxu0 0.0
    %2946 = vmatpush.msra.mxu0 0.0
    %2947 = vmatpush.msra.mxu0 0.0
    %2948 = vmatpush.msra.mxu0 0.0
    %2949 = vmatpush.msra.mxu0 0.0
    %2950 = vmatpush.msra.mxu0 0.0
    %2951 = vmatpush.msra.mxu0 0.0
    %2952 = vmatpush.msra.mxu0 0.0
    %2953 = vmatpush.msra.mxu0 0.0
    %2954 = vmatpush.msra.mxu0 0.0
    %2955 = vmatpush.msra.mxu0 0.0
    %2956 = vmatpush.msra.mxu0 0.0
    %2957 = vmatpush.msra.mxu0 0.0
    %2958 = vmatpush.msra.mxu0 0.0
    %2959 = vmatpush.msra.mxu0 0.0
    %2960 = vmatpush.msra.mxu0 %v2564
    %2961 = vmatmul.f32.gmra.mxu0 %v2943
    %v2962 = vpop.f32.mrf.mxu0
    %v2963 = vadd.f32 0.0, %v2962
    %2964 = vdwg.mxu0
    %v2966 = vsel %vm990, %v2913, 0
    %2968 = vmatpush.msra.mxu0 0.0
    %2969 = vmatpush.msra.mxu0 0.0
    %2970 = vmatpush.msra.mxu0 0.0
    %2971 = vmatpush.msra.mxu0 0.0
    %2972 = vmatpush.msra.mxu0 0.0
    %2973 = vmatpush.msra.mxu0 0.0
    %2974 = vmatpush.msra.mxu0 0.0
    %2975 = vmatpush.msra.mxu0 0.0
    %2976 = vmatpush.msra.mxu0 0.0
    %2977 = vmatpush.msra.mxu0 0.0
    %2978 = vmatpush.msra.mxu0 0.0
    %2979 = vmatpush.msra.mxu0 0.0
    %2980 = vmatpush.msra.mxu0 0.0
    %2981 = vmatpush.msra.mxu0 0.0
    %2982 = vmatpush.msra.mxu0 0.0
    %2983 = vmatpush.msra.mxu0 %v2566
    %2984 = vmatmul.f32.gmra.mxu0 %v2966
    %v2985 = vpop.f32.mrf.mxu0
    %v2986 = vadd.f32 0.0, %v2985
    %2987 = vdwg.mxu0
    %v2989 = vsel %vm990, %v2914, 0
    %2991 = vmatpush.msra.mxu0 0.0
    %2992 = vmatpush.msra.mxu0 0.0
    %2993 = vmatpush.msra.mxu0 0.0
    %2994 = vmatpush.msra.mxu0 0.0
    %2995 = vmatpush.msra.mxu0 0.0
    %2996 = vmatpush.msra.mxu0 0.0
    %2997 = vmatpush.msra.mxu0 0.0
    %2998 = vmatpush.msra.mxu0 0.0
    %2999 = vmatpush.msra.mxu0 0.0
    %3000 = vmatpush.msra.mxu0 0.0
    %3001 = vmatpush.msra.mxu0 0.0
    %3002 = vmatpush.msra.mxu0 0.0
    %3003 = vmatpush.msra.mxu0 0.0
    %3004 = vmatpush.msra.mxu0 0.0
    %3005 = vmatpush.msra.mxu0 0.0
    %3006 = vmatpush.msra.mxu0 %v2568
    %3007 = vmatmul.f32.gmra.mxu0 %v2989
    %v3008 = vpop.f32.mrf.mxu0
    %v3009 = vadd.f32 0.0, %v3008
    %3010 = vdwg.mxu0
    %v3012 = vsel %vm990, %v2915, 0
    %3014 = vmatpush.msra.mxu0 0.0
    %3015 = vmatpush.msra.mxu0 0.0
    %3016 = vmatpush.msra.mxu0 0.0
    %3017 = vmatpush.msra.mxu0 0.0
    %3018 = vmatpush.msra.mxu0 0.0
    %3019 = vmatpush.msra.mxu0 0.0
    %3020 = vmatpush.msra.mxu0 0.0
    %3021 = vmatpush.msra.mxu0 0.0
    %3022 = vmatpush.msra.mxu0 0.0
    %3023 = vmatpush.msra.mxu0 0.0
    %3024 = vmatpush.msra.mxu0 0.0
    %3025 = vmatpush.msra.mxu0 0.0
    %3026 = vmatpush.msra.mxu0 0.0
    %3027 = vmatpush.msra.mxu0 0.0
    %3028 = vmatpush.msra.mxu0 0.0
    %3029 = vmatpush.msra.mxu0 %v2616
    %3030 = vmatmul.f32.gmra.mxu0 %v3012
    %v3031 = vpop.f32.mrf.mxu0
    %v3032 = vadd.f32 0.0, %v3031
    %3033 = vdwg.mxu0
    %v3035 = vsel %vm990, %v2916, 0
    %3037 = vmatpush.msra.mxu0 0.0
    %3038 = vmatpush.msra.mxu0 0.0
    %3039 = vmatpush.msra.mxu0 0.0
    %3040 = vmatpush.msra.mxu0 0.0
    %3041 = vmatpush.msra.mxu0 0.0
    %3042 = vmatpush.msra.mxu0 0.0
    %3043 = vmatpush.msra.mxu0 0.0
    %3044 = vmatpush.msra.mxu0 0.0
    %3045 = vmatpush.msra.mxu0 0.0
    %3046 = vmatpush.msra.mxu0 0.0
    %3047 = vmatpush.msra.mxu0 0.0
    %3048 = vmatpush.msra.mxu0 0.0
    %3049 = vmatpush.msra.mxu0 0.0
    %3050 = vmatpush.msra.mxu0 0.0
    %3051 = vmatpush.msra.mxu0 0.0
    %3052 = vmatpush.msra.mxu0 %v2618
    %3053 = vmatmul.f32.gmra.mxu0 %v3035
    %v3054 = vpop.f32.mrf.mxu0
    %v3055 = vadd.f32 0.0, %v3054
    %3056 = vdwg.mxu0
    %v3058 = vsel %vm990, %v2917, 0
    %3060 = vmatpush.msra.mxu0 0.0
    %3061 = vmatpush.msra.mxu0 0.0
    %3062 = vmatpush.msra.mxu0 0.0
    %3063 = vmatpush.msra.mxu0 0.0
    %3064 = vmatpush.msra.mxu0 0.0
    %3065 = vmatpush.msra.mxu0 0.0
    %3066 = vmatpush.msra.mxu0 0.0
    %3067 = vmatpush.msra.mxu0 0.0
    %3068 = vmatpush.msra.mxu0 0.0
    %3069 = vmatpush.msra.mxu0 0.0
    %3070 = vmatpush.msra.mxu0 0.0
    %3071 = vmatpush.msra.mxu0 0.0
    %3072 = vmatpush.msra.mxu0 0.0
    %3073 = vmatpush.msra.mxu0 0.0
    %3074 = vmatpush.msra.mxu0 0.0
    %3075 = vmatpush.msra.mxu0 %v2620
    %3076 = vmatmul.f32.gmra.mxu0 %v3058
    %v3077 = vpop.f32.mrf.mxu0
    %v3078 = vadd.f32 0.0, %v3077
    %3079 = vdwg.mxu0
    %v3081 = vsel %vm990, %v2918, 0
    %3083 = vmatpush.msra.mxu0 0.0
    %3084 = vmatpush.msra.mxu0 0.0
    %3085 = vmatpush.msra.mxu0 0.0
    %3086 = vmatpush.msra.mxu0 0.0
    %3087 = vmatpush.msra.mxu0 0.0
    %3088 = vmatpush.msra.mxu0 0.0
    %3089 = vmatpush.msra.mxu0 0.0
    %3090 = vmatpush.msra.mxu0 0.0
    %3091 = vmatpush.msra.mxu0 0.0
    %3092 = vmatpush.msra.mxu0 0.0
    %3093 = vmatpush.msra.mxu0 0.0
    %3094 = vmatpush.msra.mxu0 0.0
    %3095 = vmatpush.msra.mxu0 0.0
    %3096 = vmatpush.msra.mxu0 0.0
    %3097 = vmatpush.msra.mxu0 0.0
    %3098 = vmatpush.msra.mxu0 %v2622
    %3099 = vmatmul.f32.gmra.mxu0 %v3081
    %v3100 = vpop.f32.mrf.mxu0
    %v3101 = vadd.f32 0.0, %v3100
    %3102 = vdwg.mxu0
    %v3103 = vrot.slane %v2986, 4
    %v3104 = vsel %vm282, %v3103, %v2940
    %v3105 = vrot.slane %v2940, 4
    %v3106 = vsel %vm282, %v2986, %v3105
    %v3108 = vunpack.c.l.s4 1983009808
    %v3109 = vunpack.c.0.s8 %v3108
    %v3110 = vperm.slane %v3104, %v3109
    %v3112 = vunpack.c.l.s4 1983009808
    %v3113 = vunpack.c.0.s8 %v3112
    %v3114 = vperm.slane %v3106, %v3113
    %v3115 = vrot.slane %v3009, 4
    %v3116 = vsel %vm282, %v3115, %v2963
    %v3117 = vrot.slane %v2963, 4
    %v3118 = vsel %vm282, %v3009, %v3117
    %v3120 = vunpack.c.l.s4 1983009808
    %v3121 = vunpack.c.0.s8 %v3120
    %v3122 = vperm.slane %v3116, %v3121
    %v3124 = vunpack.c.l.s4 1983009808
    %v3125 = vunpack.c.0.s8 %v3124
    %v3126 = vperm.slane %v3118, %v3125
    %v3127 = vrot.slane %v3122, 4
    %v3128 = vsel %vm282, %v3127, %v3110
    %v3129 = vrot.slane %v3110, 4
    %v3130 = vsel %vm282, %v3122, %v3129
    %v3132 = vunpack.c.l.s4 1934713408
    %v3133 = vunpack.c.0.s8 %v3132
    %v3134 = vperm.slane %v3128, %v3133
    %v3136 = vunpack.c.l.s4 1934713408
    %v3137 = vunpack.c.0.s8 %v3136
    %v3138 = vperm.slane %v3130, %v3137
    %v3139 = vrot.slane %v3126, 4
    %v3140 = vsel %vm282, %v3139, %v3114
    %v3141 = vrot.slane %v3114, 4
    %v3142 = vsel %vm282, %v3126, %v3141
    %v3144 = vunpack.c.l.s4 1934713408
    %v3145 = vunpack.c.0.s8 %v3144
    %v3146 = vperm.slane %v3140, %v3145
    %v3148 = vunpack.c.l.s4 1934713408
    %v3149 = vunpack.c.0.s8 %v3148
    %v3150 = vperm.slane %v3142, %v3149
    %v3151 = vrot.slane %v3134, 4
    %v3152 = vsel %vm282, 0.0, %v3151
    %v3153 = vrot.slane %v3138, 4
    %v3154 = vsel %vm282, 0.0, %v3153
    %v3155 = vrot.slane %v3146, 4
    %v3156 = vsel %vm282, 0.0, %v3155
    %v3157 = vrot.slane %v3150, 4
    %v3158 = vsel %vm282, 0.0, %v3157
    %v3159 = vrot.slane %v3078, 4
    %v3160 = vsel %vm282, %v3159, %v3032
    %v3161 = vrot.slane %v3032, 4
    %v3162 = vsel %vm282, %v3078, %v3161
    %v3164 = vunpack.c.l.s4 1983009808
    %v3165 = vunpack.c.0.s8 %v3164
    %v3166 = vperm.slane %v3160, %v3165
    %v3168 = vunpack.c.l.s4 1983009808
    %v3169 = vunpack.c.0.s8 %v3168
    %v3170 = vperm.slane %v3162, %v3169
    %v3171 = vrot.slane %v3101, 4
    %v3172 = vsel %vm282, %v3171, %v3055
    %v3173 = vrot.slane %v3055, 4
    %v3174 = vsel %vm282, %v3101, %v3173
    %v3176 = vunpack.c.l.s4 1983009808
    %v3177 = vunpack.c.0.s8 %v3176
    %v3178 = vperm.slane %v3172, %v3177
    %v3180 = vunpack.c.l.s4 1983009808
    %v3181 = vunpack.c.0.s8 %v3180
    %v3182 = vperm.slane %v3174, %v3181
    %v3183 = vrot.slane %v3178, 4
    %v3184 = vsel %vm282, %v3183, %v3166
    %v3185 = vrot.slane %v3166, 4
    %v3186 = vsel %vm282, %v3178, %v3185
    %v3188 = vunpack.c.l.s4 1934713408
    %v3189 = vunpack.c.0.s8 %v3188
    %v3190 = vperm.slane %v3184, %v3189
    %v3192 = vunpack.c.l.s4 1934713408
    %v3193 = vunpack.c.0.s8 %v3192
    %v3194 = vperm.slane %v3186, %v3193
    %v3195 = vrot.slane %v3182, 4
    %v3196 = vsel %vm282, %v3195, %v3170
    %v3197 = vrot.slane %v3170, 4
    %v3198 = vsel %vm282, %v3182, %v3197
    %v3200 = vunpack.c.l.s4 1934713408
    %v3201 = vunpack.c.0.s8 %v3200
    %v3202 = vperm.slane %v3196, %v3201
    %v3204 = vunpack.c.l.s4 1934713408
    %v3205 = vunpack.c.0.s8 %v3204
    %v3206 = vperm.slane %v3198, %v3205
    %v3207 = vrot.slane %v3190, 4
    %v3208 = vsel %vm282, 0.0, %v3207
    %v3209 = vrot.slane %v3194, 4
    %v3210 = vsel %vm282, 0.0, %v3209
    %v3211 = vrot.slane %v3202, 4
    %v3212 = vsel %vm282, 0.0, %v3211
    %v3213 = vrot.slane %v3206, 4
    %v3214 = vsel %vm282, 0.0, %v3213
    %v3215 = vsel %vm282, %v3153, %v3134
    %v3217 = vunpack.c.l.s4 1983009808
    %v3218 = vunpack.c.0.s8 %v3217
    %v3219 = vperm.slane %v3215, %v3218
    %v3220 = vrot.slane %v3154, 4
    %v3221 = vsel %vm282, %v3220, %v3152
    %v3223 = vunpack.c.l.s4 1983009808
    %v3224 = vunpack.c.0.s8 %v3223
    %v3225 = vperm.slane %v3221, %v3224
    %v3226 = vsel %vm282, %v3157, %v3146
    %v3228 = vunpack.c.l.s4 1983009808
    %v3229 = vunpack.c.0.s8 %v3228
    %v3230 = vperm.slane %v3226, %v3229
    %v3231 = vrot.slane %v3158, 4
    %v3232 = vsel %vm282, %v3231, %v3156
    %v3234 = vunpack.c.l.s4 1983009808
    %v3235 = vunpack.c.0.s8 %v3234
    %v3236 = vperm.slane %v3232, %v3235
    %v3237 = vrot.slane %v3225, 4
    %v3238 = vsel %vm282, %v3237, %v3219
    %v3239 = vrot.slane %v3219, 4
    %v3240 = vsel %vm282, %v3225, %v3239
    %v3242 = vunpack.c.l.s4 1934713408
    %v3243 = vunpack.c.0.s8 %v3242
    %v3244 = vperm.slane %v3238, %v3243
    %v3246 = vunpack.c.l.s4 1934713408
    %v3247 = vunpack.c.0.s8 %v3246
    %v3248 = vperm.slane %v3240, %v3247
    %v3249 = vrot.slane %v3236, 4
    %v3250 = vsel %vm282, %v3249, %v3230
    %v3251 = vrot.slane %v3230, 4
    %v3252 = vsel %vm282, %v3236, %v3251
    %v3254 = vunpack.c.l.s4 1934713408
    %v3255 = vunpack.c.0.s8 %v3254
    %v3256 = vperm.slane %v3250, %v3255
    %v3258 = vunpack.c.l.s4 1934713408
    %v3259 = vunpack.c.0.s8 %v3258
    %v3260 = vperm.slane %v3252, %v3259
    %v3261 = vrot.slane %v3256, 4
    %v3262 = vsel %vm282, %v3261, %v3244
    %v3263 = vrot.slane %v3244, 4
    %v3264 = vsel %vm282, %v3256, %v3263
    %v3265 = vrot.slane %v3260, 4
    %v3266 = vsel %vm282, %v3265, %v3248
    %v3267 = vrot.slane %v3248, 4
    %v3268 = vsel %vm282, %v3260, %v3267
    %v3269 = vsel %vm282, %v3209, %v3190
    %v3271 = vunpack.c.l.s4 1983009808
    %v3272 = vunpack.c.0.s8 %v3271
    %v3273 = vperm.slane %v3269, %v3272
    %v3274 = vrot.slane %v3210, 4
    %v3275 = vsel %vm282, %v3274, %v3208
    %v3277 = vunpack.c.l.s4 1983009808
    %v3278 = vunpack.c.0.s8 %v3277
    %v3279 = vperm.slane %v3275, %v3278
    %v3280 = vsel %vm282, %v3213, %v3202
    %v3282 = vunpack.c.l.s4 1983009808
    %v3283 = vunpack.c.0.s8 %v3282
    %v3284 = vperm.slane %v3280, %v3283
    %v3285 = vrot.slane %v3214, 4
    %v3286 = vsel %vm282, %v3285, %v3212
    %v3288 = vunpack.c.l.s4 1983009808
    %v3289 = vunpack.c.0.s8 %v3288
    %v3290 = vperm.slane %v3286, %v3289
    %v3291 = vrot.slane %v3279, 4
    %v3292 = vsel %vm282, %v3291, %v3273
    %v3293 = vrot.slane %v3273, 4
    %v3294 = vsel %vm282, %v3279, %v3293
    %v3296 = vunpack.c.l.s4 1934713408
    %v3297 = vunpack.c.0.s8 %v3296
    %v3298 = vperm.slane %v3292, %v3297
    %v3300 = vunpack.c.l.s4 1934713408
    %v3301 = vunpack.c.0.s8 %v3300
    %v3302 = vperm.slane %v3294, %v3301
    %v3303 = vrot.slane %v3290, 4
    %v3304 = vsel %vm282, %v3303, %v3284
    %v3305 = vrot.slane %v3284, 4
    %v3306 = vsel %vm282, %v3290, %v3305
    %v3308 = vunpack.c.l.s4 1934713408
    %v3309 = vunpack.c.0.s8 %v3308
    %v3310 = vperm.slane %v3304, %v3309
    %v3312 = vunpack.c.l.s4 1934713408
    %v3313 = vunpack.c.0.s8 %v3312
    %v3314 = vperm.slane %v3306, %v3313
    %v3315 = vrot.slane %v3310, 4
    %v3316 = vsel %vm282, %v3315, %v3298
    %v3317 = vrot.slane %v3298, 4
    %v3318 = vsel %vm282, %v3310, %v3317
    %v3319 = vrot.slane %v3314, 4
    %v3320 = vsel %vm282, %v3319, %v3302
    %v3321 = vrot.slane %v3302, 4
    %v3322 = vsel %vm282, %v3314, %v3321
    %3325 = vrot.lane.b32.xlu0 %v3264, 8
    %v3326 = vpop.permute.xlu0 %3325
    %3327 = vrot.lane.b32.xlu0 %v3318, 8
    %v3328 = vpop.permute.xlu0 %3327
    %3333 = vrot.lane.b32.xlu0 %v3266, 16
    %v3334 = vpop.permute.xlu0 %3333
    %3335 = vrot.lane.b32.xlu0 %v3320, 16
    %v3336 = vpop.permute.xlu0 %3335
    %3341 = vrot.lane.b32.xlu0 %v3268, 24
    %v3342 = vpop.permute.xlu0 %3341
    %3343 = vrot.lane.b32.xlu0 %v3322, 24
    %v3344 = vpop.permute.xlu0 %3343
    %v3347 = vsel %vm990, %v3262, %v3326
    %v3348 = vsel %vm990, %v3316, %v3328
    %v3349 = vsel %vm1717, %v3347, %v3334
    %v3350 = vsel %vm1717, %v3348, %v3336
    %v3351 = vsel %vm1720, %v3349, %v3342
    %v3352 = vsel %vm1720, %v3350, %v3344
    %v3354 = vperm.slane %v1898, 0
    %v3357 = vsel %vm226, %v3351, 0
    %v3360 = vsel %vm226, %v3352, 0
    %3362 = vmatpush.msra.mxu0 0.0
    %3363 = vmatpush.msra.mxu0 0.0
    %3364 = vmatpush.msra.mxu0 0.0
    %3365 = vmatpush.msra.mxu0 0.0
    %3366 = vmatpush.msra.mxu0 0.0
    %3367 = vmatpush.msra.mxu0 0.0
    %3368 = vmatpush.msra.mxu0 0.0
    %3369 = vmatpush.msra.mxu0 0.0
    %3370 = vmatpush.msra.mxu0 0.0
    %3371 = vmatpush.msra.mxu0 0.0
    %3372 = vmatpush.msra.mxu0 0.0
    %3373 = vmatpush.msra.mxu0 0.0
    %3374 = vmatpush.msra.mxu0 %v1897
    %3375 = vmatpush.msra.mxu0 %v1896
    %3376 = vmatpush.msra.mxu0 %v1895
    %3377 = vmatpush.msra.mxu0 %v1894
    %3378 = vmatmul.f32.gmra.mxu0 %v3357
    %v3379 = vpop.f32.mrf.mxu0
    %v3380 = vadd.f32 %v3354, %v3379
    %3381 = vmatmul.f32.gmra.mxu0 %v3360
    %v3382 = vpop.f32.mrf.mxu0
    %v3383 = vadd.f32 %v3354, %v3382
    %3384 = vdwg.mxu0
    %v3385 = vadd.f32 %v1818, %v3380
    %v3386 = vadd.f32 %v1819, %v3383
    %v3387 = vld [vmem:[%s15] sm:$0x1]
    %v3388 = vld [vmem:[%s16] sm:$0x1]
    %v3389 = vsel %vm226, %v3385, 0.0
    %3390 = vadd.xlane.f32.xlu0 %v3389
    %v3391 = vpop.xlane.xlu0 %3390
    %v3392 = vsel %vm226, %v3386, 0.0
    %3393 = vadd.xlane.f32.xlu0 %v3392
    %v3394 = vpop.xlane.xlu0 %3393
    %v3395 = vmul.f32 %v3391, %v1771
    %v3396 = vmul.f32 %v3394, %v1771
    %v3397 = vsub.f32 %v3385, %v3395
    %v3398 = vsub.f32 %v3386, %v3396
    %v3399 = vmul.f32 %v3397, %v3397
    %v3400 = vmul.f32 %v3398, %v3398
    %v3401 = vsel %vm226, %v3399, 0.0
    %3402 = vadd.xlane.f32.xlu0 %v3401
    %v3403 = vpop.xlane.xlu0 %3402
    %v3404 = vsel %vm226, %v3400, 0.0
    %3405 = vadd.xlane.f32.xlu0 %v3404
    %v3406 = vpop.xlane.xlu0 %3405
    %v3407 = vmul.f32 %v3403, %v1771
    %v3408 = vmul.f32 %v3406, %v1771
    %v3409 = vadd.f32 %v3407, 1e-05
    %v3410 = vadd.f32 %v3408, 1e-05
    %v3411 = vrsqrt.pop %v3409
    %v3412 = vmul.f32 %v3411, %v3409
    %v3413 = vmul.f32 %v3412, %v3411
    %v3414 = vmul.f32 0.5, %v3413
    %v3415 = vsub.f32 1.5, %v3414
    %v3416 = vmul.f32 %v3411, %v3415
    %vm3417 = vweird.f32 %v3409
    %vm3418 = vweird.f32 %v3411
    %vm3419 = vmor %vm3417, %vm3418
    %v3420 = vsel %vm3419, %v3411, %v3416
    %v3421 = vrsqrt.pop %v3410
    %v3422 = vmul.f32 %v3421, %v3410
    %v3423 = vmul.f32 %v3422, %v3421
    %v3424 = vmul.f32 0.5, %v3423
    %v3425 = vsub.f32 1.5, %v3424
    %v3426 = vmul.f32 %v3421, %v3425
    %vm3427 = vweird.f32 %v3410
    %vm3428 = vweird.f32 %v3421
    %vm3429 = vmor %vm3427, %vm3428
    %v3430 = vsel %vm3429, %v3421, %v3426
    %v3431 = vmul.f32 %v3397, %v3420
    %v3432 = vmul.f32 %v3398, %v3430
    %v3434 = vperm.slane %v3387, 0
    %v3436 = vmul.f32 %v3431, %v3434
    %v3437 = vmul.f32 %v3432, %v3434
    %v3439 = vperm.slane %v3388, 0
    %v3441 = vadd.f32 %v3436, %v3439
    %v3442 = vadd.f32 %v3437, %v3439
    %v3443 = vld [vmem:[#allocation14] sm:$0xff]
    %v3444 = vld [vmem:[#allocation14 + $0x8] sm:$0xff]
    %v3445 = vld [vmem:[#allocation14 + $0x10] sm:$0xff]
    %v3446 = vld [vmem:[#allocation14 + $0x18] sm:$0xff]
    %v3447 = vld [vmem:[%s18] sm:$0x1]
    %v3449 = vperm.slane %v3447, 0
    %v3452 = vsel %vm226, %v3441, 0
    %v3455 = vsel %vm226, %v3442, 0
    %3457 = vmatpush.msra.mxu0 0.0
    %3458 = vmatpush.msra.mxu0 0.0
    %3459 = vmatpush.msra.mxu0 0.0
    %3460 = vmatpush.msra.mxu0 0.0
    %3461 = vmatpush.msra.mxu0 0.0
    %3462 = vmatpush.msra.mxu0 0.0
    %3463 = vmatpush.msra.mxu0 0.0
    %3464 = vmatpush.msra.mxu0 0.0
    %3465 = vmatpush.msra.mxu0 0.0
    %3466 = vmatpush.msra.mxu0 0.0
    %3467 = vmatpush.msra.mxu0 0.0
    %3468 = vmatpush.msra.mxu0 0.0
    %3469 = vmatpush.msra.mxu0 %v3446
    %3470 = vmatpush.msra.mxu0 %v3445
    %3471 = vmatpush.msra.mxu0 %v3444
    %3472 = vmatpush.msra.mxu0 %v3443
    %3473 = vmatmul.f32.gmra.mxu0 %v3452
    %v3474 = vpop.f32.mrf.mxu0
    %v3475 = vadd.f32 %v3449, %v3474
    %3476 = vmatmul.f32.gmra.mxu0 %v3455
    %v3477 = vpop.f32.mrf.mxu0
    %v3478 = vadd.f32 %v3449, %v3477
    %3479 = vdwg.mxu0
    %v3480 = vmax.f32 %v3475, 0.0
    %v3481 = vmax.f32 %v3478, 0.0
    %v3482 = vld [vmem:[%s19] sm:$0xff]
    %v3483 = vld [vmem:[%s19 + $0x8] sm:$0xff]
    %v3484 = vld [vmem:[%s19 + $0x10] sm:$0xff]
    %v3485 = vld [vmem:[%s19 + $0x18] sm:$0xff]
    %v3486 = vld [vmem:[%s19 + $0x20] sm:$0xff]
    %v3487 = vld [vmem:[%s19 + $0x28] sm:$0xff]
    %v3488 = vld [vmem:[%s19 + $0x30] sm:$0xff]
    %v3489 = vld [vmem:[%s19 + $0x38] sm:$0xff]
    %v3490 = vld [vmem:[#allocation16] sm:$0x1]
    %v3492 = vperm.slane %v3490, 0
    %vm3494 = vcmask 523264
    %v3496 = vsel %vm3494, %v3480, 0
    %v3499 = vsel %vm3494, %v3481, 0
    %3501 = vmatpush.msra.mxu0 0.0
    %3502 = vmatpush.msra.mxu0 0.0
    %3503 = vmatpush.msra.mxu0 0.0
    %3504 = vmatpush.msra.mxu0 0.0
    %3505 = vmatpush.msra.mxu0 0.0
    %3506 = vmatpush.msra.mxu0 0.0
    %3507 = vmatpush.msra.mxu0 0.0
    %3508 = vmatpush.msra.mxu0 0.0
    %3509 = vmatpush.msra.mxu0 %v3489
    %3510 = vmatpush.msra.mxu0 %v3488
    %3511 = vmatpush.msra.mxu0 %v3487
    %3512 = vmatpush.msra.mxu0 %v3486
    %3513 = vmatpush.msra.mxu0 %v3485
    %3514 = vmatpush.msra.mxu0 %v3484
    %3515 = vmatpush.msra.mxu0 %v3483
    %3516 = vmatpush.msra.mxu0 %v3482
    %3517 = vmatmul.f32.gmra.mxu0 %v3496
    %v3518 = vpop.f32.mrf.mxu0
    %v3519 = vadd.f32 %v3492, %v3518
    %3520 = vmatmul.f32.gmra.mxu0 %v3499
    %v3521 = vpop.f32.mrf.mxu0
    %v3522 = vadd.f32 %v3492, %v3521
    %3523 = vdwg.mxu0
    %v3524 = vadd.f32 %v3441, %v3519
    %v3525 = vadd.f32 %v3442, %v3522
    %v3526 = vld [vmem:[%s21] sm:$0x1]
    %v3527 = vld [vmem:[%s22] sm:$0x1]
    %v3528 = vsel %vm226, %v3524, 0.0
    %3529 = vadd.xlane.f32.xlu0 %v3528
    %v3530 = vpop.xlane.xlu0 %3529
    %v3531 = vsel %vm226, %v3525, 0.0
    %3532 = vadd.xlane.f32.xlu0 %v3531
    %v3533 = vpop.xlane.xlu0 %3532
    %v3534 = vmul.f32 %v3530, %v1771
    %v3535 = vmul.f32 %v3533, %v1771
    %v3536 = vsub.f32 %v3524, %v3534
    %v3537 = vsub.f32 %v3525, %v3535
    %v3538 = vmul.f32 %v3536, %v3536
    %v3539 = vmul.f32 %v3537, %v3537
    %v3540 = vsel %vm226, %v3538, 0.0
    %3541 = vadd.xlane.f32.xlu0 %v3540
    %v3542 = vpop.xlane.xlu0 %3541
    %v3543 = vsel %vm226, %v3539, 0.0
    %3544 = vadd.xlane.f32.xlu0 %v3543
    %v3545 = vpop.xlane.xlu0 %3544
    %v3546 = vmul.f32 %v3542, %v1771
    %v3547 = vmul.f32 %v3545, %v1771
    %v3548 = vadd.f32 %v3546, 1e-05
    %v3549 = vadd.f32 %v3547, 1e-05
    %v3550 = vrsqrt.pop %v3548
    %v3551 = vmul.f32 %v3550, %v3548
    %v3552 = vmul.f32 %v3551, %v3550
    %v3553 = vmul.f32 0.5, %v3552
    %v3554 = vsub.f32 1.5, %v3553
    %v3555 = vmul.f32 %v3550, %v3554
    %vm3556 = vweird.f32 %v3548
    %vm3557 = vweird.f32 %v3550
    %vm3558 = vmor %vm3556, %vm3557
    %v3559 = vsel %vm3558, %v3550, %v3555
    %v3560 = vrsqrt.pop %v3549
    %v3561 = vmul.f32 %v3560, %v3549
    %v3562 = vmul.f32 %v3561, %v3560
    %v3563 = vmul.f32 0.5, %v3562
    %v3564 = vsub.f32 1.5, %v3563
    %v3565 = vmul.f32 %v3560, %v3564
    %vm3566 = vweird.f32 %v3549
    %vm3567 = vweird.f32 %v3560
    %vm3568 = vmor %vm3566, %vm3567
    %v3569 = vsel %vm3568, %v3560, %v3565
    %v3570 = vmul.f32 %v3536, %v3559
    %v3571 = vmul.f32 %v3537, %v3569
    %v3573 = vperm.slane %v3526, 0
    %v3575 = vmul.f32 %v3570, %v3573
    %v3576 = vmul.f32 %v3571, %v3573
    %v3578 = vperm.slane %v3527, 0
    %v3580 = vadd.f32 %v3575, %v3578
    %v3581 = vadd.f32 %v3576, %v3578
    %s3582 = scalar_lea.vmem %s3, 32
    %v3583 = vld [vmem:[%s3582] sm:$0xff]
    %v3584 = vld [vmem:[%s3582 + $0x8] sm:$0xff]
    %v3585 = vld [vmem:[%s3582 + $0x10] sm:$0xff]
    %v3586 = vld [vmem:[%s3582 + $0x18] sm:$0xff]
    %s3587 = scalar_lea.vmem %s4, 1
    %v3588 = vld [vmem:[%s3587] sm:$0x1]
    %v3590 = vperm.slane %v3588, 0
    %v3593 = vsel %vm226, %v3580, 0
    %v3596 = vsel %vm226, %v3581, 0
    %3598 = vmatpush.msra.mxu0 0.0
    %3599 = vmatpush.msra.mxu0 0.0
    %3600 = vmatpush.msra.mxu0 0.0
    %3601 = vmatpush.msra.mxu0 0.0
    %3602 = vmatpush.msra.mxu0 0.0
    %3603 = vmatpush.msra.mxu0 0.0
    %3604 = vmatpush.msra.mxu0 0.0
    %3605 = vmatpush.msra.mxu0 0.0
    %3606 = vmatpush.msra.mxu0 0.0
    %3607 = vmatpush.msra.mxu0 0.0
    %3608 = vmatpush.msra.mxu0 0.0
    %3609 = vmatpush.msra.mxu0 0.0
    %3610 = vmatpush.msra.mxu0 %v3586
    %3611 = vmatpush.msra.mxu0 %v3585
    %3612 = vmatpush.msra.mxu0 %v3584
    %3613 = vmatpush.msra.mxu0 %v3583
    %3614 = vmatmul.f32.gmra.mxu0 %v3593
    %v3615 = vpop.f32.mrf.mxu0
    %v3616 = vadd.f32 %v3590, %v3615
    %3617 = vmatmul.f32.gmra.mxu0 %v3596
    %v3618 = vpop.f32.mrf.mxu0
    %v3619 = vadd.f32 %v3590, %v3618
    %3620 = vdwg.mxu0
    %s3621 = scalar_lea.vmem %s5, 32
    %v3622 = vld [vmem:[%s3621] sm:$0xff]
    %v3623 = vld [vmem:[%s3621 + $0x8] sm:$0xff]
    %v3624 = vld [vmem:[%s3621 + $0x10] sm:$0xff]
    %v3625 = vld [vmem:[%s3621 + $0x18] sm:$0xff]
    %s3626 = scalar_lea.vmem %s6, 1
    %v3627 = vld [vmem:[%s3626] sm:$0x1]
    %3630 = vrot.lane.b32.xlu0 %v3616, 120
    %v3631 = vpop.permute.xlu0 %3630
    %3632 = vrot.lane.b32.xlu0 %v3619, 120
    %v3633 = vpop.permute.xlu0 %3632
    %3636 = vrot.lane.b32.xlu0 %v3616, 112
    %v3637 = vpop.permute.xlu0 %3636
    %3638 = vrot.lane.b32.xlu0 %v3619, 112
    %v3639 = vpop.permute.xlu0 %3638
    %3642 = vrot.lane.b32.xlu0 %v3616, 104
    %v3643 = vpop.permute.xlu0 %3642
    %3644 = vrot.lane.b32.xlu0 %v3619, 104
    %v3645 = vpop.permute.xlu0 %3644
    %v3648 = vrot.slane %v3637, 4
    %v3649 = vsel %vm282, %v3648, %v3616
    %v3650 = vrot.slane %v3616, 4
    %v3651 = vsel %vm282, %v3637, %v3650
    %v3653 = vunpack.c.l.s4 1983009808
    %v3654 = vunpack.c.0.s8 %v3653
    %v3655 = vperm.slane %v3649, %v3654
    %v3657 = vunpack.c.l.s4 1983009808
    %v3658 = vunpack.c.0.s8 %v3657
    %v3659 = vperm.slane %v3651, %v3658
    %v3660 = vrot.slane %v3643, 4
    %v3661 = vsel %vm282, %v3660, %v3631
    %v3662 = vrot.slane %v3631, 4
    %v3663 = vsel %vm282, %v3643, %v3662
    %v3665 = vunpack.c.l.s4 1983009808
    %v3666 = vunpack.c.0.s8 %v3665
    %v3667 = vperm.slane %v3661, %v3666
    %v3669 = vunpack.c.l.s4 1983009808
    %v3670 = vunpack.c.0.s8 %v3669
    %v3671 = vperm.slane %v3663, %v3670
    %v3672 = vrot.slane %v3667, 4
    %v3673 = vsel %vm282, %v3672, %v3655
    %v3674 = vrot.slane %v3655, 4
    %v3675 = vsel %vm282, %v3667, %v3674
    %v3677 = vunpack.c.l.s4 1934713408
    %v3678 = vunpack.c.0.s8 %v3677
    %v3679 = vperm.slane %v3673, %v3678
    %v3681 = vunpack.c.l.s4 1934713408
    %v3682 = vunpack.c.0.s8 %v3681
    %v3683 = vperm.slane %v3675, %v3682
    %v3684 = vrot.slane %v3671, 4
    %v3685 = vsel %vm282, %v3684, %v3659
    %v3686 = vrot.slane %v3659, 4
    %v3687 = vsel %vm282, %v3671, %v3686
    %v3689 = vunpack.c.l.s4 1934713408
    %v3690 = vunpack.c.0.s8 %v3689
    %v3691 = vperm.slane %v3685, %v3690
    %v3693 = vunpack.c.l.s4 1934713408
    %v3694 = vunpack.c.0.s8 %v3693
    %v3695 = vperm.slane %v3687, %v3694
    %v3696 = vrot.slane %v3679, 4
    %v3697 = vsel %vm282, 0.0, %v3696
    %v3698 = vrot.slane %v3683, 4
    %v3699 = vsel %vm282, 0.0, %v3698
    %v3700 = vrot.slane %v3691, 4
    %v3701 = vsel %vm282, 0.0, %v3700
    %v3702 = vrot.slane %v3695, 4
    %v3703 = vsel %vm282, 0.0, %v3702
    %v3704 = vrot.slane %v3639, 4
    %v3705 = vsel %vm282, %v3704, %v3619
    %v3706 = vrot.slane %v3619, 4
    %v3707 = vsel %vm282, %v3639, %v3706
    %v3709 = vunpack.c.l.s4 1983009808
    %v3710 = vunpack.c.0.s8 %v3709
    %v3711 = vperm.slane %v3705, %v3710
    %v3713 = vunpack.c.l.s4 1983009808
    %v3714 = vunpack.c.0.s8 %v3713
    %v3715 = vperm.slane %v3707, %v3714
    %v3716 = vrot.slane %v3645, 4
    %v3717 = vsel %vm282, %v3716, %v3633
    %v3718 = vrot.slane %v3633, 4
    %v3719 = vsel %vm282, %v3645, %v3718
    %v3721 = vunpack.c.l.s4 1983009808
    %v3722 = vunpack.c.0.s8 %v3721
    %v3723 = vperm.slane %v3717, %v3722
    %v3725 = vunpack.c.l.s4 1983009808
    %v3726 = vunpack.c.0.s8 %v3725
    %v3727 = vperm.slane %v3719, %v3726
    %v3728 = vrot.slane %v3723, 4
    %v3729 = vsel %vm282, %v3728, %v3711
    %v3730 = vrot.slane %v3711, 4
    %v3731 = vsel %vm282, %v3723, %v3730
    %v3733 = vunpack.c.l.s4 1934713408
    %v3734 = vunpack.c.0.s8 %v3733
    %v3735 = vperm.slane %v3729, %v3734
    %v3737 = vunpack.c.l.s4 1934713408
    %v3738 = vunpack.c.0.s8 %v3737
    %v3739 = vperm.slane %v3731, %v3738
    %v3740 = vrot.slane %v3727, 4
    %v3741 = vsel %vm282, %v3740, %v3715
    %v3742 = vrot.slane %v3715, 4
    %v3743 = vsel %vm282, %v3727, %v3742
    %v3745 = vunpack.c.l.s4 1934713408
    %v3746 = vunpack.c.0.s8 %v3745
    %v3747 = vperm.slane %v3741, %v3746
    %v3749 = vunpack.c.l.s4 1934713408
    %v3750 = vunpack.c.0.s8 %v3749
    %v3751 = vperm.slane %v3743, %v3750
    %v3752 = vrot.slane %v3735, 4
    %v3753 = vsel %vm282, 0.0, %v3752
    %v3754 = vrot.slane %v3739, 4
    %v3755 = vsel %vm282, 0.0, %v3754
    %v3756 = vrot.slane %v3747, 4
    %v3757 = vsel %vm282, 0.0, %v3756
    %v3758 = vrot.slane %v3751, 4
    %v3759 = vsel %vm282, 0.0, %v3758
    %v3760 = vsel %vm282, %v3698, %v3679
    %v3762 = vunpack.c.l.s4 1983009808
    %v3763 = vunpack.c.0.s8 %v3762
    %v3764 = vperm.slane %v3760, %v3763
    %v3765 = vrot.slane %v3699, 4
    %v3766 = vsel %vm282, %v3765, %v3697
    %v3768 = vunpack.c.l.s4 1983009808
    %v3769 = vunpack.c.0.s8 %v3768
    %v3770 = vperm.slane %v3766, %v3769
    %v3771 = vsel %vm282, %v3702, %v3691
    %v3773 = vunpack.c.l.s4 1983009808
    %v3774 = vunpack.c.0.s8 %v3773
    %v3775 = vperm.slane %v3771, %v3774
    %v3776 = vrot.slane %v3703, 4
    %v3777 = vsel %vm282, %v3776, %v3701
    %v3779 = vunpack.c.l.s4 1983009808
    %v3780 = vunpack.c.0.s8 %v3779
    %v3781 = vperm.slane %v3777, %v3780
    %v3782 = vrot.slane %v3770, 4
    %v3783 = vsel %vm282, %v3782, %v3764
    %v3784 = vrot.slane %v3764, 4
    %v3785 = vsel %vm282, %v3770, %v3784
    %v3787 = vunpack.c.l.s4 1934713408
    %v3788 = vunpack.c.0.s8 %v3787
    %v3789 = vperm.slane %v3783, %v3788
    %v3791 = vunpack.c.l.s4 1934713408
    %v3792 = vunpack.c.0.s8 %v3791
    %v3793 = vperm.slane %v3785, %v3792
    %v3794 = vrot.slane %v3781, 4
    %v3795 = vsel %vm282, %v3794, %v3775
    %v3796 = vrot.slane %v3775, 4
    %v3797 = vsel %vm282, %v3781, %v3796
    %v3799 = vunpack.c.l.s4 1934713408
    %v3800 = vunpack.c.0.s8 %v3799
    %v3801 = vperm.slane %v3795, %v3800
    %v3803 = vunpack.c.l.s4 1934713408
    %v3804 = vunpack.c.0.s8 %v3803
    %v3805 = vperm.slane %v3797, %v3804
    %v3806 = vrot.slane %v3801, 4
    %v3807 = vsel %vm282, %v3806, %v3789
    %v3808 = vrot.slane %v3789, 4
    %v3809 = vsel %vm282, %v3801, %v3808
    %v3810 = vrot.slane %v3805, 4
    %v3811 = vsel %vm282, %v3810, %v3793
    %v3812 = vrot.slane %v3793, 4
    %v3813 = vsel %vm282, %v3805, %v3812
    %v3814 = vsel %vm282, %v3754, %v3735
    %v3816 = vunpack.c.l.s4 1983009808
    %v3817 = vunpack.c.0.s8 %v3816
    %v3818 = vperm.slane %v3814, %v3817
    %v3819 = vrot.slane %v3755, 4
    %v3820 = vsel %vm282, %v3819, %v3753
    %v3822 = vunpack.c.l.s4 1983009808
    %v3823 = vunpack.c.0.s8 %v3822
    %v3824 = vperm.slane %v3820, %v3823
    %v3825 = vsel %vm282, %v3758, %v3747
    %v3827 = vunpack.c.l.s4 1983009808
    %v3828 = vunpack.c.0.s8 %v3827
    %v3829 = vperm.slane %v3825, %v3828
    %v3830 = vrot.slane %v3759, 4
    %v3831 = vsel %vm282, %v3830, %v3757
    %v3833 = vunpack.c.l.s4 1983009808
    %v3834 = vunpack.c.0.s8 %v3833
    %v3835 = vperm.slane %v3831, %v3834
    %v3836 = vrot.slane %v3824, 4
    %v3837 = vsel %vm282, %v3836, %v3818
    %v3838 = vrot.slane %v3818, 4
    %v3839 = vsel %vm282, %v3824, %v3838
    %v3841 = vunpack.c.l.s4 1934713408
    %v3842 = vunpack.c.0.s8 %v3841
    %v3843 = vperm.slane %v3837, %v3842
    %v3845 = vunpack.c.l.s4 1934713408
    %v3846 = vunpack.c.0.s8 %v3845
    %v3847 = vperm.slane %v3839, %v3846
    %v3848 = vrot.slane %v3835, 4
    %v3849 = vsel %vm282, %v3848, %v3829
    %v3850 = vrot.slane %v3829, 4
    %v3851 = vsel %vm282, %v3835, %v3850
    %v3853 = vunpack.c.l.s4 1934713408
    %v3854 = vunpack.c.0.s8 %v3853
    %v3855 = vperm.slane %v3849, %v3854
    %v3857 = vunpack.c.l.s4 1934713408
    %v3858 = vunpack.c.0.s8 %v3857
    %v3859 = vperm.slane %v3851, %v3858
    %v3860 = vrot.slane %v3855, 4
    %v3861 = vsel %vm282, %v3860, %v3843
    %v3862 = vrot.slane %v3843, 4
    %v3863 = vsel %vm282, %v3855, %v3862
    %v3864 = vrot.slane %v3859, 4
    %v3865 = vsel %vm282, %v3864, %v3847
    %v3866 = vrot.slane %v3847, 4
    %v3867 = vsel %vm282, %v3859, %v3866
    %3868 = vrot.lane.b32.xlu0 %v3616, 96
    %v3869 = vpop.permute.xlu0 %3868
    %3870 = vrot.lane.b32.xlu0 %v3619, 96
    %v3871 = vpop.permute.xlu0 %3870
    %3872 = vrot.lane.b32.xlu0 %v3631, 96
    %v3873 = vpop.permute.xlu0 %3872
    %3874 = vrot.lane.b32.xlu0 %v3633, 96
    %v3875 = vpop.permute.xlu0 %3874
    %3876 = vrot.lane.b32.xlu0 %v3637, 96
    %v3877 = vpop.permute.xlu0 %3876
    %3878 = vrot.lane.b32.xlu0 %v3639, 96
    %v3879 = vpop.permute.xlu0 %3878
    %3880 = vrot.lane.b32.xlu0 %v3643, 96
    %v3881 = vpop.permute.xlu0 %3880
    %3882 = vrot.lane.b32.xlu0 %v3645, 96
    %v3883 = vpop.permute.xlu0 %3882
    %v3892 = vrot.slane %v3877, 4
    %v3893 = vsel %vm282, %v3892, %v3869
    %v3894 = vrot.slane %v3869, 4
    %v3895 = vsel %vm282, %v3877, %v3894
    %v3897 = vunpack.c.l.s4 1983009808
    %v3898 = vunpack.c.0.s8 %v3897
    %v3899 = vperm.slane %v3893, %v3898
    %v3901 = vunpack.c.l.s4 1983009808
    %v3902 = vunpack.c.0.s8 %v3901
    %v3903 = vperm.slane %v3895, %v3902
    %v3904 = vrot.slane %v3881, 4
    %v3905 = vsel %vm282, %v3904, %v3873
    %v3906 = vrot.slane %v3873, 4
    %v3907 = vsel %vm282, %v3881, %v3906
    %v3909 = vunpack.c.l.s4 1983009808
    %v3910 = vunpack.c.0.s8 %v3909
    %v3911 = vperm.slane %v3905, %v3910
    %v3913 = vunpack.c.l.s4 1983009808
    %v3914 = vunpack.c.0.s8 %v3913
    %v3915 = vperm.slane %v3907, %v3914
    %v3916 = vrot.slane %v3911, 4
    %v3917 = vsel %vm282, %v3916, %v3899
    %v3918 = vrot.slane %v3899, 4
    %v3919 = vsel %vm282, %v3911, %v3918
    %v3921 = vunpack.c.l.s4 1934713408
    %v3922 = vunpack.c.0.s8 %v3921
    %v3923 = vperm.slane %v3917, %v3922
    %v3925 = vunpack.c.l.s4 1934713408
    %v3926 = vunpack.c.0.s8 %v3925
    %v3927 = vperm.slane %v3919, %v3926
    %v3928 = vrot.slane %v3915, 4
    %v3929 = vsel %vm282, %v3928, %v3903
    %v3930 = vrot.slane %v3903, 4
    %v3931 = vsel %vm282, %v3915, %v3930
    %v3933 = vunpack.c.l.s4 1934713408
    %v3934 = vunpack.c.0.s8 %v3933
    %v3935 = vperm.slane %v3929, %v3934
    %v3937 = vunpack.c.l.s4 1934713408
    %v3938 = vunpack.c.0.s8 %v3937
    %v3939 = vperm.slane %v3931, %v3938
    %v3940 = vrot.slane %v3923, 4
    %v3941 = vsel %vm282, 0.0, %v3940
    %v3942 = vrot.slane %v3927, 4
    %v3943 = vsel %vm282, 0.0, %v3942
    %v3944 = vrot.slane %v3935, 4
    %v3945 = vsel %vm282, 0.0, %v3944
    %v3946 = vrot.slane %v3939, 4
    %v3947 = vsel %vm282, 0.0, %v3946
    %v3948 = vrot.slane %v3879, 4
    %v3949 = vsel %vm282, %v3948, %v3871
    %v3950 = vrot.slane %v3871, 4
    %v3951 = vsel %vm282, %v3879, %v3950
    %v3953 = vunpack.c.l.s4 1983009808
    %v3954 = vunpack.c.0.s8 %v3953
    %v3955 = vperm.slane %v3949, %v3954
    %v3957 = vunpack.c.l.s4 1983009808
    %v3958 = vunpack.c.0.s8 %v3957
    %v3959 = vperm.slane %v3951, %v3958
    %v3960 = vrot.slane %v3883, 4
    %v3961 = vsel %vm282, %v3960, %v3875
    %v3962 = vrot.slane %v3875, 4
    %v3963 = vsel %vm282, %v3883, %v3962
    %v3965 = vunpack.c.l.s4 1983009808
    %v3966 = vunpack.c.0.s8 %v3965
    %v3967 = vperm.slane %v3961, %v3966
    %v3969 = vunpack.c.l.s4 1983009808
    %v3970 = vunpack.c.0.s8 %v3969
    %v3971 = vperm.slane %v3963, %v3970
    %v3972 = vrot.slane %v3967, 4
    %v3973 = vsel %vm282, %v3972, %v3955
    %v3974 = vrot.slane %v3955, 4
    %v3975 = vsel %vm282, %v3967, %v3974
    %v3977 = vunpack.c.l.s4 1934713408
    %v3978 = vunpack.c.0.s8 %v3977
    %v3979 = vperm.slane %v3973, %v3978
    %v3981 = vunpack.c.l.s4 1934713408
    %v3982 = vunpack.c.0.s8 %v3981
    %v3983 = vperm.slane %v3975, %v3982
    %v3984 = vrot.slane %v3971, 4
    %v3985 = vsel %vm282, %v3984, %v3959
    %v3986 = vrot.slane %v3959, 4
    %v3987 = vsel %vm282, %v3971, %v3986
    %v3989 = vunpack.c.l.s4 1934713408
    %v3990 = vunpack.c.0.s8 %v3989
    %v3991 = vperm.slane %v3985, %v3990
    %v3993 = vunpack.c.l.s4 1934713408
    %v3994 = vunpack.c.0.s8 %v3993
    %v3995 = vperm.slane %v3987, %v3994
    %v3996 = vrot.slane %v3979, 4
    %v3997 = vsel %vm282, 0.0, %v3996
    %v3998 = vrot.slane %v3983, 4
    %v3999 = vsel %vm282, 0.0, %v3998
    %v4000 = vrot.slane %v3991, 4
    %v4001 = vsel %vm282, 0.0, %v4000
    %v4002 = vrot.slane %v3995, 4
    %v4003 = vsel %vm282, 0.0, %v4002
    %v4004 = vsel %vm282, %v3942, %v3923
    %v4006 = vunpack.c.l.s4 1983009808
    %v4007 = vunpack.c.0.s8 %v4006
    %v4008 = vperm.slane %v4004, %v4007
    %v4009 = vrot.slane %v3943, 4
    %v4010 = vsel %vm282, %v4009, %v3941
    %v4012 = vunpack.c.l.s4 1983009808
    %v4013 = vunpack.c.0.s8 %v4012
    %v4014 = vperm.slane %v4010, %v4013
    %v4015 = vsel %vm282, %v3946, %v3935
    %v4017 = vunpack.c.l.s4 1983009808
    %v4018 = vunpack.c.0.s8 %v4017
    %v4019 = vperm.slane %v4015, %v4018
    %v4020 = vrot.slane %v3947, 4
    %v4021 = vsel %vm282, %v4020, %v3945
    %v4023 = vunpack.c.l.s4 1983009808
    %v4024 = vunpack.c.0.s8 %v4023
    %v4025 = vperm.slane %v4021, %v4024
    %v4026 = vrot.slane %v4014, 4
    %v4027 = vsel %vm282, %v4026, %v4008
    %v4028 = vrot.slane %v4008, 4
    %v4029 = vsel %vm282, %v4014, %v4028
    %v4031 = vunpack.c.l.s4 1934713408
    %v4032 = vunpack.c.0.s8 %v4031
    %v4033 = vperm.slane %v4027, %v4032
    %v4035 = vunpack.c.l.s4 1934713408
    %v4036 = vunpack.c.0.s8 %v4035
    %v4037 = vperm.slane %v4029, %v4036
    %v4038 = vrot.slane %v4025, 4
    %v4039 = vsel %vm282, %v4038, %v4019
    %v4040 = vrot.slane %v4019, 4
    %v4041 = vsel %vm282, %v4025, %v4040
    %v4043 = vunpack.c.l.s4 1934713408
    %v4044 = vunpack.c.0.s8 %v4043
    %v4045 = vperm.slane %v4039, %v4044
    %v4047 = vunpack.c.l.s4 1934713408
    %v4048 = vunpack.c.0.s8 %v4047
    %v4049 = vperm.slane %v4041, %v4048
    %v4050 = vrot.slane %v4045, 4
    %v4051 = vsel %vm282, %v4050, %v4033
    %v4052 = vrot.slane %v4033, 4
    %v4053 = vsel %vm282, %v4045, %v4052
    %v4054 = vrot.slane %v4049, 4
    %v4055 = vsel %vm282, %v4054, %v4037
    %v4056 = vrot.slane %v4037, 4
    %v4057 = vsel %vm282, %v4049, %v4056
    %v4058 = vsel %vm282, %v3998, %v3979
    %v4060 = vunpack.c.l.s4 1983009808
    %v4061 = vunpack.c.0.s8 %v4060
    %v4062 = vperm.slane %v4058, %v4061
    %v4063 = vrot.slane %v3999, 4
    %v4064 = vsel %vm282, %v4063, %v3997
    %v4066 = vunpack.c.l.s4 1983009808
    %v4067 = vunpack.c.0.s8 %v4066
    %v4068 = vperm.slane %v4064, %v4067
    %v4069 = vsel %vm282, %v4002, %v3991
    %v4071 = vunpack.c.l.s4 1983009808
    %v4072 = vunpack.c.0.s8 %v4071
    %v4073 = vperm.slane %v4069, %v4072
    %v4074 = vrot.slane %v4003, 4
    %v4075 = vsel %vm282, %v4074, %v4001
    %v4077 = vunpack.c.l.s4 1983009808
    %v4078 = vunpack.c.0.s8 %v4077
    %v4079 = vperm.slane %v4075, %v4078
    %v4080 = vrot.slane %v4068, 4
    %v4081 = vsel %vm282, %v4080, %v4062
    %v4082 = vrot.slane %v4062, 4
    %v4083 = vsel %vm282, %v4068, %v4082
    %v4085 = vunpack.c.l.s4 1934713408
    %v4086 = vunpack.c.0.s8 %v4085
    %v4087 = vperm.slane %v4081, %v4086
    %v4089 = vunpack.c.l.s4 1934713408
    %v4090 = vunpack.c.0.s8 %v4089
    %v4091 = vperm.slane %v4083, %v4090
    %v4092 = vrot.slane %v4079, 4
    %v4093 = vsel %vm282, %v4092, %v4073
    %v4094 = vrot.slane %v4073, 4
    %v4095 = vsel %vm282, %v4079, %v4094
    %v4097 = vunpack.c.l.s4 1934713408
    %v4098 = vunpack.c.0.s8 %v4097
    %v4099 = vperm.slane %v4093, %v4098
    %v4101 = vunpack.c.l.s4 1934713408
    %v4102 = vunpack.c.0.s8 %v4101
    %v4103 = vperm.slane %v4095, %v4102
    %v4104 = vrot.slane %v4099, 4
    %v4105 = vsel %vm282, %v4104, %v4087
    %v4106 = vrot.slane %v4087, 4
    %v4107 = vsel %vm282, %v4099, %v4106
    %v4108 = vrot.slane %v4103, 4
    %v4109 = vsel %vm282, %v4108, %v4091
    %v4110 = vrot.slane %v4091, 4
    %v4111 = vsel %vm282, %v4103, %v4110
    %4112 = vrot.lane.b32.xlu0 %v3616, 64
    %v4113 = vpop.permute.xlu0 %4112
    %4114 = vrot.lane.b32.xlu0 %v3619, 64
    %v4115 = vpop.permute.xlu0 %4114
    %4116 = vrot.lane.b32.xlu0 %v3631, 64
    %v4117 = vpop.permute.xlu0 %4116
    %4118 = vrot.lane.b32.xlu0 %v3633, 64
    %v4119 = vpop.permute.xlu0 %4118
    %4120 = vrot.lane.b32.xlu0 %v3637, 64
    %v4121 = vpop.permute.xlu0 %4120
    %4122 = vrot.lane.b32.xlu0 %v3639, 64
    %v4123 = vpop.permute.xlu0 %4122
    %4124 = vrot.lane.b32.xlu0 %v3643, 64
    %v4125 = vpop.permute.xlu0 %4124
    %4126 = vrot.lane.b32.xlu0 %v3645, 64
    %v4127 = vpop.permute.xlu0 %4126
    %v4136 = vrot.slane %v4121, 4
    %v4137 = vsel %vm282, %v4136, %v4113
    %v4138 = vrot.slane %v4113, 4
    %v4139 = vsel %vm282, %v4121, %v4138
    %v4141 = vunpack.c.l.s4 1983009808
    %v4142 = vunpack.c.0.s8 %v4141
    %v4143 = vperm.slane %v4137, %v4142
    %v4145 = vunpack.c.l.s4 1983009808
    %v4146 = vunpack.c.0.s8 %v4145
    %v4147 = vperm.slane %v4139, %v4146
    %v4148 = vrot.slane %v4125, 4
    %v4149 = vsel %vm282, %v4148, %v4117
    %v4150 = vrot.slane %v4117, 4
    %v4151 = vsel %vm282, %v4125, %v4150
    %v4153 = vunpack.c.l.s4 1983009808
    %v4154 = vunpack.c.0.s8 %v4153
    %v4155 = vperm.slane %v4149, %v4154
    %v4157 = vunpack.c.l.s4 1983009808
    %v4158 = vunpack.c.0.s8 %v4157
    %v4159 = vperm.slane %v4151, %v4158
    %v4160 = vrot.slane %v4155, 4
    %v4161 = vsel %vm282, %v4160, %v4143
    %v4162 = vrot.slane %v4143, 4
    %v4163 = vsel %vm282, %v4155, %v4162
    %v4165 = vunpack.c.l.s4 1934713408
    %v4166 = vunpack.c.0.s8 %v4165
    %v4167 = vperm.slane %v4161, %v4166
    %v4169 = vunpack.c.l.s4 1934713408
    %v4170 = vunpack.c.0.s8 %v4169
    %v4171 = vperm.slane %v4163, %v4170
    %v4172 = vrot.slane %v4159, 4
    %v4173 = vsel %vm282, %v4172, %v4147
    %v4174 = vrot.slane %v4147, 4
    %v4175 = vsel %vm282, %v4159, %v4174
    %v4177 = vunpack.c.l.s4 1934713408
    %v4178 = vunpack.c.0.s8 %v4177
    %v4179 = vperm.slane %v4173, %v4178
    %v4181 = vunpack.c.l.s4 1934713408
    %v4182 = vunpack.c.0.s8 %v4181
    %v4183 = vperm.slane %v4175, %v4182
    %v4184 = vrot.slane %v4167, 4
    %v4185 = vsel %vm282, 0.0, %v4184
    %v4186 = vrot.slane %v4171, 4
    %v4187 = vsel %vm282, 0.0, %v4186
    %v4188 = vrot.slane %v4179, 4
    %v4189 = vsel %vm282, 0.0, %v4188
    %v4190 = vrot.slane %v4183, 4
    %v4191 = vsel %vm282, 0.0, %v4190
    %v4192 = vrot.slane %v4123, 4
    %v4193 = vsel %vm282, %v4192, %v4115
    %v4194 = vrot.slane %v4115, 4
    %v4195 = vsel %vm282, %v4123, %v4194
    %v4197 = vunpack.c.l.s4 1983009808
    %v4198 = vunpack.c.0.s8 %v4197
    %v4199 = vperm.slane %v4193, %v4198
    %v4201 = vunpack.c.l.s4 1983009808
    %v4202 = vunpack.c.0.s8 %v4201
    %v4203 = vperm.slane %v4195, %v4202
    %v4204 = vrot.slane %v4127, 4
    %v4205 = vsel %vm282, %v4204, %v4119
    %v4206 = vrot.slane %v4119, 4
    %v4207 = vsel %vm282, %v4127, %v4206
    %v4209 = vunpack.c.l.s4 1983009808
    %v4210 = vunpack.c.0.s8 %v4209
    %v4211 = vperm.slane %v4205, %v4210
    %v4213 = vunpack.c.l.s4 1983009808
    %v4214 = vunpack.c.0.s8 %v4213
    %v4215 = vperm.slane %v4207, %v4214
    %v4216 = vrot.slane %v4211, 4
    %v4217 = vsel %vm282, %v4216, %v4199
    %v4218 = vrot.slane %v4199, 4
    %v4219 = vsel %vm282, %v4211, %v4218
    %v4221 = vunpack.c.l.s4 1934713408
    %v4222 = vunpack.c.0.s8 %v4221
    %v4223 = vperm.slane %v4217, %v4222
    %v4225 = vunpack.c.l.s4 1934713408
    %v4226 = vunpack.c.0.s8 %v4225
    %v4227 = vperm.slane %v4219, %v4226
    %v4228 = vrot.slane %v4215, 4
    %v4229 = vsel %vm282, %v4228, %v4203
    %v4230 = vrot.slane %v4203, 4
    %v4231 = vsel %vm282, %v4215, %v4230
    %v4233 = vunpack.c.l.s4 1934713408
    %v4234 = vunpack.c.0.s8 %v4233
    %v4235 = vperm.slane %v4229, %v4234
    %v4237 = vunpack.c.l.s4 1934713408
    %v4238 = vunpack.c.0.s8 %v4237
    %v4239 = vperm.slane %v4231, %v4238
    %v4240 = vrot.slane %v4223, 4
    %v4241 = vsel %vm282, 0.0, %v4240
    %v4242 = vrot.slane %v4227, 4
    %v4243 = vsel %vm282, 0.0, %v4242
    %v4244 = vrot.slane %v4235, 4
    %v4245 = vsel %vm282, 0.0, %v4244
    %v4246 = vrot.slane %v4239, 4
    %v4247 = vsel %vm282, 0.0, %v4246
    %v4248 = vsel %vm282, %v4186, %v4167
    %v4250 = vunpack.c.l.s4 1983009808
    %v4251 = vunpack.c.0.s8 %v4250
    %v4252 = vperm.slane %v4248, %v4251
    %v4253 = vrot.slane %v4187, 4
    %v4254 = vsel %vm282, %v4253, %v4185
    %v4256 = vunpack.c.l.s4 1983009808
    %v4257 = vunpack.c.0.s8 %v4256
    %v4258 = vperm.slane %v4254, %v4257
    %v4259 = vsel %vm282, %v4190, %v4179
    %v4261 = vunpack.c.l.s4 1983009808
    %v4262 = vunpack.c.0.s8 %v4261
    %v4263 = vperm.slane %v4259, %v4262
    %v4264 = vrot.slane %v4191, 4
    %v4265 = vsel %vm282, %v4264, %v4189
    %v4267 = vunpack.c.l.s4 1983009808
    %v4268 = vunpack.c.0.s8 %v4267
    %v4269 = vperm.slane %v4265, %v4268
    %v4270 = vrot.slane %v4258, 4
    %v4271 = vsel %vm282, %v4270, %v4252
    %v4272 = vrot.slane %v4252, 4
    %v4273 = vsel %vm282, %v4258, %v4272
    %v4275 = vunpack.c.l.s4 1934713408
    %v4276 = vunpack.c.0.s8 %v4275
    %v4277 = vperm.slane %v4271, %v4276
    %v4279 = vunpack.c.l.s4 1934713408
    %v4280 = vunpack.c.0.s8 %v4279
    %v4281 = vperm.slane %v4273, %v4280
    %v4282 = vrot.slane %v4269, 4
    %v4283 = vsel %vm282, %v4282, %v4263
    %v4284 = vrot.slane %v4263, 4
    %v4285 = vsel %vm282, %v4269, %v4284
    %v4287 = vunpack.c.l.s4 1934713408
    %v4288 = vunpack.c.0.s8 %v4287
    %v4289 = vperm.slane %v4283, %v4288
    %v4291 = vunpack.c.l.s4 1934713408
    %v4292 = vunpack.c.0.s8 %v4291
    %v4293 = vperm.slane %v4285, %v4292
    %v4294 = vrot.slane %v4289, 4
    %v4295 = vsel %vm282, %v4294, %v4277
    %v4296 = vrot.slane %v4277, 4
    %v4297 = vsel %vm282, %v4289, %v4296
    %v4298 = vrot.slane %v4293, 4
    %v4299 = vsel %vm282, %v4298, %v4281
    %v4300 = vrot.slane %v4281, 4
    %v4301 = vsel %vm282, %v4293, %v4300
    %v4302 = vsel %vm282, %v4242, %v4223
    %v4304 = vunpack.c.l.s4 1983009808
    %v4305 = vunpack.c.0.s8 %v4304
    %v4306 = vperm.slane %v4302, %v4305
    %v4307 = vrot.slane %v4243, 4
    %v4308 = vsel %vm282, %v4307, %v4241
    %v4310 = vunpack.c.l.s4 1983009808
    %v4311 = vunpack.c.0.s8 %v4310
    %v4312 = vperm.slane %v4308, %v4311
    %v4313 = vsel %vm282, %v4246, %v4235
    %v4315 = vunpack.c.l.s4 1983009808
    %v4316 = vunpack.c.0.s8 %v4315
    %v4317 = vperm.slane %v4313, %v4316
    %v4318 = vrot.slane %v4247, 4
    %v4319 = vsel %vm282, %v4318, %v4245
    %v4321 = vunpack.c.l.s4 1983009808
    %v4322 = vunpack.c.0.s8 %v4321
    %v4323 = vperm.slane %v4319, %v4322
    %v4324 = vrot.slane %v4312, 4
    %v4325 = vsel %vm282, %v4324, %v4306
    %v4326 = vrot.slane %v4306, 4
    %v4327 = vsel %vm282, %v4312, %v4326
    %v4329 = vunpack.c.l.s4 1934713408
    %v4330 = vunpack.c.0.s8 %v4329
    %v4331 = vperm.slane %v4325, %v4330
    %v4333 = vunpack.c.l.s4 1934713408
    %v4334 = vunpack.c.0.s8 %v4333
    %v4335 = vperm.slane %v4327, %v4334
    %v4336 = vrot.slane %v4323, 4
    %v4337 = vsel %vm282, %v4336, %v4317
    %v4338 = vrot.slane %v4317, 4
    %v4339 = vsel %vm282, %v4323, %v4338
    %v4341 = vunpack.c.l.s4 1934713408
    %v4342 = vunpack.c.0.s8 %v4341
    %v4343 = vperm.slane %v4337, %v4342
    %v4345 = vunpack.c.l.s4 1934713408
    %v4346 = vunpack.c.0.s8 %v4345
    %v4347 = vperm.slane %v4339, %v4346
    %v4348 = vrot.slane %v4343, 4
    %v4349 = vsel %vm282, %v4348, %v4331
    %v4350 = vrot.slane %v4331, 4
    %v4351 = vsel %vm282, %v4343, %v4350
    %v4352 = vrot.slane %v4347, 4
    %v4353 = vsel %vm282, %v4352, %v4335
    %v4354 = vrot.slane %v4335, 4
    %v4355 = vsel %vm282, %v4347, %v4354
    %v4357 = vsel %vm990, %v3807, 0
    %v4360 = vsel %vm990, %v4051, 0
    %4362 = vmatpush.xpose.msra.mxu0 0.0
    %4363 = vmatpush.xpose.msra.mxu0 0.0
    %4364 = vmatpush.xpose.msra.mxu0 0.0
    %4365 = vmatpush.xpose.msra.mxu0 0.0
    %4366 = vmatpush.xpose.msra.mxu0 0.0
    %4367 = vmatpush.xpose.msra.mxu0 0.0
    %4368 = vmatpush.xpose.msra.mxu0 0.0
    %4369 = vmatpush.xpose.msra.mxu0 0.0
    %4370 = vmatpush.xpose.msra.mxu0 0.0
    %4371 = vmatpush.xpose.msra.mxu0 0.0
    %4372 = vmatpush.xpose.msra.mxu0 0.0
    %4373 = vmatpush.xpose.msra.mxu0 0.0
    %4374 = vmatpush.xpose.msra.mxu0 0.0
    %4375 = vmatpush.xpose.msra.mxu0 0.0
    %4376 = vmatpush.xpose.msra.mxu0 0.0
    %4377 = vmatpush.xpose.msra.mxu0 %v4360
    %4378 = vmatmul.f32.gmra.mxu0 %v4357
    %v4379 = vpop.f32.mrf.mxu0
    %v4380 = vadd.f32 %v217, %v4379
    %4381 = vdwg.mxu0
    %v4383 = vsel %vm990, %v3809, 0
    %v4386 = vsel %vm990, %v4053, 0
    %4388 = vmatpush.xpose.msra.mxu0 0.0
    %4389 = vmatpush.xpose.msra.mxu0 0.0
    %4390 = vmatpush.xpose.msra.mxu0 0.0
    %4391 = vmatpush.xpose.msra.mxu0 0.0
    %4392 = vmatpush.xpose.msra.mxu0 0.0
    %4393 = vmatpush.xpose.msra.mxu0 0.0
    %4394 = vmatpush.xpose.msra.mxu0 0.0
    %4395 = vmatpush.xpose.msra.mxu0 0.0
    %4396 = vmatpush.xpose.msra.mxu0 0.0
    %4397 = vmatpush.xpose.msra.mxu0 0.0
    %4398 = vmatpush.xpose.msra.mxu0 0.0
    %4399 = vmatpush.xpose.msra.mxu0 0.0
    %4400 = vmatpush.xpose.msra.mxu0 0.0
    %4401 = vmatpush.xpose.msra.mxu0 0.0
    %4402 = vmatpush.xpose.msra.mxu0 0.0
    %4403 = vmatpush.xpose.msra.mxu0 %v4386
    %4404 = vmatmul.f32.gmra.mxu0 %v4383
    %v4405 = vpop.f32.mrf.mxu0
    %v4406 = vadd.f32 %v217, %v4405
    %4407 = vdwg.mxu0
    %v4409 = vsel %vm990, %v3811, 0
    %v4412 = vsel %vm990, %v4055, 0
    %4414 = vmatpush.xpose.msra.mxu0 0.0
    %4415 = vmatpush.xpose.msra.mxu0 0.0
    %4416 = vmatpush.xpose.msra.mxu0 0.0
    %4417 = vmatpush.xpose.msra.mxu0 0.0
    %4418 = vmatpush.xpose.msra.mxu0 0.0
    %4419 = vmatpush.xpose.msra.mxu0 0.0
    %4420 = vmatpush.xpose.msra.mxu0 0.0
    %4421 = vmatpush.xpose.msra.mxu0 0.0
    %4422 = vmatpush.xpose.msra.mxu0 0.0
    %4423 = vmatpush.xpose.msra.mxu0 0.0
    %4424 = vmatpush.xpose.msra.mxu0 0.0
    %4425 = vmatpush.xpose.msra.mxu0 0.0
    %4426 = vmatpush.xpose.msra.mxu0 0.0
    %4427 = vmatpush.xpose.msra.mxu0 0.0
    %4428 = vmatpush.xpose.msra.mxu0 0.0
    %4429 = vmatpush.xpose.msra.mxu0 %v4412
    %4430 = vmatmul.f32.gmra.mxu0 %v4409
    %v4431 = vpop.f32.mrf.mxu0
    %v4432 = vadd.f32 %v217, %v4431
    %4433 = vdwg.mxu0
    %v4435 = vsel %vm990, %v3813, 0
    %v4438 = vsel %vm990, %v4057, 0
    %4440 = vmatpush.xpose.msra.mxu0 0.0
    %4441 = vmatpush.xpose.msra.mxu0 0.0
    %4442 = vmatpush.xpose.msra.mxu0 0.0
    %4443 = vmatpush.xpose.msra.mxu0 0.0
    %4444 = vmatpush.xpose.msra.mxu0 0.0
    %4445 = vmatpush.xpose.msra.mxu0 0.0
    %4446 = vmatpush.xpose.msra.mxu0 0.0
    %4447 = vmatpush.xpose.msra.mxu0 0.0
    %4448 = vmatpush.xpose.msra.mxu0 0.0
    %4449 = vmatpush.xpose.msra.mxu0 0.0
    %4450 = vmatpush.xpose.msra.mxu0 0.0
    %4451 = vmatpush.xpose.msra.mxu0 0.0
    %4452 = vmatpush.xpose.msra.mxu0 0.0
    %4453 = vmatpush.xpose.msra.mxu0 0.0
    %4454 = vmatpush.xpose.msra.mxu0 0.0
    %4455 = vmatpush.xpose.msra.mxu0 %v4438
    %4456 = vmatmul.f32.gmra.mxu0 %v4435
    %v4457 = vpop.f32.mrf.mxu0
    %v4458 = vadd.f32 %v217, %v4457
    %4459 = vdwg.mxu0
    %v4461 = vsel %vm990, %v3861, 0
    %v4464 = vsel %vm990, %v4105, 0
    %4466 = vmatpush.xpose.msra.mxu0 0.0
    %4467 = vmatpush.xpose.msra.mxu0 0.0
    %4468 = vmatpush.xpose.msra.mxu0 0.0
    %4469 = vmatpush.xpose.msra.mxu0 0.0
    %4470 = vmatpush.xpose.msra.mxu0 0.0
    %4471 = vmatpush.xpose.msra.mxu0 0.0
    %4472 = vmatpush.xpose.msra.mxu0 0.0
    %4473 = vmatpush.xpose.msra.mxu0 0.0
    %4474 = vmatpush.xpose.msra.mxu0 0.0
    %4475 = vmatpush.xpose.msra.mxu0 0.0
    %4476 = vmatpush.xpose.msra.mxu0 0.0
    %4477 = vmatpush.xpose.msra.mxu0 0.0
    %4478 = vmatpush.xpose.msra.mxu0 0.0
    %4479 = vmatpush.xpose.msra.mxu0 0.0
    %4480 = vmatpush.xpose.msra.mxu0 0.0
    %4481 = vmatpush.xpose.msra.mxu0 %v4464
    %4482 = vmatmul.f32.gmra.mxu0 %v4461
    %v4483 = vpop.f32.mrf.mxu0
    %v4484 = vadd.f32 %v217, %v4483
    %4485 = vdwg.mxu0
    %v4487 = vsel %vm990, %v3863, 0
    %v4490 = vsel %vm990, %v4107, 0
    %4492 = vmatpush.xpose.msra.mxu0 0.0
    %4493 = vmatpush.xpose.msra.mxu0 0.0
    %4494 = vmatpush.xpose.msra.mxu0 0.0
    %4495 = vmatpush.xpose.msra.mxu0 0.0
    %4496 = vmatpush.xpose.msra.mxu0 0.0
    %4497 = vmatpush.xpose.msra.mxu0 0.0
    %4498 = vmatpush.xpose.msra.mxu0 0.0
    %4499 = vmatpush.xpose.msra.mxu0 0.0
    %4500 = vmatpush.xpose.msra.mxu0 0.0
    %4501 = vmatpush.xpose.msra.mxu0 0.0
    %4502 = vmatpush.xpose.msra.mxu0 0.0
    %4503 = vmatpush.xpose.msra.mxu0 0.0
    %4504 = vmatpush.xpose.msra.mxu0 0.0
    %4505 = vmatpush.xpose.msra.mxu0 0.0
    %4506 = vmatpush.xpose.msra.mxu0 0.0
    %4507 = vmatpush.xpose.msra.mxu0 %v4490
    %4508 = vmatmul.f32.gmra.mxu0 %v4487
    %v4509 = vpop.f32.mrf.mxu0
    %v4510 = vadd.f32 %v217, %v4509
    %4511 = vdwg.mxu0
    %v4513 = vsel %vm990, %v3865, 0
    %v4516 = vsel %vm990, %v4109, 0
    %4518 = vmatpush.xpose.msra.mxu0 0.0
    %4519 = vmatpush.xpose.msra.mxu0 0.0
    %4520 = vmatpush.xpose.msra.mxu0 0.0
    %4521 = vmatpush.xpose.msra.mxu0 0.0
    %4522 = vmatpush.xpose.msra.mxu0 0.0
    %4523 = vmatpush.xpose.msra.mxu0 0.0
    %4524 = vmatpush.xpose.msra.mxu0 0.0
    %4525 = vmatpush.xpose.msra.mxu0 0.0
    %4526 = vmatpush.xpose.msra.mxu0 0.0
    %4527 = vmatpush.xpose.msra.mxu0 0.0
    %4528 = vmatpush.xpose.msra.mxu0 0.0
    %4529 = vmatpush.xpose.msra.mxu0 0.0
    %4530 = vmatpush.xpose.msra.mxu0 0.0
    %4531 = vmatpush.xpose.msra.mxu0 0.0
    %4532 = vmatpush.xpose.msra.mxu0 0.0
    %4533 = vmatpush.xpose.msra.mxu0 %v4516
    %4534 = vmatmul.f32.gmra.mxu0 %v4513
    %v4535 = vpop.f32.mrf.mxu0
    %v4536 = vadd.f32 %v217, %v4535
    %4537 = vdwg.mxu0
    %v4539 = vsel %vm990, %v3867, 0
    %v4542 = vsel %vm990, %v4111, 0
    %4544 = vmatpush.xpose.msra.mxu0 0.0
    %4545 = vmatpush.xpose.msra.mxu0 0.0
    %4546 = vmatpush.xpose.msra.mxu0 0.0
    %4547 = vmatpush.xpose.msra.mxu0 0.0
    %4548 = vmatpush.xpose.msra.mxu0 0.0
    %4549 = vmatpush.xpose.msra.mxu0 0.0
    %4550 = vmatpush.xpose.msra.mxu0 0.0
    %4551 = vmatpush.xpose.msra.mxu0 0.0
    %4552 = vmatpush.xpose.msra.mxu0 0.0
    %4553 = vmatpush.xpose.msra.mxu0 0.0
    %4554 = vmatpush.xpose.msra.mxu0 0.0
    %4555 = vmatpush.xpose.msra.mxu0 0.0
    %4556 = vmatpush.xpose.msra.mxu0 0.0
    %4557 = vmatpush.xpose.msra.mxu0 0.0
    %4558 = vmatpush.xpose.msra.mxu0 0.0
    %4559 = vmatpush.xpose.msra.mxu0 %v4542
    %4560 = vmatmul.f32.gmra.mxu0 %v4539
    %v4561 = vpop.f32.mrf.mxu0
    %v4562 = vadd.f32 %v217, %v4561
    %4563 = vdwg.mxu0
    %v4564 = vsel %vm990, %v4380, -inf
    %4565 = vmax.xlane.f32.xlu0 %v4564
    %v4566 = vpop.xlane.xlu0 %4565
    %v4567 = vsel %vm990, %v4406, -inf
    %4568 = vmax.xlane.f32.xlu0 %v4567
    %v4569 = vpop.xlane.xlu0 %4568
    %v4570 = vsel %vm990, %v4432, -inf
    %4571 = vmax.xlane.f32.xlu0 %v4570
    %v4572 = vpop.xlane.xlu0 %4571
    %v4573 = vsel %vm990, %v4458, -inf
    %4574 = vmax.xlane.f32.xlu0 %v4573
    %v4575 = vpop.xlane.xlu0 %4574
    %v4576 = vsel %vm990, %v4484, -inf
    %4577 = vmax.xlane.f32.xlu0 %v4576
    %v4578 = vpop.xlane.xlu0 %4577
    %v4579 = vsel %vm990, %v4510, -inf
    %4580 = vmax.xlane.f32.xlu0 %v4579
    %v4581 = vpop.xlane.xlu0 %4580
    %v4582 = vsel %vm990, %v4536, -inf
    %4583 = vmax.xlane.f32.xlu0 %v4582
    %v4584 = vpop.xlane.xlu0 %4583
    %v4585 = vsel %vm990, %v4562, -inf
    %4586 = vmax.xlane.f32.xlu0 %v4585
    %v4587 = vpop.xlane.xlu0 %4586
    %v4588 = vsub.f32 %v4380, %v4566
    %v4589 = vsub.f32 %v4406, %v4569
    %v4590 = vsub.f32 %v4432, %v4572
    %v4591 = vsub.f32 %v4458, %v4575
    %v4592 = vsub.f32 %v4484, %v4578
    %v4593 = vsub.f32 %v4510, %v4581
    %v4594 = vsub.f32 %v4536, %v4584
    %v4595 = vsub.f32 %v4562, %v4587
    %v4596 = vmul.f32 %v4588, 1.442695
    %v4597 = vpow.pop %v4596
    %v4598 = vmul.f32 %v4589, 1.442695
    %v4599 = vpow.pop %v4598
    %v4600 = vmul.f32 %v4590, 1.442695
    %v4601 = vpow.pop %v4600
    %v4602 = vmul.f32 %v4591, 1.442695
    %v4603 = vpow.pop %v4602
    %v4604 = vmul.f32 %v4592, 1.442695
    %v4605 = vpow.pop %v4604
    %v4606 = vmul.f32 %v4593, 1.442695
    %v4607 = vpow.pop %v4606
    %v4608 = vmul.f32 %v4594, 1.442695
    %v4609 = vpow.pop %v4608
    %v4610 = vmul.f32 %v4595, 1.442695
    %v4611 = vpow.pop %v4610
    %v4612 = vsel %vm990, %v4597, 0.0
    %4613 = vadd.xlane.f32.xlu0 %v4612
    %v4614 = vpop.xlane.xlu0 %4613
    %v4615 = vsel %vm990, %v4599, 0.0
    %4616 = vadd.xlane.f32.xlu0 %v4615
    %v4617 = vpop.xlane.xlu0 %4616
    %v4618 = vsel %vm990, %v4601, 0.0
    %4619 = vadd.xlane.f32.xlu0 %v4618
    %v4620 = vpop.xlane.xlu0 %4619
    %v4621 = vsel %vm990, %v4603, 0.0
    %4622 = vadd.xlane.f32.xlu0 %v4621
    %v4623 = vpop.xlane.xlu0 %4622
    %v4624 = vsel %vm990, %v4605, 0.0
    %4625 = vadd.xlane.f32.xlu0 %v4624
    %v4626 = vpop.xlane.xlu0 %4625
    %v4627 = vsel %vm990, %v4607, 0.0
    %4628 = vadd.xlane.f32.xlu0 %v4627
    %v4629 = vpop.xlane.xlu0 %4628
    %v4630 = vsel %vm990, %v4609, 0.0
    %4631 = vadd.xlane.f32.xlu0 %v4630
    %v4632 = vpop.xlane.xlu0 %4631
    %v4633 = vsel %vm990, %v4611, 0.0
    %4634 = vadd.xlane.f32.xlu0 %v4633
    %v4635 = vpop.xlane.xlu0 %4634
    %v4636 = vrcp.pop %v4614
    %v4637 = vrcp.pop %v4617
    %v4638 = vrcp.pop %v4620
    %v4639 = vrcp.pop %v4623
    %v4640 = vrcp.pop %v4626
    %v4641 = vrcp.pop %v4629
    %v4642 = vrcp.pop %v4632
    %v4643 = vrcp.pop %v4635
    %v4644 = vmul.f32 %v4597, %v4636
    %v4645 = vmul.f32 %v4599, %v4637
    %v4646 = vmul.f32 %v4601, %v4638
    %v4647 = vmul.f32 %v4603, %v4639
    %v4648 = vmul.f32 %v4605, %v4640
    %v4649 = vmul.f32 %v4607, %v4641
    %v4650 = vmul.f32 %v4609, %v4642
    %v4651 = vmul.f32 %v4611, %v4643
    %v4653 = vsel %vm990, %v4644, 0
    %4655 = vmatpush.msra.mxu0 0.0
    %4656 = vmatpush.msra.mxu0 0.0
    %4657 = vmatpush.msra.mxu0 0.0
    %4658 = vmatpush.msra.mxu0 0.0
    %4659 = vmatpush.msra.mxu0 0.0
    %4660 = vmatpush.msra.mxu0 0.0
    %4661 = vmatpush.msra.mxu0 0.0
    %4662 = vmatpush.msra.mxu0 0.0
    %4663 = vmatpush.msra.mxu0 0.0
    %4664 = vmatpush.msra.mxu0 0.0
    %4665 = vmatpush.msra.mxu0 0.0
    %4666 = vmatpush.msra.mxu0 0.0
    %4667 = vmatpush.msra.mxu0 0.0
    %4668 = vmatpush.msra.mxu0 0.0
    %4669 = vmatpush.msra.mxu0 0.0
    %4670 = vmatpush.msra.mxu0 %v4295
    %4671 = vmatmul.f32.gmra.mxu0 %v4653
    %v4672 = vpop.f32.mrf.mxu0
    %v4673 = vadd.f32 0.0, %v4672
    %4674 = vdwg.mxu0
    %v4676 = vsel %vm990, %v4645, 0
    %4678 = vmatpush.msra.mxu0 0.0
    %4679 = vmatpush.msra.mxu0 0.0
    %4680 = vmatpush.msra.mxu0 0.0
    %4681 = vmatpush.msra.mxu0 0.0
    %4682 = vmatpush.msra.mxu0 0.0
    %4683 = vmatpush.msra.mxu0 0.0
    %4684 = vmatpush.msra.mxu0 0.0
    %4685 = vmatpush.msra.mxu0 0.0
    %4686 = vmatpush.msra.mxu0 0.0
    %4687 = vmatpush.msra.mxu0 0.0
    %4688 = vmatpush.msra.mxu0 0.0
    %4689 = vmatpush.msra.mxu0 0.0
    %4690 = vmatpush.msra.mxu0 0.0
    %4691 = vmatpush.msra.mxu0 0.0
    %4692 = vmatpush.msra.mxu0 0.0
    %4693 = vmatpush.msra.mxu0 %v4297
    %4694 = vmatmul.f32.gmra.mxu0 %v4676
    %v4695 = vpop.f32.mrf.mxu0
    %v4696 = vadd.f32 0.0, %v4695
    %4697 = vdwg.mxu0
    %v4699 = vsel %vm990, %v4646, 0
    %4701 = vmatpush.msra.mxu0 0.0
    %4702 = vmatpush.msra.mxu0 0.0
    %4703 = vmatpush.msra.mxu0 0.0
    %4704 = vmatpush.msra.mxu0 0.0
    %4705 = vmatpush.msra.mxu0 0.0
    %4706 = vmatpush.msra.mxu0 0.0
    %4707 = vmatpush.msra.mxu0 0.0
    %4708 = vmatpush.msra.mxu0 0.0
    %4709 = vmatpush.msra.mxu0 0.0
    %4710 = vmatpush.msra.mxu0 0.0
    %4711 = vmatpush.msra.mxu0 0.0
    %4712 = vmatpush.msra.mxu0 0.0
    %4713 = vmatpush.msra.mxu0 0.0
    %4714 = vmatpush.msra.mxu0 0.0
    %4715 = vmatpush.msra.mxu0 0.0
    %4716 = vmatpush.msra.mxu0 %v4299
    %4717 = vmatmul.f32.gmra.mxu0 %v4699
    %v4718 = vpop.f32.mrf.mxu0
    %v4719 = vadd.f32 0.0, %v4718
    %4720 = vdwg.mxu0
    %v4722 = vsel %vm990, %v4647, 0
    %4724 = vmatpush.msra.mxu0 0.0
    %4725 = vmatpush.msra.mxu0 0.0
    %4726 = vmatpush.msra.mxu0 0.0
    %4727 = vmatpush.msra.mxu0 0.0
    %4728 = vmatpush.msra.mxu0 0.0
    %4729 = vmatpush.msra.mxu0 0.0
    %4730 = vmatpush.msra.mxu0 0.0
    %4731 = vmatpush.msra.mxu0 0.0
    %4732 = vmatpush.msra.mxu0 0.0
    %4733 = vmatpush.msra.mxu0 0.0
    %4734 = vmatpush.msra.mxu0 0.0
    %4735 = vmatpush.msra.mxu0 0.0
    %4736 = vmatpush.msra.mxu0 0.0
    %4737 = vmatpush.msra.mxu0 0.0
    %4738 = vmatpush.msra.mxu0 0.0
    %4739 = vmatpush.msra.mxu0 %v4301
    %4740 = vmatmul.f32.gmra.mxu0 %v4722
    %v4741 = vpop.f32.mrf.mxu0
    %v4742 = vadd.f32 0.0, %v4741
    %4743 = vdwg.mxu0
    %v4745 = vsel %vm990, %v4648, 0
    %4747 = vmatpush.msra.mxu0 0.0
    %4748 = vmatpush.msra.mxu0 0.0
    %4749 = vmatpush.msra.mxu0 0.0
    %4750 = vmatpush.msra.mxu0 0.0
    %4751 = vmatpush.msra.mxu0 0.0
    %4752 = vmatpush.msra.mxu0 0.0
    %4753 = vmatpush.msra.mxu0 0.0
    %4754 = vmatpush.msra.mxu0 0.0
    %4755 = vmatpush.msra.mxu0 0.0
    %4756 = vmatpush.msra.mxu0 0.0
    %4757 = vmatpush.msra.mxu0 0.0
    %4758 = vmatpush.msra.mxu0 0.0
    %4759 = vmatpush.msra.mxu0 0.0
    %4760 = vmatpush.msra.mxu0 0.0
    %4761 = vmatpush.msra.mxu0 0.0
    %4762 = vmatpush.msra.mxu0 %v4349
    %4763 = vmatmul.f32.gmra.mxu0 %v4745
    %v4764 = vpop.f32.mrf.mxu0
    %v4765 = vadd.f32 0.0, %v4764
    %4766 = vdwg.mxu0
    %v4768 = vsel %vm990, %v4649, 0
    %4770 = vmatpush.msra.mxu0 0.0
    %4771 = vmatpush.msra.mxu0 0.0
    %4772 = vmatpush.msra.mxu0 0.0
    %4773 = vmatpush.msra.mxu0 0.0
    %4774 = vmatpush.msra.mxu0 0.0
    %4775 = vmatpush.msra.mxu0 0.0
    %4776 = vmatpush.msra.mxu0 0.0
    %4777 = vmatpush.msra.mxu0 0.0
    %4778 = vmatpush.msra.mxu0 0.0
    %4779 = vmatpush.msra.mxu0 0.0
    %4780 = vmatpush.msra.mxu0 0.0
    %4781 = vmatpush.msra.mxu0 0.0
    %4782 = vmatpush.msra.mxu0 0.0
    %4783 = vmatpush.msra.mxu0 0.0
    %4784 = vmatpush.msra.mxu0 0.0
    %4785 = vmatpush.msra.mxu0 %v4351
    %4786 = vmatmul.f32.gmra.mxu0 %v4768
    %v4787 = vpop.f32.mrf.mxu0
    %v4788 = vadd.f32 0.0, %v4787
    %4789 = vdwg.mxu0
    %v4791 = vsel %vm990, %v4650, 0
    %4793 = vmatpush.msra.mxu0 0.0
    %4794 = vmatpush.msra.mxu0 0.0
    %4795 = vmatpush.msra.mxu0 0.0
    %4796 = vmatpush.msra.mxu0 0.0
    %4797 = vmatpush.msra.mxu0 0.0
    %4798 = vmatpush.msra.mxu0 0.0
    %4799 = vmatpush.msra.mxu0 0.0
    %4800 = vmatpush.msra.mxu0 0.0
    %4801 = vmatpush.msra.mxu0 0.0
    %4802 = vmatpush.msra.mxu0 0.0
    %4803 = vmatpush.msra.mxu0 0.0
    %4804 = vmatpush.msra.mxu0 0.0
    %4805 = vmatpush.msra.mxu0 0.0
    %4806 = vmatpush.msra.mxu0 0.0
    %4807 = vmatpush.msra.mxu0 0.0
    %4808 = vmatpush.msra.mxu0 %v4353
    %4809 = vmatmul.f32.gmra.mxu0 %v4791
    %v4810 = vpop.f32.mrf.mxu0
    %v4811 = vadd.f32 0.0, %v4810
    %4812 = vdwg.mxu0
    %v4814 = vsel %vm990, %v4651, 0
    %4816 = vmatpush.msra.mxu0 0.0
    %4817 = vmatpush.msra.mxu0 0.0
    %4818 = vmatpush.msra.mxu0 0.0
    %4819 = vmatpush.msra.mxu0 0.0
    %4820 = vmatpush.msra.mxu0 0.0
    %4821 = vmatpush.msra.mxu0 0.0
    %4822 = vmatpush.msra.mxu0 0.0
    %4823 = vmatpush.msra.mxu0 0.0
    %4824 = vmatpush.msra.mxu0 0.0
    %4825 = vmatpush.msra.mxu0 0.0
    %4826 = vmatpush.msra.mxu0 0.0
    %4827 = vmatpush.msra.mxu0 0.0
    %4828 = vmatpush.msra.mxu0 0.0
    %4829 = vmatpush.msra.mxu0 0.0
    %4830 = vmatpush.msra.mxu0 0.0
    %4831 = vmatpush.msra.mxu0 %v4355
    %4832 = vmatmul.f32.gmra.mxu0 %v4814
    %v4833 = vpop.f32.mrf.mxu0
    %v4834 = vadd.f32 0.0, %v4833
    %4835 = vdwg.mxu0
    %v4836 = vrot.slane %v4719, 4
    %v4837 = vsel %vm282, %v4836, %v4673
    %v4838 = vrot.slane %v4673, 4
    %v4839 = vsel %vm282, %v4719, %v4838
    %v4841 = vunpack.c.l.s4 1983009808
    %v4842 = vunpack.c.0.s8 %v4841
    %v4843 = vperm.slane %v4837, %v4842
    %v4845 = vunpack.c.l.s4 1983009808
    %v4846 = vunpack.c.0.s8 %v4845
    %v4847 = vperm.slane %v4839, %v4846
    %v4848 = vrot.slane %v4742, 4
    %v4849 = vsel %vm282, %v4848, %v4696
    %v4850 = vrot.slane %v4696, 4
    %v4851 = vsel %vm282, %v4742, %v4850
    %v4853 = vunpack.c.l.s4 1983009808
    %v4854 = vunpack.c.0.s8 %v4853
    %v4855 = vperm.slane %v4849, %v4854
    %v4857 = vunpack.c.l.s4 1983009808
    %v4858 = vunpack.c.0.s8 %v4857
    %v4859 = vperm.slane %v4851, %v4858
    %v4860 = vrot.slane %v4855, 4
    %v4861 = vsel %vm282, %v4860, %v4843
    %v4862 = vrot.slane %v4843, 4
    %v4863 = vsel %vm282, %v4855, %v4862
    %v4865 = vunpack.c.l.s4 1934713408
    %v4866 = vunpack.c.0.s8 %v4865
    %v4867 = vperm.slane %v4861, %v4866
    %v4869 = vunpack.c.l.s4 1934713408
    %v4870 = vunpack.c.0.s8 %v4869
    %v4871 = vperm.slane %v4863, %v4870
    %v4872 = vrot.slane %v4859, 4
    %v4873 = vsel %vm282, %v4872, %v4847
    %v4874 = vrot.slane %v4847, 4
    %v4875 = vsel %vm282, %v4859, %v4874
    %v4877 = vunpack.c.l.s4 1934713408
    %v4878 = vunpack.c.0.s8 %v4877
    %v4879 = vperm.slane %v4873, %v4878
    %v4881 = vunpack.c.l.s4 1934713408
    %v4882 = vunpack.c.0.s8 %v4881
    %v4883 = vperm.slane %v4875, %v4882
    %v4884 = vrot.slane %v4867, 4
    %v4885 = vsel %vm282, 0.0, %v4884
    %v4886 = vrot.slane %v4871, 4
    %v4887 = vsel %vm282, 0.0, %v4886
    %v4888 = vrot.slane %v4879, 4
    %v4889 = vsel %vm282, 0.0, %v4888
    %v4890 = vrot.slane %v4883, 4
    %v4891 = vsel %vm282, 0.0, %v4890
    %v4892 = vrot.slane %v4811, 4
    %v4893 = vsel %vm282, %v4892, %v4765
    %v4894 = vrot.slane %v4765, 4
    %v4895 = vsel %vm282, %v4811, %v4894
    %v4897 = vunpack.c.l.s4 1983009808
    %v4898 = vunpack.c.0.s8 %v4897
    %v4899 = vperm.slane %v4893, %v4898
    %v4901 = vunpack.c.l.s4 1983009808
    %v4902 = vunpack.c.0.s8 %v4901
    %v4903 = vperm.slane %v4895, %v4902
    %v4904 = vrot.slane %v4834, 4
    %v4905 = vsel %vm282, %v4904, %v4788
    %v4906 = vrot.slane %v4788, 4
    %v4907 = vsel %vm282, %v4834, %v4906
    %v4909 = vunpack.c.l.s4 1983009808
    %v4910 = vunpack.c.0.s8 %v4909
    %v4911 = vperm.slane %v4905, %v4910
    %v4913 = vunpack.c.l.s4 1983009808
    %v4914 = vunpack.c.0.s8 %v4913
    %v4915 = vperm.slane %v4907, %v4914
    %v4916 = vrot.slane %v4911, 4
    %v4917 = vsel %vm282, %v4916, %v4899
    %v4918 = vrot.slane %v4899, 4
    %v4919 = vsel %vm282, %v4911, %v4918
    %v4921 = vunpack.c.l.s4 1934713408
    %v4922 = vunpack.c.0.s8 %v4921
    %v4923 = vperm.slane %v4917, %v4922
    %v4925 = vunpack.c.l.s4 1934713408
    %v4926 = vunpack.c.0.s8 %v4925
    %v4927 = vperm.slane %v4919, %v4926
    %v4928 = vrot.slane %v4915, 4
    %v4929 = vsel %vm282, %v4928, %v4903
    %v4930 = vrot.slane %v4903, 4
    %v4931 = vsel %vm282, %v4915, %v4930
    %v4933 = vunpack.c.l.s4 1934713408
    %v4934 = vunpack.c.0.s8 %v4933
    %v4935 = vperm.slane %v4929, %v4934
    %v4937 = vunpack.c.l.s4 1934713408
    %v4938 = vunpack.c.0.s8 %v4937
    %v4939 = vperm.slane %v4931, %v4938
    %v4940 = vrot.slane %v4923, 4
    %v4941 = vsel %vm282, 0.0, %v4940
    %v4942 = vrot.slane %v4927, 4
    %v4943 = vsel %vm282, 0.0, %v4942
    %v4944 = vrot.slane %v4935, 4
    %v4945 = vsel %vm282, 0.0, %v4944
    %v4946 = vrot.slane %v4939, 4
    %v4947 = vsel %vm282, 0.0, %v4946
    %v4948 = vsel %vm282, %v4886, %v4867
    %v4950 = vunpack.c.l.s4 1983009808
    %v4951 = vunpack.c.0.s8 %v4950
    %v4952 = vperm.slane %v4948, %v4951
    %v4953 = vrot.slane %v4887, 4
    %v4954 = vsel %vm282, %v4953, %v4885
    %v4956 = vunpack.c.l.s4 1983009808
    %v4957 = vunpack.c.0.s8 %v4956
    %v4958 = vperm.slane %v4954, %v4957
    %v4959 = vsel %vm282, %v4890, %v4879
    %v4961 = vunpack.c.l.s4 1983009808
    %v4962 = vunpack.c.0.s8 %v4961
    %v4963 = vperm.slane %v4959, %v4962
    %v4964 = vrot.slane %v4891, 4
    %v4965 = vsel %vm282, %v4964, %v4889
    %v4967 = vunpack.c.l.s4 1983009808
    %v4968 = vunpack.c.0.s8 %v4967
    %v4969 = vperm.slane %v4965, %v4968
    %v4970 = vrot.slane %v4958, 4
    %v4971 = vsel %vm282, %v4970, %v4952
    %v4972 = vrot.slane %v4952, 4
    %v4973 = vsel %vm282, %v4958, %v4972
    %v4975 = vunpack.c.l.s4 1934713408
    %v4976 = vunpack.c.0.s8 %v4975
    %v4977 = vperm.slane %v4971, %v4976
    %v4979 = vunpack.c.l.s4 1934713408
    %v4980 = vunpack.c.0.s8 %v4979
    %v4981 = vperm.slane %v4973, %v4980
    %v4982 = vrot.slane %v4969, 4
    %v4983 = vsel %vm282, %v4982, %v4963
    %v4984 = vrot.slane %v4963, 4
    %v4985 = vsel %vm282, %v4969, %v4984
    %v4987 = vunpack.c.l.s4 1934713408
    %v4988 = vunpack.c.0.s8 %v4987
    %v4989 = vperm.slane %v4983, %v4988
    %v4991 = vunpack.c.l.s4 1934713408
    %v4992 = vunpack.c.0.s8 %v4991
    %v4993 = vperm.slane %v4985, %v4992
    %v4994 = vrot.slane %v4989, 4
    %v4995 = vsel %vm282, %v4994, %v4977
    %v4996 = vrot.slane %v4977, 4
    %v4997 = vsel %vm282, %v4989, %v4996
    %v4998 = vrot.slane %v4993, 4
    %v4999 = vsel %vm282, %v4998, %v4981
    %v5000 = vrot.slane %v4981, 4
    %v5001 = vsel %vm282, %v4993, %v5000
    %v5002 = vsel %vm282, %v4942, %v4923
    %v5004 = vunpack.c.l.s4 1983009808
    %v5005 = vunpack.c.0.s8 %v5004
    %v5006 = vperm.slane %v5002, %v5005
    %v5007 = vrot.slane %v4943, 4
    %v5008 = vsel %vm282, %v5007, %v4941
    %v5010 = vunpack.c.l.s4 1983009808
    %v5011 = vunpack.c.0.s8 %v5010
    %v5012 = vperm.slane %v5008, %v5011
    %v5013 = vsel %vm282, %v4946, %v4935
    %v5015 = vunpack.c.l.s4 1983009808
    %v5016 = vunpack.c.0.s8 %v5015
    %v5017 = vperm.slane %v5013, %v5016
    %v5018 = vrot.slane %v4947, 4
    %v5019 = vsel %vm282, %v5018, %v4945
    %v5021 = vunpack.c.l.s4 1983009808
    %v5022 = vunpack.c.0.s8 %v5021
    %v5023 = vperm.slane %v5019, %v5022
    %v5024 = vrot.slane %v5012, 4
    %v5025 = vsel %vm282, %v5024, %v5006
    %v5026 = vrot.slane %v5006, 4
    %v5027 = vsel %vm282, %v5012, %v5026
    %v5029 = vunpack.c.l.s4 1934713408
    %v5030 = vunpack.c.0.s8 %v5029
    %v5031 = vperm.slane %v5025, %v5030
    %v5033 = vunpack.c.l.s4 1934713408
    %v5034 = vunpack.c.0.s8 %v5033
    %v5035 = vperm.slane %v5027, %v5034
    %v5036 = vrot.slane %v5023, 4
    %v5037 = vsel %vm282, %v5036, %v5017
    %v5038 = vrot.slane %v5017, 4
    %v5039 = vsel %vm282, %v5023, %v5038
    %v5041 = vunpack.c.l.s4 1934713408
    %v5042 = vunpack.c.0.s8 %v5041
    %v5043 = vperm.slane %v5037, %v5042
    %v5045 = vunpack.c.l.s4 1934713408
    %v5046 = vunpack.c.0.s8 %v5045
    %v5047 = vperm.slane %v5039, %v5046
    %v5048 = vrot.slane %v5043, 4
    %v5049 = vsel %vm282, %v5048, %v5031
    %v5050 = vrot.slane %v5031, 4
    %v5051 = vsel %vm282, %v5043, %v5050
    %v5052 = vrot.slane %v5047, 4
    %v5053 = vsel %vm282, %v5052, %v5035
    %v5054 = vrot.slane %v5035, 4
    %v5055 = vsel %vm282, %v5047, %v5054
    %5058 = vrot.lane.b32.xlu0 %v4997, 8
    %v5059 = vpop.permute.xlu0 %5058
    %5060 = vrot.lane.b32.xlu0 %v5051, 8
    %v5061 = vpop.permute.xlu0 %5060
    %5066 = vrot.lane.b32.xlu0 %v4999, 16
    %v5067 = vpop.permute.xlu0 %5066
    %5068 = vrot.lane.b32.xlu0 %v5053, 16
    %v5069 = vpop.permute.xlu0 %5068
    %5074 = vrot.lane.b32.xlu0 %v5001, 24
    %v5075 = vpop.permute.xlu0 %5074
    %5076 = vrot.lane.b32.xlu0 %v5055, 24
    %v5077 = vpop.permute.xlu0 %5076
    %v5080 = vsel %vm990, %v4995, %v5059
    %v5081 = vsel %vm990, %v5049, %v5061
    %v5082 = vsel %vm1717, %v5080, %v5067
    %v5083 = vsel %vm1717, %v5081, %v5069
    %v5084 = vsel %vm1720, %v5082, %v5075
    %v5085 = vsel %vm1720, %v5083, %v5077
    %v5087 = vperm.slane %v3627, 0
    %v5090 = vsel %vm226, %v5084, 0
    %v5093 = vsel %vm226, %v5085, 0
    %5095 = vmatpush.msra.mxu0 0.0
    %5096 = vmatpush.msra.mxu0 0.0
    %5097 = vmatpush.msra.mxu0 0.0
    %5098 = vmatpush.msra.mxu0 0.0
    %5099 = vmatpush.msra.mxu0 0.0
    %5100 = vmatpush.msra.mxu0 0.0
    %5101 = vmatpush.msra.mxu0 0.0
    %5102 = vmatpush.msra.mxu0 0.0
    %5103 = vmatpush.msra.mxu0 0.0
    %5104 = vmatpush.msra.mxu0 0.0
    %5105 = vmatpush.msra.mxu0 0.0
    %5106 = vmatpush.msra.mxu0 0.0
    %5107 = vmatpush.msra.mxu0 %v3625
    %5108 = vmatpush.msra.mxu0 %v3624
    %5109 = vmatpush.msra.mxu0 %v3623
    %5110 = vmatpush.msra.mxu0 %v3622
    %5111 = vmatmul.f32.gmra.mxu0 %v5090
    %v5112 = vpop.f32.mrf.mxu0
    %v5113 = vadd.f32 %v5087, %v5112
    %5114 = vmatmul.f32.gmra.mxu0 %v5093
    %v5115 = vpop.f32.mrf.mxu0
    %v5116 = vadd.f32 %v5087, %v5115
    %5117 = vdwg.mxu0
    %v5118 = vadd.f32 %v3580, %v5113
    %v5119 = vadd.f32 %v3581, %v5116
    %s5120 = scalar_lea.vmem [#allocation8], 1
    %v5121 = vld [vmem:[%s5120] sm:$0x1]
    %s5122 = scalar_lea.vmem [#allocation10], 1
    %v5123 = vld [vmem:[%s5122] sm:$0x1]
    %v5124 = vsel %vm226, %v5118, 0.0
    %5125 = vadd.xlane.f32.xlu0 %v5124
    %v5126 = vpop.xlane.xlu0 %5125
    %v5127 = vsel %vm226, %v5119, 0.0
    %5128 = vadd.xlane.f32.xlu0 %v5127
    %v5129 = vpop.xlane.xlu0 %5128
    %v5130 = vmul.f32 %v5126, %v1771
    %v5131 = vmul.f32 %v5129, %v1771
    %v5132 = vsub.f32 %v5118, %v5130
    %v5133 = vsub.f32 %v5119, %v5131
    %v5134 = vmul.f32 %v5132, %v5132
    %v5135 = vmul.f32 %v5133, %v5133
    %v5136 = vsel %vm226, %v5134, 0.0
    %5137 = vadd.xlane.f32.xlu0 %v5136
    %v5138 = vpop.xlane.xlu0 %5137
    %v5139 = vsel %vm226, %v5135, 0.0
    %5140 = vadd.xlane.f32.xlu0 %v5139
    %v5141 = vpop.xlane.xlu0 %5140
    %v5142 = vmul.f32 %v5138, %v1771
    %v5143 = vmul.f32 %v5141, %v1771
    %v5144 = vadd.f32 %v5142, 1e-05
    %v5145 = vadd.f32 %v5143, 1e-05
    %v5146 = vrsqrt.pop %v5144
    %v5147 = vmul.f32 %v5146, %v5144
    %v5148 = vmul.f32 %v5147, %v5146
    %v5149 = vmul.f32 0.5, %v5148
    %v5150 = vsub.f32 1.5, %v5149
    %v5151 = vmul.f32 %v5146, %v5150
    %vm5152 = vweird.f32 %v5144
    %vm5153 = vweird.f32 %v5146
    %vm5154 = vmor %vm5152, %vm5153
    %v5155 = vsel %vm5154, %v5146, %v5151
    %v5156 = vrsqrt.pop %v5145
    %v5157 = vmul.f32 %v5156, %v5145
    %v5158 = vmul.f32 %v5157, %v5156
    %v5159 = vmul.f32 0.5, %v5158
    %v5160 = vsub.f32 1.5, %v5159
    %v5161 = vmul.f32 %v5156, %v5160
    %vm5162 = vweird.f32 %v5145
    %vm5163 = vweird.f32 %v5156
    %vm5164 = vmor %vm5162, %vm5163
    %v5165 = vsel %vm5164, %v5156, %v5161
    %v5166 = vmul.f32 %v5132, %v5155
    %v5167 = vmul.f32 %v5133, %v5165
    %v5169 = vperm.slane %v5121, 0
    %v5171 = vmul.f32 %v5166, %v5169
    %v5172 = vmul.f32 %v5167, %v5169
    %v5174 = vperm.slane %v5123, 0
    %v5176 = vadd.f32 %v5171, %v5174
    %v5177 = vadd.f32 %v5172, %v5174
    %s5178 = scalar_lea.vmem %s9, 32
    %v5179 = vld [vmem:[%s5178] sm:$0xff]
    %v5180 = vld [vmem:[%s5178 + $0x8] sm:$0xff]
    %v5181 = vld [vmem:[%s5178 + $0x10] sm:$0xff]
    %v5182 = vld [vmem:[%s5178 + $0x18] sm:$0xff]
    %s5183 = scalar_lea.vmem %s10, 1
    %v5184 = vld [vmem:[%s5183] sm:$0x1]
    %v5186 = vperm.slane %v5184, 0
    %v5189 = vsel %vm226, %v5176, 0
    %v5192 = vsel %vm226, %v5177, 0
    %5194 = vmatpush.msra.mxu0 0.0
    %5195 = vmatpush.msra.mxu0 0.0
    %5196 = vmatpush.msra.mxu0 0.0
    %5197 = vmatpush.msra.mxu0 0.0
    %5198 = vmatpush.msra.mxu0 0.0
    %5199 = vmatpush.msra.mxu0 0.0
    %5200 = vmatpush.msra.mxu0 0.0
    %5201 = vmatpush.msra.mxu0 0.0
    %5202 = vmatpush.msra.mxu0 0.0
    %5203 = vmatpush.msra.mxu0 0.0
    %5204 = vmatpush.msra.mxu0 0.0
    %5205 = vmatpush.msra.mxu0 0.0
    %5206 = vmatpush.msra.mxu0 %v5182
    %5207 = vmatpush.msra.mxu0 %v5181
    %5208 = vmatpush.msra.mxu0 %v5180
    %5209 = vmatpush.msra.mxu0 %v5179
    %5210 = vmatmul.f32.gmra.mxu0 %v5189
    %v5211 = vpop.f32.mrf.mxu0
    %v5212 = vadd.f32 %v5186, %v5211
    %5213 = vmatmul.f32.gmra.mxu0 %v5192
    %v5214 = vpop.f32.mrf.mxu0
    %v5215 = vadd.f32 %v5186, %v5214
    %5216 = vdwg.mxu0
    %s5217 = scalar_lea.vmem [#allocation11], 32
    %v5218 = vld [vmem:[%s5217] sm:$0xff]
    %v5219 = vld [vmem:[%s5217 + $0x8] sm:$0xff]
    %v5220 = vld [vmem:[%s5217 + $0x10] sm:$0xff]
    %v5221 = vld [vmem:[%s5217 + $0x18] sm:$0xff]
    %s5222 = scalar_lea.vmem %s12, 1
    %v5223 = vld [vmem:[%s5222] sm:$0x1]
    %v5225 = vperm.slane %v5223, 0
    %5227 = vmatpush.msra.mxu0 0.0
    %5228 = vmatpush.msra.mxu0 0.0
    %5229 = vmatpush.msra.mxu0 0.0
    %5230 = vmatpush.msra.mxu0 0.0
    %5231 = vmatpush.msra.mxu0 0.0
    %5232 = vmatpush.msra.mxu0 0.0
    %5233 = vmatpush.msra.mxu0 0.0
    %5234 = vmatpush.msra.mxu0 0.0
    %5235 = vmatpush.msra.mxu0 0.0
    %5236 = vmatpush.msra.mxu0 0.0
    %5237 = vmatpush.msra.mxu0 0.0
    %5238 = vmatpush.msra.mxu0 0.0
    %5239 = vmatpush.msra.mxu0 %v5221
    %5240 = vmatpush.msra.mxu0 %v5220
    %5241 = vmatpush.msra.mxu0 %v5219
    %5242 = vmatpush.msra.mxu0 %v5218
    %5243 = vmatmul.f32.gmra.mxu0 %v1866
    %v5244 = vpop.f32.mrf.mxu0
    %v5245 = vadd.f32 %v5225, %v5244
    %5246 = vmatmul.f32.gmra.mxu0 %v1869
    %v5247 = vpop.f32.mrf.mxu0
    %v5248 = vadd.f32 %v5225, %v5247
    %5249 = vdwg.mxu0
    %s5250 = scalar_lea.vmem [#allocation13], 32
    %v5251 = vld [vmem:[%s5250] sm:$0xff]
    %v5252 = vld [vmem:[%s5250 + $0x8] sm:$0xff]
    %v5253 = vld [vmem:[%s5250 + $0x10] sm:$0xff]
    %v5254 = vld [vmem:[%s5250 + $0x18] sm:$0xff]
    %s5255 = scalar_lea.vmem %s14, 1
    %v5256 = vld [vmem:[%s5255] sm:$0x1]
    %5259 = vrot.lane.b32.xlu0 %v5212, 120
    %v5260 = vpop.permute.xlu0 %5259
    %5261 = vrot.lane.b32.xlu0 %v5215, 120
    %v5262 = vpop.permute.xlu0 %5261
    %5265 = vrot.lane.b32.xlu0 %v5212, 112
    %v5266 = vpop.permute.xlu0 %5265
    %5267 = vrot.lane.b32.xlu0 %v5215, 112
    %v5268 = vpop.permute.xlu0 %5267
    %5271 = vrot.lane.b32.xlu0 %v5212, 104
    %v5272 = vpop.permute.xlu0 %5271
    %5273 = vrot.lane.b32.xlu0 %v5215, 104
    %v5274 = vpop.permute.xlu0 %5273
    %v5277 = vrot.slane %v5266, 4
    %v5278 = vsel %vm282, %v5277, %v5212
    %v5279 = vrot.slane %v5212, 4
    %v5280 = vsel %vm282, %v5266, %v5279
    %v5282 = vunpack.c.l.s4 1983009808
    %v5283 = vunpack.c.0.s8 %v5282
    %v5284 = vperm.slane %v5278, %v5283
    %v5286 = vunpack.c.l.s4 1983009808
    %v5287 = vunpack.c.0.s8 %v5286
    %v5288 = vperm.slane %v5280, %v5287
    %v5289 = vrot.slane %v5272, 4
    %v5290 = vsel %vm282, %v5289, %v5260
    %v5291 = vrot.slane %v5260, 4
    %v5292 = vsel %vm282, %v5272, %v5291
    %v5294 = vunpack.c.l.s4 1983009808
    %v5295 = vunpack.c.0.s8 %v5294
    %v5296 = vperm.slane %v5290, %v5295
    %v5298 = vunpack.c.l.s4 1983009808
    %v5299 = vunpack.c.0.s8 %v5298
    %v5300 = vperm.slane %v5292, %v5299
    %v5301 = vrot.slane %v5296, 4
    %v5302 = vsel %vm282, %v5301, %v5284
    %v5303 = vrot.slane %v5284, 4
    %v5304 = vsel %vm282, %v5296, %v5303
    %v5306 = vunpack.c.l.s4 1934713408
    %v5307 = vunpack.c.0.s8 %v5306
    %v5308 = vperm.slane %v5302, %v5307
    %v5310 = vunpack.c.l.s4 1934713408
    %v5311 = vunpack.c.0.s8 %v5310
    %v5312 = vperm.slane %v5304, %v5311
    %v5313 = vrot.slane %v5300, 4
    %v5314 = vsel %vm282, %v5313, %v5288
    %v5315 = vrot.slane %v5288, 4
    %v5316 = vsel %vm282, %v5300, %v5315
    %v5318 = vunpack.c.l.s4 1934713408
    %v5319 = vunpack.c.0.s8 %v5318
    %v5320 = vperm.slane %v5314, %v5319
    %v5322 = vunpack.c.l.s4 1934713408
    %v5323 = vunpack.c.0.s8 %v5322
    %v5324 = vperm.slane %v5316, %v5323
    %v5325 = vrot.slane %v5308, 4
    %v5326 = vsel %vm282, 0.0, %v5325
    %v5327 = vrot.slane %v5312, 4
    %v5328 = vsel %vm282, 0.0, %v5327
    %v5329 = vrot.slane %v5320, 4
    %v5330 = vsel %vm282, 0.0, %v5329
    %v5331 = vrot.slane %v5324, 4
    %v5332 = vsel %vm282, 0.0, %v5331
    %v5333 = vrot.slane %v5268, 4
    %v5334 = vsel %vm282, %v5333, %v5215
    %v5335 = vrot.slane %v5215, 4
    %v5336 = vsel %vm282, %v5268, %v5335
    %v5338 = vunpack.c.l.s4 1983009808
    %v5339 = vunpack.c.0.s8 %v5338
    %v5340 = vperm.slane %v5334, %v5339
    %v5342 = vunpack.c.l.s4 1983009808
    %v5343 = vunpack.c.0.s8 %v5342
    %v5344 = vperm.slane %v5336, %v5343
    %v5345 = vrot.slane %v5274, 4
    %v5346 = vsel %vm282, %v5345, %v5262
    %v5347 = vrot.slane %v5262, 4
    %v5348 = vsel %vm282, %v5274, %v5347
    %v5350 = vunpack.c.l.s4 1983009808
    %v5351 = vunpack.c.0.s8 %v5350
    %v5352 = vperm.slane %v5346, %v5351
    %v5354 = vunpack.c.l.s4 1983009808
    %v5355 = vunpack.c.0.s8 %v5354
    %v5356 = vperm.slane %v5348, %v5355
    %v5357 = vrot.slane %v5352, 4
    %v5358 = vsel %vm282, %v5357, %v5340
    %v5359 = vrot.slane %v5340, 4
    %v5360 = vsel %vm282, %v5352, %v5359
    %v5362 = vunpack.c.l.s4 1934713408
    %v5363 = vunpack.c.0.s8 %v5362
    %v5364 = vperm.slane %v5358, %v5363
    %v5366 = vunpack.c.l.s4 1934713408
    %v5367 = vunpack.c.0.s8 %v5366
    %v5368 = vperm.slane %v5360, %v5367
    %v5369 = vrot.slane %v5356, 4
    %v5370 = vsel %vm282, %v5369, %v5344
    %v5371 = vrot.slane %v5344, 4
    %v5372 = vsel %vm282, %v5356, %v5371
    %v5374 = vunpack.c.l.s4 1934713408
    %v5375 = vunpack.c.0.s8 %v5374
    %v5376 = vperm.slane %v5370, %v5375
    %v5378 = vunpack.c.l.s4 1934713408
    %v5379 = vunpack.c.0.s8 %v5378
    %v5380 = vperm.slane %v5372, %v5379
    %v5381 = vrot.slane %v5364, 4
    %v5382 = vsel %vm282, 0.0, %v5381
    %v5383 = vrot.slane %v5368, 4
    %v5384 = vsel %vm282, 0.0, %v5383
    %v5385 = vrot.slane %v5376, 4
    %v5386 = vsel %vm282, 0.0, %v5385
    %v5387 = vrot.slane %v5380, 4
    %v5388 = vsel %vm282, 0.0, %v5387
    %v5389 = vsel %vm282, %v5327, %v5308
    %v5391 = vunpack.c.l.s4 1983009808
    %v5392 = vunpack.c.0.s8 %v5391
    %v5393 = vperm.slane %v5389, %v5392
    %v5394 = vrot.slane %v5328, 4
    %v5395 = vsel %vm282, %v5394, %v5326
    %v5397 = vunpack.c.l.s4 1983009808
    %v5398 = vunpack.c.0.s8 %v5397
    %v5399 = vperm.slane %v5395, %v5398
    %v5400 = vsel %vm282, %v5331, %v5320
    %v5402 = vunpack.c.l.s4 1983009808
    %v5403 = vunpack.c.0.s8 %v5402
    %v5404 = vperm.slane %v5400, %v5403
    %v5405 = vrot.slane %v5332, 4
    %v5406 = vsel %vm282, %v5405, %v5330
    %v5408 = vunpack.c.l.s4 1983009808
    %v5409 = vunpack.c.0.s8 %v5408
    %v5410 = vperm.slane %v5406, %v5409
    %v5411 = vrot.slane %v5399, 4
    %v5412 = vsel %vm282, %v5411, %v5393
    %v5413 = vrot.slane %v5393, 4
    %v5414 = vsel %vm282, %v5399, %v5413
    %v5416 = vunpack.c.l.s4 1934713408
    %v5417 = vunpack.c.0.s8 %v5416
    %v5418 = vperm.slane %v5412, %v5417
    %v5420 = vunpack.c.l.s4 1934713408
    %v5421 = vunpack.c.0.s8 %v5420
    %v5422 = vperm.slane %v5414, %v5421
    %v5423 = vrot.slane %v5410, 4
    %v5424 = vsel %vm282, %v5423, %v5404
    %v5425 = vrot.slane %v5404, 4
    %v5426 = vsel %vm282, %v5410, %v5425
    %v5428 = vunpack.c.l.s4 1934713408
    %v5429 = vunpack.c.0.s8 %v5428
    %v5430 = vperm.slane %v5424, %v5429
    %v5432 = vunpack.c.l.s4 1934713408
    %v5433 = vunpack.c.0.s8 %v5432
    %v5434 = vperm.slane %v5426, %v5433
    %v5435 = vrot.slane %v5430, 4
    %v5436 = vsel %vm282, %v5435, %v5418
    %v5437 = vrot.slane %v5418, 4
    %v5438 = vsel %vm282, %v5430, %v5437
    %v5439 = vrot.slane %v5434, 4
    %v5440 = vsel %vm282, %v5439, %v5422
    %v5441 = vrot.slane %v5422, 4
    %v5442 = vsel %vm282, %v5434, %v5441
    %v5443 = vsel %vm282, %v5383, %v5364
    %v5445 = vunpack.c.l.s4 1983009808
    %v5446 = vunpack.c.0.s8 %v5445
    %v5447 = vperm.slane %v5443, %v5446
    %v5448 = vrot.slane %v5384, 4
    %v5449 = vsel %vm282, %v5448, %v5382
    %v5451 = vunpack.c.l.s4 1983009808
    %v5452 = vunpack.c.0.s8 %v5451
    %v5453 = vperm.slane %v5449, %v5452
    %v5454 = vsel %vm282, %v5387, %v5376
    %v5456 = vunpack.c.l.s4 1983009808
    %v5457 = vunpack.c.0.s8 %v5456
    %v5458 = vperm.slane %v5454, %v5457
    %v5459 = vrot.slane %v5388, 4
    %v5460 = vsel %vm282, %v5459, %v5386
    %v5462 = vunpack.c.l.s4 1983009808
    %v5463 = vunpack.c.0.s8 %v5462
    %v5464 = vperm.slane %v5460, %v5463
    %v5465 = vrot.slane %v5453, 4
    %v5466 = vsel %vm282, %v5465, %v5447
    %v5467 = vrot.slane %v5447, 4
    %v5468 = vsel %vm282, %v5453, %v5467
    %v5470 = vunpack.c.l.s4 1934713408
    %v5471 = vunpack.c.0.s8 %v5470
    %v5472 = vperm.slane %v5466, %v5471
    %v5474 = vunpack.c.l.s4 1934713408
    %v5475 = vunpack.c.0.s8 %v5474
    %v5476 = vperm.slane %v5468, %v5475
    %v5477 = vrot.slane %v5464, 4
    %v5478 = vsel %vm282, %v5477, %v5458
    %v5479 = vrot.slane %v5458, 4
    %v5480 = vsel %vm282, %v5464, %v5479
    %v5482 = vunpack.c.l.s4 1934713408
    %v5483 = vunpack.c.0.s8 %v5482
    %v5484 = vperm.slane %v5478, %v5483
    %v5486 = vunpack.c.l.s4 1934713408
    %v5487 = vunpack.c.0.s8 %v5486
    %v5488 = vperm.slane %v5480, %v5487
    %v5489 = vrot.slane %v5484, 4
    %v5490 = vsel %vm282, %v5489, %v5472
    %v5491 = vrot.slane %v5472, 4
    %v5492 = vsel %vm282, %v5484, %v5491
    %v5493 = vrot.slane %v5488, 4
    %v5494 = vsel %vm282, %v5493, %v5476
    %v5495 = vrot.slane %v5476, 4
    %v5496 = vsel %vm282, %v5488, %v5495
    %5499 = vrot.lane.b32.xlu0 %v5245, 120
    %v5500 = vpop.permute.xlu0 %5499
    %5501 = vrot.lane.b32.xlu0 %v5248, 120
    %v5502 = vpop.permute.xlu0 %5501
    %5505 = vrot.lane.b32.xlu0 %v5245, 112
    %v5506 = vpop.permute.xlu0 %5505
    %5507 = vrot.lane.b32.xlu0 %v5248, 112
    %v5508 = vpop.permute.xlu0 %5507
    %5511 = vrot.lane.b32.xlu0 %v5245, 104
    %v5512 = vpop.permute.xlu0 %5511
    %5513 = vrot.lane.b32.xlu0 %v5248, 104
    %v5514 = vpop.permute.xlu0 %5513
    %v5517 = vrot.slane %v5506, 4
    %v5518 = vsel %vm282, %v5517, %v5245
    %v5519 = vrot.slane %v5245, 4
    %v5520 = vsel %vm282, %v5506, %v5519
    %v5522 = vunpack.c.l.s4 1983009808
    %v5523 = vunpack.c.0.s8 %v5522
    %v5524 = vperm.slane %v5518, %v5523
    %v5526 = vunpack.c.l.s4 1983009808
    %v5527 = vunpack.c.0.s8 %v5526
    %v5528 = vperm.slane %v5520, %v5527
    %v5529 = vrot.slane %v5512, 4
    %v5530 = vsel %vm282, %v5529, %v5500
    %v5531 = vrot.slane %v5500, 4
    %v5532 = vsel %vm282, %v5512, %v5531
    %v5534 = vunpack.c.l.s4 1983009808
    %v5535 = vunpack.c.0.s8 %v5534
    %v5536 = vperm.slane %v5530, %v5535
    %v5538 = vunpack.c.l.s4 1983009808
    %v5539 = vunpack.c.0.s8 %v5538
    %v5540 = vperm.slane %v5532, %v5539
    %v5541 = vrot.slane %v5536, 4
    %v5542 = vsel %vm282, %v5541, %v5524
    %v5543 = vrot.slane %v5524, 4
    %v5544 = vsel %vm282, %v5536, %v5543
    %v5546 = vunpack.c.l.s4 1934713408
    %v5547 = vunpack.c.0.s8 %v5546
    %v5548 = vperm.slane %v5542, %v5547
    %v5550 = vunpack.c.l.s4 1934713408
    %v5551 = vunpack.c.0.s8 %v5550
    %v5552 = vperm.slane %v5544, %v5551
    %v5553 = vrot.slane %v5540, 4
    %v5554 = vsel %vm282, %v5553, %v5528
    %v5555 = vrot.slane %v5528, 4
    %v5556 = vsel %vm282, %v5540, %v5555
    %v5558 = vunpack.c.l.s4 1934713408
    %v5559 = vunpack.c.0.s8 %v5558
    %v5560 = vperm.slane %v5554, %v5559
    %v5562 = vunpack.c.l.s4 1934713408
    %v5563 = vunpack.c.0.s8 %v5562
    %v5564 = vperm.slane %v5556, %v5563
    %v5565 = vrot.slane %v5548, 4
    %v5566 = vsel %vm282, 0.0, %v5565
    %v5567 = vrot.slane %v5552, 4
    %v5568 = vsel %vm282, 0.0, %v5567
    %v5569 = vrot.slane %v5560, 4
    %v5570 = vsel %vm282, 0.0, %v5569
    %v5571 = vrot.slane %v5564, 4
    %v5572 = vsel %vm282, 0.0, %v5571
    %v5573 = vrot.slane %v5508, 4
    %v5574 = vsel %vm282, %v5573, %v5248
    %v5575 = vrot.slane %v5248, 4
    %v5576 = vsel %vm282, %v5508, %v5575
    %v5578 = vunpack.c.l.s4 1983009808
    %v5579 = vunpack.c.0.s8 %v5578
    %v5580 = vperm.slane %v5574, %v5579
    %v5582 = vunpack.c.l.s4 1983009808
    %v5583 = vunpack.c.0.s8 %v5582
    %v5584 = vperm.slane %v5576, %v5583
    %v5585 = vrot.slane %v5514, 4
    %v5586 = vsel %vm282, %v5585, %v5502
    %v5587 = vrot.slane %v5502, 4
    %v5588 = vsel %vm282, %v5514, %v5587
    %v5590 = vunpack.c.l.s4 1983009808
    %v5591 = vunpack.c.0.s8 %v5590
    %v5592 = vperm.slane %v5586, %v5591
    %v5594 = vunpack.c.l.s4 1983009808
    %v5595 = vunpack.c.0.s8 %v5594
    %v5596 = vperm.slane %v5588, %v5595
    %v5597 = vrot.slane %v5592, 4
    %v5598 = vsel %vm282, %v5597, %v5580
    %v5599 = vrot.slane %v5580, 4
    %v5600 = vsel %vm282, %v5592, %v5599
    %v5602 = vunpack.c.l.s4 1934713408
    %v5603 = vunpack.c.0.s8 %v5602
    %v5604 = vperm.slane %v5598, %v5603
    %v5606 = vunpack.c.l.s4 1934713408
    %v5607 = vunpack.c.0.s8 %v5606
    %v5608 = vperm.slane %v5600, %v5607
    %v5609 = vrot.slane %v5596, 4
    %v5610 = vsel %vm282, %v5609, %v5584
    %v5611 = vrot.slane %v5584, 4
    %v5612 = vsel %vm282, %v5596, %v5611
    %v5614 = vunpack.c.l.s4 1934713408
    %v5615 = vunpack.c.0.s8 %v5614
    %v5616 = vperm.slane %v5610, %v5615
    %v5618 = vunpack.c.l.s4 1934713408
    %v5619 = vunpack.c.0.s8 %v5618
    %v5620 = vperm.slane %v5612, %v5619
    %v5621 = vrot.slane %v5604, 4
    %v5622 = vsel %vm282, 0.0, %v5621
    %v5623 = vrot.slane %v5608, 4
    %v5624 = vsel %vm282, 0.0, %v5623
    %v5625 = vrot.slane %v5616, 4
    %v5626 = vsel %vm282, 0.0, %v5625
    %v5627 = vrot.slane %v5620, 4
    %v5628 = vsel %vm282, 0.0, %v5627
    %v5629 = vsel %vm282, %v5567, %v5548
    %v5631 = vunpack.c.l.s4 1983009808
    %v5632 = vunpack.c.0.s8 %v5631
    %v5633 = vperm.slane %v5629, %v5632
    %v5634 = vrot.slane %v5568, 4
    %v5635 = vsel %vm282, %v5634, %v5566
    %v5637 = vunpack.c.l.s4 1983009808
    %v5638 = vunpack.c.0.s8 %v5637
    %v5639 = vperm.slane %v5635, %v5638
    %v5640 = vsel %vm282, %v5571, %v5560
    %v5642 = vunpack.c.l.s4 1983009808
    %v5643 = vunpack.c.0.s8 %v5642
    %v5644 = vperm.slane %v5640, %v5643
    %v5645 = vrot.slane %v5572, 4
    %v5646 = vsel %vm282, %v5645, %v5570
    %v5648 = vunpack.c.l.s4 1983009808
    %v5649 = vunpack.c.0.s8 %v5648
    %v5650 = vperm.slane %v5646, %v5649
    %v5651 = vrot.slane %v5639, 4
    %v5652 = vsel %vm282, %v5651, %v5633
    %v5653 = vrot.slane %v5633, 4
    %v5654 = vsel %vm282, %v5639, %v5653
    %v5656 = vunpack.c.l.s4 1934713408
    %v5657 = vunpack.c.0.s8 %v5656
    %v5658 = vperm.slane %v5652, %v5657
    %v5660 = vunpack.c.l.s4 1934713408
    %v5661 = vunpack.c.0.s8 %v5660
    %v5662 = vperm.slane %v5654, %v5661
    %v5663 = vrot.slane %v5650, 4
    %v5664 = vsel %vm282, %v5663, %v5644
    %v5665 = vrot.slane %v5644, 4
    %v5666 = vsel %vm282, %v5650, %v5665
    %v5668 = vunpack.c.l.s4 1934713408
    %v5669 = vunpack.c.0.s8 %v5668
    %v5670 = vperm.slane %v5664, %v5669
    %v5672 = vunpack.c.l.s4 1934713408
    %v5673 = vunpack.c.0.s8 %v5672
    %v5674 = vperm.slane %v5666, %v5673
    %v5675 = vrot.slane %v5670, 4
    %v5676 = vsel %vm282, %v5675, %v5658
    %v5677 = vrot.slane %v5658, 4
    %v5678 = vsel %vm282, %v5670, %v5677
    %v5679 = vrot.slane %v5674, 4
    %v5680 = vsel %vm282, %v5679, %v5662
    %v5681 = vrot.slane %v5662, 4
    %v5682 = vsel %vm282, %v5674, %v5681
    %v5683 = vsel %vm282, %v5623, %v5604
    %v5685 = vunpack.c.l.s4 1983009808
    %v5686 = vunpack.c.0.s8 %v5685
    %v5687 = vperm.slane %v5683, %v5686
    %v5688 = vrot.slane %v5624, 4
    %v5689 = vsel %vm282, %v5688, %v5622
    %v5691 = vunpack.c.l.s4 1983009808
    %v5692 = vunpack.c.0.s8 %v5691
    %v5693 = vperm.slane %v5689, %v5692
    %v5694 = vsel %vm282, %v5627, %v5616
    %v5696 = vunpack.c.l.s4 1983009808
    %v5697 = vunpack.c.0.s8 %v5696
    %v5698 = vperm.slane %v5694, %v5697
    %v5699 = vrot.slane %v5628, 4
    %v5700 = vsel %vm282, %v5699, %v5626
    %v5702 = vunpack.c.l.s4 1983009808
    %v5703 = vunpack.c.0.s8 %v5702
    %v5704 = vperm.slane %v5700, %v5703
    %v5705 = vrot.slane %v5693, 4
    %v5706 = vsel %vm282, %v5705, %v5687
    %v5707 = vrot.slane %v5687, 4
    %v5708 = vsel %vm282, %v5693, %v5707
    %v5710 = vunpack.c.l.s4 1934713408
    %v5711 = vunpack.c.0.s8 %v5710
    %v5712 = vperm.slane %v5706, %v5711
    %v5714 = vunpack.c.l.s4 1934713408
    %v5715 = vunpack.c.0.s8 %v5714
    %v5716 = vperm.slane %v5708, %v5715
    %v5717 = vrot.slane %v5704, 4
    %v5718 = vsel %vm282, %v5717, %v5698
    %v5719 = vrot.slane %v5698, 4
    %v5720 = vsel %vm282, %v5704, %v5719
    %v5722 = vunpack.c.l.s4 1934713408
    %v5723 = vunpack.c.0.s8 %v5722
    %v5724 = vperm.slane %v5718, %v5723
    %v5726 = vunpack.c.l.s4 1934713408
    %v5727 = vunpack.c.0.s8 %v5726
    %v5728 = vperm.slane %v5720, %v5727
    %v5729 = vrot.slane %v5724, 4
    %v5730 = vsel %vm282, %v5729, %v5712
    %v5731 = vrot.slane %v5712, 4
    %v5732 = vsel %vm282, %v5724, %v5731
    %v5733 = vrot.slane %v5728, 4
    %v5734 = vsel %vm282, %v5733, %v5716
    %v5735 = vrot.slane %v5716, 4
    %v5736 = vsel %vm282, %v5728, %v5735
    %5737 = vrot.lane.b32.xlu0 %v5245, 96
    %v5738 = vpop.permute.xlu0 %5737
    %5739 = vrot.lane.b32.xlu0 %v5248, 96
    %v5740 = vpop.permute.xlu0 %5739
    %5741 = vrot.lane.b32.xlu0 %v5500, 96
    %v5742 = vpop.permute.xlu0 %5741
    %5743 = vrot.lane.b32.xlu0 %v5502, 96
    %v5744 = vpop.permute.xlu0 %5743
    %5745 = vrot.lane.b32.xlu0 %v5506, 96
    %v5746 = vpop.permute.xlu0 %5745
    %5747 = vrot.lane.b32.xlu0 %v5508, 96
    %v5748 = vpop.permute.xlu0 %5747
    %5749 = vrot.lane.b32.xlu0 %v5512, 96
    %v5750 = vpop.permute.xlu0 %5749
    %5751 = vrot.lane.b32.xlu0 %v5514, 96
    %v5752 = vpop.permute.xlu0 %5751
    %v5761 = vrot.slane %v5746, 4
    %v5762 = vsel %vm282, %v5761, %v5738
    %v5763 = vrot.slane %v5738, 4
    %v5764 = vsel %vm282, %v5746, %v5763
    %v5766 = vunpack.c.l.s4 1983009808
    %v5767 = vunpack.c.0.s8 %v5766
    %v5768 = vperm.slane %v5762, %v5767
    %v5770 = vunpack.c.l.s4 1983009808
    %v5771 = vunpack.c.0.s8 %v5770
    %v5772 = vperm.slane %v5764, %v5771
    %v5773 = vrot.slane %v5750, 4
    %v5774 = vsel %vm282, %v5773, %v5742
    %v5775 = vrot.slane %v5742, 4
    %v5776 = vsel %vm282, %v5750, %v5775
    %v5778 = vunpack.c.l.s4 1983009808
    %v5779 = vunpack.c.0.s8 %v5778
    %v5780 = vperm.slane %v5774, %v5779
    %v5782 = vunpack.c.l.s4 1983009808
    %v5783 = vunpack.c.0.s8 %v5782
    %v5784 = vperm.slane %v5776, %v5783
    %v5785 = vrot.slane %v5780, 4
    %v5786 = vsel %vm282, %v5785, %v5768
    %v5787 = vrot.slane %v5768, 4
    %v5788 = vsel %vm282, %v5780, %v5787
    %v5790 = vunpack.c.l.s4 1934713408
    %v5791 = vunpack.c.0.s8 %v5790
    %v5792 = vperm.slane %v5786, %v5791
    %v5794 = vunpack.c.l.s4 1934713408
    %v5795 = vunpack.c.0.s8 %v5794
    %v5796 = vperm.slane %v5788, %v5795
    %v5797 = vrot.slane %v5784, 4
    %v5798 = vsel %vm282, %v5797, %v5772
    %v5799 = vrot.slane %v5772, 4
    %v5800 = vsel %vm282, %v5784, %v5799
    %v5802 = vunpack.c.l.s4 1934713408
    %v5803 = vunpack.c.0.s8 %v5802
    %v5804 = vperm.slane %v5798, %v5803
    %v5806 = vunpack.c.l.s4 1934713408
    %v5807 = vunpack.c.0.s8 %v5806
    %v5808 = vperm.slane %v5800, %v5807
    %v5809 = vrot.slane %v5792, 4
    %v5810 = vsel %vm282, 0.0, %v5809
    %v5811 = vrot.slane %v5796, 4
    %v5812 = vsel %vm282, 0.0, %v5811
    %v5813 = vrot.slane %v5804, 4
    %v5814 = vsel %vm282, 0.0, %v5813
    %v5815 = vrot.slane %v5808, 4
    %v5816 = vsel %vm282, 0.0, %v5815
    %v5817 = vrot.slane %v5748, 4
    %v5818 = vsel %vm282, %v5817, %v5740
    %v5819 = vrot.slane %v5740, 4
    %v5820 = vsel %vm282, %v5748, %v5819
    %v5822 = vunpack.c.l.s4 1983009808
    %v5823 = vunpack.c.0.s8 %v5822
    %v5824 = vperm.slane %v5818, %v5823
    %v5826 = vunpack.c.l.s4 1983009808
    %v5827 = vunpack.c.0.s8 %v5826
    %v5828 = vperm.slane %v5820, %v5827
    %v5829 = vrot.slane %v5752, 4
    %v5830 = vsel %vm282, %v5829, %v5744
    %v5831 = vrot.slane %v5744, 4
    %v5832 = vsel %vm282, %v5752, %v5831
    %v5834 = vunpack.c.l.s4 1983009808
    %v5835 = vunpack.c.0.s8 %v5834
    %v5836 = vperm.slane %v5830, %v5835
    %v5838 = vunpack.c.l.s4 1983009808
    %v5839 = vunpack.c.0.s8 %v5838
    %v5840 = vperm.slane %v5832, %v5839
    %v5841 = vrot.slane %v5836, 4
    %v5842 = vsel %vm282, %v5841, %v5824
    %v5843 = vrot.slane %v5824, 4
    %v5844 = vsel %vm282, %v5836, %v5843
    %v5846 = vunpack.c.l.s4 1934713408
    %v5847 = vunpack.c.0.s8 %v5846
    %v5848 = vperm.slane %v5842, %v5847
    %v5850 = vunpack.c.l.s4 1934713408
    %v5851 = vunpack.c.0.s8 %v5850
    %v5852 = vperm.slane %v5844, %v5851
    %v5853 = vrot.slane %v5840, 4
    %v5854 = vsel %vm282, %v5853, %v5828
    %v5855 = vrot.slane %v5828, 4
    %v5856 = vsel %vm282, %v5840, %v5855
    %v5858 = vunpack.c.l.s4 1934713408
    %v5859 = vunpack.c.0.s8 %v5858
    %v5860 = vperm.slane %v5854, %v5859
    %v5862 = vunpack.c.l.s4 1934713408
    %v5863 = vunpack.c.0.s8 %v5862
    %v5864 = vperm.slane %v5856, %v5863
    %v5865 = vrot.slane %v5848, 4
    %v5866 = vsel %vm282, 0.0, %v5865
    %v5867 = vrot.slane %v5852, 4
    %v5868 = vsel %vm282, 0.0, %v5867
    %v5869 = vrot.slane %v5860, 4
    %v5870 = vsel %vm282, 0.0, %v5869
    %v5871 = vrot.slane %v5864, 4
    %v5872 = vsel %vm282, 0.0, %v5871
    %v5873 = vsel %vm282, %v5811, %v5792
    %v5875 = vunpack.c.l.s4 1983009808
    %v5876 = vunpack.c.0.s8 %v5875
    %v5877 = vperm.slane %v5873, %v5876
    %v5878 = vrot.slane %v5812, 4
    %v5879 = vsel %vm282, %v5878, %v5810
    %v5881 = vunpack.c.l.s4 1983009808
    %v5882 = vunpack.c.0.s8 %v5881
    %v5883 = vperm.slane %v5879, %v5882
    %v5884 = vsel %vm282, %v5815, %v5804
    %v5886 = vunpack.c.l.s4 1983009808
    %v5887 = vunpack.c.0.s8 %v5886
    %v5888 = vperm.slane %v5884, %v5887
    %v5889 = vrot.slane %v5816, 4
    %v5890 = vsel %vm282, %v5889, %v5814
    %v5892 = vunpack.c.l.s4 1983009808
    %v5893 = vunpack.c.0.s8 %v5892
    %v5894 = vperm.slane %v5890, %v5893
    %v5895 = vrot.slane %v5883, 4
    %v5896 = vsel %vm282, %v5895, %v5877
    %v5897 = vrot.slane %v5877, 4
    %v5898 = vsel %vm282, %v5883, %v5897
    %v5900 = vunpack.c.l.s4 1934713408
    %v5901 = vunpack.c.0.s8 %v5900
    %v5902 = vperm.slane %v5896, %v5901
    %v5904 = vunpack.c.l.s4 1934713408
    %v5905 = vunpack.c.0.s8 %v5904
    %v5906 = vperm.slane %v5898, %v5905
    %v5907 = vrot.slane %v5894, 4
    %v5908 = vsel %vm282, %v5907, %v5888
    %v5909 = vrot.slane %v5888, 4
    %v5910 = vsel %vm282, %v5894, %v5909
    %v5912 = vunpack.c.l.s4 1934713408
    %v5913 = vunpack.c.0.s8 %v5912
    %v5914 = vperm.slane %v5908, %v5913
    %v5916 = vunpack.c.l.s4 1934713408
    %v5917 = vunpack.c.0.s8 %v5916
    %v5918 = vperm.slane %v5910, %v5917
    %v5919 = vrot.slane %v5914, 4
    %v5920 = vsel %vm282, %v5919, %v5902
    %v5921 = vrot.slane %v5902, 4
    %v5922 = vsel %vm282, %v5914, %v5921
    %v5923 = vrot.slane %v5918, 4
    %v5924 = vsel %vm282, %v5923, %v5906
    %v5925 = vrot.slane %v5906, 4
    %v5926 = vsel %vm282, %v5918, %v5925
    %v5927 = vsel %vm282, %v5867, %v5848
    %v5929 = vunpack.c.l.s4 1983009808
    %v5930 = vunpack.c.0.s8 %v5929
    %v5931 = vperm.slane %v5927, %v5930
    %v5932 = vrot.slane %v5868, 4
    %v5933 = vsel %vm282, %v5932, %v5866
    %v5935 = vunpack.c.l.s4 1983009808
    %v5936 = vunpack.c.0.s8 %v5935
    %v5937 = vperm.slane %v5933, %v5936
    %v5938 = vsel %vm282, %v5871, %v5860
    %v5940 = vunpack.c.l.s4 1983009808
    %v5941 = vunpack.c.0.s8 %v5940
    %v5942 = vperm.slane %v5938, %v5941
    %v5943 = vrot.slane %v5872, 4
    %v5944 = vsel %vm282, %v5943, %v5870
    %v5946 = vunpack.c.l.s4 1983009808
    %v5947 = vunpack.c.0.s8 %v5946
    %v5948 = vperm.slane %v5944, %v5947
    %v5949 = vrot.slane %v5937, 4
    %v5950 = vsel %vm282, %v5949, %v5931
    %v5951 = vrot.slane %v5931, 4
    %v5952 = vsel %vm282, %v5937, %v5951
    %v5954 = vunpack.c.l.s4 1934713408
    %v5955 = vunpack.c.0.s8 %v5954
    %v5956 = vperm.slane %v5950, %v5955
    %v5958 = vunpack.c.l.s4 1934713408
    %v5959 = vunpack.c.0.s8 %v5958
    %v5960 = vperm.slane %v5952, %v5959
    %v5961 = vrot.slane %v5948, 4
    %v5962 = vsel %vm282, %v5961, %v5942
    %v5963 = vrot.slane %v5942, 4
    %v5964 = vsel %vm282, %v5948, %v5963
    %v5966 = vunpack.c.l.s4 1934713408
    %v5967 = vunpack.c.0.s8 %v5966
    %v5968 = vperm.slane %v5962, %v5967
    %v5970 = vunpack.c.l.s4 1934713408
    %v5971 = vunpack.c.0.s8 %v5970
    %v5972 = vperm.slane %v5964, %v5971
    %v5973 = vrot.slane %v5968, 4
    %v5974 = vsel %vm282, %v5973, %v5956
    %v5975 = vrot.slane %v5956, 4
    %v5976 = vsel %vm282, %v5968, %v5975
    %v5977 = vrot.slane %v5972, 4
    %v5978 = vsel %vm282, %v5977, %v5960
    %v5979 = vrot.slane %v5960, 4
    %v5980 = vsel %vm282, %v5972, %v5979
    %v5982 = vsel %vm990, %v5436, 0
    %v5985 = vsel %vm990, %v5676, 0
    %5987 = vmatpush.xpose.msra.mxu0 0.0
    %5988 = vmatpush.xpose.msra.mxu0 0.0
    %5989 = vmatpush.xpose.msra.mxu0 0.0
    %5990 = vmatpush.xpose.msra.mxu0 0.0
    %5991 = vmatpush.xpose.msra.mxu0 0.0
    %5992 = vmatpush.xpose.msra.mxu0 0.0
    %5993 = vmatpush.xpose.msra.mxu0 0.0
    %5994 = vmatpush.xpose.msra.mxu0 0.0
    %5995 = vmatpush.xpose.msra.mxu0 0.0
    %5996 = vmatpush.xpose.msra.mxu0 0.0
    %5997 = vmatpush.xpose.msra.mxu0 0.0
    %5998 = vmatpush.xpose.msra.mxu0 0.0
    %5999 = vmatpush.xpose.msra.mxu0 0.0
    %6000 = vmatpush.xpose.msra.mxu0 0.0
    %6001 = vmatpush.xpose.msra.mxu0 0.0
    %6002 = vmatpush.xpose.msra.mxu0 %v5985
    %6003 = vmatmul.f32.gmra.mxu0 %v5982
    %v6004 = vpop.f32.mrf.mxu0
    %v6005 = vadd.f32 0.0, %v6004
    %6006 = vdwg.mxu0
    %v6008 = vsel %vm990, %v5438, 0
    %v6011 = vsel %vm990, %v5678, 0
    %6013 = vmatpush.xpose.msra.mxu0 0.0
    %6014 = vmatpush.xpose.msra.mxu0 0.0
    %6015 = vmatpush.xpose.msra.mxu0 0.0
    %6016 = vmatpush.xpose.msra.mxu0 0.0
    %6017 = vmatpush.xpose.msra.mxu0 0.0
    %6018 = vmatpush.xpose.msra.mxu0 0.0
    %6019 = vmatpush.xpose.msra.mxu0 0.0
    %6020 = vmatpush.xpose.msra.mxu0 0.0
    %6021 = vmatpush.xpose.msra.mxu0 0.0
    %6022 = vmatpush.xpose.msra.mxu0 0.0
    %6023 = vmatpush.xpose.msra.mxu0 0.0
    %6024 = vmatpush.xpose.msra.mxu0 0.0
    %6025 = vmatpush.xpose.msra.mxu0 0.0
    %6026 = vmatpush.xpose.msra.mxu0 0.0
    %6027 = vmatpush.xpose.msra.mxu0 0.0
    %6028 = vmatpush.xpose.msra.mxu0 %v6011
    %6029 = vmatmul.f32.gmra.mxu0 %v6008
    %v6030 = vpop.f32.mrf.mxu0
    %v6031 = vadd.f32 0.0, %v6030
    %6032 = vdwg.mxu0
    %v6034 = vsel %vm990, %v5440, 0
    %v6037 = vsel %vm990, %v5680, 0
    %6039 = vmatpush.xpose.msra.mxu0 0.0
    %6040 = vmatpush.xpose.msra.mxu0 0.0
    %6041 = vmatpush.xpose.msra.mxu0 0.0
    %6042 = vmatpush.xpose.msra.mxu0 0.0
    %6043 = vmatpush.xpose.msra.mxu0 0.0
    %6044 = vmatpush.xpose.msra.mxu0 0.0
    %6045 = vmatpush.xpose.msra.mxu0 0.0
    %6046 = vmatpush.xpose.msra.mxu0 0.0
    %6047 = vmatpush.xpose.msra.mxu0 0.0
    %6048 = vmatpush.xpose.msra.mxu0 0.0
    %6049 = vmatpush.xpose.msra.mxu0 0.0
    %6050 = vmatpush.xpose.msra.mxu0 0.0
    %6051 = vmatpush.xpose.msra.mxu0 0.0
    %6052 = vmatpush.xpose.msra.mxu0 0.0
    %6053 = vmatpush.xpose.msra.mxu0 0.0
    %6054 = vmatpush.xpose.msra.mxu0 %v6037
    %6055 = vmatmul.f32.gmra.mxu0 %v6034
    %v6056 = vpop.f32.mrf.mxu0
    %v6057 = vadd.f32 0.0, %v6056
    %6058 = vdwg.mxu0
    %v6060 = vsel %vm990, %v5442, 0
    %v6063 = vsel %vm990, %v5682, 0
    %6065 = vmatpush.xpose.msra.mxu0 0.0
    %6066 = vmatpush.xpose.msra.mxu0 0.0
    %6067 = vmatpush.xpose.msra.mxu0 0.0
    %6068 = vmatpush.xpose.msra.mxu0 0.0
    %6069 = vmatpush.xpose.msra.mxu0 0.0
    %6070 = vmatpush.xpose.msra.mxu0 0.0
    %6071 = vmatpush.xpose.msra.mxu0 0.0
    %6072 = vmatpush.xpose.msra.mxu0 0.0
    %6073 = vmatpush.xpose.msra.mxu0 0.0
    %6074 = vmatpush.xpose.msra.mxu0 0.0
    %6075 = vmatpush.xpose.msra.mxu0 0.0
    %6076 = vmatpush.xpose.msra.mxu0 0.0
    %6077 = vmatpush.xpose.msra.mxu0 0.0
    %6078 = vmatpush.xpose.msra.mxu0 0.0
    %6079 = vmatpush.xpose.msra.mxu0 0.0
    %6080 = vmatpush.xpose.msra.mxu0 %v6063
    %6081 = vmatmul.f32.gmra.mxu0 %v6060
    %v6082 = vpop.f32.mrf.mxu0
    %v6083 = vadd.f32 0.0, %v6082
    %6084 = vdwg.mxu0
    %v6086 = vsel %vm990, %v5490, 0
    %v6089 = vsel %vm990, %v5730, 0
    %6091 = vmatpush.xpose.msra.mxu0 0.0
    %6092 = vmatpush.xpose.msra.mxu0 0.0
    %6093 = vmatpush.xpose.msra.mxu0 0.0
    %6094 = vmatpush.xpose.msra.mxu0 0.0
    %6095 = vmatpush.xpose.msra.mxu0 0.0
    %6096 = vmatpush.xpose.msra.mxu0 0.0
    %6097 = vmatpush.xpose.msra.mxu0 0.0
    %6098 = vmatpush.xpose.msra.mxu0 0.0
    %6099 = vmatpush.xpose.msra.mxu0 0.0
    %6100 = vmatpush.xpose.msra.mxu0 0.0
    %6101 = vmatpush.xpose.msra.mxu0 0.0
    %6102 = vmatpush.xpose.msra.mxu0 0.0
    %6103 = vmatpush.xpose.msra.mxu0 0.0
    %6104 = vmatpush.xpose.msra.mxu0 0.0
    %6105 = vmatpush.xpose.msra.mxu0 0.0
    %6106 = vmatpush.xpose.msra.mxu0 %v6089
    %6107 = vmatmul.f32.gmra.mxu0 %v6086
    %v6108 = vpop.f32.mrf.mxu0
    %v6109 = vadd.f32 0.0, %v6108
    %6110 = vdwg.mxu0
    %v6112 = vsel %vm990, %v5492, 0
    %v6115 = vsel %vm990, %v5732, 0
    %6117 = vmatpush.xpose.msra.mxu0 0.0
    %6118 = vmatpush.xpose.msra.mxu0 0.0
    %6119 = vmatpush.xpose.msra.mxu0 0.0
    %6120 = vmatpush.xpose.msra.mxu0 0.0
    %6121 = vmatpush.xpose.msra.mxu0 0.0
    %6122 = vmatpush.xpose.msra.mxu0 0.0
    %6123 = vmatpush.xpose.msra.mxu0 0.0
    %6124 = vmatpush.xpose.msra.mxu0 0.0
    %6125 = vmatpush.xpose.msra.mxu0 0.0
    %6126 = vmatpush.xpose.msra.mxu0 0.0
    %6127 = vmatpush.xpose.msra.mxu0 0.0
    %6128 = vmatpush.xpose.msra.mxu0 0.0
    %6129 = vmatpush.xpose.msra.mxu0 0.0
    %6130 = vmatpush.xpose.msra.mxu0 0.0
    %6131 = vmatpush.xpose.msra.mxu0 0.0
    %6132 = vmatpush.xpose.msra.mxu0 %v6115
    %6133 = vmatmul.f32.gmra.mxu0 %v6112
    %v6134 = vpop.f32.mrf.mxu0
    %v6135 = vadd.f32 0.0, %v6134
    %6136 = vdwg.mxu0
    %v6138 = vsel %vm990, %v5494, 0
    %v6141 = vsel %vm990, %v5734, 0
    %6143 = vmatpush.xpose.msra.mxu0 0.0
    %6144 = vmatpush.xpose.msra.mxu0 0.0
    %6145 = vmatpush.xpose.msra.mxu0 0.0
    %6146 = vmatpush.xpose.msra.mxu0 0.0
    %6147 = vmatpush.xpose.msra.mxu0 0.0
    %6148 = vmatpush.xpose.msra.mxu0 0.0
    %6149 = vmatpush.xpose.msra.mxu0 0.0
    %6150 = vmatpush.xpose.msra.mxu0 0.0
    %6151 = vmatpush.xpose.msra.mxu0 0.0
    %6152 = vmatpush.xpose.msra.mxu0 0.0
    %6153 = vmatpush.xpose.msra.mxu0 0.0
    %6154 = vmatpush.xpose.msra.mxu0 0.0
    %6155 = vmatpush.xpose.msra.mxu0 0.0
    %6156 = vmatpush.xpose.msra.mxu0 0.0
    %6157 = vmatpush.xpose.msra.mxu0 0.0
    %6158 = vmatpush.xpose.msra.mxu0 %v6141
    %6159 = vmatmul.f32.gmra.mxu0 %v6138
    %v6160 = vpop.f32.mrf.mxu0
    %v6161 = vadd.f32 0.0, %v6160
    %6162 = vdwg.mxu0
    %v6164 = vsel %vm990, %v5496, 0
    %v6167 = vsel %vm990, %v5736, 0
    %6169 = vmatpush.xpose.msra.mxu0 0.0
    %6170 = vmatpush.xpose.msra.mxu0 0.0
    %6171 = vmatpush.xpose.msra.mxu0 0.0
    %6172 = vmatpush.xpose.msra.mxu0 0.0
    %6173 = vmatpush.xpose.msra.mxu0 0.0
    %6174 = vmatpush.xpose.msra.mxu0 0.0
    %6175 = vmatpush.xpose.msra.mxu0 0.0
    %6176 = vmatpush.xpose.msra.mxu0 0.0
    %6177 = vmatpush.xpose.msra.mxu0 0.0
    %6178 = vmatpush.xpose.msra.mxu0 0.0
    %6179 = vmatpush.xpose.msra.mxu0 0.0
    %6180 = vmatpush.xpose.msra.mxu0 0.0
    %6181 = vmatpush.xpose.msra.mxu0 0.0
    %6182 = vmatpush.xpose.msra.mxu0 0.0
    %6183 = vmatpush.xpose.msra.mxu0 0.0
    %6184 = vmatpush.xpose.msra.mxu0 %v6167
    %6185 = vmatmul.f32.gmra.mxu0 %v6164
    %v6186 = vpop.f32.mrf.mxu0
    %v6187 = vadd.f32 0.0, %v6186
    %6188 = vdwg.mxu0
    %v6189 = vsel %vm990, %v6005, -inf
    %6190 = vmax.xlane.f32.xlu0 %v6189
    %v6191 = vpop.xlane.xlu0 %6190
    %v6192 = vsel %vm990, %v6031, -inf
    %6193 = vmax.xlane.f32.xlu0 %v6192
    %v6194 = vpop.xlane.xlu0 %6193
    %v6195 = vsel %vm990, %v6057, -inf
    %6196 = vmax.xlane.f32.xlu0 %v6195
    %v6197 = vpop.xlane.xlu0 %6196
    %v6198 = vsel %vm990, %v6083, -inf
    %6199 = vmax.xlane.f32.xlu0 %v6198
    %v6200 = vpop.xlane.xlu0 %6199
    %v6201 = vsel %vm990, %v6109, -inf
    %6202 = vmax.xlane.f32.xlu0 %v6201
    %v6203 = vpop.xlane.xlu0 %6202
    %v6204 = vsel %vm990, %v6135, -inf
    %6205 = vmax.xlane.f32.xlu0 %v6204
    %v6206 = vpop.xlane.xlu0 %6205
    %v6207 = vsel %vm990, %v6161, -inf
    %6208 = vmax.xlane.f32.xlu0 %v6207
    %v6209 = vpop.xlane.xlu0 %6208
    %v6210 = vsel %vm990, %v6187, -inf
    %6211 = vmax.xlane.f32.xlu0 %v6210
    %v6212 = vpop.xlane.xlu0 %6211
    %v6213 = vsub.f32 %v6005, %v6191
    %v6214 = vsub.f32 %v6031, %v6194
    %v6215 = vsub.f32 %v6057, %v6197
    %v6216 = vsub.f32 %v6083, %v6200
    %v6217 = vsub.f32 %v6109, %v6203
    %v6218 = vsub.f32 %v6135, %v6206
    %v6219 = vsub.f32 %v6161, %v6209
    %v6220 = vsub.f32 %v6187, %v6212
    %v6221 = vmul.f32 %v6213, 1.442695
    %v6222 = vpow.pop %v6221
    %v6223 = vmul.f32 %v6214, 1.442695
    %v6224 = vpow.pop %v6223
    %v6225 = vmul.f32 %v6215, 1.442695
    %v6226 = vpow.pop %v6225
    %v6227 = vmul.f32 %v6216, 1.442695
    %v6228 = vpow.pop %v6227
    %v6229 = vmul.f32 %v6217, 1.442695
    %v6230 = vpow.pop %v6229
    %v6231 = vmul.f32 %v6218, 1.442695
    %v6232 = vpow.pop %v6231
    %v6233 = vmul.f32 %v6219, 1.442695
    %v6234 = vpow.pop %v6233
    %v6235 = vmul.f32 %v6220, 1.442695
    %v6236 = vpow.pop %v6235
    %v6237 = vsel %vm990, %v6222, 0.0
    %6238 = vadd.xlane.f32.xlu0 %v6237
    %v6239 = vpop.xlane.xlu0 %6238
    %v6240 = vsel %vm990, %v6224, 0.0
    %6241 = vadd.xlane.f32.xlu0 %v6240
    %v6242 = vpop.xlane.xlu0 %6241
    %v6243 = vsel %vm990, %v6226, 0.0
    %6244 = vadd.xlane.f32.xlu0 %v6243
    %v6245 = vpop.xlane.xlu0 %6244
    %v6246 = vsel %vm990, %v6228, 0.0
    %6247 = vadd.xlane.f32.xlu0 %v6246
    %v6248 = vpop.xlane.xlu0 %6247
    %v6249 = vsel %vm990, %v6230, 0.0
    %6250 = vadd.xlane.f32.xlu0 %v6249
    %v6251 = vpop.xlane.xlu0 %6250
    %v6252 = vsel %vm990, %v6232, 0.0
    %6253 = vadd.xlane.f32.xlu0 %v6252
    %v6254 = vpop.xlane.xlu0 %6253
    %v6255 = vsel %vm990, %v6234, 0.0
    %6256 = vadd.xlane.f32.xlu0 %v6255
    %v6257 = vpop.xlane.xlu0 %6256
    %v6258 = vsel %vm990, %v6236, 0.0
    %6259 = vadd.xlane.f32.xlu0 %v6258
    %v6260 = vpop.xlane.xlu0 %6259
    %v6261 = vrcp.pop %v6239
    %v6262 = vrcp.pop %v6242
    %v6263 = vrcp.pop %v6245
    %v6264 = vrcp.pop %v6248
    %v6265 = vrcp.pop %v6251
    %v6266 = vrcp.pop %v6254
    %v6267 = vrcp.pop %v6257
    %v6268 = vrcp.pop %v6260
    %v6269 = vmul.f32 %v6222, %v6261
    %v6270 = vmul.f32 %v6224, %v6262
    %v6271 = vmul.f32 %v6226, %v6263
    %v6272 = vmul.f32 %v6228, %v6264
    %v6273 = vmul.f32 %v6230, %v6265
    %v6274 = vmul.f32 %v6232, %v6266
    %v6275 = vmul.f32 %v6234, %v6267
    %v6276 = vmul.f32 %v6236, %v6268
    %v6278 = vsel %vm990, %v6269, 0
    %6280 = vmatpush.msra.mxu0 0.0
    %6281 = vmatpush.msra.mxu0 0.0
    %6282 = vmatpush.msra.mxu0 0.0
    %6283 = vmatpush.msra.mxu0 0.0
    %6284 = vmatpush.msra.mxu0 0.0
    %6285 = vmatpush.msra.mxu0 0.0
    %6286 = vmatpush.msra.mxu0 0.0
    %6287 = vmatpush.msra.mxu0 0.0
    %6288 = vmatpush.msra.mxu0 0.0
    %6289 = vmatpush.msra.mxu0 0.0
    %6290 = vmatpush.msra.mxu0 0.0
    %6291 = vmatpush.msra.mxu0 0.0
    %6292 = vmatpush.msra.mxu0 0.0
    %6293 = vmatpush.msra.mxu0 0.0
    %6294 = vmatpush.msra.mxu0 0.0
    %6295 = vmatpush.msra.mxu0 %v5920
    %6296 = vmatmul.f32.gmra.mxu0 %v6278
    %v6297 = vpop.f32.mrf.mxu0
    %v6298 = vadd.f32 0.0, %v6297
    %6299 = vdwg.mxu0
    %v6301 = vsel %vm990, %v6270, 0
    %6303 = vmatpush.msra.mxu0 0.0
    %6304 = vmatpush.msra.mxu0 0.0
    %6305 = vmatpush.msra.mxu0 0.0
    %6306 = vmatpush.msra.mxu0 0.0
    %6307 = vmatpush.msra.mxu0 0.0
    %6308 = vmatpush.msra.mxu0 0.0
    %6309 = vmatpush.msra.mxu0 0.0
    %6310 = vmatpush.msra.mxu0 0.0
    %6311 = vmatpush.msra.mxu0 0.0
    %6312 = vmatpush.msra.mxu0 0.0
    %6313 = vmatpush.msra.mxu0 0.0
    %6314 = vmatpush.msra.mxu0 0.0
    %6315 = vmatpush.msra.mxu0 0.0
    %6316 = vmatpush.msra.mxu0 0.0
    %6317 = vmatpush.msra.mxu0 0.0
    %6318 = vmatpush.msra.mxu0 %v5922
    %6319 = vmatmul.f32.gmra.mxu0 %v6301
    %v6320 = vpop.f32.mrf.mxu0
    %v6321 = vadd.f32 0.0, %v6320
    %6322 = vdwg.mxu0
    %v6324 = vsel %vm990, %v6271, 0
    %6326 = vmatpush.msra.mxu0 0.0
    %6327 = vmatpush.msra.mxu0 0.0
    %6328 = vmatpush.msra.mxu0 0.0
    %6329 = vmatpush.msra.mxu0 0.0
    %6330 = vmatpush.msra.mxu0 0.0
    %6331 = vmatpush.msra.mxu0 0.0
    %6332 = vmatpush.msra.mxu0 0.0
    %6333 = vmatpush.msra.mxu0 0.0
    %6334 = vmatpush.msra.mxu0 0.0
    %6335 = vmatpush.msra.mxu0 0.0
    %6336 = vmatpush.msra.mxu0 0.0
    %6337 = vmatpush.msra.mxu0 0.0
    %6338 = vmatpush.msra.mxu0 0.0
    %6339 = vmatpush.msra.mxu0 0.0
    %6340 = vmatpush.msra.mxu0 0.0
    %6341 = vmatpush.msra.mxu0 %v5924
    %6342 = vmatmul.f32.gmra.mxu0 %v6324
    %v6343 = vpop.f32.mrf.mxu0
    %v6344 = vadd.f32 0.0, %v6343
    %6345 = vdwg.mxu0
    %v6347 = vsel %vm990, %v6272, 0
    %6349 = vmatpush.msra.mxu0 0.0
    %6350 = vmatpush.msra.mxu0 0.0
    %6351 = vmatpush.msra.mxu0 0.0
    %6352 = vmatpush.msra.mxu0 0.0
    %6353 = vmatpush.msra.mxu0 0.0
    %6354 = vmatpush.msra.mxu0 0.0
    %6355 = vmatpush.msra.mxu0 0.0
    %6356 = vmatpush.msra.mxu0 0.0
    %6357 = vmatpush.msra.mxu0 0.0
    %6358 = vmatpush.msra.mxu0 0.0
    %6359 = vmatpush.msra.mxu0 0.0
    %6360 = vmatpush.msra.mxu0 0.0
    %6361 = vmatpush.msra.mxu0 0.0
    %6362 = vmatpush.msra.mxu0 0.0
    %6363 = vmatpush.msra.mxu0 0.0
    %6364 = vmatpush.msra.mxu0 %v5926
    %6365 = vmatmul.f32.gmra.mxu0 %v6347
    %v6366 = vpop.f32.mrf.mxu0
    %v6367 = vadd.f32 0.0, %v6366
    %6368 = vdwg.mxu0
    %v6370 = vsel %vm990, %v6273, 0
    %6372 = vmatpush.msra.mxu0 0.0
    %6373 = vmatpush.msra.mxu0 0.0
    %6374 = vmatpush.msra.mxu0 0.0
    %6375 = vmatpush.msra.mxu0 0.0
    %6376 = vmatpush.msra.mxu0 0.0
    %6377 = vmatpush.msra.mxu0 0.0
    %6378 = vmatpush.msra.mxu0 0.0
    %6379 = vmatpush.msra.mxu0 0.0
    %6380 = vmatpush.msra.mxu0 0.0
    %6381 = vmatpush.msra.mxu0 0.0
    %6382 = vmatpush.msra.mxu0 0.0
    %6383 = vmatpush.msra.mxu0 0.0
    %6384 = vmatpush.msra.mxu0 0.0
    %6385 = vmatpush.msra.mxu0 0.0
    %6386 = vmatpush.msra.mxu0 0.0
    %6387 = vmatpush.msra.mxu0 %v5974
    %6388 = vmatmul.f32.gmra.mxu0 %v6370
    %v6389 = vpop.f32.mrf.mxu0
    %v6390 = vadd.f32 0.0, %v6389
    %6391 = vdwg.mxu0
    %v6393 = vsel %vm990, %v6274, 0
    %6395 = vmatpush.msra.mxu0 0.0
    %6396 = vmatpush.msra.mxu0 0.0
    %6397 = vmatpush.msra.mxu0 0.0
    %6398 = vmatpush.msra.mxu0 0.0
    %6399 = vmatpush.msra.mxu0 0.0
    %6400 = vmatpush.msra.mxu0 0.0
    %6401 = vmatpush.msra.mxu0 0.0
    %6402 = vmatpush.msra.mxu0 0.0
    %6403 = vmatpush.msra.mxu0 0.0
    %6404 = vmatpush.msra.mxu0 0.0
    %6405 = vmatpush.msra.mxu0 0.0
    %6406 = vmatpush.msra.mxu0 0.0
    %6407 = vmatpush.msra.mxu0 0.0
    %6408 = vmatpush.msra.mxu0 0.0
    %6409 = vmatpush.msra.mxu0 0.0
    %6410 = vmatpush.msra.mxu0 %v5976
    %6411 = vmatmul.f32.gmra.mxu0 %v6393
    %v6412 = vpop.f32.mrf.mxu0
    %v6413 = vadd.f32 0.0, %v6412
    %6414 = vdwg.mxu0
    %v6416 = vsel %vm990, %v6275, 0
    %6418 = vmatpush.msra.mxu0 0.0
    %6419 = vmatpush.msra.mxu0 0.0
    %6420 = vmatpush.msra.mxu0 0.0
    %6421 = vmatpush.msra.mxu0 0.0
    %6422 = vmatpush.msra.mxu0 0.0
    %6423 = vmatpush.msra.mxu0 0.0
    %6424 = vmatpush.msra.mxu0 0.0
    %6425 = vmatpush.msra.mxu0 0.0
    %6426 = vmatpush.msra.mxu0 0.0
    %6427 = vmatpush.msra.mxu0 0.0
    %6428 = vmatpush.msra.mxu0 0.0
    %6429 = vmatpush.msra.mxu0 0.0
    %6430 = vmatpush.msra.mxu0 0.0
    %6431 = vmatpush.msra.mxu0 0.0
    %6432 = vmatpush.msra.mxu0 0.0
    %6433 = vmatpush.msra.mxu0 %v5978
    %6434 = vmatmul.f32.gmra.mxu0 %v6416
    %v6435 = vpop.f32.mrf.mxu0
    %v6436 = vadd.f32 0.0, %v6435
    %6437 = vdwg.mxu0
    %v6439 = vsel %vm990, %v6276, 0
    %6441 = vmatpush.msra.mxu0 0.0
    %6442 = vmatpush.msra.mxu0 0.0
    %6443 = vmatpush.msra.mxu0 0.0
    %6444 = vmatpush.msra.mxu0 0.0
    %6445 = vmatpush.msra.mxu0 0.0
    %6446 = vmatpush.msra.mxu0 0.0
    %6447 = vmatpush.msra.mxu0 0.0
    %6448 = vmatpush.msra.mxu0 0.0
    %6449 = vmatpush.msra.mxu0 0.0
    %6450 = vmatpush.msra.mxu0 0.0
    %6451 = vmatpush.msra.mxu0 0.0
    %6452 = vmatpush.msra.mxu0 0.0
    %6453 = vmatpush.msra.mxu0 0.0
    %6454 = vmatpush.msra.mxu0 0.0
    %6455 = vmatpush.msra.mxu0 0.0
    %6456 = vmatpush.msra.mxu0 %v5980
    %6457 = vmatmul.f32.gmra.mxu0 %v6439
    %v6458 = vpop.f32.mrf.mxu0
    %v6459 = vadd.f32 0.0, %v6458
    %6460 = vdwg.mxu0
    %v6461 = vrot.slane %v6344, 4
    %v6462 = vsel %vm282, %v6461, %v6298
    %v6463 = vrot.slane %v6298, 4
    %v6464 = vsel %vm282, %v6344, %v6463
    %v6466 = vunpack.c.l.s4 1983009808
    %v6467 = vunpack.c.0.s8 %v6466
    %v6468 = vperm.slane %v6462, %v6467
    %v6470 = vunpack.c.l.s4 1983009808
    %v6471 = vunpack.c.0.s8 %v6470
    %v6472 = vperm.slane %v6464, %v6471
    %v6473 = vrot.slane %v6367, 4
    %v6474 = vsel %vm282, %v6473, %v6321
    %v6475 = vrot.slane %v6321, 4
    %v6476 = vsel %vm282, %v6367, %v6475
    %v6478 = vunpack.c.l.s4 1983009808
    %v6479 = vunpack.c.0.s8 %v6478
    %v6480 = vperm.slane %v6474, %v6479
    %v6482 = vunpack.c.l.s4 1983009808
    %v6483 = vunpack.c.0.s8 %v6482
    %v6484 = vperm.slane %v6476, %v6483
    %v6485 = vrot.slane %v6480, 4
    %v6486 = vsel %vm282, %v6485, %v6468
    %v6487 = vrot.slane %v6468, 4
    %v6488 = vsel %vm282, %v6480, %v6487
    %v6490 = vunpack.c.l.s4 1934713408
    %v6491 = vunpack.c.0.s8 %v6490
    %v6492 = vperm.slane %v6486, %v6491
    %v6494 = vunpack.c.l.s4 1934713408
    %v6495 = vunpack.c.0.s8 %v6494
    %v6496 = vperm.slane %v6488, %v6495
    %v6497 = vrot.slane %v6484, 4
    %v6498 = vsel %vm282, %v6497, %v6472
    %v6499 = vrot.slane %v6472, 4
    %v6500 = vsel %vm282, %v6484, %v6499
    %v6502 = vunpack.c.l.s4 1934713408
    %v6503 = vunpack.c.0.s8 %v6502
    %v6504 = vperm.slane %v6498, %v6503
    %v6506 = vunpack.c.l.s4 1934713408
    %v6507 = vunpack.c.0.s8 %v6506
    %v6508 = vperm.slane %v6500, %v6507
    %v6509 = vrot.slane %v6492, 4
    %v6510 = vsel %vm282, 0.0, %v6509
    %v6511 = vrot.slane %v6496, 4
    %v6512 = vsel %vm282, 0.0, %v6511
    %v6513 = vrot.slane %v6504, 4
    %v6514 = vsel %vm282, 0.0, %v6513
    %v6515 = vrot.slane %v6508, 4
    %v6516 = vsel %vm282, 0.0, %v6515
    %v6517 = vrot.slane %v6436, 4
    %v6518 = vsel %vm282, %v6517, %v6390
    %v6519 = vrot.slane %v6390, 4
    %v6520 = vsel %vm282, %v6436, %v6519
    %v6522 = vunpack.c.l.s4 1983009808
    %v6523 = vunpack.c.0.s8 %v6522
    %v6524 = vperm.slane %v6518, %v6523
    %v6526 = vunpack.c.l.s4 1983009808
    %v6527 = vunpack.c.0.s8 %v6526
    %v6528 = vperm.slane %v6520, %v6527
    %v6529 = vrot.slane %v6459, 4
    %v6530 = vsel %vm282, %v6529, %v6413
    %v6531 = vrot.slane %v6413, 4
    %v6532 = vsel %vm282, %v6459, %v6531
    %v6534 = vunpack.c.l.s4 1983009808
    %v6535 = vunpack.c.0.s8 %v6534
    %v6536 = vperm.slane %v6530, %v6535
    %v6538 = vunpack.c.l.s4 1983009808
    %v6539 = vunpack.c.0.s8 %v6538
    %v6540 = vperm.slane %v6532, %v6539
    %v6541 = vrot.slane %v6536, 4
    %v6542 = vsel %vm282, %v6541, %v6524
    %v6543 = vrot.slane %v6524, 4
    %v6544 = vsel %vm282, %v6536, %v6543
    %v6546 = vunpack.c.l.s4 1934713408
    %v6547 = vunpack.c.0.s8 %v6546
    %v6548 = vperm.slane %v6542, %v6547
    %v6550 = vunpack.c.l.s4 1934713408
    %v6551 = vunpack.c.0.s8 %v6550
    %v6552 = vperm.slane %v6544, %v6551
    %v6553 = vrot.slane %v6540, 4
    %v6554 = vsel %vm282, %v6553, %v6528
    %v6555 = vrot.slane %v6528, 4
    %v6556 = vsel %vm282, %v6540, %v6555
    %v6558 = vunpack.c.l.s4 1934713408
    %v6559 = vunpack.c.0.s8 %v6558
    %v6560 = vperm.slane %v6554, %v6559
    %v6562 = vunpack.c.l.s4 1934713408
    %v6563 = vunpack.c.0.s8 %v6562
    %v6564 = vperm.slane %v6556, %v6563
    %v6565 = vrot.slane %v6548, 4
    %v6566 = vsel %vm282, 0.0, %v6565
    %v6567 = vrot.slane %v6552, 4
    %v6568 = vsel %vm282, 0.0, %v6567
    %v6569 = vrot.slane %v6560, 4
    %v6570 = vsel %vm282, 0.0, %v6569
    %v6571 = vrot.slane %v6564, 4
    %v6572 = vsel %vm282, 0.0, %v6571
    %v6573 = vsel %vm282, %v6511, %v6492
    %v6575 = vunpack.c.l.s4 1983009808
    %v6576 = vunpack.c.0.s8 %v6575
    %v6577 = vperm.slane %v6573, %v6576
    %v6578 = vrot.slane %v6512, 4
    %v6579 = vsel %vm282, %v6578, %v6510
    %v6581 = vunpack.c.l.s4 1983009808
    %v6582 = vunpack.c.0.s8 %v6581
    %v6583 = vperm.slane %v6579, %v6582
    %v6584 = vsel %vm282, %v6515, %v6504
    %v6586 = vunpack.c.l.s4 1983009808
    %v6587 = vunpack.c.0.s8 %v6586
    %v6588 = vperm.slane %v6584, %v6587
    %v6589 = vrot.slane %v6516, 4
    %v6590 = vsel %vm282, %v6589, %v6514
    %v6592 = vunpack.c.l.s4 1983009808
    %v6593 = vunpack.c.0.s8 %v6592
    %v6594 = vperm.slane %v6590, %v6593
    %v6595 = vrot.slane %v6583, 4
    %v6596 = vsel %vm282, %v6595, %v6577
    %v6597 = vrot.slane %v6577, 4
    %v6598 = vsel %vm282, %v6583, %v6597
    %v6600 = vunpack.c.l.s4 1934713408
    %v6601 = vunpack.c.0.s8 %v6600
    %v6602 = vperm.slane %v6596, %v6601
    %v6604 = vunpack.c.l.s4 1934713408
    %v6605 = vunpack.c.0.s8 %v6604
    %v6606 = vperm.slane %v6598, %v6605
    %v6607 = vrot.slane %v6594, 4
    %v6608 = vsel %vm282, %v6607, %v6588
    %v6609 = vrot.slane %v6588, 4
    %v6610 = vsel %vm282, %v6594, %v6609
    %v6612 = vunpack.c.l.s4 1934713408
    %v6613 = vunpack.c.0.s8 %v6612
    %v6614 = vperm.slane %v6608, %v6613
    %v6616 = vunpack.c.l.s4 1934713408
    %v6617 = vunpack.c.0.s8 %v6616
    %v6618 = vperm.slane %v6610, %v6617
    %v6619 = vrot.slane %v6614, 4
    %v6620 = vsel %vm282, %v6619, %v6602
    %v6621 = vrot.slane %v6602, 4
    %v6622 = vsel %vm282, %v6614, %v6621
    %v6623 = vrot.slane %v6618, 4
    %v6624 = vsel %vm282, %v6623, %v6606
    %v6625 = vrot.slane %v6606, 4
    %v6626 = vsel %vm282, %v6618, %v6625
    %v6627 = vsel %vm282, %v6567, %v6548
    %v6629 = vunpack.c.l.s4 1983009808
    %v6630 = vunpack.c.0.s8 %v6629
    %v6631 = vperm.slane %v6627, %v6630
    %v6632 = vrot.slane %v6568, 4
    %v6633 = vsel %vm282, %v6632, %v6566
    %v6635 = vunpack.c.l.s4 1983009808
    %v6636 = vunpack.c.0.s8 %v6635
    %v6637 = vperm.slane %v6633, %v6636
    %v6638 = vsel %vm282, %v6571, %v6560
    %v6640 = vunpack.c.l.s4 1983009808
    %v6641 = vunpack.c.0.s8 %v6640
    %v6642 = vperm.slane %v6638, %v6641
    %v6643 = vrot.slane %v6572, 4
    %v6644 = vsel %vm282, %v6643, %v6570
    %v6646 = vunpack.c.l.s4 1983009808
    %v6647 = vunpack.c.0.s8 %v6646
    %v6648 = vperm.slane %v6644, %v6647
    %v6649 = vrot.slane %v6637, 4
    %v6650 = vsel %vm282, %v6649, %v6631
    %v6651 = vrot.slane %v6631, 4
    %v6652 = vsel %vm282, %v6637, %v6651
    %v6654 = vunpack.c.l.s4 1934713408
    %v6655 = vunpack.c.0.s8 %v6654
    %v6656 = vperm.slane %v6650, %v6655
    %v6658 = vunpack.c.l.s4 1934713408
    %v6659 = vunpack.c.0.s8 %v6658
    %v6660 = vperm.slane %v6652, %v6659
    %v6661 = vrot.slane %v6648, 4
    %v6662 = vsel %vm282, %v6661, %v6642
    %v6663 = vrot.slane %v6642, 4
    %v6664 = vsel %vm282, %v6648, %v6663
    %v6666 = vunpack.c.l.s4 1934713408
    %v6667 = vunpack.c.0.s8 %v6666
    %v6668 = vperm.slane %v6662, %v6667
    %v6670 = vunpack.c.l.s4 1934713408
    %v6671 = vunpack.c.0.s8 %v6670
    %v6672 = vperm.slane %v6664, %v6671
    %v6673 = vrot.slane %v6668, 4
    %v6674 = vsel %vm282, %v6673, %v6656
    %v6675 = vrot.slane %v6656, 4
    %v6676 = vsel %vm282, %v6668, %v6675
    %v6677 = vrot.slane %v6672, 4
    %v6678 = vsel %vm282, %v6677, %v6660
    %v6679 = vrot.slane %v6660, 4
    %v6680 = vsel %vm282, %v6672, %v6679
    %6683 = vrot.lane.b32.xlu0 %v6622, 8
    %v6684 = vpop.permute.xlu0 %6683
    %6685 = vrot.lane.b32.xlu0 %v6676, 8
    %v6686 = vpop.permute.xlu0 %6685
    %6691 = vrot.lane.b32.xlu0 %v6624, 16
    %v6692 = vpop.permute.xlu0 %6691
    %6693 = vrot.lane.b32.xlu0 %v6678, 16
    %v6694 = vpop.permute.xlu0 %6693
    %6699 = vrot.lane.b32.xlu0 %v6626, 24
    %v6700 = vpop.permute.xlu0 %6699
    %6701 = vrot.lane.b32.xlu0 %v6680, 24
    %v6702 = vpop.permute.xlu0 %6701
    %v6705 = vsel %vm990, %v6620, %v6684
    %v6706 = vsel %vm990, %v6674, %v6686
    %v6707 = vsel %vm1717, %v6705, %v6692
    %v6708 = vsel %vm1717, %v6706, %v6694
    %v6709 = vsel %vm1720, %v6707, %v6700
    %v6710 = vsel %vm1720, %v6708, %v6702
    %v6712 = vperm.slane %v5256, 0
    %v6715 = vsel %vm226, %v6709, 0
    %v6718 = vsel %vm226, %v6710, 0
    %6720 = vmatpush.msra.mxu0 0.0
    %6721 = vmatpush.msra.mxu0 0.0
    %6722 = vmatpush.msra.mxu0 0.0
    %6723 = vmatpush.msra.mxu0 0.0
    %6724 = vmatpush.msra.mxu0 0.0
    %6725 = vmatpush.msra.mxu0 0.0
    %6726 = vmatpush.msra.mxu0 0.0
    %6727 = vmatpush.msra.mxu0 0.0
    %6728 = vmatpush.msra.mxu0 0.0
    %6729 = vmatpush.msra.mxu0 0.0
    %6730 = vmatpush.msra.mxu0 0.0
    %6731 = vmatpush.msra.mxu0 0.0
    %6732 = vmatpush.msra.mxu0 %v5254
    %6733 = vmatpush.msra.mxu0 %v5253
    %6734 = vmatpush.msra.mxu0 %v5252
    %6735 = vmatpush.msra.mxu0 %v5251
    %6736 = vmatmul.f32.gmra.mxu0 %v6715
    %v6737 = vpop.f32.mrf.mxu0
    %v6738 = vadd.f32 %v6712, %v6737
    %6739 = vmatmul.f32.gmra.mxu0 %v6718
    %v6740 = vpop.f32.mrf.mxu0
    %v6741 = vadd.f32 %v6712, %v6740
    %6742 = vdwg.mxu0
    %v6743 = vadd.f32 %v5176, %v6738
    %v6744 = vadd.f32 %v5177, %v6741
    %s6745 = scalar_lea.vmem %s15, 1
    %v6746 = vld [vmem:[%s6745] sm:$0x1]
    %s6747 = scalar_lea.vmem %s16, 1
    %v6748 = vld [vmem:[%s6747] sm:$0x1]
    %v6749 = vsel %vm226, %v6743, 0.0
    %6750 = vadd.xlane.f32.xlu0 %v6749
    %v6751 = vpop.xlane.xlu0 %6750
    %v6752 = vsel %vm226, %v6744, 0.0
    %6753 = vadd.xlane.f32.xlu0 %v6752
    %v6754 = vpop.xlane.xlu0 %6753
    %v6755 = vmul.f32 %v6751, %v1771
    %v6756 = vmul.f32 %v6754, %v1771
    %v6757 = vsub.f32 %v6743, %v6755
    %v6758 = vsub.f32 %v6744, %v6756
    %v6759 = vmul.f32 %v6757, %v6757
    %v6760 = vmul.f32 %v6758, %v6758
    %v6761 = vsel %vm226, %v6759, 0.0
    %6762 = vadd.xlane.f32.xlu0 %v6761
    %v6763 = vpop.xlane.xlu0 %6762
    %v6764 = vsel %vm226, %v6760, 0.0
    %6765 = vadd.xlane.f32.xlu0 %v6764
    %v6766 = vpop.xlane.xlu0 %6765
    %v6767 = vmul.f32 %v6763, %v1771
    %v6768 = vmul.f32 %v6766, %v1771
    %v6769 = vadd.f32 %v6767, 1e-05
    %v6770 = vadd.f32 %v6768, 1e-05
    %v6771 = vrsqrt.pop %v6769
    %v6772 = vmul.f32 %v6771, %v6769
    %v6773 = vmul.f32 %v6772, %v6771
    %v6774 = vmul.f32 0.5, %v6773
    %v6775 = vsub.f32 1.5, %v6774
    %v6776 = vmul.f32 %v6771, %v6775
    %vm6777 = vweird.f32 %v6769
    %vm6778 = vweird.f32 %v6771
    %vm6779 = vmor %vm6777, %vm6778
    %v6780 = vsel %vm6779, %v6771, %v6776
    %v6781 = vrsqrt.pop %v6770
    %v6782 = vmul.f32 %v6781, %v6770
    %v6783 = vmul.f32 %v6782, %v6781
    %v6784 = vmul.f32 0.5, %v6783
    %v6785 = vsub.f32 1.5, %v6784
    %v6786 = vmul.f32 %v6781, %v6785
    %vm6787 = vweird.f32 %v6770
    %vm6788 = vweird.f32 %v6781
    %vm6789 = vmor %vm6787, %vm6788
    %v6790 = vsel %vm6789, %v6781, %v6786
    %v6791 = vmul.f32 %v6757, %v6780
    %v6792 = vmul.f32 %v6758, %v6790
    %v6794 = vperm.slane %v6746, 0
    %v6796 = vmul.f32 %v6791, %v6794
    %v6797 = vmul.f32 %v6792, %v6794
    %v6799 = vperm.slane %v6748, 0
    %v6801 = vadd.f32 %v6796, %v6799
    %v6802 = vadd.f32 %v6797, %v6799
    %s6803 = scalar_lea.vmem [#allocation14], 32
    %v6804 = vld [vmem:[%s6803] sm:$0xff]
    %v6805 = vld [vmem:[%s6803 + $0x8] sm:$0xff]
    %v6806 = vld [vmem:[%s6803 + $0x10] sm:$0xff]
    %v6807 = vld [vmem:[%s6803 + $0x18] sm:$0xff]
    %s6808 = scalar_lea.vmem %s18, 1
    %v6809 = vld [vmem:[%s6808] sm:$0x1]
    %v6811 = vperm.slane %v6809, 0
    %v6814 = vsel %vm226, %v6801, 0
    %v6817 = vsel %vm226, %v6802, 0
    %6819 = vmatpush.msra.mxu0 0.0
    %6820 = vmatpush.msra.mxu0 0.0
    %6821 = vmatpush.msra.mxu0 0.0
    %6822 = vmatpush.msra.mxu0 0.0
    %6823 = vmatpush.msra.mxu0 0.0
    %6824 = vmatpush.msra.mxu0 0.0
    %6825 = vmatpush.msra.mxu0 0.0
    %6826 = vmatpush.msra.mxu0 0.0
    %6827 = vmatpush.msra.mxu0 0.0
    %6828 = vmatpush.msra.mxu0 0.0
    %6829 = vmatpush.msra.mxu0 0.0
    %6830 = vmatpush.msra.mxu0 0.0
    %6831 = vmatpush.msra.mxu0 %v6807
    %6832 = vmatpush.msra.mxu0 %v6806
    %6833 = vmatpush.msra.mxu0 %v6805
    %6834 = vmatpush.msra.mxu0 %v6804
    %6835 = vmatmul.f32.gmra.mxu0 %v6814
    %v6836 = vpop.f32.mrf.mxu0
    %v6837 = vadd.f32 %v6811, %v6836
    %6838 = vmatmul.f32.gmra.mxu0 %v6817
    %v6839 = vpop.f32.mrf.mxu0
    %v6840 = vadd.f32 %v6811, %v6839
    %6841 = vdwg.mxu0
    %v6842 = vmax.f32 %v6837, 0.0
    %v6843 = vmax.f32 %v6840, 0.0
    %s6844 = scalar_lea.vmem %s19, 64
    %v6845 = vld [vmem:[%s6844] sm:$0xff]
    %v6846 = vld [vmem:[%s6844 + $0x8] sm:$0xff]
    %v6847 = vld [vmem:[%s6844 + $0x10] sm:$0xff]
    %v6848 = vld [vmem:[%s6844 + $0x18] sm:$0xff]
    %v6849 = vld [vmem:[%s6844 + $0x20] sm:$0xff]
    %v6850 = vld [vmem:[%s6844 + $0x28] sm:$0xff]
    %v6851 = vld [vmem:[%s6844 + $0x30] sm:$0xff]
    %v6852 = vld [vmem:[%s6844 + $0x38] sm:$0xff]
    %s6853 = scalar_lea.vmem [#allocation16], 1
    %v6854 = vld [vmem:[%s6853] sm:$0x1]
    %v6856 = vperm.slane %v6854, 0
    %v6859 = vsel %vm3494, %v6842, 0
    %v6862 = vsel %vm3494, %v6843, 0
    %6864 = vmatpush.msra.mxu0 0.0
    %6865 = vmatpush.msra.mxu0 0.0
    %6866 = vmatpush.msra.mxu0 0.0
    %6867 = vmatpush.msra.mxu0 0.0
    %6868 = vmatpush.msra.mxu0 0.0
    %6869 = vmatpush.msra.mxu0 0.0
    %6870 = vmatpush.msra.mxu0 0.0
    %6871 = vmatpush.msra.mxu0 0.0
    %6872 = vmatpush.msra.mxu0 %v6852
    %6873 = vmatpush.msra.mxu0 %v6851
    %6874 = vmatpush.msra.mxu0 %v6850
    %6875 = vmatpush.msra.mxu0 %v6849
    %6876 = vmatpush.msra.mxu0 %v6848
    %6877 = vmatpush.msra.mxu0 %v6847
    %6878 = vmatpush.msra.mxu0 %v6846
    %6879 = vmatpush.msra.mxu0 %v6845
    %6880 = vmatmul.f32.gmra.mxu0 %v6859
    %v6881 = vpop.f32.mrf.mxu0
    %v6882 = vadd.f32 %v6856, %v6881
    %6883 = vmatmul.f32.gmra.mxu0 %v6862
    %v6884 = vpop.f32.mrf.mxu0
    %v6885 = vadd.f32 %v6856, %v6884
    %6886 = vdwg.mxu0
    %v6887 = vadd.f32 %v6801, %v6882
    %v6888 = vadd.f32 %v6802, %v6885
    %s6889 = scalar_lea.vmem %s21, 1
    %v6890 = vld [vmem:[%s6889] sm:$0x1]
    %s6891 = scalar_lea.vmem %s22, 1
    %v6892 = vld [vmem:[%s6891] sm:$0x1]
    %v6893 = vsel %vm226, %v6887, 0.0
    %6894 = vadd.xlane.f32.xlu0 %v6893
    %v6895 = vpop.xlane.xlu0 %6894
    %v6896 = vsel %vm226, %v6888, 0.0
    %6897 = vadd.xlane.f32.xlu0 %v6896
    %v6898 = vpop.xlane.xlu0 %6897
    %v6899 = vmul.f32 %v6895, %v1771
    %v6900 = vmul.f32 %v6898, %v1771
    %v6901 = vsub.f32 %v6887, %v6899
    %v6902 = vsub.f32 %v6888, %v6900
    %v6903 = vmul.f32 %v6901, %v6901
    %v6904 = vmul.f32 %v6902, %v6902
    %v6905 = vsel %vm226, %v6903, 0.0
    %6906 = vadd.xlane.f32.xlu0 %v6905
    %v6907 = vpop.xlane.xlu0 %6906
    %v6908 = vsel %vm226, %v6904, 0.0
    %6909 = vadd.xlane.f32.xlu0 %v6908
    %v6910 = vpop.xlane.xlu0 %6909
    %v6911 = vmul.f32 %v6907, %v1771
    %v6912 = vmul.f32 %v6910, %v1771
    %v6913 = vadd.f32 %v6911, 1e-05
    %v6914 = vadd.f32 %v6912, 1e-05
    %v6915 = vrsqrt.pop %v6913
    %v6916 = vmul.f32 %v6915, %v6913
    %v6917 = vmul.f32 %v6916, %v6915
    %v6918 = vmul.f32 0.5, %v6917
    %v6919 = vsub.f32 1.5, %v6918
    %v6920 = vmul.f32 %v6915, %v6919
    %vm6921 = vweird.f32 %v6913
    %vm6922 = vweird.f32 %v6915
    %vm6923 = vmor %vm6921, %vm6922
    %v6924 = vsel %vm6923, %v6915, %v6920
    %v6925 = vrsqrt.pop %v6914
    %v6926 = vmul.f32 %v6925, %v6914
    %v6927 = vmul.f32 %v6926, %v6925
    %v6928 = vmul.f32 0.5, %v6927
    %v6929 = vsub.f32 1.5, %v6928
    %v6930 = vmul.f32 %v6925, %v6929
    %vm6931 = vweird.f32 %v6914
    %vm6932 = vweird.f32 %v6925
    %vm6933 = vmor %vm6931, %vm6932
    %v6934 = vsel %vm6933, %v6925, %v6930
    %v6935 = vmul.f32 %v6901, %v6924
    %v6936 = vmul.f32 %v6902, %v6934
    %v6938 = vperm.slane %v6890, 0
    %v6940 = vmul.f32 %v6935, %v6938
    %v6941 = vmul.f32 %v6936, %v6938
    %v6943 = vperm.slane %v6892, 0
    %v6945 = vadd.f32 %v6940, %v6943
    %v6946 = vadd.f32 %v6941, %v6943
    %6947 = vst.msk [vmem:[#allocation17] sm:$0xff] %vm226, %v6945
    %6948 = vst.msk [vmem:[#allocation17 + $0x8] sm:$0xff] %vm226, %v6946
    // Predicated region
    $region130: #{tpu_custom_call.1} parent=1 // pred_check
      _
    $region131: #{tpu_custom_call.1} parent=1 // pred_check_branch
      %6950 = sbr.rel (0) target = $region133
    $region132: #{tpu_custom_call.1} parent=1 // pred_region
      %6952 = vsyncadd [#allocation4], 0
      %s6953 = sshll.u32 [#allocation17], 4
      %s6954 = int_to_ptr.vmem [resolvable:$true] %s6953
      %s6955 = sshll.u32 %s23, 4
      %s6956 = int_to_ptr.hbm [resolvable:$true] %s6955
      %6961 = dma.vmem_to_hbm [thread:$0]  %s6954, 256, %s6956, [#allocation4], 128, 128, 8
    $region133: #{tpu_custom_call.1} parent=1 // pred_fallthru
      _
    // Predicated region
    $region134: #{tpu_custom_call.1} parent=1 // pred_check
      _
    $region135: #{tpu_custom_call.1} parent=1 // pred_check_branch
      %6963 = sbr.rel (0) target = $region137
    $region136: #{tpu_custom_call.1} parent=1 // pred_region
      %6965 = dma.done [#allocation4], 256
    $region137: #{tpu_custom_call.1} parent=1 // pred_fallthru
      _
    %6966 = vsyncpa [#allocation3], 1
    %6967 = vsyncpa [#allocation6], 1
    %6968 = vsyncpa [#allocation9], 1
    %6969 = vsyncpa [#allocation12], 1
    %6970 = vsyncpa [#allocation15], 1
    %6971 = vsyncpa [#allocation4], 1

</llo_original>
